<compile_context>
chip_gen: v7x
topology: tpu7x:2x2x1
jax: 0.10.0
libtpu: 0.0.40
codegen_flags: <defaults>
</compile_context>

<pallas_src>
import functools

import jax
import jax.numpy as jnp
import numpy as np
from jax import lax
from jax.experimental import pallas as pl
from jax.experimental.pallas import tpu as pltpu


# -----------------------------------------------------------------------------
# In-kernel helpers (traced inside Pallas kernels)
# -----------------------------------------------------------------------------
def _silu(x):
    return x * jax.nn.sigmoid(x)


def _leaky(x):
    return jnp.where(x > 0.0, x, 0.01 * x)


def _layernorm(x, g, b, eps=1e-5):
    m = jnp.mean(x, axis=-1, keepdims=True)
    v = jnp.mean((x - m) ** 2, axis=-1, keepdims=True)
    return (x - m) * lax.rsqrt(v + eps) * g + b


# -----------------------------------------------------------------------------
# Fused conditioning kernels (time-embedding MLP + cond / jet branches + merge)
# -----------------------------------------------------------------------------
def _jet_cond_kernel(emb_ref, cff_ref,
                     we1_ref, be1_ref, we2_ref, be2_ref,
                     wc1_ref, bc1_ref, wc2_ref, bc2_ref,
                     wjt_ref, wjc_ref, bj_ref,
                     o_ref):
    f32 = jnp.float32
    dot = lambda a, w: jnp.dot(a, w, preferred_element_type=f32)
    t1 = _silu(dot(emb_ref[...], we1_ref[...]) + be1_ref[...])
    t_emb = _silu(dot(t1, we2_ref[...]) + be2_ref[...])
    c1 = dot(cff_ref[...], wc1_ref[...]) + bc1_ref[...]
    cd = _silu(dot(c1, wc2_ref[...]) + bc2_ref[...])
    # concat([t_emb, cd]) @ W  ==  t_emb @ W_top + cd @ W_bot   (no lane concat)
    pre = dot(t_emb, wjt_ref[...]) + dot(cd, wjc_ref[...]) + bj_ref[...]
    o_ref[...] = _silu(pre)


def jet_conditioning(emb, cond_ff, p):
    B = emb.shape[0]
    out_dim = p["jet_cond_b"].shape[1]
    return pl.pallas_call(
        _jet_cond_kernel,
        out_shape=jax.ShapeDtypeStruct((B, out_dim), jnp.float32),
    )(emb, cond_ff,
      p["emb_fc1_w"], p["emb_fc1_b"], p["emb_fc2_w"], p["emb_fc2_b"],
      p["cond_fc1_w"], p["cond_fc1_b"], p["cond_fc2_w"], p["cond_fc2_b"],
      p["jet_cond_wt"], p["jet_cond_wc"], p["jet_cond_b"])


def _part_cond_kernel(emb_ref, jet_ref, cff_ref,
                      we1_ref, be1_ref, we2_ref, be2_ref,
                      wj1_ref, bj1_ref, wj2_ref, bj2_ref,
                      wc1_ref, bc1_ref, wc2_ref, bc2_ref,
                      wgt_ref, wgj_ref, wgc_ref, bg_ref,
                      o_ref):
    f32 = jnp.float32
    dot = lambda a, w: jnp.dot(a, w, preferred_element_type=f32)
    t1 = _silu(dot(emb_ref[...], we1_ref[...]) + be1_ref[...])
    t_emb = _silu(dot(t1, we2_ref[...]) + be2_ref[...])
    j1 = dot(jet_ref[...], wj1_ref[...]) + bj1_ref[...]
    jd = _silu(dot(j1, wj2_ref[...]) + bj2_ref[...])
    c1 = dot(cff_ref[...], wc1_ref[...]) + bc1_ref[...]
    cd = _silu(dot(c1, wc2_ref[...]) + bc2_ref[...])
    pre = (dot(t_emb, wgt_ref[...]) + dot(jd, wgj_ref[...])
           + dot(cd, wgc_ref[...]) + bg_ref[...])
    o_ref[...] = _silu(pre)


def part_conditioning(emb, jet, cond_ff, p):
    B = emb.shape[0]
    out_dim = p["graph_b"].shape[1]
    return pl.pallas_call(
        _part_cond_kernel,
        out_shape=jax.ShapeDtypeStruct((B, out_dim), jnp.float32),
    )(emb, jet, cond_ff,
      p["emb_fc1_w"], p["emb_fc1_b"], p["emb_fc2_w"], p["emb_fc2_b"],
      p["jet_fc1_w"], p["jet_fc1_b"], p["jet_fc2_w"], p["jet_fc2_b"],
      p["cond_fc1_w"], p["cond_fc1_b"], p["cond_fc2_w"], p["cond_fc2_b"],
      p["graph_wt"], p["graph_wj"], p["graph_wc"], p["graph_b"])


# -----------------------------------------------------------------------------
# Fully fused DeepSetsAtt kernel: encoder + 6 transformer layers + head
# -----------------------------------------------------------------------------
def _deepsets_kernel(
        # data
        x_ref,        # (M, F)  f32      M = B*N points
        cond_ref,     # (M, E)  f32      time-conditioning, pre-expanded per point
        bias_ref,     # (M, M)  f32      block-diagonal + key-mask additive bias
        maskf_ref,    # (M, 1)  f32      multiplicative output mask
        # encoder weights
        tw1_ref, tb1_ref, tw2_ref, tb2_ref,
        fw_ref, fb_ref,
        e1f_ref, e1t_ref, e1b_ref,
        e2w_ref, e2b_ref,
        # stacked per-layer transformer weights (leading dim = L)
        ln1g_ref, ln1b_ref, wqkv_ref, bqkv_ref, wo_ref, bo_ref,
        ln2g_ref, ln2b_ref, f1w_ref, f1b_ref, f2w_ref, f2b_ref,
        # epilogue
        lnfg_ref, lnfb_ref, o1w_ref, o1b_ref, o2w_ref, o2b_ref,
        # output
        out_ref,      # (M, F) f32
        *, num_heads):
    f32 = jnp.float32
    bf16 = jnp.bfloat16
    L = wqkv_ref.shape[0]
    P = wo_ref.shape[-1]
    H = num_heads
    Dh = P // H
    scale = 1.0 / float(np.sqrt(Dh))

    def mm(a, w):
        # bf16 MXU operands, f32 accumulate
        return jnp.dot(a.astype(bf16), w.astype(bf16), preferred_element_type=f32)

    x = x_ref[...].astype(f32)
    cond = cond_ref[...].astype(f32)
    attn_bias = bias_ref[...]

    # --- conditional time embedding (one row per point, no HBM round-trip) ---
    t1 = _leaky(mm(cond, tw1_ref[...]) + tb1_ref[...])          # (M, 2P)
    time = mm(t1, tw2_ref[...]) + tb2_ref[...]                  # (M, P)

    # --- point features + encoder fc1 (split feat/time blocks, no concat) ---
    feat = mm(x, fw_ref[...]) + fb_ref[...]                     # (M, P)
    h = _leaky(mm(feat, e1f_ref[...]) + mm(time, e1t_ref[...]) + e1b_ref[...])
    enc0 = mm(h, e2w_ref[...]) + e2b_ref[...]                   # (M, P)

    # --- transformer stack: fori_loop over stacked weights resident in VMEM ---
    def layer(l, enc):
        x1 = _layernorm(enc, ln1g_ref[l], ln1b_ref[l])
        qkv = mm(x1, wqkv_ref[l]) + bqkv_ref[l]                 # (M, 3P) fused QKV
        heads = []
        for hh in range(H):                                     # heads sliced on lanes
            q = qkv[:, hh * Dh:(hh + 1) * Dh]
            k = qkv[:, P + hh * Dh:P + (hh + 1) * Dh]
            v = qkv[:, 2 * P + hh * Dh:2 * P + (hh + 1) * Dh]
            s = lax.dot_general(q.astype(bf16), k.astype(bf16),
                                (((1,), (1,)), ((), ())),
                                preferred_element_type=f32) * scale
            s = s + attn_bias                                   # mask + block-diag
            s = s - jnp.max(s, axis=-1, keepdims=True)
            e = jnp.exp(s)
            pr = e * pl.reciprocal(jnp.sum(e, axis=-1, keepdims=True), approx=True)
            heads.append(jnp.dot(pr.astype(bf16), v.astype(bf16),
                                 preferred_element_type=f32))   # (M, Dh)
        o = jnp.concatenate(heads, axis=-1)                     # (M, P)
        attn = mm(o, wo_ref[l]) + bo_ref[l]
        x2 = attn + enc                                         # residual (in-kernel)
        x3 = _layernorm(x2, ln2g_ref[l], ln2b_ref[l])
        y = jax.nn.gelu(mm(x3, f1w_ref[l]) + f1b_ref[l])
        y = jax.nn.gelu(mm(y, f2w_ref[l]) + f2b_ref[l])
        return y + x2                                           # residual (in-kernel)

    enc = lax.fori_loop(0, L, layer, enc0)

    # --- epilogue: final LN + output MLP + output mask ---
    rep = _layernorm(enc, lnfg_ref[...], lnfb_ref[...])
    o1 = _leaky(mm(rep, o1w_ref[...]) + o1b_ref[...])
    out = mm(o1, o2w_ref[...]) + o2b_ref[...]                   # (M, F)
    out_ref[...] = out * maskf_ref[...]


def deepsets_att(x, cond_emb, mask, p, num_heads=2):
    """Transformer deep-sets encoder, fused into a single pallas_call."""
    B, N, F = x.shape
    M = B * N
    x_flat = x.reshape(M, F).astype(jnp.float32)
    cond_bn = jnp.repeat(cond_emb.astype(jnp.float32), N, axis=0)       # (M, E)

    # Block-diagonal additive attention bias: a point may only attend to valid
    # (unmasked) points of its own set.  Built on the host; tiny at these sizes.
    batch_ids = jnp.repeat(jnp.arange(B, dtype=jnp.int32), N)
    same_batch = batch_ids[:, None] == batch_ids[None, :]
    if mask is None:
        key_ok = jnp.ones((M,), dtype=bool)
        mask_flat = jnp.ones((M, 1), jnp.float32)
    else:
        mask_flat = mask.reshape(M, 1).astype(jnp.float32)
        key_ok = mask_flat[:, 0] > 0.0
    attn_bias = jnp.where(same_batch & key_ok[None, :], 0.0, -1e9).astype(jnp.float32)

    out_flat = pl.pallas_call(
        functools.partial(_deepsets_kernel, num_heads=num_heads),
        out_shape=jax.ShapeDtypeStruct((M, F), jnp.float32),
        compiler_params=pltpu.CompilerParams(vmem_limit_bytes=32 * 1024 * 1024),
    )(
        x_flat, cond_bn, attn_bias, mask_flat,
        p["time_fc1_w"], p["time_fc1_b"], p["time_fc2_w"], p["time_fc2_b"],
        p["feat_fc_w"], p["feat_fc_b"],
        p["enc1_wf"], p["enc1_wt"], p["enc1_b"],
        p["enc2_w"], p["enc2_b"],
        p["ln1_g"], p["ln1_b"], p["wqkv"], p["bqkv"], p["wo"], p["bo"],
        p["ln2_g"], p["ln2_b"], p["ffn1_w"], p["ffn1_b"], p["ffn2_w"], p["ffn2_b"],
        p["lnf_g"], p["lnf_b"], p["out1_w"], p["out1_b"], p["out2_w"], p["out2_b"],
    )
    return out_flat.reshape(B, N, F)


# -----------------------------------------------------------------------------
# Plain-JAX glue: feature construction (mirrors the PyTorch helpers exactly)
# -----------------------------------------------------------------------------
def gaussian_fourier_projection(num_embed):
    half = num_embed // 2
    emb = np.log(10000.0) / (half - 1)
    freq = np.exp(-emb * np.arange(half, dtype=np.float32))
    return jnp.asarray(freq, dtype=jnp.float32)


def base_embedding(t, projection):
    angle = t * projection[None, :] * 1000.0
    return jnp.concatenate([jnp.sin(angle), jnp.cos(angle)], axis=-1)


def ff_features(x, min_proj=4, max_proj=8):
    if x.ndim == 1:
        x = x[:, None]
    x = x.astype(jnp.float32)
    num_freq = max_proj - min_proj
    d = x.shape[-1]
    freq = (2.0 ** np.arange(min_proj, max_proj, dtype=np.float32)) * 2.0 * np.pi
    h = jnp.tile(x, (1, num_freq))
    f = jnp.tile(jnp.asarray(freq, jnp.float32)[None, :], (1, d))
    angle = h * f
    return jnp.concatenate([x, jnp.sin(angle), jnp.cos(angle)], axis=-1)


# -----------------------------------------------------------------------------
# ModelJet / ModelPart / GSGM forward
# -----------------------------------------------------------------------------
def model_jet_forward(jet, t, cond, p, projection):
    emb = base_embedding(t, projection)
    cond_ff = ff_features(cond)
    jet_cond = jet_conditioning(emb, cond_ff, p)
    out = deepsets_att(jet, jet_cond, None, p["att"])
    if out.shape[1] == 1:            # torch .squeeze(1) semantics
        out = out[:, 0]
    return out


def model_part_forward(part, t, jet, cond, mask, p, projection):
    emb = base_embedding(t, projection)
    cond_ff = ff_features(cond)
    graph_cond = part_conditioning(emb, jet, cond_ff, p)
    return deepsets_att(part, graph_cond, mask, p["att"])


def gsgm_forward(part, jet, cond, mask, t, params):
    projection = params["projection"]
    jet_pred = model_jet_forward(jet, t, cond, params["jet"], projection)

    B, _, N, F = part.shape
    part_r = part.reshape(-1, N, F)
    mask_r = mask.reshape(-1, N, 1)
    jet_r = jet.reshape(-1, jet.shape[-1])
    cond_r = jnp.tile(cond[:, None, :], (1, 2, 1)).reshape(-1, 1)
    t_r = jnp.tile(t, (2, 1))

    part_pred = model_part_forward(part_r, t_r, jet_r, cond_r, mask_r,
                                   params["part"], projection)
    return jet_pred, part_pred


# -----------------------------------------------------------------------------
# Deterministic parameter initialization (synthetic, not a checkpoint load)
# -----------------------------------------------------------------------------
def _init_linear(key, fan_in, fan_out, w_dtype=jnp.float32):
    k1, k2 = jax.random.split(key)
    w = (jax.random.normal(k1, (fan_in, fan_out), jnp.float32)
         / np.sqrt(float(fan_in))).astype(w_dtype)
    b = 0.01 * jax.random.normal(k2, (1, fan_out), jnp.float32)
    return w, b


def _init_deepsets_att(key, num_feat, emb_dim, proj=128, num_transformer=6):
    wdt = jnp.bfloat16  # MXU-facing weights stored in bf16 (halves DMA bytes)
    keys = jax.random.split(key, 8 + num_transformer)
    p = {}
    p["time_fc1_w"], p["time_fc1_b"] = _init_linear(keys[0], emb_dim, 2 * proj, wdt)
    p["time_fc2_w"], p["time_fc2_b"] = _init_linear(keys[1], 2 * proj, proj, wdt)
    p["feat_fc_w"], p["feat_fc_b"] = _init_linear(keys[2], num_feat, proj, wdt)
    # enc_fc1 split into feat-block / time-block (avoids concat in the kernel)
    p["enc1_wf"], p["enc1_b"] = _init_linear(keys[3], proj, proj, wdt)
    p["enc1_wt"], _ = _init_linear(keys[4], proj, proj, wdt)
    p["enc2_w"], p["enc2_b"] = _init_linear(keys[5], proj, proj, wdt)
    p["out1_w"], p["out1_b"] = _init_linear(keys[6], proj, 2 * proj, wdt)
    p["out2_w"], p["out2_b"] = _init_linear(keys[7], 2 * proj, num_feat, wdt)
    p["lnf_g"] = jnp.ones((1, proj), jnp.float32)
    p["lnf_b"] = jnp.zeros((1, proj), jnp.float32)

    acc = {k: [] for k in ("ln1_g", "ln1_b", "wqkv", "bqkv", "wo", "bo",
                           "ln2_g", "ln2_b", "ffn1_w", "ffn1_b", "ffn2_w", "ffn2_b")}
    for i in range(num_transformer):
        lk = jax.random.split(keys[8 + i], 6)
        wq, bq = _init_linear(lk[0], proj, proj, wdt)
        wk, bk = _init_linear(lk[1], proj, proj, wdt)
        wv, bv = _init_linear(lk[2], proj, proj, wdt)
        wo, bo = _init_linear(lk[3], proj, proj, wdt)
        w1, b1 = _init_linear(lk[4], proj, 4 * proj, wdt)
        w2, b2 = _init_linear(lk[5], 4 * proj, proj, wdt)
        acc["ln1_g"].append(jnp.ones((1, proj), jnp.float32))
        acc["ln1_b"].append(jnp.zeros((1, proj), jnp.float32))
        acc["ln2_g"].append(jnp.ones((1, proj), jnp.float32))
        acc["ln2_b"].append(jnp.zeros((1, proj), jnp.float32))
        acc["wqkv"].append(jnp.concatenate([wq, wk, wv], axis=1))   # fused QKV
        acc["bqkv"].append(jnp.concatenate([bq, bk, bv], axis=1))
        acc["wo"].append(wo)
        acc["bo"].append(bo)
        acc["ffn1_w"].append(w1)
        acc["ffn1_b"].append(b1)
        acc["ffn2_w"].append(w2)
        acc["ffn2_b"].append(b2)
    for k, v in acc.items():
        p[k] = jnp.stack(v, axis=0)
    return p


def _init_model_jet(key, num_jet, num_cond, num_embed):
    keys = jax.random.split(key, 7)
    p = {}
    p["emb_fc1_w"], p["emb_fc1_b"] = _init_linear(keys[0], num_embed, 2 * num_embed)
    p["emb_fc2_w"], p["emb_fc2_b"] = _init_linear(keys[1], 2 * num_embed, num_embed)
    p["cond_fc1_w"], p["cond_fc1_b"] = _init_linear(keys[2], num_cond * 9, 2 * num_embed)
    p["cond_fc2_w"], p["cond_fc2_b"] = _init_linear(keys[3], 2 * num_embed, num_embed)
    # jet_cond_fc split by input block: [t_emb | cond_dense]
    p["jet_cond_wt"], p["jet_cond_b"] = _init_linear(keys[4], num_embed, 2 * num_embed)
    p["jet_cond_wc"], _ = _init_linear(keys[5], num_embed, 2 * num_embed)
    p["att"] = _init_deepsets_att(keys[6], num_feat=num_jet, emb_dim=2 * num_embed)
    return p


def _init_model_part(key, num_feat, num_jet, num_cond, num_embed):
    keys = jax.random.split(key, 10)
    p = {}
    p["emb_fc1_w"], p["emb_fc1_b"] = _init_linear(keys[0], num_embed, 2 * num_embed)
    p["emb_fc2_w"], p["emb_fc2_b"] = _init_linear(keys[1], 2 * num_embed, num_embed)
    p["jet_fc1_w"], p["jet_fc1_b"] = _init_linear(keys[2], num_jet, 2 * num_embed)
    p["jet_fc2_w"], p["jet_fc2_b"] = _init_linear(keys[3], 2 * num_embed, num_embed)
    p["cond_fc1_w"], p["cond_fc1_b"] = _init_linear(keys[4], num_cond * 9, 2 * num_embed)
    p["cond_fc2_w"], p["cond_fc2_b"] = _init_linear(keys[5], 2 * num_embed, num_embed)
    # graph_fc split by input block: [t_emb | jet_dense | cond_dense]
    p["graph_wt"], p["graph_b"] = _init_linear(keys[6], num_embed, 3 * num_embed)
    p["graph_wj"], _ = _init_linear(keys[7], num_embed, 3 * num_embed)
    p["graph_wc"], _ = _init_linear(keys[8], num_embed, 3 * num_embed)
    p["att"] = _init_deepsets_att(keys[9], num_feat=num_feat, emb_dim=3 * num_embed)
    return p


def init_gsgm_params(key, config):
    kj, kp = jax.random.split(key)
    return {
        "projection": gaussian_fourier_projection(config["EMBED"]),
        "jet": _init_model_jet(kj, config["NUM_JET"], config["NUM_COND"], config["EMBED"]),
        "part": _init_model_part(kp, config["NUM_FEAT"], config["NUM_JET"],
                                 config["NUM_COND"], config["EMBED"]),
    }


# -----------------------------------------------------------------------------
# Main
# -----------------------------------------------------------------------------
if __name__ == "__main__":
    config = {"NUM_FEAT": 3, "NUM_JET": 4, "NUM_COND": 1, "EMBED": 32,
              "MAX_STEPS": 512, "NORM": "mean"}
    B, N = 2, 8  # batch, particles per jet (npart kept small)

    key = jax.random.PRNGKey(0)
    kpart, kjet, kcond, kmask, kt, kparams = jax.random.split(key, 6)

    part = jax.random.normal(kpart, (B, 2, N, config["NUM_FEAT"]), jnp.float32)
    jet = jax.random.normal(kjet, (B, 2, config["NUM_JET"]), jnp.float32)
    cond = jax.random.normal(kcond, (B, config["NUM_COND"]), jnp.float32)
    mask = (jax.random.uniform(kmask, (B, 2, N, 1)) > 0.3).astype(jnp.float32)
    t = jax.random.uniform(kt, (B, 1), dtype=jnp.float32)

    params = init_gsgm_params(kparams, config)

    fwd = jax.jit(gsgm_forward)
    jet_pred, part_pred = fwd(part, jet, cond, mask, t, params)
    jax.block_until_ready((jet_pred, part_pred))

    assert jet_pred.shape == (B, 2, config["NUM_JET"])
    assert part_pred.shape == (2 * B, N, config["NUM_FEAT"])
    assert bool(jnp.all(jnp.isfinite(jet_pred))) and bool(jnp.all(jnp.isfinite(part_pred)))
    print("KERNEL_OK")
</pallas_src>

<mosaic_0001>
module attributes {stable_mosaic.version = 11 : i64} {
  func.func @_part_cond_kernel(%arg0: memref<4x32xf32, #tpu.memory_space<vmem>>, %arg1: memref<4x4xf32, #tpu.memory_space<vmem>>, %arg2: memref<4x9xf32, #tpu.memory_space<vmem>>, %arg3: memref<32x64xf32, #tpu.memory_space<vmem>>, %arg4: memref<1x64xf32, #tpu.memory_space<vmem>>, %arg5: memref<64x32xf32, #tpu.memory_space<vmem>>, %arg6: memref<1x32xf32, #tpu.memory_space<vmem>>, %arg7: memref<4x64xf32, #tpu.memory_space<vmem>>, %arg8: memref<1x64xf32, #tpu.memory_space<vmem>>, %arg9: memref<64x32xf32, #tpu.memory_space<vmem>>, %arg10: memref<1x32xf32, #tpu.memory_space<vmem>>, %arg11: memref<9x64xf32, #tpu.memory_space<vmem>>, %arg12: memref<1x64xf32, #tpu.memory_space<vmem>>, %arg13: memref<64x32xf32, #tpu.memory_space<vmem>>, %arg14: memref<1x32xf32, #tpu.memory_space<vmem>>, %arg15: memref<32x96xf32, #tpu.memory_space<vmem>>, %arg16: memref<32x96xf32, #tpu.memory_space<vmem>>, %arg17: memref<32x96xf32, #tpu.memory_space<vmem>>, %arg18: memref<1x96xf32, #tpu.memory_space<vmem>>, %arg19: memref<4x96xf32, #tpu.memory_space<vmem>>) attributes {dimension_semantics = [], scalar_prefetch = 0 : i64, scratch_operands = 0 : i64, tpu.core_type = #tpu.core_type<tc>} {
    %c0 = arith.constant 0 : index
    %c0_0 = arith.constant 0 : index
    %0 = vector.load %arg0[%c0, %c0_0] : memref<4x32xf32, #tpu.memory_space<vmem>>, vector<4x32xf32>
    %c0_1 = arith.constant 0 : index
    %c0_2 = arith.constant 0 : index
    %1 = vector.load %arg3[%c0_1, %c0_2] : memref<32x64xf32, #tpu.memory_space<vmem>>, vector<32x64xf32>
    %cst = arith.constant dense<0.000000e+00> : vector<4x64xf32>
    %2 = tpu.matmul %0, %1, %cst {dimension_numbers = #tpu.dot_dimension_numbers<[1], [0], [0], [1], [0, 0, 1, 1], [], []>} : vector<4x32xf32>, vector<32x64xf32>, vector<4x64xf32> -> vector<4x64xf32>
    %c0_3 = arith.constant 0 : index
    %c0_4 = arith.constant 0 : index
    %3 = vector.load %arg4[%c0_3, %c0_4] : memref<1x64xf32, #tpu.memory_space<vmem>>, vector<1x64xf32>
    %4 = vector.broadcast %3 : vector<1x64xf32> to vector<4x64xf32>
    %5 = arith.addf %2, %4 : vector<4x64xf32>
    %6 = arith.negf %5 : vector<4x64xf32>
    %7 = math.exp %6 : vector<4x64xf32>
    %cst_5 = arith.constant 1.000000e+00 : f32
    %8 = vector.broadcast %cst_5 : f32 to vector<4x64xf32>
    %9 = arith.addf %8, %7 : vector<4x64xf32>
    %10 = arith.divf %8, %9 : vector<4x64xf32>
    %11 = arith.mulf %5, %10 : vector<4x64xf32>
    %c0_6 = arith.constant 0 : index
    %c0_7 = arith.constant 0 : index
    %12 = vector.load %arg5[%c0_6, %c0_7] : memref<64x32xf32, #tpu.memory_space<vmem>>, vector<64x32xf32>
    %cst_8 = arith.constant dense<0.000000e+00> : vector<4x32xf32>
    %13 = tpu.matmul %11, %12, %cst_8 {dimension_numbers = #tpu.dot_dimension_numbers<[1], [0], [0], [1], [0, 0, 1, 1], [], []>} : vector<4x64xf32>, vector<64x32xf32>, vector<4x32xf32> -> vector<4x32xf32>
    %c0_9 = arith.constant 0 : index
    %c0_10 = arith.constant 0 : index
    %14 = vector.load %arg6[%c0_9, %c0_10] : memref<1x32xf32, #tpu.memory_space<vmem>>, vector<1x32xf32>
    %15 = vector.broadcast %14 : vector<1x32xf32> to vector<4x32xf32>
    %16 = arith.addf %13, %15 : vector<4x32xf32>
    %17 = arith.negf %16 : vector<4x32xf32>
    %18 = math.exp %17 : vector<4x32xf32>
    %cst_11 = arith.constant 1.000000e+00 : f32
    %19 = vector.broadcast %cst_11 : f32 to vector<4x32xf32>
    %20 = arith.addf %19, %18 : vector<4x32xf32>
    %21 = arith.divf %19, %20 : vector<4x32xf32>
    %22 = arith.mulf %16, %21 : vector<4x32xf32>
    %c0_12 = arith.constant 0 : index
    %c0_13 = arith.constant 0 : index
    %23 = vector.load %arg1[%c0_12, %c0_13] : memref<4x4xf32, #tpu.memory_space<vmem>>, vector<4x4xf32>
    %c0_14 = arith.constant 0 : index
    %c0_15 = arith.constant 0 : index
    %24 = vector.load %arg7[%c0_14, %c0_15] : memref<4x64xf32, #tpu.memory_space<vmem>>, vector<4x64xf32>
    %cst_16 = arith.constant dense<0.000000e+00> : vector<4x64xf32>
    %25 = tpu.matmul %23, %24, %cst_16 {dimension_numbers = #tpu.dot_dimension_numbers<[1], [0], [0], [1], [0, 0, 1, 1], [], []>} : vector<4x4xf32>, vector<4x64xf32>, vector<4x64xf32> -> vector<4x64xf32>
    %c0_17 = arith.constant 0 : index
    %c0_18 = arith.constant 0 : index
    %26 = vector.load %arg8[%c0_17, %c0_18] : memref<1x64xf32, #tpu.memory_space<vmem>>, vector<1x64xf32>
    %27 = vector.broadcast %26 : vector<1x64xf32> to vector<4x64xf32>
    %28 = arith.addf %25, %27 : vector<4x64xf32>
    %c0_19 = arith.constant 0 : index
    %c0_20 = arith.constant 0 : index
    %29 = vector.load %arg9[%c0_19, %c0_20] : memref<64x32xf32, #tpu.memory_space<vmem>>, vector<64x32xf32>
    %cst_21 = arith.constant dense<0.000000e+00> : vector<4x32xf32>
    %30 = tpu.matmul %28, %29, %cst_21 {dimension_numbers = #tpu.dot_dimension_numbers<[1], [0], [0], [1], [0, 0, 1, 1], [], []>} : vector<4x64xf32>, vector<64x32xf32>, vector<4x32xf32> -> vector<4x32xf32>
    %c0_22 = arith.constant 0 : index
    %c0_23 = arith.constant 0 : index
    %31 = vector.load %arg10[%c0_22, %c0_23] : memref<1x32xf32, #tpu.memory_space<vmem>>, vector<1x32xf32>
    %32 = vector.broadcast %31 : vector<1x32xf32> to vector<4x32xf32>
    %33 = arith.addf %30, %32 : vector<4x32xf32>
    %34 = arith.negf %33 : vector<4x32xf32>
    %35 = math.exp %34 : vector<4x32xf32>
    %cst_24 = arith.constant 1.000000e+00 : f32
    %36 = vector.broadcast %cst_24 : f32 to vector<4x32xf32>
    %37 = arith.addf %36, %35 : vector<4x32xf32>
    %38 = arith.divf %36, %37 : vector<4x32xf32>
    %39 = arith.mulf %33, %38 : vector<4x32xf32>
    %c0_25 = arith.constant 0 : index
    %c0_26 = arith.constant 0 : index
    %40 = vector.load %arg2[%c0_25, %c0_26] : memref<4x9xf32, #tpu.memory_space<vmem>>, vector<4x9xf32>
    %c0_27 = arith.constant 0 : index
    %c0_28 = arith.constant 0 : index
    %41 = vector.load %arg11[%c0_27, %c0_28] : memref<9x64xf32, #tpu.memory_space<vmem>>, vector<9x64xf32>
    %cst_29 = arith.constant dense<0.000000e+00> : vector<4x64xf32>
    %42 = tpu.matmul %40, %41, %cst_29 {dimension_numbers = #tpu.dot_dimension_numbers<[1], [0], [0], [1], [0, 0, 1, 1], [], []>} : vector<4x9xf32>, vector<9x64xf32>, vector<4x64xf32> -> vector<4x64xf32>
    %c0_30 = arith.constant 0 : index
    %c0_31 = arith.constant 0 : index
    %43 = vector.load %arg12[%c0_30, %c0_31] : memref<1x64xf32, #tpu.memory_space<vmem>>, vector<1x64xf32>
    %44 = vector.broadcast %43 : vector<1x64xf32> to vector<4x64xf32>
    %45 = arith.addf %42, %44 : vector<4x64xf32>
    %c0_32 = arith.constant 0 : index
    %c0_33 = arith.constant 0 : index
    %46 = vector.load %arg13[%c0_32, %c0_33] : memref<64x32xf32, #tpu.memory_space<vmem>>, vector<64x32xf32>
    %cst_34 = arith.constant dense<0.000000e+00> : vector<4x32xf32>
    %47 = tpu.matmul %45, %46, %cst_34 {dimension_numbers = #tpu.dot_dimension_numbers<[1], [0], [0], [1], [0, 0, 1, 1], [], []>} : vector<4x64xf32>, vector<64x32xf32>, vector<4x32xf32> -> vector<4x32xf32>
    %c0_35 = arith.constant 0 : index
    %c0_36 = arith.constant 0 : index
    %48 = vector.load %arg14[%c0_35, %c0_36] : memref<1x32xf32, #tpu.memory_space<vmem>>, vector<1x32xf32>
    %49 = vector.broadcast %48 : vector<1x32xf32> to vector<4x32xf32>
    %50 = arith.addf %47, %49 : vector<4x32xf32>
    %51 = arith.negf %50 : vector<4x32xf32>
    %52 = math.exp %51 : vector<4x32xf32>
    %cst_37 = arith.constant 1.000000e+00 : f32
    %53 = vector.broadcast %cst_37 : f32 to vector<4x32xf32>
    %54 = arith.addf %53, %52 : vector<4x32xf32>
    %55 = arith.divf %53, %54 : vector<4x32xf32>
    %56 = arith.mulf %50, %55 : vector<4x32xf32>
    %c0_38 = arith.constant 0 : index
    %c0_39 = arith.constant 0 : index
    %57 = vector.load %arg15[%c0_38, %c0_39] : memref<32x96xf32, #tpu.memory_space<vmem>>, vector<32x96xf32>
    %cst_40 = arith.constant dense<0.000000e+00> : vector<4x96xf32>
    %58 = tpu.matmul %22, %57, %cst_40 {dimension_numbers = #tpu.dot_dimension_numbers<[1], [0], [0], [1], [0, 0, 1, 1], [], []>} : vector<4x32xf32>, vector<32x96xf32>, vector<4x96xf32> -> vector<4x96xf32>
    %c0_41 = arith.constant 0 : index
    %c0_42 = arith.constant 0 : index
    %59 = vector.load %arg16[%c0_41, %c0_42] : memref<32x96xf32, #tpu.memory_space<vmem>>, vector<32x96xf32>
    %cst_43 = arith.constant dense<0.000000e+00> : vector<4x96xf32>
    %60 = tpu.matmul %39, %59, %cst_43 {dimension_numbers = #tpu.dot_dimension_numbers<[1], [0], [0], [1], [0, 0, 1, 1], [], []>} : vector<4x32xf32>, vector<32x96xf32>, vector<4x96xf32> -> vector<4x96xf32>
    %61 = arith.addf %58, %60 : vector<4x96xf32>
    %c0_44 = arith.constant 0 : index
    %c0_45 = arith.constant 0 : index
    %62 = vector.load %arg17[%c0_44, %c0_45] : memref<32x96xf32, #tpu.memory_space<vmem>>, vector<32x96xf32>
    %cst_46 = arith.constant dense<0.000000e+00> : vector<4x96xf32>
    %63 = tpu.matmul %56, %62, %cst_46 {dimension_numbers = #tpu.dot_dimension_numbers<[1], [0], [0], [1], [0, 0, 1, 1], [], []>} : vector<4x32xf32>, vector<32x96xf32>, vector<4x96xf32> -> vector<4x96xf32>
    %64 = arith.addf %61, %63 : vector<4x96xf32>
    %c0_47 = arith.constant 0 : index
    %c0_48 = arith.constant 0 : index
    %65 = vector.load %arg18[%c0_47, %c0_48] : memref<1x96xf32, #tpu.memory_space<vmem>>, vector<1x96xf32>
    %66 = vector.broadcast %65 : vector<1x96xf32> to vector<4x96xf32>
    %67 = arith.addf %64, %66 : vector<4x96xf32>
    %68 = arith.negf %67 : vector<4x96xf32>
    %69 = math.exp %68 : vector<4x96xf32>
    %cst_49 = arith.constant 1.000000e+00 : f32
    %70 = vector.broadcast %cst_49 : f32 to vector<4x96xf32>
    %71 = arith.addf %70, %69 : vector<4x96xf32>
    %72 = arith.divf %70, %71 : vector<4x96xf32>
    %73 = arith.mulf %67, %72 : vector<4x96xf32>
    %c0_50 = arith.constant 0 : index
    %c0_51 = arith.constant 0 : index
    %74 = vector.load %arg19[%c0_50, %c0_51] : memref<4x96xf32, #tpu.memory_space<vmem>>, vector<4x96xf32>
    tpu.vector_store %arg19[%c0_50, %c0_51], %73 {strides = array<i32>} : memref<4x96xf32, #tpu.memory_space<vmem>>, vector<4x96xf32>,
    return
  }
}

module attributes {stable_mosaic.version = 11 : i64} {
  func.func @_deepsets_kernel(%arg0: memref<32x3xf32, #tpu.memory_space<vmem>>, %arg1: memref<32x96xf32, #tpu.memory_space<vmem>>, %arg2: memref<32x32xf32, #tpu.memory_space<vmem>>, %arg3: memref<32x1xf32, #tpu.memory_space<vmem>>, %arg4: memref<96x256xbf16, #tpu.memory_space<vmem>>, %arg5: memref<1x256xf32, #tpu.memory_space<vmem>>, %arg6: memref<256x128xbf16, #tpu.memory_space<vmem>>, %arg7: memref<1x128xf32, #tpu.memory_space<vmem>>, %arg8: memref<3x128xbf16, #tpu.memory_space<vmem>>, %arg9: memref<1x128xf32, #tpu.memory_space<vmem>>, %arg10: memref<128x128xbf16, #tpu.memory_space<vmem>>, %arg11: memref<128x128xbf16, #tpu.memory_space<vmem>>, %arg12: memref<1x128xf32, #tpu.memory_space<vmem>>, %arg13: memref<128x128xbf16, #tpu.memory_space<vmem>>, %arg14: memref<1x128xf32, #tpu.memory_space<vmem>>, %arg15: memref<6x1x128xf32, #tpu.memory_space<vmem>>, %arg16: memref<6x1x128xf32, #tpu.memory_space<vmem>>, %arg17: memref<6x128x384xbf16, #tpu.memory_space<vmem>>, %arg18: memref<6x1x384xf32, #tpu.memory_space<vmem>>, %arg19: memref<6x128x128xbf16, #tpu.memory_space<vmem>>, %arg20: memref<6x1x128xf32, #tpu.memory_space<vmem>>, %arg21: memref<6x1x128xf32, #tpu.memory_space<vmem>>, %arg22: memref<6x1x128xf32, #tpu.memory_space<vmem>>, %arg23: memref<6x128x512xbf16, #tpu.memory_space<vmem>>, %arg24: memref<6x1x512xf32, #tpu.memory_space<vmem>>, %arg25: memref<6x512x128xbf16, #tpu.memory_space<vmem>>, %arg26: memref<6x1x128xf32, #tpu.memory_space<vmem>>, %arg27: memref<1x128xf32, #tpu.memory_space<vmem>>, %arg28: memref<1x128xf32, #tpu.memory_space<vmem>>, %arg29: memref<128x256xbf16, #tpu.memory_space<vmem>>, %arg30: memref<1x256xf32, #tpu.memory_space<vmem>>, %arg31: memref<256x3xbf16, #tpu.memory_space<vmem>>, %arg32: memref<1x3xf32, #tpu.memory_space<vmem>>, %arg33: memref<32x3xf32, #tpu.memory_space<vmem>>) attributes {dimension_semantics = [], scalar_prefetch = 0 : i64, scratch_operands = 0 : i64, tpu.core_type = #tpu.core_type<tc>} {
    %c0 = arith.constant 0 : index
    %c0_0 = arith.constant 0 : index
    %0 = vector.load %arg0[%c0, %c0_0] : memref<32x3xf32, #tpu.memory_space<vmem>>, vector<32x3xf32>
    %c0_1 = arith.constant 0 : index
    %c0_2 = arith.constant 0 : index
    %1 = vector.load %arg1[%c0_1, %c0_2] : memref<32x96xf32, #tpu.memory_space<vmem>>, vector<32x96xf32>
    %c0_3 = arith.constant 0 : index
    %c0_4 = arith.constant 0 : index
    %2 = vector.load %arg2[%c0_3, %c0_4] : memref<32x32xf32, #tpu.memory_space<vmem>>, vector<32x32xf32>
    %c0_5 = arith.constant 0 : index
    %c0_6 = arith.constant 0 : index
    %3 = vector.load %arg4[%c0_5, %c0_6] : memref<96x256xbf16, #tpu.memory_space<vmem>>, vector<96x256xbf16>
    %4 = arith.truncf %1 : vector<32x96xf32> to vector<32x96xbf16>
    %cst = arith.constant dense<0.000000e+00> : vector<32x256xf32>
    %5 = tpu.matmul %4, %3, %cst {dimension_numbers = #tpu.dot_dimension_numbers<[1], [0], [0], [1], [0, 0, 1, 1], [], []>} : vector<32x96xbf16>, vector<96x256xbf16>, vector<32x256xf32> -> vector<32x256xf32>
    %c0_7 = arith.constant 0 : index
    %c0_8 = arith.constant 0 : index
    %6 = vector.load %arg5[%c0_7, %c0_8] : memref<1x256xf32, #tpu.memory_space<vmem>>, vector<1x256xf32>
    %7 = vector.broadcast %6 : vector<1x256xf32> to vector<32x256xf32>
    %8 = arith.addf %5, %7 : vector<32x256xf32>
    %cst_9 = arith.constant 0.000000e+00 : f32
    %9 = vector.broadcast %cst_9 : f32 to vector<32x256xf32>
    %10 = arith.cmpf ogt, %8, %9 : vector<32x256xf32>
    %cst_10 = arith.constant 0.00999999977 : f32
    %11 = vector.broadcast %cst_10 : f32 to vector<32x256xf32>
    %12 = arith.mulf %11, %8 : vector<32x256xf32>
    %13 = arith.select %10, %8, %12 : vector<32x256xi1>, vector<32x256xf32>
    %c0_11 = arith.constant 0 : index
    %c0_12 = arith.constant 0 : index
    %14 = vector.load %arg6[%c0_11, %c0_12] : memref<256x128xbf16, #tpu.memory_space<vmem>>, vector<256x128xbf16>
    %15 = arith.truncf %13 : vector<32x256xf32> to vector<32x256xbf16>
    %cst_13 = arith.constant dense<0.000000e+00> : vector<32x128xf32>
    %16 = tpu.matmul %15, %14, %cst_13 {dimension_numbers = #tpu.dot_dimension_numbers<[1], [0], [0], [1], [0, 0, 1, 1], [], []>} : vector<32x256xbf16>, vector<256x128xbf16>, vector<32x128xf32> -> vector<32x128xf32>
    %c0_14 = arith.constant 0 : index
    %c0_15 = arith.constant 0 : index
    %17 = vector.load %arg7[%c0_14, %c0_15] : memref<1x128xf32, #tpu.memory_space<vmem>>, vector<1x128xf32>
    %18 = vector.broadcast %17 : vector<1x128xf32> to vector<32x128xf32>
    %19 = arith.addf %16, %18 : vector<32x128xf32>
    %c0_16 = arith.constant 0 : index
    %c0_17 = arith.constant 0 : index
    %20 = vector.load %arg8[%c0_16, %c0_17] : memref<3x128xbf16, #tpu.memory_space<vmem>>, vector<3x128xbf16>
    %21 = arith.truncf %0 : vector<32x3xf32> to vector<32x3xbf16>
    %cst_18 = arith.constant dense<0.000000e+00> : vector<32x128xf32>
    %22 = tpu.matmul %21, %20, %cst_18 {dimension_numbers = #tpu.dot_dimension_numbers<[1], [0], [0], [1], [0, 0, 1, 1], [], []>} : vector<32x3xbf16>, vector<3x128xbf16>, vector<32x128xf32> -> vector<32x128xf32>
    %c0_19 = arith.constant 0 : index
    %c0_20 = arith.constant 0 : index
    %23 = vector.load %arg9[%c0_19, %c0_20] : memref<1x128xf32, #tpu.memory_space<vmem>>, vector<1x128xf32>
    %24 = vector.broadcast %23 : vector<1x128xf32> to vector<32x128xf32>
    %25 = arith.addf %22, %24 : vector<32x128xf32>
    %c0_21 = arith.constant 0 : index
    %c0_22 = arith.constant 0 : index
    %26 = vector.load %arg10[%c0_21, %c0_22] : memref<128x128xbf16, #tpu.memory_space<vmem>>, vector<128x128xbf16>
    %27 = arith.truncf %25 : vector<32x128xf32> to vector<32x128xbf16>
    %cst_23 = arith.constant dense<0.000000e+00> : vector<32x128xf32>
    %28 = tpu.matmul %27, %26, %cst_23 {dimension_numbers = #tpu.dot_dimension_numbers<[1], [0], [0], [1], [0, 0, 1, 1], [], []>} : vector<32x128xbf16>, vector<128x128xbf16>, vector<32x128xf32> -> vector<32x128xf32>
    %c0_24 = arith.constant 0 : index
    %c0_25 = arith.constant 0 : index
    %29 = vector.load %arg11[%c0_24, %c0_25] : memref<128x128xbf16, #tpu.memory_space<vmem>>, vector<128x128xbf16>
    %30 = arith.truncf %19 : vector<32x128xf32> to vector<32x128xbf16>
    %cst_26 = arith.constant dense<0.000000e+00> : vector<32x128xf32>
    %31 = tpu.matmul %30, %29, %cst_26 {dimension_numbers = #tpu.dot_dimension_numbers<[1], [0], [0], [1], [0, 0, 1, 1], [], []>} : vector<32x128xbf16>, vector<128x128xbf16>, vector<32x128xf32> -> vector<32x128xf32>
    %32 = arith.addf %28, %31 : vector<32x128xf32>
    %c0_27 = arith.constant 0 : index
    %c0_28 = arith.constant 0 : index
    %33 = vector.load %arg12[%c0_27, %c0_28] : memref<1x128xf32, #tpu.memory_space<vmem>>, vector<1x128xf32>
    %34 = vector.broadcast %33 : vector<1x128xf32> to vector<32x128xf32>
    %35 = arith.addf %32, %34 : vector<32x128xf32>
    %cst_29 = arith.constant 0.000000e+00 : f32
    %36 = vector.broadcast %cst_29 : f32 to vector<32x128xf32>
    %37 = arith.cmpf ogt, %35, %36 : vector<32x128xf32>
    %cst_30 = arith.constant 0.00999999977 : f32
    %38 = vector.broadcast %cst_30 : f32 to vector<32x128xf32>
    %39 = arith.mulf %38, %35 : vector<32x128xf32>
    %40 = arith.select %37, %35, %39 : vector<32x128xi1>, vector<32x128xf32>
    %c0_31 = arith.constant 0 : index
    %c0_32 = arith.constant 0 : index
    %41 = vector.load %arg13[%c0_31, %c0_32] : memref<128x128xbf16, #tpu.memory_space<vmem>>, vector<128x128xbf16>
    %42 = arith.truncf %40 : vector<32x128xf32> to vector<32x128xbf16>
    %cst_33 = arith.constant dense<0.000000e+00> : vector<32x128xf32>
    %43 = tpu.matmul %42, %41, %cst_33 {dimension_numbers = #tpu.dot_dimension_numbers<[1], [0], [0], [1], [0, 0, 1, 1], [], []>} : vector<32x128xbf16>, vector<128x128xbf16>, vector<32x128xf32> -> vector<32x128xf32>
    %c0_34 = arith.constant 0 : index
    %c0_35 = arith.constant 0 : index
    %44 = vector.load %arg14[%c0_34, %c0_35] : memref<1x128xf32, #tpu.memory_space<vmem>>, vector<1x128xf32>
    %45 = vector.broadcast %44 : vector<1x128xf32> to vector<32x128xf32>
    %46 = arith.addf %43, %45 : vector<32x128xf32>
    %c0_i32 = arith.constant 0 : i32
    %c6_i32 = arith.constant 6 : i32
    %47 = arith.addi %c0_i32, %c6_i32 : i32
    %c1_i32 = arith.constant 1 : i32
    %48 = scf.for %arg34 = %c0_i32 to %47 step %c1_i32 iter_args(%arg35 = %46) -> (vector<32x128xf32>)  : i32 {
      %94 = arith.index_cast %arg34 : i32 to index
      %c0_62 = arith.constant 0 : index
      %c0_63 = arith.constant 0 : index
      %95 = vector.load %arg15[%94, %c0_62, %c0_63] : memref<6x1x128xf32, #tpu.memory_space<vmem>>, vector<1x1x128xf32>
      %96 = vector.shape_cast %95 : vector<1x1x128xf32> to vector<1x128xf32>
      %97 = arith.index_cast %arg34 : i32 to index
      %c0_64 = arith.constant 0 : index
      %c0_65 = arith.constant 0 : index
      %98 = vector.load %arg16[%97, %c0_64, %c0_65] : memref<6x1x128xf32, #tpu.memory_space<vmem>>, vector<1x1x128xf32>
      %99 = vector.shape_cast %98 : vector<1x1x128xf32> to vector<1x128xf32>
      %cst_66 = arith.constant dense<0.000000e+00> : vector<32xf32>
      %100 = vector.multi_reduction <add>, %arg35, %cst_66 [1] : vector<32x128xf32> to vector<32xf32>
      %101 = vector.shape_cast %100 : vector<32xf32> to vector<32x1xf32>
      %cst_67 = arith.constant 1.280000e+02 : f32
      %102 = vector.broadcast %cst_67 : f32 to vector<32x1xf32>
      %103 = arith.divf %101, %102 : vector<32x1xf32>
      %104 = vector.broadcast %103 : vector<32x1xf32> to vector<32x128xf32>
      %105 = arith.subf %arg35, %104 : vector<32x128xf32>
      %106 = arith.mulf %105, %105 : vector<32x128xf32>
      %cst_68 = arith.constant dense<0.000000e+00> : vector<32xf32>
      %107 = vector.multi_reduction <add>, %106, %cst_68 [1] : vector<32x128xf32> to vector<32xf32>
      %108 = vector.shape_cast %107 : vector<32xf32> to vector<32x1xf32>
      %cst_69 = arith.constant 1.280000e+02 : f32
      %109 = vector.broadcast %cst_69 : f32 to vector<32x1xf32>
      %110 = arith.divf %108, %109 : vector<32x1xf32>
      %111 = vector.broadcast %103 : vector<32x1xf32> to vector<32x128xf32>
      %112 = arith.subf %arg35, %111 : vector<32x128xf32>
      %cst_70 = arith.constant 9.99999974E-6 : f32
      %113 = vector.broadcast %cst_70 : f32 to vector<32x1xf32>
      %114 = arith.addf %110, %113 : vector<32x1xf32>
      %115 = math.rsqrt %114 : vector<32x1xf32>
      %116 = vector.broadcast %115 : vector<32x1xf32> to vector<32x128xf32>
      %117 = arith.mulf %112, %116 : vector<32x128xf32>
      %118 = vector.broadcast %96 : vector<1x128xf32> to vector<32x128xf32>
      %119 = arith.mulf %117, %118 : vector<32x128xf32>
      %120 = vector.broadcast %99 : vector<1x128xf32> to vector<32x128xf32>
      %121 = arith.addf %119, %120 : vector<32x128xf32>
      %122 = arith.index_cast %arg34 : i32 to index
      %c0_71 = arith.constant 0 : index
      %c0_72 = arith.constant 0 : index
      %123 = vector.load %arg17[%122, %c0_71, %c0_72] : memref<6x128x384xbf16, #tpu.memory_space<vmem>>, vector<1x128x384xbf16>
      %124 = vector.shape_cast %123 : vector<1x128x384xbf16> to vector<128x384xbf16>
      %125 = arith.truncf %121 : vector<32x128xf32> to vector<32x128xbf16>
      %cst_73 = arith.constant dense<0.000000e+00> : vector<32x384xf32>
      %126 = tpu.matmul %125, %124, %cst_73 {dimension_numbers = #tpu.dot_dimension_numbers<[1], [0], [0], [1], [0, 0, 1, 1], [], []>} : vector<32x128xbf16>, vector<128x384xbf16>, vector<32x384xf32> -> vector<32x384xf32>
      %127 = arith.index_cast %arg34 : i32 to index
      %c0_74 = arith.constant 0 : index
      %c0_75 = arith.constant 0 : index
      %128 = vector.load %arg18[%127, %c0_74, %c0_75] : memref<6x1x384xf32, #tpu.memory_space<vmem>>, vector<1x1x384xf32>
      %129 = vector.shape_cast %128 : vector<1x1x384xf32> to vector<1x384xf32>
      %130 = vector.broadcast %129 : vector<1x384xf32> to vector<32x384xf32>
      %131 = arith.addf %126, %130 : vector<32x384xf32>
      %132 = vector.extract_strided_slice %131 {offsets = [0, 0], sizes = [32, 64], strides = [1, 1]} : vector<32x384xf32> to vector<32x64xf32>
      %133 = vector.extract_strided_slice %131 {offsets = [0, 128], sizes = [32, 64], strides = [1, 1]} : vector<32x384xf32> to vector<32x64xf32>
      %134 = vector.extract_strided_slice %131 {offsets = [0, 256], sizes = [32, 64], strides = [1, 1]} : vector<32x384xf32> to vector<32x64xf32>
      %135 = arith.truncf %132 : vector<32x64xf32> to vector<32x64xbf16>
      %136 = arith.truncf %133 : vector<32x64xf32> to vector<32x64xbf16>
      %cst_76 = arith.constant dense<0.000000e+00> : vector<32x32xf32>
      %137 = tpu.matmul %135, %136, %cst_76 {dimension_numbers = #tpu.dot_dimension_numbers<[1], [1], [0], [0], [0, 0, 1, 0], [], []>} : vector<32x64xbf16>, vector<32x64xbf16>, vector<32x32xf32> -> vector<32x32xf32>
      %cst_77 = arith.constant 1.250000e-01 : f32
      %138 = vector.broadcast %cst_77 : f32 to vector<32x32xf32>
      %139 = arith.mulf %137, %138 : vector<32x32xf32>
      %140 = arith.addf %139, %2 : vector<32x32xf32>
      %cst_78 = arith.constant dense<0xFF800000> : vector<32xf32>
      %141 = vector.multi_reduction <maximumf>, %140, %cst_78 [1] : vector<32x32xf32> to vector<32xf32>
      %142 = vector.shape_cast %141 : vector<32xf32> to vector<32x1xf32>
      %143 = vector.broadcast %142 : vector<32x1xf32> to vector<32x32xf32>
      %144 = arith.subf %140, %143 : vector<32x32xf32>
      %145 = math.exp %144 : vector<32x32xf32>
      %cst_79 = arith.constant dense<0.000000e+00> : vector<32xf32>
      %146 = vector.multi_reduction <add>, %145, %cst_79 [1] : vector<32x32xf32> to vector<32xf32>
      %147 = vector.shape_cast %146 : vector<32xf32> to vector<32x1xf32>
      %148 = tpu.reciprocal %147 {approx = true} : vector<32x1xf32> -> vector<32x1xf32>
      %149 = vector.broadcast %148 : vector<32x1xf32> to vector<32x32xf32>
      %150 = arith.mulf %145, %149 : vector<32x32xf32>
      %151 = arith.truncf %150 : vector<32x32xf32> to vector<32x32xbf16>
      %152 = arith.truncf %134 : vector<32x64xf32> to vector<32x64xbf16>
      %cst_80 = arith.constant dense<0.000000e+00> : vector<32x64xf32>
      %153 = tpu.matmul %151, %152, %cst_80 {dimension_numbers = #tpu.dot_dimension_numbers<[1], [0], [0], [1], [0, 0, 1, 1], [], []>} : vector<32x32xbf16>, vector<32x64xbf16>, vector<32x64xf32> -> vector<32x64xf32>
      %154 = vector.extract_strided_slice %131 {offsets = [0, 64], sizes = [32, 64], strides = [1, 1]} : vector<32x384xf32> to vector<32x64xf32>
      %155 = vector.extract_strided_slice %131 {offsets = [0, 192], sizes = [32, 64], strides = [1, 1]} : vector<32x384xf32> to vector<32x64xf32>
      %156 = vector.extract_strided_slice %131 {offsets = [0, 320], sizes = [32, 64], strides = [1, 1]} : vector<32x384xf32> to vector<32x64xf32>
      %157 = arith.truncf %154 : vector<32x64xf32> to vector<32x64xbf16>
      %158 = arith.truncf %155 : vector<32x64xf32> to vector<32x64xbf16>
      %cst_81 = arith.constant dense<0.000000e+00> : vector<32x32xf32>
      %159 = tpu.matmul %157, %158, %cst_81 {dimension_numbers = #tpu.dot_dimension_numbers<[1], [1], [0], [0], [0, 0, 1, 0], [], []>} : vector<32x64xbf16>, vector<32x64xbf16>, vector<32x32xf32> -> vector<32x32xf32>
      %cst_82 = arith.constant 1.250000e-01 : f32
      %160 = vector.broadcast %cst_82 : f32 to vector<32x32xf32>
      %161 = arith.mulf %159, %160 : vector<32x32xf32>
      %162 = arith.addf %161, %2 : vector<32x32xf32>
      %cst_83 = arith.constant dense<0xFF800000> : vector<32xf32>
      %163 = vector.multi_reduction <maximumf>, %162, %cst_83 [1] : vector<32x32xf32> to vector<32xf32>
      %164 = vector.shape_cast %163 : vector<32xf32> to vector<32x1xf32>
      %165 = vector.broadcast %164 : vector<32x1xf32> to vector<32x32xf32>
      %166 = arith.subf %162, %165 : vector<32x32xf32>
      %167 = math.exp %166 : vector<32x32xf32>
      %cst_84 = arith.constant dense<0.000000e+00> : vector<32xf32>
      %168 = vector.multi_reduction <add>, %167, %cst_84 [1] : vector<32x32xf32> to vector<32xf32>
      %169 = vector.shape_cast %168 : vector<32xf32> to vector<32x1xf32>
      %170 = tpu.reciprocal %169 {approx = true} : vector<32x1xf32> -> vector<32x1xf32>
      %171 = vector.broadcast %170 : vector<32x1xf32> to vector<32x32xf32>
      %172 = arith.mulf %167, %171 : vector<32x32xf32>
      %173 = arith.truncf %172 : vector<32x32xf32> to vector<32x32xbf16>
      %174 = arith.truncf %156 : vector<32x64xf32> to vector<32x64xbf16>
      %cst_85 = arith.constant dense<0.000000e+00> : vector<32x64xf32>
      %175 = tpu.matmul %173, %174, %cst_85 {dimension_numbers = #tpu.dot_dimension_numbers<[1], [0], [0], [1], [0, 0, 1, 1], [], []>} : vector<32x32xbf16>, vector<32x64xbf16>, vector<32x64xf32> -> vector<32x64xf32>
      %176 = tpu.concatenate %153, %175 in 1 : vector<32x64xf32>, vector<32x64xf32> -> vector<32x128xf32>
      %177 = arith.index_cast %arg34 : i32 to index
      %c0_86 = arith.constant 0 : index
      %c0_87 = arith.constant 0 : index
      %178 = vector.load %arg19[%177, %c0_86, %c0_87] : memref<6x128x128xbf16, #tpu.memory_space<vmem>>, vector<1x128x128xbf16>
      %179 = vector.shape_cast %178 : vector<1x128x128xbf16> to vector<128x128xbf16>
      %180 = arith.truncf %176 : vector<32x128xf32> to vector<32x128xbf16>
      %cst_88 = arith.constant dense<0.000000e+00> : vector<32x128xf32>
      %181 = tpu.matmul %180, %179, %cst_88 {dimension_numbers = #tpu.dot_dimension_numbers<[1], [0], [0], [1], [0, 0, 1, 1], [], []>} : vector<32x128xbf16>, vector<128x128xbf16>, vector<32x128xf32> -> vector<32x128xf32>
      %182 = arith.index_cast %arg34 : i32 to index
      %c0_89 = arith.constant 0 : index
      %c0_90 = arith.constant 0 : index
      %183 = vector.load %arg20[%182, %c0_89, %c0_90] : memref<6x1x128xf32, #tpu.memory_space<vmem>>, vector<1x1x128xf32>
      %184 = vector.shape_cast %183 : vector<1x1x128xf32> to vector<1x128xf32>
      %185 = vector.broadcast %184 : vector<1x128xf32> to vector<32x128xf32>
      %186 = arith.addf %181, %185 : vector<32x128xf32>
      %187 = arith.addf %186, %arg35 : vector<32x128xf32>
      %188 = arith.index_cast %arg34 : i32 to index
      %c0_91 = arith.constant 0 : index
      %c0_92 = arith.constant 0 : index
      %189 = vector.load %arg21[%188, %c0_91, %c0_92] : memref<6x1x128xf32, #tpu.memory_space<vmem>>, vector<1x1x128xf32>
      %190 = vector.shape_cast %189 : vector<1x1x128xf32> to vector<1x128xf32>
      %191 = arith.index_cast %arg34 : i32 to index
      %c0_93 = arith.constant 0 : index
      %c0_94 = arith.constant 0 : index
      %192 = vector.load %arg22[%191, %c0_93, %c0_94] : memref<6x1x128xf32, #tpu.memory_space<vmem>>, vector<1x1x128xf32>
      %193 = vector.shape_cast %192 : vector<1x1x128xf32> to vector<1x128xf32>
      %cst_95 = arith.constant dense<0.000000e+00> : vector<32xf32>
      %194 = vector.multi_reduction <add>, %187, %cst_95 [1] : vector<32x128xf32> to vector<32xf32>
      %195 = vector.shape_cast %194 : vector<32xf32> to vector<32x1xf32>
      %cst_96 = arith.constant 1.280000e+02 : f32
      %196 = vector.broadcast %cst_96 : f32 to vector<32x1xf32>
      %197 = arith.divf %195, %196 : vector<32x1xf32>
      %198 = vector.broadcast %197 : vector<32x1xf32> to vector<32x128xf32>
      %199 = arith.subf %187, %198 : vector<32x128xf32>
      %200 = arith.mulf %199, %199 : vector<32x128xf32>
      %cst_97 = arith.constant dense<0.000000e+00> : vector<32xf32>
      %201 = vector.multi_reduction <add>, %200, %cst_97 [1] : vector<32x128xf32> to vector<32xf32>
      %202 = vector.shape_cast %201 : vector<32xf32> to vector<32x1xf32>
      %cst_98 = arith.constant 1.280000e+02 : f32
      %203 = vector.broadcast %cst_98 : f32 to vector<32x1xf32>
      %204 = arith.divf %202, %203 : vector<32x1xf32>
      %205 = vector.broadcast %197 : vector<32x1xf32> to vector<32x128xf32>
      %206 = arith.subf %187, %205 : vector<32x128xf32>
      %cst_99 = arith.constant 9.99999974E-6 : f32
      %207 = vector.broadcast %cst_99 : f32 to vector<32x1xf32>
      %208 = arith.addf %204, %207 : vector<32x1xf32>
      %209 = math.rsqrt %208 : vector<32x1xf32>
      %210 = vector.broadcast %209 : vector<32x1xf32> to vector<32x128xf32>
      %211 = arith.mulf %206, %210 : vector<32x128xf32>
      %212 = vector.broadcast %190 : vector<1x128xf32> to vector<32x128xf32>
      %213 = arith.mulf %211, %212 : vector<32x128xf32>
      %214 = vector.broadcast %193 : vector<1x128xf32> to vector<32x128xf32>
      %215 = arith.addf %213, %214 : vector<32x128xf32>
      %216 = arith.index_cast %arg34 : i32 to index
      %c0_100 = arith.constant 0 : index
      %c0_101 = arith.constant 0 : index
      %217 = vector.load %arg23[%216, %c0_100, %c0_101] : memref<6x128x512xbf16, #tpu.memory_space<vmem>>, vector<1x128x512xbf16>
      %218 = vector.shape_cast %217 : vector<1x128x512xbf16> to vector<128x512xbf16>
      %219 = arith.truncf %215 : vector<32x128xf32> to vector<32x128xbf16>
      %cst_102 = arith.constant dense<0.000000e+00> : vector<32x512xf32>
      %220 = tpu.matmul %219, %218, %cst_102 {dimension_numbers = #tpu.dot_dimension_numbers<[1], [0], [0], [1], [0, 0, 1, 1], [], []>} : vector<32x128xbf16>, vector<128x512xbf16>, vector<32x512xf32> -> vector<32x512xf32>
      %221 = arith.index_cast %arg34 : i32 to index
      %c0_103 = arith.constant 0 : index
      %c0_104 = arith.constant 0 : index
      %222 = vector.load %arg24[%221, %c0_103, %c0_104] : memref<6x1x512xf32, #tpu.memory_space<vmem>>, vector<1x1x512xf32>
      %223 = vector.shape_cast %222 : vector<1x1x512xf32> to vector<1x512xf32>
      %224 = vector.broadcast %223 : vector<1x512xf32> to vector<32x512xf32>
      %225 = arith.addf %220, %224 : vector<32x512xf32>
      %226 = arith.mulf %225, %225 : vector<32x512xf32>
      %227 = arith.mulf %225, %226 : vector<32x512xf32>
      %cst_105 = arith.constant 4.471500e-02 : f32
      %228 = vector.broadcast %cst_105 : f32 to vector<32x512xf32>
      %229 = arith.mulf %228, %227 : vector<32x512xf32>
      %230 = arith.addf %225, %229 : vector<32x512xf32>
      %cst_106 = arith.constant 0.797884583 : f32
      %231 = vector.broadcast %cst_106 : f32 to vector<32x512xf32>
      %232 = arith.mulf %231, %230 : vector<32x512xf32>
      %233 = math.tanh %232 : vector<32x512xf32>
      %cst_107 = arith.constant 1.000000e+00 : f32
      %234 = vector.broadcast %cst_107 : f32 to vector<32x512xf32>
      %235 = arith.addf %234, %233 : vector<32x512xf32>
      %cst_108 = arith.constant 5.000000e-01 : f32
      %236 = vector.broadcast %cst_108 : f32 to vector<32x512xf32>
      %237 = arith.mulf %236, %235 : vector<32x512xf32>
      %238 = arith.mulf %225, %237 : vector<32x512xf32>
      %239 = arith.index_cast %arg34 : i32 to index
      %c0_109 = arith.constant 0 : index
      %c0_110 = arith.constant 0 : index
      %240 = vector.load %arg25[%239, %c0_109, %c0_110] : memref<6x512x128xbf16, #tpu.memory_space<vmem>>, vector<1x512x128xbf16>
      %241 = vector.shape_cast %240 : vector<1x512x128xbf16> to vector<512x128xbf16>
      %242 = arith.truncf %238 : vector<32x512xf32> to vector<32x512xbf16>
      %cst_111 = arith.constant dense<0.000000e+00> : vector<32x128xf32>
      %243 = tpu.matmul %242, %241, %cst_111 {dimension_numbers = #tpu.dot_dimension_numbers<[1], [0], [0], [1], [0, 0, 1, 1], [], []>} : vector<32x512xbf16>, vector<512x128xbf16>, vector<32x128xf32> -> vector<32x128xf32>
      %244 = arith.index_cast %arg34 : i32 to index
      %c0_112 = arith.constant 0 : index
      %c0_113 = arith.constant 0 : index
      %245 = vector.load %arg26[%244, %c0_112, %c0_113] : memref<6x1x128xf32, #tpu.memory_space<vmem>>, vector<1x1x128xf32>
      %246 = vector.shape_cast %245 : vector<1x1x128xf32> to vector<1x128xf32>
      %247 = vector.broadcast %246 : vector<1x128xf32> to vector<32x128xf32>
      %248 = arith.addf %243, %247 : vector<32x128xf32>
      %249 = arith.mulf %248, %248 : vector<32x128xf32>
      %250 = arith.mulf %248, %249 : vector<32x128xf32>
      %cst_114 = arith.constant 4.471500e-02 : f32
      %251 = vector.broadcast %cst_114 : f32 to vector<32x128xf32>
      %252 = arith.mulf %251, %250 : vector<32x128xf32>
      %253 = arith.addf %248, %252 : vector<32x128xf32>
      %cst_115 = arith.constant 0.797884583 : f32
      %254 = vector.broadcast %cst_115 : f32 to vector<32x128xf32>
      %255 = arith.mulf %254, %253 : vector<32x128xf32>
      %256 = math.tanh %255 : vector<32x128xf32>
      %cst_116 = arith.constant 1.000000e+00 : f32
      %257 = vector.broadcast %cst_116 : f32 to vector<32x128xf32>
      %258 = arith.addf %257, %256 : vector<32x128xf32>
      %cst_117 = arith.constant 5.000000e-01 : f32
      %259 = vector.broadcast %cst_117 : f32 to vector<32x128xf32>
      %260 = arith.mulf %259, %258 : vector<32x128xf32>
      %261 = arith.mulf %248, %260 : vector<32x128xf32>
      %262 = arith.addf %261, %187 : vector<32x128xf32>
      scf.yield %262 : vector<32x128xf32>
    }
    %c6_i32_36 = arith.constant 6 : i32
    %c0_37 = arith.constant 0 : index
    %c0_38 = arith.constant 0 : index
    %49 = vector.load %arg27[%c0_37, %c0_38] : memref<1x128xf32, #tpu.memory_space<vmem>>, vector<1x128xf32>
    %c0_39 = arith.constant 0 : index
    %c0_40 = arith.constant 0 : index
    %50 = vector.load %arg28[%c0_39, %c0_40] : memref<1x128xf32, #tpu.memory_space<vmem>>, vector<1x128xf32>
    %cst_41 = arith.constant dense<0.000000e+00> : vector<32xf32>
    %51 = vector.multi_reduction <add>, %48, %cst_41 [1] : vector<32x128xf32> to vector<32xf32>
    %52 = vector.shape_cast %51 : vector<32xf32> to vector<32x1xf32>
    %cst_42 = arith.constant 1.280000e+02 : f32
    %53 = vector.broadcast %cst_42 : f32 to vector<32x1xf32>
    %54 = arith.divf %52, %53 : vector<32x1xf32>
    %55 = vector.broadcast %54 : vector<32x1xf32> to vector<32x128xf32>
    %56 = arith.subf %48, %55 : vector<32x128xf32>
    %57 = arith.mulf %56, %56 : vector<32x128xf32>
    %cst_43 = arith.constant dense<0.000000e+00> : vector<32xf32>
    %58 = vector.multi_reduction <add>, %57, %cst_43 [1] : vector<32x128xf32> to vector<32xf32>
    %59 = vector.shape_cast %58 : vector<32xf32> to vector<32x1xf32>
    %cst_44 = arith.constant 1.280000e+02 : f32
    %60 = vector.broadcast %cst_44 : f32 to vector<32x1xf32>
    %61 = arith.divf %59, %60 : vector<32x1xf32>
    %62 = vector.broadcast %54 : vector<32x1xf32> to vector<32x128xf32>
    %63 = arith.subf %48, %62 : vector<32x128xf32>
    %cst_45 = arith.constant 9.99999974E-6 : f32
    %64 = vector.broadcast %cst_45 : f32 to vector<32x1xf32>
    %65 = arith.addf %61, %64 : vector<32x1xf32>
    %66 = math.rsqrt %65 : vector<32x1xf32>
    %67 = vector.broadcast %66 : vector<32x1xf32> to vector<32x128xf32>
    %68 = arith.mulf %63, %67 : vector<32x128xf32>
    %69 = vector.broadcast %49 : vector<1x128xf32> to vector<32x128xf32>
    %70 = arith.mulf %68, %69 : vector<32x128xf32>
    %71 = vector.broadcast %50 : vector<1x128xf32> to vector<32x128xf32>
    %72 = arith.addf %70, %71 : vector<32x128xf32>
    %c0_46 = arith.constant 0 : index
    %c0_47 = arith.constant 0 : index
    %73 = vector.load %arg29[%c0_46, %c0_47] : memref<128x256xbf16, #tpu.memory_space<vmem>>, vector<128x256xbf16>
    %74 = arith.truncf %72 : vector<32x128xf32> to vector<32x128xbf16>
    %cst_48 = arith.constant dense<0.000000e+00> : vector<32x256xf32>
    %75 = tpu.matmul %74, %73, %cst_48 {dimension_numbers = #tpu.dot_dimension_numbers<[1], [0], [0], [1], [0, 0, 1, 1], [], []>} : vector<32x128xbf16>, vector<128x256xbf16>, vector<32x256xf32> -> vector<32x256xf32>
    %c0_49 = arith.constant 0 : index
    %c0_50 = arith.constant 0 : index
    %76 = vector.load %arg30[%c0_49, %c0_50] : memref<1x256xf32, #tpu.memory_space<vmem>>, vector<1x256xf32>
    %77 = vector.broadcast %76 : vector<1x256xf32> to vector<32x256xf32>
    %78 = arith.addf %75, %77 : vector<32x256xf32>
    %cst_51 = arith.constant 0.000000e+00 : f32
    %79 = vector.broadcast %cst_51 : f32 to vector<32x256xf32>
    %80 = arith.cmpf ogt, %78, %79 : vector<32x256xf32>
    %cst_52 = arith.constant 0.00999999977 : f32
    %81 = vector.broadcast %cst_52 : f32 to vector<32x256xf32>
    %82 = arith.mulf %81, %78 : vector<32x256xf32>
    %83 = arith.select %80, %78, %82 : vector<32x256xi1>, vector<32x256xf32>
    %c0_53 = arith.constant 0 : index
    %c0_54 = arith.constant 0 : index
    %84 = vector.load %arg31[%c0_53, %c0_54] : memref<256x3xbf16, #tpu.memory_space<vmem>>, vector<256x3xbf16>
    %85 = arith.truncf %83 : vector<32x256xf32> to vector<32x256xbf16>
    %cst_55 = arith.constant dense<0.000000e+00> : vector<32x3xf32>
    %86 = tpu.matmul %85, %84, %cst_55 {dimension_numbers = #tpu.dot_dimension_numbers<[1], [0], [0], [1], [0, 0, 1, 1], [], []>} : vector<32x256xbf16>, vector<256x3xbf16>, vector<32x3xf32> -> vector<32x3xf32>
    %c0_56 = arith.constant 0 : index
    %c0_57 = arith.constant 0 : index
    %87 = vector.load %arg32[%c0_56, %c0_57] : memref<1x3xf32, #tpu.memory_space<vmem>>, vector<1x3xf32>
    %88 = vector.broadcast %87 : vector<1x3xf32> to vector<32x3xf32>
    %89 = arith.addf %86, %88 : vector<32x3xf32>
    %c0_58 = arith.constant 0 : index
    %c0_59 = arith.constant 0 : index
    %90 = vector.load %arg3[%c0_58, %c0_59] : memref<32x1xf32, #tpu.memory_space<vmem>>, vector<32x1xf32>
    %91 = vector.broadcast %90 : vector<32x1xf32> to vector<32x3xf32>
    %92 = arith.mulf %89, %91 : vector<32x3xf32>
    %c0_60 = arith.constant 0 : index
    %c0_61 = arith.constant 0 : index
    %93 = vector.load %arg33[%c0_60, %c0_61] : memref<32x3xf32, #tpu.memory_space<vmem>>, vector<32x3xf32>
    tpu.vector_store %arg33[%c0_60, %c0_61], %92 {strides = array<i32>} : memref<32x3xf32, #tpu.memory_space<vmem>>, vector<32x3xf32>,
    return
  }
}

module attributes {stable_mosaic.version = 11 : i64} {
  func.func @_jet_cond_kernel(%arg0: memref<2x32xf32, #tpu.memory_space<vmem>>, %arg1: memref<2x9xf32, #tpu.memory_space<vmem>>, %arg2: memref<32x64xf32, #tpu.memory_space<vmem>>, %arg3: memref<1x64xf32, #tpu.memory_space<vmem>>, %arg4: memref<64x32xf32, #tpu.memory_space<vmem>>, %arg5: memref<1x32xf32, #tpu.memory_space<vmem>>, %arg6: memref<9x64xf32, #tpu.memory_space<vmem>>, %arg7: memref<1x64xf32, #tpu.memory_space<vmem>>, %arg8: memref<64x32xf32, #tpu.memory_space<vmem>>, %arg9: memref<1x32xf32, #tpu.memory_space<vmem>>, %arg10: memref<32x64xf32, #tpu.memory_space<vmem>>, %arg11: memref<32x64xf32, #tpu.memory_space<vmem>>, %arg12: memref<1x64xf32, #tpu.memory_space<vmem>>, %arg13: memref<2x64xf32, #tpu.memory_space<vmem>>) attributes {dimension_semantics = [], scalar_prefetch = 0 : i64, scratch_operands = 0 : i64, tpu.core_type = #tpu.core_type<tc>} {
    %c0 = arith.constant 0 : index
    %c0_0 = arith.constant 0 : index
    %0 = vector.load %arg0[%c0, %c0_0] : memref<2x32xf32, #tpu.memory_space<vmem>>, vector<2x32xf32>
    %c0_1 = arith.constant 0 : index
    %c0_2 = arith.constant 0 : index
    %1 = vector.load %arg2[%c0_1, %c0_2] : memref<32x64xf32, #tpu.memory_space<vmem>>, vector<32x64xf32>
    %cst = arith.constant dense<0.000000e+00> : vector<2x64xf32>
    %2 = tpu.matmul %0, %1, %cst {dimension_numbers = #tpu.dot_dimension_numbers<[1], [0], [0], [1], [0, 0, 1, 1], [], []>} : vector<2x32xf32>, vector<32x64xf32>, vector<2x64xf32> -> vector<2x64xf32>
    %c0_3 = arith.constant 0 : index
    %c0_4 = arith.constant 0 : index
    %3 = vector.load %arg3[%c0_3, %c0_4] : memref<1x64xf32, #tpu.memory_space<vmem>>, vector<1x64xf32>
    %4 = vector.broadcast %3 : vector<1x64xf32> to vector<2x64xf32>
    %5 = arith.addf %2, %4 : vector<2x64xf32>
    %6 = arith.negf %5 : vector<2x64xf32>
    %7 = math.exp %6 : vector<2x64xf32>
    %cst_5 = arith.constant 1.000000e+00 : f32
    %8 = vector.broadcast %cst_5 : f32 to vector<2x64xf32>
    %9 = arith.addf %8, %7 : vector<2x64xf32>
    %10 = arith.divf %8, %9 : vector<2x64xf32>
    %11 = arith.mulf %5, %10 : vector<2x64xf32>
    %c0_6 = arith.constant 0 : index
    %c0_7 = arith.constant 0 : index
    %12 = vector.load %arg4[%c0_6, %c0_7] : memref<64x32xf32, #tpu.memory_space<vmem>>, vector<64x32xf32>
    %cst_8 = arith.constant dense<0.000000e+00> : vector<2x32xf32>
    %13 = tpu.matmul %11, %12, %cst_8 {dimension_numbers = #tpu.dot_dimension_numbers<[1], [0], [0], [1], [0, 0, 1, 1], [], []>} : vector<2x64xf32>, vector<64x32xf32>, vector<2x32xf32> -> vector<2x32xf32>
    %c0_9 = arith.constant 0 : index
    %c0_10 = arith.constant 0 : index
    %14 = vector.load %arg5[%c0_9, %c0_10] : memref<1x32xf32, #tpu.memory_space<vmem>>, vector<1x32xf32>
    %15 = vector.broadcast %14 : vector<1x32xf32> to vector<2x32xf32>
    %16 = arith.addf %13, %15 : vector<2x32xf32>
    %17 = arith.negf %16 : vector<2x32xf32>
    %18 = math.exp %17 : vector<2x32xf32>
    %cst_11 = arith.constant 1.000000e+00 : f32
    %19 = vector.broadcast %cst_11 : f32 to vector<2x32xf32>
    %20 = arith.addf %19, %18 : vector<2x32xf32>
    %21 = arith.divf %19, %20 : vector<2x32xf32>
    %22 = arith.mulf %16, %21 : vector<2x32xf32>
    %c0_12 = arith.constant 0 : index
    %c0_13 = arith.constant 0 : index
    %23 = vector.load %arg1[%c0_12, %c0_13] : memref<2x9xf32, #tpu.memory_space<vmem>>, vector<2x9xf32>
    %c0_14 = arith.constant 0 : index
    %c0_15 = arith.constant 0 : index
    %24 = vector.load %arg6[%c0_14, %c0_15] : memref<9x64xf32, #tpu.memory_space<vmem>>, vector<9x64xf32>
    %cst_16 = arith.constant dense<0.000000e+00> : vector<2x64xf32>
    %25 = tpu.matmul %23, %24, %cst_16 {dimension_numbers = #tpu.dot_dimension_numbers<[1], [0], [0], [1], [0, 0, 1, 1], [], []>} : vector<2x9xf32>, vector<9x64xf32>, vector<2x64xf32> -> vector<2x64xf32>
    %c0_17 = arith.constant 0 : index
    %c0_18 = arith.constant 0 : index
    %26 = vector.load %arg7[%c0_17, %c0_18] : memref<1x64xf32, #tpu.memory_space<vmem>>, vector<1x64xf32>
    %27 = vector.broadcast %26 : vector<1x64xf32> to vector<2x64xf32>
    %28 = arith.addf %25, %27 : vector<2x64xf32>
    %c0_19 = arith.constant 0 : index
    %c0_20 = arith.constant 0 : index
    %29 = vector.load %arg8[%c0_19, %c0_20] : memref<64x32xf32, #tpu.memory_space<vmem>>, vector<64x32xf32>
    %cst_21 = arith.constant dense<0.000000e+00> : vector<2x32xf32>
    %30 = tpu.matmul %28, %29, %cst_21 {dimension_numbers = #tpu.dot_dimension_numbers<[1], [0], [0], [1], [0, 0, 1, 1], [], []>} : vector<2x64xf32>, vector<64x32xf32>, vector<2x32xf32> -> vector<2x32xf32>
    %c0_22 = arith.constant 0 : index
    %c0_23 = arith.constant 0 : index
    %31 = vector.load %arg9[%c0_22, %c0_23] : memref<1x32xf32, #tpu.memory_space<vmem>>, vector<1x32xf32>
    %32 = vector.broadcast %31 : vector<1x32xf32> to vector<2x32xf32>
    %33 = arith.addf %30, %32 : vector<2x32xf32>
    %34 = arith.negf %33 : vector<2x32xf32>
    %35 = math.exp %34 : vector<2x32xf32>
    %cst_24 = arith.constant 1.000000e+00 : f32
    %36 = vector.broadcast %cst_24 : f32 to vector<2x32xf32>
    %37 = arith.addf %36, %35 : vector<2x32xf32>
    %38 = arith.divf %36, %37 : vector<2x32xf32>
    %39 = arith.mulf %33, %38 : vector<2x32xf32>
    %c0_25 = arith.constant 0 : index
    %c0_26 = arith.constant 0 : index
    %40 = vector.load %arg10[%c0_25, %c0_26] : memref<32x64xf32, #tpu.memory_space<vmem>>, vector<32x64xf32>
    %cst_27 = arith.constant dense<0.000000e+00> : vector<2x64xf32>
    %41 = tpu.matmul %22, %40, %cst_27 {dimension_numbers = #tpu.dot_dimension_numbers<[1], [0], [0], [1], [0, 0, 1, 1], [], []>} : vector<2x32xf32>, vector<32x64xf32>, vector<2x64xf32> -> vector<2x64xf32>
    %c0_28 = arith.constant 0 : index
    %c0_29 = arith.constant 0 : index
    %42 = vector.load %arg11[%c0_28, %c0_29] : memref<32x64xf32, #tpu.memory_space<vmem>>, vector<32x64xf32>
    %cst_30 = arith.constant dense<0.000000e+00> : vector<2x64xf32>
    %43 = tpu.matmul %39, %42, %cst_30 {dimension_numbers = #tpu.dot_dimension_numbers<[1], [0], [0], [1], [0, 0, 1, 1], [], []>} : vector<2x32xf32>, vector<32x64xf32>, vector<2x64xf32> -> vector<2x64xf32>
    %44 = arith.addf %41, %43 : vector<2x64xf32>
    %c0_31 = arith.constant 0 : index
    %c0_32 = arith.constant 0 : index
    %45 = vector.load %arg12[%c0_31, %c0_32] : memref<1x64xf32, #tpu.memory_space<vmem>>, vector<1x64xf32>
    %46 = vector.broadcast %45 : vector<1x64xf32> to vector<2x64xf32>
    %47 = arith.addf %44, %46 : vector<2x64xf32>
    %48 = arith.negf %47 : vector<2x64xf32>
    %49 = math.exp %48 : vector<2x64xf32>
    %cst_33 = arith.constant 1.000000e+00 : f32
    %50 = vector.broadcast %cst_33 : f32 to vector<2x64xf32>
    %51 = arith.addf %50, %49 : vector<2x64xf32>
    %52 = arith.divf %50, %51 : vector<2x64xf32>
    %53 = arith.mulf %47, %52 : vector<2x64xf32>
    %c0_34 = arith.constant 0 : index
    %c0_35 = arith.constant 0 : index
    %54 = vector.load %arg13[%c0_34, %c0_35] : memref<2x64xf32, #tpu.memory_space<vmem>>, vector<2x64xf32>
    tpu.vector_store %arg13[%c0_34, %c0_35], %53 {strides = array<i32>} : memref<2x64xf32, #tpu.memory_space<vmem>>, vector<2x64xf32>,
    return
  }
}

module attributes {stable_mosaic.version = 11 : i64} {
  func.func @_deepsets_kernel(%arg0: memref<4x4xf32, #tpu.memory_space<vmem>>, %arg1: memref<4x64xf32, #tpu.memory_space<vmem>>, %arg2: memref<4x4xf32, #tpu.memory_space<vmem>>, %arg3: memref<4x1xf32, #tpu.memory_space<vmem>>, %arg4: memref<64x256xbf16, #tpu.memory_space<vmem>>, %arg5: memref<1x256xf32, #tpu.memory_space<vmem>>, %arg6: memref<256x128xbf16, #tpu.memory_space<vmem>>, %arg7: memref<1x128xf32, #tpu.memory_space<vmem>>, %arg8: memref<4x128xbf16, #tpu.memory_space<vmem>>, %arg9: memref<1x128xf32, #tpu.memory_space<vmem>>, %arg10: memref<128x128xbf16, #tpu.memory_space<vmem>>, %arg11: memref<128x128xbf16, #tpu.memory_space<vmem>>, %arg12: memref<1x128xf32, #tpu.memory_space<vmem>>, %arg13: memref<128x128xbf16, #tpu.memory_space<vmem>>, %arg14: memref<1x128xf32, #tpu.memory_space<vmem>>, %arg15: memref<6x1x128xf32, #tpu.memory_space<vmem>>, %arg16: memref<6x1x128xf32, #tpu.memory_space<vmem>>, %arg17: memref<6x128x384xbf16, #tpu.memory_space<vmem>>, %arg18: memref<6x1x384xf32, #tpu.memory_space<vmem>>, %arg19: memref<6x128x128xbf16, #tpu.memory_space<vmem>>, %arg20: memref<6x1x128xf32, #tpu.memory_space<vmem>>, %arg21: memref<6x1x128xf32, #tpu.memory_space<vmem>>, %arg22: memref<6x1x128xf32, #tpu.memory_space<vmem>>, %arg23: memref<6x128x512xbf16, #tpu.memory_space<vmem>>, %arg24: memref<6x1x512xf32, #tpu.memory_space<vmem>>, %arg25: memref<6x512x128xbf16, #tpu.memory_space<vmem>>, %arg26: memref<6x1x128xf32, #tpu.memory_space<vmem>>, %arg27: memref<1x128xf32, #tpu.memory_space<vmem>>, %arg28: memref<1x128xf32, #tpu.memory_space<vmem>>, %arg29: memref<128x256xbf16, #tpu.memory_space<vmem>>, %arg30: memref<1x256xf32, #tpu.memory_space<vmem>>, %arg31: memref<256x4xbf16, #tpu.memory_space<vmem>>, %arg32: memref<1x4xf32, #tpu.memory_space<vmem>>, %arg33: memref<4x4xf32, #tpu.memory_space<vmem>>) attributes {dimension_semantics = [], scalar_prefetch = 0 : i64, scratch_operands = 0 : i64, tpu.core_type = #tpu.core_type<tc>} {
    %c0 = arith.constant 0 : index
    %c0_0 = arith.constant 0 : index
    %0 = vector.load %arg0[%c0, %c0_0] : memref<4x4xf32, #tpu.memory_space<vmem>>, vector<4x4xf32>
    %c0_1 = arith.constant 0 : index
    %c0_2 = arith.constant 0 : index
    %1 = vector.load %arg1[%c0_1, %c0_2] : memref<4x64xf32, #tpu.memory_space<vmem>>, vector<4x64xf32>
    %c0_3 = arith.constant 0 : index
    %c0_4 = arith.constant 0 : index
    %2 = vector.load %arg2[%c0_3, %c0_4] : memref<4x4xf32, #tpu.memory_space<vmem>>, vector<4x4xf32>
    %c0_5 = arith.constant 0 : index
    %c0_6 = arith.constant 0 : index
    %3 = vector.load %arg4[%c0_5, %c0_6] : memref<64x256xbf16, #tpu.memory_space<vmem>>, vector<64x256xbf16>
    %4 = arith.truncf %1 : vector<4x64xf32> to vector<4x64xbf16>
    %cst = arith.constant dense<0.000000e+00> : vector<4x256xf32>
    %5 = tpu.matmul %4, %3, %cst {dimension_numbers = #tpu.dot_dimension_numbers<[1], [0], [0], [1], [0, 0, 1, 1], [], []>} : vector<4x64xbf16>, vector<64x256xbf16>, vector<4x256xf32> -> vector<4x256xf32>
    %c0_7 = arith.constant 0 : index
    %c0_8 = arith.constant 0 : index
    %6 = vector.load %arg5[%c0_7, %c0_8] : memref<1x256xf32, #tpu.memory_space<vmem>>, vector<1x256xf32>
    %7 = vector.broadcast %6 : vector<1x256xf32> to vector<4x256xf32>
    %8 = arith.addf %5, %7 : vector<4x256xf32>
    %cst_9 = arith.constant 0.000000e+00 : f32
    %9 = vector.broadcast %cst_9 : f32 to vector<4x256xf32>
    %10 = arith.cmpf ogt, %8, %9 : vector<4x256xf32>
    %cst_10 = arith.constant 0.00999999977 : f32
    %11 = vector.broadcast %cst_10 : f32 to vector<4x256xf32>
    %12 = arith.mulf %11, %8 : vector<4x256xf32>
    %13 = arith.select %10, %8, %12 : vector<4x256xi1>, vector<4x256xf32>
    %c0_11 = arith.constant 0 : index
    %c0_12 = arith.constant 0 : index
    %14 = vector.load %arg6[%c0_11, %c0_12] : memref<256x128xbf16, #tpu.memory_space<vmem>>, vector<256x128xbf16>
    %15 = arith.truncf %13 : vector<4x256xf32> to vector<4x256xbf16>
    %cst_13 = arith.constant dense<0.000000e+00> : vector<4x128xf32>
    %16 = tpu.matmul %15, %14, %cst_13 {dimension_numbers = #tpu.dot_dimension_numbers<[1], [0], [0], [1], [0, 0, 1, 1], [], []>} : vector<4x256xbf16>, vector<256x128xbf16>, vector<4x128xf32> -> vector<4x128xf32>
    %c0_14 = arith.constant 0 : index
    %c0_15 = arith.constant 0 : index
    %17 = vector.load %arg7[%c0_14, %c0_15] : memref<1x128xf32, #tpu.memory_space<vmem>>, vector<1x128xf32>
    %18 = vector.broadcast %17 : vector<1x128xf32> to vector<4x128xf32>
    %19 = arith.addf %16, %18 : vector<4x128xf32>
    %c0_16 = arith.constant 0 : index
    %c0_17 = arith.constant 0 : index
    %20 = vector.load %arg8[%c0_16, %c0_17] : memref<4x128xbf16, #tpu.memory_space<vmem>>, vector<4x128xbf16>
    %21 = arith.truncf %0 : vector<4x4xf32> to vector<4x4xbf16>
    %cst_18 = arith.constant dense<0.000000e+00> : vector<4x128xf32>
    %22 = tpu.matmul %21, %20, %cst_18 {dimension_numbers = #tpu.dot_dimension_numbers<[1], [0], [0], [1], [0, 0, 1, 1], [], []>} : vector<4x4xbf16>, vector<4x128xbf16>, vector<4x128xf32> -> vector<4x128xf32>
    %c0_19 = arith.constant 0 : index
    %c0_20 = arith.constant 0 : index
    %23 = vector.load %arg9[%c0_19, %c0_20] : memref<1x128xf32, #tpu.memory_space<vmem>>, vector<1x128xf32>
    %24 = vector.broadcast %23 : vector<1x128xf32> to vector<4x128xf32>
    %25 = arith.addf %22, %24 : vector<4x128xf32>
    %c0_21 = arith.constant 0 : index
    %c0_22 = arith.constant 0 : index
    %26 = vector.load %arg10[%c0_21, %c0_22] : memref<128x128xbf16, #tpu.memory_space<vmem>>, vector<128x128xbf16>
    %27 = arith.truncf %25 : vector<4x128xf32> to vector<4x128xbf16>
    %cst_23 = arith.constant dense<0.000000e+00> : vector<4x128xf32>
    %28 = tpu.matmul %27, %26, %cst_23 {dimension_numbers = #tpu.dot_dimension_numbers<[1], [0], [0], [1], [0, 0, 1, 1], [], []>} : vector<4x128xbf16>, vector<128x128xbf16>, vector<4x128xf32> -> vector<4x128xf32>
    %c0_24 = arith.constant 0 : index
    %c0_25 = arith.constant 0 : index
    %29 = vector.load %arg11[%c0_24, %c0_25] : memref<128x128xbf16, #tpu.memory_space<vmem>>, vector<128x128xbf16>
    %30 = arith.truncf %19 : vector<4x128xf32> to vector<4x128xbf16>
    %cst_26 = arith.constant dense<0.000000e+00> : vector<4x128xf32>
    %31 = tpu.matmul %30, %29, %cst_26 {dimension_numbers = #tpu.dot_dimension_numbers<[1], [0], [0], [1], [0, 0, 1, 1], [], []>} : vector<4x128xbf16>, vector<128x128xbf16>, vector<4x128xf32> -> vector<4x128xf32>
    %32 = arith.addf %28, %31 : vector<4x128xf32>
    %c0_27 = arith.constant 0 : index
    %c0_28 = arith.constant 0 : index
    %33 = vector.load %arg12[%c0_27, %c0_28] : memref<1x128xf32, #tpu.memory_space<vmem>>, vector<1x128xf32>
    %34 = vector.broadcast %33 : vector<1x128xf32> to vector<4x128xf32>
    %35 = arith.addf %32, %34 : vector<4x128xf32>
    %cst_29 = arith.constant 0.000000e+00 : f32
    %36 = vector.broadcast %cst_29 : f32 to vector<4x128xf32>
    %37 = arith.cmpf ogt, %35, %36 : vector<4x128xf32>
    %cst_30 = arith.constant 0.00999999977 : f32
    %38 = vector.broadcast %cst_30 : f32 to vector<4x128xf32>
    %39 = arith.mulf %38, %35 : vector<4x128xf32>
    %40 = arith.select %37, %35, %39 : vector<4x128xi1>, vector<4x128xf32>
    %c0_31 = arith.constant 0 : index
    %c0_32 = arith.constant 0 : index
    %41 = vector.load %arg13[%c0_31, %c0_32] : memref<128x128xbf16, #tpu.memory_space<vmem>>, vector<128x128xbf16>
    %42 = arith.truncf %40 : vector<4x128xf32> to vector<4x128xbf16>
    %cst_33 = arith.constant dense<0.000000e+00> : vector<4x128xf32>
    %43 = tpu.matmul %42, %41, %cst_33 {dimension_numbers = #tpu.dot_dimension_numbers<[1], [0], [0], [1], [0, 0, 1, 1], [], []>} : vector<4x128xbf16>, vector<128x128xbf16>, vector<4x128xf32> -> vector<4x128xf32>
    %c0_34 = arith.constant 0 : index
    %c0_35 = arith.constant 0 : index
    %44 = vector.load %arg14[%c0_34, %c0_35] : memref<1x128xf32, #tpu.memory_space<vmem>>, vector<1x128xf32>
    %45 = vector.broadcast %44 : vector<1x128xf32> to vector<4x128xf32>
    %46 = arith.addf %43, %45 : vector<4x128xf32>
    %c0_i32 = arith.constant 0 : i32
    %c6_i32 = arith.constant 6 : i32
    %47 = arith.addi %c0_i32, %c6_i32 : i32
    %c1_i32 = arith.constant 1 : i32
    %48 = scf.for %arg34 = %c0_i32 to %47 step %c1_i32 iter_args(%arg35 = %46) -> (vector<4x128xf32>)  : i32 {
      %94 = arith.index_cast %arg34 : i32 to index
      %c0_62 = arith.constant 0 : index
      %c0_63 = arith.constant 0 : index
      %95 = vector.load %arg15[%94, %c0_62, %c0_63] : memref<6x1x128xf32, #tpu.memory_space<vmem>>, vector<1x1x128xf32>
      %96 = vector.shape_cast %95 : vector<1x1x128xf32> to vector<1x128xf32>
      %97 = arith.index_cast %arg34 : i32 to index
      %c0_64 = arith.constant 0 : index
      %c0_65 = arith.constant 0 : index
      %98 = vector.load %arg16[%97, %c0_64, %c0_65] : memref<6x1x128xf32, #tpu.memory_space<vmem>>, vector<1x1x128xf32>
      %99 = vector.shape_cast %98 : vector<1x1x128xf32> to vector<1x128xf32>
      %cst_66 = arith.constant dense<0.000000e+00> : vector<4xf32>
      %100 = vector.multi_reduction <add>, %arg35, %cst_66 [1] : vector<4x128xf32> to vector<4xf32>
      %101 = vector.shape_cast %100 : vector<4xf32> to vector<4x1xf32>
      %cst_67 = arith.constant 1.280000e+02 : f32
      %102 = vector.broadcast %cst_67 : f32 to vector<4x1xf32>
      %103 = arith.divf %101, %102 : vector<4x1xf32>
      %104 = vector.broadcast %103 : vector<4x1xf32> to vector<4x128xf32>
      %105 = arith.subf %arg35, %104 : vector<4x128xf32>
      %106 = arith.mulf %105, %105 : vector<4x128xf32>
      %cst_68 = arith.constant dense<0.000000e+00> : vector<4xf32>
      %107 = vector.multi_reduction <add>, %106, %cst_68 [1] : vector<4x128xf32> to vector<4xf32>
      %108 = vector.shape_cast %107 : vector<4xf32> to vector<4x1xf32>
      %cst_69 = arith.constant 1.280000e+02 : f32
      %109 = vector.broadcast %cst_69 : f32 to vector<4x1xf32>
      %110 = arith.divf %108, %109 : vector<4x1xf32>
      %111 = vector.broadcast %103 : vector<4x1xf32> to vector<4x128xf32>
      %112 = arith.subf %arg35, %111 : vector<4x128xf32>
      %cst_70 = arith.constant 9.99999974E-6 : f32
      %113 = vector.broadcast %cst_70 : f32 to vector<4x1xf32>
      %114 = arith.addf %110, %113 : vector<4x1xf32>
      %115 = math.rsqrt %114 : vector<4x1xf32>
      %116 = vector.broadcast %115 : vector<4x1xf32> to vector<4x128xf32>
      %117 = arith.mulf %112, %116 : vector<4x128xf32>
      %118 = vector.broadcast %96 : vector<1x128xf32> to vector<4x128xf32>
      %119 = arith.mulf %117, %118 : vector<4x128xf32>
      %120 = vector.broadcast %99 : vector<1x128xf32> to vector<4x128xf32>
      %121 = arith.addf %119, %120 : vector<4x128xf32>
      %122 = arith.index_cast %arg34 : i32 to index
      %c0_71 = arith.constant 0 : index
      %c0_72 = arith.constant 0 : index
      %123 = vector.load %arg17[%122, %c0_71, %c0_72] : memref<6x128x384xbf16, #tpu.memory_space<vmem>>, vector<1x128x384xbf16>
      %124 = vector.shape_cast %123 : vector<1x128x384xbf16> to vector<128x384xbf16>
      %125 = arith.truncf %121 : vector<4x128xf32> to vector<4x128xbf16>
      %cst_73 = arith.constant dense<0.000000e+00> : vector<4x384xf32>
      %126 = tpu.matmul %125, %124, %cst_73 {dimension_numbers = #tpu.dot_dimension_numbers<[1], [0], [0], [1], [0, 0, 1, 1], [], []>} : vector<4x128xbf16>, vector<128x384xbf16>, vector<4x384xf32> -> vector<4x384xf32>
      %127 = arith.index_cast %arg34 : i32 to index
      %c0_74 = arith.constant 0 : index
      %c0_75 = arith.constant 0 : index
      %128 = vector.load %arg18[%127, %c0_74, %c0_75] : memref<6x1x384xf32, #tpu.memory_space<vmem>>, vector<1x1x384xf32>
      %129 = vector.shape_cast %128 : vector<1x1x384xf32> to vector<1x384xf32>
      %130 = vector.broadcast %129 : vector<1x384xf32> to vector<4x384xf32>
      %131 = arith.addf %126, %130 : vector<4x384xf32>
      %132 = vector.extract_strided_slice %131 {offsets = [0, 0], sizes = [4, 64], strides = [1, 1]} : vector<4x384xf32> to vector<4x64xf32>
      %133 = vector.extract_strided_slice %131 {offsets = [0, 128], sizes = [4, 64], strides = [1, 1]} : vector<4x384xf32> to vector<4x64xf32>
      %134 = vector.extract_strided_slice %131 {offsets = [0, 256], sizes = [4, 64], strides = [1, 1]} : vector<4x384xf32> to vector<4x64xf32>
      %135 = arith.truncf %132 : vector<4x64xf32> to vector<4x64xbf16>
      %136 = arith.truncf %133 : vector<4x64xf32> to vector<4x64xbf16>
      %cst_76 = arith.constant dense<0.000000e+00> : vector<4x4xf32>
      %137 = tpu.matmul %135, %136, %cst_76 {dimension_numbers = #tpu.dot_dimension_numbers<[1], [1], [0], [0], [0, 0, 1, 0], [], []>} : vector<4x64xbf16>, vector<4x64xbf16>, vector<4x4xf32> -> vector<4x4xf32>
      %cst_77 = arith.constant 1.250000e-01 : f32
      %138 = vector.broadcast %cst_77 : f32 to vector<4x4xf32>
      %139 = arith.mulf %137, %138 : vector<4x4xf32>
      %140 = arith.addf %139, %2 : vector<4x4xf32>
      %cst_78 = arith.constant dense<0xFF800000> : vector<4xf32>
      %141 = vector.multi_reduction <maximumf>, %140, %cst_78 [1] : vector<4x4xf32> to vector<4xf32>
      %142 = vector.shape_cast %141 : vector<4xf32> to vector<4x1xf32>
      %143 = vector.broadcast %142 : vector<4x1xf32> to vector<4x4xf32>
      %144 = arith.subf %140, %143 : vector<4x4xf32>
      %145 = math.exp %144 : vector<4x4xf32>
      %cst_79 = arith.constant dense<0.000000e+00> : vector<4xf32>
      %146 = vector.multi_reduction <add>, %145, %cst_79 [1] : vector<4x4xf32> to vector<4xf32>
      %147 = vector.shape_cast %146 : vector<4xf32> to vector<4x1xf32>
      %148 = tpu.reciprocal %147 {approx = true} : vector<4x1xf32> -> vector<4x1xf32>
      %149 = vector.broadcast %148 : vector<4x1xf32> to vector<4x4xf32>
      %150 = arith.mulf %145, %149 : vector<4x4xf32>
      %151 = arith.truncf %150 : vector<4x4xf32> to vector<4x4xbf16>
      %152 = arith.truncf %134 : vector<4x64xf32> to vector<4x64xbf16>
      %cst_80 = arith.constant dense<0.000000e+00> : vector<4x64xf32>
      %153 = tpu.matmul %151, %152, %cst_80 {dimension_numbers = #tpu.dot_dimension_numbers<[1], [0], [0], [1], [0, 0, 1, 1], [], []>} : vector<4x4xbf16>, vector<4x64xbf16>, vector<4x64xf32> -> vector<4x64xf32>
      %154 = vector.extract_strided_slice %131 {offsets = [0, 64], sizes = [4, 64], strides = [1, 1]} : vector<4x384xf32> to vector<4x64xf32>
      %155 = vector.extract_strided_slice %131 {offsets = [0, 192], sizes = [4, 64], strides = [1, 1]} : vector<4x384xf32> to vector<4x64xf32>
      %156 = vector.extract_strided_slice %131 {offsets = [0, 320], sizes = [4, 64], strides = [1, 1]} : vector<4x384xf32> to vector<4x64xf32>
      %157 = arith.truncf %154 : vector<4x64xf32> to vector<4x64xbf16>
      %158 = arith.truncf %155 : vector<4x64xf32> to vector<4x64xbf16>
      %cst_81 = arith.constant dense<0.000000e+00> : vector<4x4xf32>
      %159 = tpu.matmul %157, %158, %cst_81 {dimension_numbers = #tpu.dot_dimension_numbers<[1], [1], [0], [0], [0, 0, 1, 0], [], []>} : vector<4x64xbf16>, vector<4x64xbf16>, vector<4x4xf32> -> vector<4x4xf32>
      %cst_82 = arith.constant 1.250000e-01 : f32
      %160 = vector.broadcast %cst_82 : f32 to vector<4x4xf32>
      %161 = arith.mulf %159, %160 : vector<4x4xf32>
      %162 = arith.addf %161, %2 : vector<4x4xf32>
      %cst_83 = arith.constant dense<0xFF800000> : vector<4xf32>
      %163 = vector.multi_reduction <maximumf>, %162, %cst_83 [1] : vector<4x4xf32> to vector<4xf32>
      %164 = vector.shape_cast %163 : vector<4xf32> to vector<4x1xf32>
      %165 = vector.broadcast %164 : vector<4x1xf32> to vector<4x4xf32>
      %166 = arith.subf %162, %165 : vector<4x4xf32>
      %167 = math.exp %166 : vector<4x4xf32>
      %cst_84 = arith.constant dense<0.000000e+00> : vector<4xf32>
      %168 = vector.multi_reduction <add>, %167, %cst_84 [1] : vector<4x4xf32> to vector<4xf32>
      %169 = vector.shape_cast %168 : vector<4xf32> to vector<4x1xf32>
      %170 = tpu.reciprocal %169 {approx = true} : vector<4x1xf32> -> vector<4x1xf32>
      %171 = vector.broadcast %170 : vector<4x1xf32> to vector<4x4xf32>
      %172 = arith.mulf %167, %171 : vector<4x4xf32>
      %173 = arith.truncf %172 : vector<4x4xf32> to vector<4x4xbf16>
      %174 = arith.truncf %156 : vector<4x64xf32> to vector<4x64xbf16>
      %cst_85 = arith.constant dense<0.000000e+00> : vector<4x64xf32>
      %175 = tpu.matmul %173, %174, %cst_85 {dimension_numbers = #tpu.dot_dimension_numbers<[1], [0], [0], [1], [0, 0, 1, 1], [], []>} : vector<4x4xbf16>, vector<4x64xbf16>, vector<4x64xf32> -> vector<4x64xf32>
      %176 = tpu.concatenate %153, %175 in 1 : vector<4x64xf32>, vector<4x64xf32> -> vector<4x128xf32>
      %177 = arith.index_cast %arg34 : i32 to index
      %c0_86 = arith.constant 0 : index
      %c0_87 = arith.constant 0 : index
      %178 = vector.load %arg19[%177, %c0_86, %c0_87] : memref<6x128x128xbf16, #tpu.memory_space<vmem>>, vector<1x128x128xbf16>
      %179 = vector.shape_cast %178 : vector<1x128x128xbf16> to vector<128x128xbf16>
      %180 = arith.truncf %176 : vector<4x128xf32> to vector<4x128xbf16>
      %cst_88 = arith.constant dense<0.000000e+00> : vector<4x128xf32>
      %181 = tpu.matmul %180, %179, %cst_88 {dimension_numbers = #tpu.dot_dimension_numbers<[1], [0], [0], [1], [0, 0, 1, 1], [], []>} : vector<4x128xbf16>, vector<128x128xbf16>, vector<4x128xf32> -> vector<4x128xf32>
      %182 = arith.index_cast %arg34 : i32 to index
      %c0_89 = arith.constant 0 : index
      %c0_90 = arith.constant 0 : index
      %183 = vector.load %arg20[%182, %c0_89, %c0_90] : memref<6x1x128xf32, #tpu.memory_space<vmem>>, vector<1x1x128xf32>
      %184 = vector.shape_cast %183 : vector<1x1x128xf32> to vector<1x128xf32>
      %185 = vector.broadcast %184 : vector<1x128xf32> to vector<4x128xf32>
      %186 = arith.addf %181, %185 : vector<4x128xf32>
      %187 = arith.addf %186, %arg35 : vector<4x128xf32>
      %188 = arith.index_cast %arg34 : i32 to index
      %c0_91 = arith.constant 0 : index
      %c0_92 = arith.constant 0 : index
      %189 = vector.load %arg21[%188, %c0_91, %c0_92] : memref<6x1x128xf32, #tpu.memory_space<vmem>>, vector<1x1x128xf32>
      %190 = vector.shape_cast %189 : vector<1x1x128xf32> to vector<1x128xf32>
      %191 = arith.index_cast %arg34 : i32 to index
      %c0_93 = arith.constant 0 : index
      %c0_94 = arith.constant 0 : index
      %192 = vector.load %arg22[%191, %c0_93, %c0_94] : memref<6x1x128xf32, #tpu.memory_space<vmem>>, vector<1x1x128xf32>
      %193 = vector.shape_cast %192 : vector<1x1x128xf32> to vector<1x128xf32>
      %cst_95 = arith.constant dense<0.000000e+00> : vector<4xf32>
      %194 = vector.multi_reduction <add>, %187, %cst_95 [1] : vector<4x128xf32> to vector<4xf32>
      %195 = vector.shape_cast %194 : vector<4xf32> to vector<4x1xf32>
      %cst_96 = arith.constant 1.280000e+02 : f32
      %196 = vector.broadcast %cst_96 : f32 to vector<4x1xf32>
      %197 = arith.divf %195, %196 : vector<4x1xf32>
      %198 = vector.broadcast %197 : vector<4x1xf32> to vector<4x128xf32>
      %199 = arith.subf %187, %198 : vector<4x128xf32>
      %200 = arith.mulf %199, %199 : vector<4x128xf32>
      %cst_97 = arith.constant dense<0.000000e+00> : vector<4xf32>
      %201 = vector.multi_reduction <add>, %200, %cst_97 [1] : vector<4x128xf32> to vector<4xf32>
      %202 = vector.shape_cast %201 : vector<4xf32> to vector<4x1xf32>
      %cst_98 = arith.constant 1.280000e+02 : f32
      %203 = vector.broadcast %cst_98 : f32 to vector<4x1xf32>
      %204 = arith.divf %202, %203 : vector<4x1xf32>
      %205 = vector.broadcast %197 : vector<4x1xf32> to vector<4x128xf32>
      %206 = arith.subf %187, %205 : vector<4x128xf32>
      %cst_99 = arith.constant 9.99999974E-6 : f32
      %207 = vector.broadcast %cst_99 : f32 to vector<4x1xf32>
      %208 = arith.addf %204, %207 : vector<4x1xf32>
      %209 = math.rsqrt %208 : vector<4x1xf32>
      %210 = vector.broadcast %209 : vector<4x1xf32> to vector<4x128xf32>
      %211 = arith.mulf %206, %210 : vector<4x128xf32>
      %212 = vector.broadcast %190 : vector<1x128xf32> to vector<4x128xf32>
      %213 = arith.mulf %211, %212 : vector<4x128xf32>
      %214 = vector.broadcast %193 : vector<1x128xf32> to vector<4x128xf32>
      %215 = arith.addf %213, %214 : vector<4x128xf32>
      %216 = arith.index_cast %arg34 : i32 to index
      %c0_100 = arith.constant 0 : index
      %c0_101 = arith.constant 0 : index
      %217 = vector.load %arg23[%216, %c0_100, %c0_101] : memref<6x128x512xbf16, #tpu.memory_space<vmem>>, vector<1x128x512xbf16>
      %218 = vector.shape_cast %217 : vector<1x128x512xbf16> to vector<128x512xbf16>
      %219 = arith.truncf %215 : vector<4x128xf32> to vector<4x128xbf16>
      %cst_102 = arith.constant dense<0.000000e+00> : vector<4x512xf32>
      %220 = tpu.matmul %219, %218, %cst_102 {dimension_numbers = #tpu.dot_dimension_numbers<[1], [0], [0], [1], [0, 0, 1, 1], [], []>} : vector<4x128xbf16>, vector<128x512xbf16>, vector<4x512xf32> -> vector<4x512xf32>
      %221 = arith.index_cast %arg34 : i32 to index
      %c0_103 = arith.constant 0 : index
      %c0_104 = arith.constant 0 : index
      %222 = vector.load %arg24[%221, %c0_103, %c0_104] : memref<6x1x512xf32, #tpu.memory_space<vmem>>, vector<1x1x512xf32>
      %223 = vector.shape_cast %222 : vector<1x1x512xf32> to vector<1x512xf32>
      %224 = vector.broadcast %223 : vector<1x512xf32> to vector<4x512xf32>
      %225 = arith.addf %220, %224 : vector<4x512xf32>
      %226 = arith.mulf %225, %225 : vector<4x512xf32>
      %227 = arith.mulf %225, %226 : vector<4x512xf32>
      %cst_105 = arith.constant 4.471500e-02 : f32
      %228 = vector.broadcast %cst_105 : f32 to vector<4x512xf32>
      %229 = arith.mulf %228, %227 : vector<4x512xf32>
      %230 = arith.addf %225, %229 : vector<4x512xf32>
      %cst_106 = arith.constant 0.797884583 : f32
      %231 = vector.broadcast %cst_106 : f32 to vector<4x512xf32>
      %232 = arith.mulf %231, %230 : vector<4x512xf32>
      %233 = math.tanh %232 : vector<4x512xf32>
      %cst_107 = arith.constant 1.000000e+00 : f32
      %234 = vector.broadcast %cst_107 : f32 to vector<4x512xf32>
      %235 = arith.addf %234, %233 : vector<4x512xf32>
      %cst_108 = arith.constant 5.000000e-01 : f32
      %236 = vector.broadcast %cst_108 : f32 to vector<4x512xf32>
      %237 = arith.mulf %236, %235 : vector<4x512xf32>
      %238 = arith.mulf %225, %237 : vector<4x512xf32>
      %239 = arith.index_cast %arg34 : i32 to index
      %c0_109 = arith.constant 0 : index
      %c0_110 = arith.constant 0 : index
      %240 = vector.load %arg25[%239, %c0_109, %c0_110] : memref<6x512x128xbf16, #tpu.memory_space<vmem>>, vector<1x512x128xbf16>
      %241 = vector.shape_cast %240 : vector<1x512x128xbf16> to vector<512x128xbf16>
      %242 = arith.truncf %238 : vector<4x512xf32> to vector<4x512xbf16>
      %cst_111 = arith.constant dense<0.000000e+00> : vector<4x128xf32>
      %243 = tpu.matmul %242, %241, %cst_111 {dimension_numbers = #tpu.dot_dimension_numbers<[1], [0], [0], [1], [0, 0, 1, 1], [], []>} : vector<4x512xbf16>, vector<512x128xbf16>, vector<4x128xf32> -> vector<4x128xf32>
      %244 = arith.index_cast %arg34 : i32 to index
      %c0_112 = arith.constant 0 : index
      %c0_113 = arith.constant 0 : index
      %245 = vector.load %arg26[%244, %c0_112, %c0_113] : memref<6x1x128xf32, #tpu.memory_space<vmem>>, vector<1x1x128xf32>
      %246 = vector.shape_cast %245 : vector<1x1x128xf32> to vector<1x128xf32>
      %247 = vector.broadcast %246 : vector<1x128xf32> to vector<4x128xf32>
      %248 = arith.addf %243, %247 : vector<4x128xf32>
      %249 = arith.mulf %248, %248 : vector<4x128xf32>
      %250 = arith.mulf %248, %249 : vector<4x128xf32>
      %cst_114 = arith.constant 4.471500e-02 : f32
      %251 = vector.broadcast %cst_114 : f32 to vector<4x128xf32>
      %252 = arith.mulf %251, %250 : vector<4x128xf32>
      %253 = arith.addf %248, %252 : vector<4x128xf32>
      %cst_115 = arith.constant 0.797884583 : f32
      %254 = vector.broadcast %cst_115 : f32 to vector<4x128xf32>
      %255 = arith.mulf %254, %253 : vector<4x128xf32>
      %256 = math.tanh %255 : vector<4x128xf32>
      %cst_116 = arith.constant 1.000000e+00 : f32
      %257 = vector.broadcast %cst_116 : f32 to vector<4x128xf32>
      %258 = arith.addf %257, %256 : vector<4x128xf32>
      %cst_117 = arith.constant 5.000000e-01 : f32
      %259 = vector.broadcast %cst_117 : f32 to vector<4x128xf32>
      %260 = arith.mulf %259, %258 : vector<4x128xf32>
      %261 = arith.mulf %248, %260 : vector<4x128xf32>
      %262 = arith.addf %261, %187 : vector<4x128xf32>
      scf.yield %262 : vector<4x128xf32>
    }
    %c6_i32_36 = arith.constant 6 : i32
    %c0_37 = arith.constant 0 : index
    %c0_38 = arith.constant 0 : index
    %49 = vector.load %arg27[%c0_37, %c0_38] : memref<1x128xf32, #tpu.memory_space<vmem>>, vector<1x128xf32>
    %c0_39 = arith.constant 0 : index
    %c0_40 = arith.constant 0 : index
    %50 = vector.load %arg28[%c0_39, %c0_40] : memref<1x128xf32, #tpu.memory_space<vmem>>, vector<1x128xf32>
    %cst_41 = arith.constant dense<0.000000e+00> : vector<4xf32>
    %51 = vector.multi_reduction <add>, %48, %cst_41 [1] : vector<4x128xf32> to vector<4xf32>
    %52 = vector.shape_cast %51 : vector<4xf32> to vector<4x1xf32>
    %cst_42 = arith.constant 1.280000e+02 : f32
    %53 = vector.broadcast %cst_42 : f32 to vector<4x1xf32>
    %54 = arith.divf %52, %53 : vector<4x1xf32>
    %55 = vector.broadcast %54 : vector<4x1xf32> to vector<4x128xf32>
    %56 = arith.subf %48, %55 : vector<4x128xf32>
    %57 = arith.mulf %56, %56 : vector<4x128xf32>
    %cst_43 = arith.constant dense<0.000000e+00> : vector<4xf32>
    %58 = vector.multi_reduction <add>, %57, %cst_43 [1] : vector<4x128xf32> to vector<4xf32>
    %59 = vector.shape_cast %58 : vector<4xf32> to vector<4x1xf32>
    %cst_44 = arith.constant 1.280000e+02 : f32
    %60 = vector.broadcast %cst_44 : f32 to vector<4x1xf32>
    %61 = arith.divf %59, %60 : vector<4x1xf32>
    %62 = vector.broadcast %54 : vector<4x1xf32> to vector<4x128xf32>
    %63 = arith.subf %48, %62 : vector<4x128xf32>
    %cst_45 = arith.constant 9.99999974E-6 : f32
    %64 = vector.broadcast %cst_45 : f32 to vector<4x1xf32>
    %65 = arith.addf %61, %64 : vector<4x1xf32>
    %66 = math.rsqrt %65 : vector<4x1xf32>
    %67 = vector.broadcast %66 : vector<4x1xf32> to vector<4x128xf32>
    %68 = arith.mulf %63, %67 : vector<4x128xf32>
    %69 = vector.broadcast %49 : vector<1x128xf32> to vector<4x128xf32>
    %70 = arith.mulf %68, %69 : vector<4x128xf32>
    %71 = vector.broadcast %50 : vector<1x128xf32> to vector<4x128xf32>
    %72 = arith.addf %70, %71 : vector<4x128xf32>
    %c0_46 = arith.constant 0 : index
    %c0_47 = arith.constant 0 : index
    %73 = vector.load %arg29[%c0_46, %c0_47] : memref<128x256xbf16, #tpu.memory_space<vmem>>, vector<128x256xbf16>
    %74 = arith.truncf %72 : vector<4x128xf32> to vector<4x128xbf16>
    %cst_48 = arith.constant dense<0.000000e+00> : vector<4x256xf32>
    %75 = tpu.matmul %74, %73, %cst_48 {dimension_numbers = #tpu.dot_dimension_numbers<[1], [0], [0], [1], [0, 0, 1, 1], [], []>} : vector<4x128xbf16>, vector<128x256xbf16>, vector<4x256xf32> -> vector<4x256xf32>
    %c0_49 = arith.constant 0 : index
    %c0_50 = arith.constant 0 : index
    %76 = vector.load %arg30[%c0_49, %c0_50] : memref<1x256xf32, #tpu.memory_space<vmem>>, vector<1x256xf32>
    %77 = vector.broadcast %76 : vector<1x256xf32> to vector<4x256xf32>
    %78 = arith.addf %75, %77 : vector<4x256xf32>
    %cst_51 = arith.constant 0.000000e+00 : f32
    %79 = vector.broadcast %cst_51 : f32 to vector<4x256xf32>
    %80 = arith.cmpf ogt, %78, %79 : vector<4x256xf32>
    %cst_52 = arith.constant 0.00999999977 : f32
    %81 = vector.broadcast %cst_52 : f32 to vector<4x256xf32>
    %82 = arith.mulf %81, %78 : vector<4x256xf32>
    %83 = arith.select %80, %78, %82 : vector<4x256xi1>, vector<4x256xf32>
    %c0_53 = arith.constant 0 : index
    %c0_54 = arith.constant 0 : index
    %84 = vector.load %arg31[%c0_53, %c0_54] : memref<256x4xbf16, #tpu.memory_space<vmem>>, vector<256x4xbf16>
    %85 = arith.truncf %83 : vector<4x256xf32> to vector<4x256xbf16>
    %cst_55 = arith.constant dense<0.000000e+00> : vector<4x4xf32>
    %86 = tpu.matmul %85, %84, %cst_55 {dimension_numbers = #tpu.dot_dimension_numbers<[1], [0], [0], [1], [0, 0, 1, 1], [], []>} : vector<4x256xbf16>, vector<256x4xbf16>, vector<4x4xf32> -> vector<4x4xf32>
    %c0_56 = arith.constant 0 : index
    %c0_57 = arith.constant 0 : index
    %87 = vector.load %arg32[%c0_56, %c0_57] : memref<1x4xf32, #tpu.memory_space<vmem>>, vector<1x4xf32>
    %88 = vector.broadcast %87 : vector<1x4xf32> to vector<4x4xf32>
    %89 = arith.addf %86, %88 : vector<4x4xf32>
    %c0_58 = arith.constant 0 : index
    %c0_59 = arith.constant 0 : index
    %90 = vector.load %arg3[%c0_58, %c0_59] : memref<4x1xf32, #tpu.memory_space<vmem>>, vector<4x1xf32>
    %91 = vector.broadcast %90 : vector<4x1xf32> to vector<4x4xf32>
    %92 = arith.mulf %89, %91 : vector<4x4xf32>
    %c0_60 = arith.constant 0 : index
    %c0_61 = arith.constant 0 : index
    %93 = vector.load %arg33[%c0_60, %c0_61] : memref<4x4xf32, #tpu.memory_space<vmem>>, vector<4x4xf32>
    tpu.vector_store %arg33[%c0_60, %c0_61], %92 {strides = array<i32>} : memref<4x4xf32, #tpu.memory_space<vmem>>, vector<4x4xf32>,
    return
  }
}

</mosaic_0001>

<llo_original>
// kernel: eq.22
$region0: #{eq.22}
  %s0 = inlined_call_operand.vmem [shape: s32[4,8], index: 0, kind: input, shape index: {}]
  %s1 = inlined_call_operand.vmem [shape: s32[32], index: 1, kind: output, shape index: {}]
  $region1: #{eq.22} parent=0
    #allocation0 [shape = 'u8[4096]{0}', space=vmem, size = 0x1000, scoped, tag = 'scoped mem for output reshape']
    #allocation1 [shape = 'u8[4096]{0}', space=vmem, size = 0x1000, scoped, tag = 'scoped mem for input reshape']
    %s3 = sshllo.u32 0, 4
    %v4 = vld [vmem:[%s0] sm:%s3]
    %5 = vst [vmem:[#allocation1] sm:%s3] %v4
    %v6 = vld [vmem:[#allocation1] sm:$0x1]
    %vm7 = vcmask 64512
    %8 = vst.msk [vmem:[#allocation0] sm:$0x1] %vm7, %v6
    %s9 = scalar_lea.vmem [#allocation1], 3
    %v10 = vld [vmem:[%s9] sm:$0x1]
    %11 = vrot.lane.b32.xlu0 %v10, 24
    %v12 = vpop.permute.xlu0 %11
    %vm13 = vcmask 261312
    %14 = vst.msk [vmem:[#allocation0] sm:$0x1] %vm13, %v12
    %s15 = scalar_lea.vmem [#allocation1], 2
    %v16 = vld [vmem:[%s15] sm:$0x1]
    %17 = vrot.lane.b32.xlu0 %v16, 16
    %v18 = vpop.permute.xlu0 %17
    %vm19 = vcmask 195712
    %20 = vst.msk [vmem:[#allocation0] sm:$0x1] %vm19, %v18
    %s21 = scalar_lea.vmem [#allocation1], 1
    %v22 = vld [vmem:[%s21] sm:$0x1]
    %23 = vrot.lane.b32.xlu0 %v22, 8
    %v24 = vpop.permute.xlu0 %23
    %vm25 = vcmask 130112
    %26 = vst.msk [vmem:[#allocation0] sm:$0x1] %vm25, %v24
    %s28 = sshllo.u32 0, 1
    %v30 = vld [vmem:[#allocation0] sm:%s28]
    %s31 = sshllo.u32 0, 1
    %32 = vst [vmem:[%s1] sm:%s31] %v30

// kernel: eq.15
$region0: #{eq.15}
  %s0 = inlined_call_operand.vmem [shape: s32[2,2], index: 0, kind: input, shape index: {}]
  %s1 = inlined_call_operand.vmem [shape: s32[4], index: 1, kind: output, shape index: {}]
  $region1: #{eq.15} parent=0
    #allocation0 [shape = 'u8[4096]{0}', space=vmem, size = 0x1000, scoped, tag = 'scoped mem for output reshape']
    #allocation1 [shape = 'u8[4096]{0}', space=vmem, size = 0x1000, scoped, tag = 'scoped mem for input reshape']
    %s3 = sshllo.u32 0, 2
    %v4 = vld [vmem:[%s0] sm:%s3]
    %5 = vst [vmem:[#allocation1] sm:%s3] %v4
    %v6 = vld [vmem:[#allocation1] sm:$0x1]
    %vm7 = vcmask 15360
    %8 = vst.msk [vmem:[#allocation0] sm:$0x1] %vm7, %v6
    %s9 = scalar_lea.vmem [#allocation1], 1
    %v10 = vld [vmem:[%s9] sm:$0x1]
    %11 = vrot.lane.b32.xlu0 %v10, 2
    %v12 = vpop.permute.xlu0 %11
    %vm13 = vcmask 31760
    %14 = vst.msk [vmem:[#allocation0] sm:$0x1] %vm13, %v12
    %s16 = sshllo.u32 0, 1
    %v18 = vld [vmem:[#allocation0] sm:%s16]
    %s19 = sshllo.u32 0, 1
    %20 = vst [vmem:[%s1] sm:%s19] %v18

// kernel: gsgm_forward.6
$region0: #{gsgm_forward.6}
  #allocation0 [shape = 'u32[]', space=smem, size = 0x4, offset = 0x4, fixed_abs, tag = 'smem constant byte address 0x4 - core index']
  #allocation1 [shape = 'u32[144,128]{1,0:T(1,128)}', space=vmem, size = 0x12000, scoped, tag = 'internal scratch']
  %s0 = inlined_call_operand.vmem [shape: f32[4,32], index: 0, kind: input, shape index: {}]
  %s1 = inlined_call_operand.vmem [shape: f32[4,4], index: 1, kind: input, shape index: {}]
  %s2 = inlined_call_operand.vmem [shape: f32[4,9], index: 2, kind: input, shape index: {}]
  %s3 = inlined_call_operand.hbm [shape: f32[32,64], index: 3, kind: input, shape index: {}]
  %s4 = inlined_call_operand.vmem [shape: f32[1,64], index: 4, kind: input, shape index: {}]
  %s5 = inlined_call_operand.vmem [shape: f32[64,32], index: 5, kind: input, shape index: {}]
  %s6 = inlined_call_operand.hbm [shape: f32[1,32], index: 6, kind: input, shape index: {}]
  %s7 = inlined_call_operand.hbm [shape: f32[4,64], index: 7, kind: input, shape index: {}]
  %s8 = inlined_call_operand.hbm [shape: f32[1,64], index: 8, kind: input, shape index: {}]
  %s9 = inlined_call_operand.vmem [shape: f32[64,32], index: 9, kind: input, shape index: {}]
  %s10 = inlined_call_operand.hbm [shape: f32[1,32], index: 10, kind: input, shape index: {}]
  %s11 = inlined_call_operand.hbm [shape: f32[9,64], index: 11, kind: input, shape index: {}]
  %s12 = inlined_call_operand.hbm [shape: f32[1,64], index: 12, kind: input, shape index: {}]
  %s13 = inlined_call_operand.vmem [shape: f32[64,32], index: 13, kind: input, shape index: {}]
  %s14 = inlined_call_operand.hbm [shape: f32[1,32], index: 14, kind: input, shape index: {}]
  %s15 = inlined_call_operand.hbm [shape: f32[32,96], index: 15, kind: input, shape index: {}]
  %s16 = inlined_call_operand.hbm [shape: f32[32,96], index: 16, kind: input, shape index: {}]
  %s17 = inlined_call_operand.hbm [shape: f32[32,96], index: 17, kind: input, shape index: {}]
  %s18 = inlined_call_operand.hbm [shape: f32[1,96], index: 18, kind: input, shape index: {}]
  %s19 = inlined_call_operand.vmem [shape: f32[4,96], index: 19, kind: output, shape index: {}]
  %s20 = sld [smem:[#allocation0]]
  $region134: #{gsgm_forward.6} parent=0
    _
  %s22 = ssub.s32 1, %s20
  %s23 = scalar_select 0, %s22, %s20
  $region1: #{gsgm_forward.6} parent=0
    #allocation2 [shape = 'u8[16384]{0}', space=vmem, size = 0x4000, scoped, tag = 'input window, operand 3, single buffered']
    #allocation3 [shape = 's32[1]{0}', space=sflag, size = 0x4, scoped, tag = 'scoped memory for gsgm_forward.6']
    #allocation4 [shape = 'u8[512]{0}', space=vmem, size = 0x400, scoped, tag = 'input window, operand 6, single buffered']
    #allocation5 [shape = 's32[1]{0}', space=sflag, size = 0x4, scoped, tag = 'scoped memory for gsgm_forward.6']
    #allocation6 [shape = 'u8[2048]{0}', space=vmem, size = 0x800, scoped, tag = 'input window, operand 7, single buffered']
    #allocation7 [shape = 'u8[512]{0}', space=vmem, size = 0x400, scoped, tag = 'input window, operand 8, single buffered']
    #allocation8 [shape = 's32[1]{0}', space=sflag, size = 0x4, scoped, tag = 'scoped memory for gsgm_forward.6']
    #allocation9 [shape = 'u8[512]{0}', space=vmem, size = 0x400, scoped, tag = 'input window, operand 10, single buffered']
    #allocation10 [shape = 'u8[8192]{0}', space=vmem, size = 0x2000, scoped, tag = 'input window, operand 11, single buffered']
    #allocation11 [shape = 's32[1]{0}', space=sflag, size = 0x4, scoped, tag = 'scoped memory for gsgm_forward.6']
    #allocation12 [shape = 'u8[512]{0}', space=vmem, size = 0x400, scoped, tag = 'input window, operand 12, single buffered']
    #allocation13 [shape = 'u8[512]{0}', space=vmem, size = 0x400, scoped, tag = 'input window, operand 14, single buffered']
    #allocation14 [shape = 's32[1]{0}', space=sflag, size = 0x4, scoped, tag = 'scoped memory for gsgm_forward.6']
    #allocation15 [shape = 'u8[16384]{0}', space=vmem, size = 0x4000, scoped, tag = 'input window, operand 15, single buffered']
    #allocation16 [shape = 'u8[16384]{0}', space=vmem, size = 0x4000, scoped, tag = 'input window, operand 16, single buffered']
    #allocation17 [shape = 's32[1]{0}', space=sflag, size = 0x4, scoped, tag = 'scoped memory for gsgm_forward.6']
    #allocation18 [shape = 'u8[16384]{0}', space=vmem, size = 0x4000, scoped, tag = 'input window, operand 17, single buffered']
    #allocation19 [shape = 'u8[512]{0}', space=vmem, size = 0x400, scoped, tag = 'input window, operand 18, single buffered']
    #allocation20 [shape = 's32[1]{0}', space=sflag, size = 0x4, scoped, tag = 'scoped memory for gsgm_forward.6']
    %24 = vsyncpa [#allocation3], 0
    %25 = vsyncpa [#allocation5], 0
    %26 = vsyncpa [#allocation8], 0
    %27 = vsyncpa [#allocation11], 0
    %28 = vsyncpa [#allocation14], 0
    %29 = vsyncpa [#allocation17], 0
    %30 = vsyncpa [#allocation20], 0
    // Predicated region
    $region2: #{gsgm_forward.6} parent=1 // pred_check
      _
    $region3: #{gsgm_forward.6} parent=1 // pred_check_branch
      %32 = sbr.rel (0) target = $region5
    $region4: #{gsgm_forward.6} parent=1 // pred_region
      _
    $region5: #{gsgm_forward.6} parent=1 // pred_fallthru
      _
    // Predicated region
    $region6: #{gsgm_forward.6} parent=1 // pred_check
      _
    $region7: #{gsgm_forward.6} parent=1 // pred_check_branch
      %34 = sbr.rel (0) target = $region9
    $region8: #{gsgm_forward.6} parent=1 // pred_region
      _
    $region9: #{gsgm_forward.6} parent=1 // pred_fallthru
      _
    // Predicated region
    $region10: #{gsgm_forward.6} parent=1 // pred_check
      _
    $region11: #{gsgm_forward.6} parent=1 // pred_check_branch
      %36 = sbr.rel (0) target = $region13
    $region12: #{gsgm_forward.6} parent=1 // pred_region
      _
    $region13: #{gsgm_forward.6} parent=1 // pred_fallthru
      _
    // Predicated region
    $region14: #{gsgm_forward.6} parent=1 // pred_check
      _
    $region15: #{gsgm_forward.6} parent=1 // pred_check_branch
      %38 = sbr.rel (0) target = $region17
    $region16: #{gsgm_forward.6} parent=1 // pred_region
      %s40 = ssub.s32 512, 512
      %41 = vsyncadd [#allocation3], %s40
      %s42 = sshll.u32 [#allocation2], 4
      %s43 = int_to_ptr.vmem [resolvable:$true] %s42
      %48 = dma.hbm_to_vmem [thread:$0]  %s3, 512, %s43, [#allocation3], 128, 128, 8
    $region17: #{gsgm_forward.6} parent=1 // pred_fallthru
      _
    // Predicated region
    $region18: #{gsgm_forward.6} parent=1 // pred_check
      _
    $region19: #{gsgm_forward.6} parent=1 // pred_check_branch
      %50 = sbr.rel (0) target = $region21
    $region20: #{gsgm_forward.6} parent=1 // pred_region
      _
    $region21: #{gsgm_forward.6} parent=1 // pred_fallthru
      _
    // Predicated region
    $region22: #{gsgm_forward.6} parent=1 // pred_check
      _
    $region23: #{gsgm_forward.6} parent=1 // pred_check_branch
      %52 = sbr.rel (0) target = $region25
    $region24: #{gsgm_forward.6} parent=1 // pred_region
      _
    $region25: #{gsgm_forward.6} parent=1 // pred_fallthru
      _
    // Predicated region
    $region26: #{gsgm_forward.6} parent=1 // pred_check
      _
    $region27: #{gsgm_forward.6} parent=1 // pred_check_branch
      %54 = sbr.rel (0) target = $region29
    $region28: #{gsgm_forward.6} parent=1 // pred_region
      %s56 = ssub.s32 16, 16
      %57 = vsyncadd [#allocation5], %s56
      %s59 = sshll.u32 [#allocation4], 4
      %s60 = int_to_ptr.vmem [resolvable:$true] %s59
      %62 = dma.hbm_to_vmem [thread:$0]  %s6, 16, %s60, [#allocation5]
    $region29: #{gsgm_forward.6} parent=1 // pred_fallthru
      _
    // Predicated region
    $region30: #{gsgm_forward.6} parent=1 // pred_check
      _
    $region31: #{gsgm_forward.6} parent=1 // pred_check_branch
      %64 = sbr.rel (0) target = $region33
    $region32: #{gsgm_forward.6} parent=1 // pred_region
      %s66 = ssub.s32 64, 64
      %67 = vsyncadd [#allocation5], %s66
      %s69 = sshll.u32 [#allocation6], 4
      %s70 = int_to_ptr.vmem [resolvable:$true] %s69
      %72 = dma.hbm_to_vmem [thread:$0]  %s7, 64, %s70, [#allocation5]
    $region33: #{gsgm_forward.6} parent=1 // pred_fallthru
      _
    // Predicated region
    $region34: #{gsgm_forward.6} parent=1 // pred_check
      _
    $region35: #{gsgm_forward.6} parent=1 // pred_check_branch
      %74 = sbr.rel (0) target = $region37
    $region36: #{gsgm_forward.6} parent=1 // pred_region
      %s76 = ssub.s32 16, 16
      %77 = vsyncadd [#allocation8], %s76
      %s79 = sshll.u32 [#allocation7], 4
      %s80 = int_to_ptr.vmem [resolvable:$true] %s79
      %82 = dma.hbm_to_vmem [thread:$0]  %s8, 16, %s80, [#allocation8]
    $region37: #{gsgm_forward.6} parent=1 // pred_fallthru
      _
    // Predicated region
    $region38: #{gsgm_forward.6} parent=1 // pred_check
      _
    $region39: #{gsgm_forward.6} parent=1 // pred_check_branch
      %84 = sbr.rel (0) target = $region41
    $region40: #{gsgm_forward.6} parent=1 // pred_region
      _
    $region41: #{gsgm_forward.6} parent=1 // pred_fallthru
      _
    // Predicated region
    $region42: #{gsgm_forward.6} parent=1 // pred_check
      _
    $region43: #{gsgm_forward.6} parent=1 // pred_check_branch
      %86 = sbr.rel (0) target = $region45
    $region44: #{gsgm_forward.6} parent=1 // pred_region
      %s88 = ssub.s32 16, 16
      %89 = vsyncadd [#allocation8], %s88
      %s91 = sshll.u32 [#allocation9], 4
      %s92 = int_to_ptr.vmem [resolvable:$true] %s91
      %94 = dma.hbm_to_vmem [thread:$0]  %s10, 16, %s92, [#allocation8]
    $region45: #{gsgm_forward.6} parent=1 // pred_fallthru
      _
    // Predicated region
    $region46: #{gsgm_forward.6} parent=1 // pred_check
      _
    $region47: #{gsgm_forward.6} parent=1 // pred_check_branch
      %96 = sbr.rel (0) target = $region49
    $region48: #{gsgm_forward.6} parent=1 // pred_region
      %s98 = ssub.s32 256, 256
      %99 = vsyncadd [#allocation11], %s98
      %s100 = sshll.u32 [#allocation10], 4
      %s101 = int_to_ptr.vmem [resolvable:$true] %s100
      %106 = dma.hbm_to_vmem [thread:$0]  %s11, 256, %s101, [#allocation11], 128, 128, 8
    $region49: #{gsgm_forward.6} parent=1 // pred_fallthru
      _
    // Predicated region
    $region50: #{gsgm_forward.6} parent=1 // pred_check
      _
    $region51: #{gsgm_forward.6} parent=1 // pred_check_branch
      %108 = sbr.rel (0) target = $region53
    $region52: #{gsgm_forward.6} parent=1 // pred_region
      %s110 = ssub.s32 16, 16
      %111 = vsyncadd [#allocation11], %s110
      %s113 = sshll.u32 [#allocation12], 4
      %s114 = int_to_ptr.vmem [resolvable:$true] %s113
      %116 = dma.hbm_to_vmem [thread:$0]  %s12, 16, %s114, [#allocation11]
    $region53: #{gsgm_forward.6} parent=1 // pred_fallthru
      _
    // Predicated region
    $region54: #{gsgm_forward.6} parent=1 // pred_check
      _
    $region55: #{gsgm_forward.6} parent=1 // pred_check_branch
      %118 = sbr.rel (0) target = $region57
    $region56: #{gsgm_forward.6} parent=1 // pred_region
      _
    $region57: #{gsgm_forward.6} parent=1 // pred_fallthru
      _
    // Predicated region
    $region58: #{gsgm_forward.6} parent=1 // pred_check
      _
    $region59: #{gsgm_forward.6} parent=1 // pred_check_branch
      %120 = sbr.rel (0) target = $region61
    $region60: #{gsgm_forward.6} parent=1 // pred_region
      %s122 = ssub.s32 16, 16
      %123 = vsyncadd [#allocation14], %s122
      %s125 = sshll.u32 [#allocation13], 4
      %s126 = int_to_ptr.vmem [resolvable:$true] %s125
      %128 = dma.hbm_to_vmem [thread:$0]  %s14, 16, %s126, [#allocation14]
    $region61: #{gsgm_forward.6} parent=1 // pred_fallthru
      _
    // Predicated region
    $region62: #{gsgm_forward.6} parent=1 // pred_check
      _
    $region63: #{gsgm_forward.6} parent=1 // pred_check_branch
      %130 = sbr.rel (0) target = $region65
    $region64: #{gsgm_forward.6} parent=1 // pred_region
      %s132 = ssub.s32 512, 512
      %133 = vsyncadd [#allocation14], %s132
      %s134 = sshll.u32 [#allocation15], 4
      %s135 = int_to_ptr.vmem [resolvable:$true] %s134
      %140 = dma.hbm_to_vmem [thread:$0]  %s15, 512, %s135, [#allocation14], 128, 128, 8
    $region65: #{gsgm_forward.6} parent=1 // pred_fallthru
      _
    // Predicated region
    $region66: #{gsgm_forward.6} parent=1 // pred_check
      _
    $region67: #{gsgm_forward.6} parent=1 // pred_check_branch
      %142 = sbr.rel (0) target = $region69
    $region68: #{gsgm_forward.6} parent=1 // pred_region
      %s144 = ssub.s32 512, 512
      %145 = vsyncadd [#allocation17], %s144
      %s146 = sshll.u32 [#allocation16], 4
      %s147 = int_to_ptr.vmem [resolvable:$true] %s146
      %152 = dma.hbm_to_vmem [thread:$0]  %s16, 512, %s147, [#allocation17], 128, 128, 8
    $region69: #{gsgm_forward.6} parent=1 // pred_fallthru
      _
    // Predicated region
    $region70: #{gsgm_forward.6} parent=1 // pred_check
      _
    $region71: #{gsgm_forward.6} parent=1 // pred_check_branch
      %154 = sbr.rel (0) target = $region73
    $region72: #{gsgm_forward.6} parent=1 // pred_region
      %s156 = ssub.s32 512, 512
      %157 = vsyncadd [#allocation17], %s156
      %s158 = sshll.u32 [#allocation18], 4
      %s159 = int_to_ptr.vmem [resolvable:$true] %s158
      %164 = dma.hbm_to_vmem [thread:$0]  %s17, 512, %s159, [#allocation17], 128, 128, 8
    $region73: #{gsgm_forward.6} parent=1 // pred_fallthru
      _
    // Predicated region
    $region74: #{gsgm_forward.6} parent=1 // pred_check
      _
    $region75: #{gsgm_forward.6} parent=1 // pred_check_branch
      %166 = sbr.rel (0) target = $region77
    $region76: #{gsgm_forward.6} parent=1 // pred_region
      %s168 = ssub.s32 16, 16
      %169 = vsyncadd [#allocation20], %s168
      %s171 = sshll.u32 [#allocation19], 4
      %s172 = int_to_ptr.vmem [resolvable:$true] %s171
      %174 = dma.hbm_to_vmem [thread:$0]  %s18, 16, %s172, [#allocation20]
    $region77: #{gsgm_forward.6} parent=1 // pred_fallthru
      _
    // Predicated region
    $region78: #{gsgm_forward.6} parent=1 // pred_check
      _
    $region79: #{gsgm_forward.6} parent=1 // pred_check_branch
      %176 = sbr.rel (0) target = $region81
    $region80: #{gsgm_forward.6} parent=1 // pred_region
      %177 = dma.done [#allocation3], 512
    $region81: #{gsgm_forward.6} parent=1 // pred_fallthru
      _
    // Predicated region
    $region82: #{gsgm_forward.6} parent=1 // pred_check
      _
    $region83: #{gsgm_forward.6} parent=1 // pred_check_branch
      %179 = sbr.rel (0) target = $region85
    $region84: #{gsgm_forward.6} parent=1 // pred_region
      %180 = dma.done [#allocation5], 16
    $region85: #{gsgm_forward.6} parent=1 // pred_fallthru
      _
    // Predicated region
    $region86: #{gsgm_forward.6} parent=1 // pred_check
      _
    $region87: #{gsgm_forward.6} parent=1 // pred_check_branch
      %182 = sbr.rel (0) target = $region89
    $region88: #{gsgm_forward.6} parent=1 // pred_region
      %183 = dma.done [#allocation5], 64
    $region89: #{gsgm_forward.6} parent=1 // pred_fallthru
      _
    // Predicated region
    $region90: #{gsgm_forward.6} parent=1 // pred_check
      _
    $region91: #{gsgm_forward.6} parent=1 // pred_check_branch
      %185 = sbr.rel (0) target = $region93
    $region92: #{gsgm_forward.6} parent=1 // pred_region
      %186 = dma.done [#allocation8], 16
    $region93: #{gsgm_forward.6} parent=1 // pred_fallthru
      _
    // Predicated region
    $region94: #{gsgm_forward.6} parent=1 // pred_check
      _
    $region95: #{gsgm_forward.6} parent=1 // pred_check_branch
      %188 = sbr.rel (0) target = $region97
    $region96: #{gsgm_forward.6} parent=1 // pred_region
      %189 = dma.done [#allocation8], 16
    $region97: #{gsgm_forward.6} parent=1 // pred_fallthru
      _
    // Predicated region
    $region98: #{gsgm_forward.6} parent=1 // pred_check
      _
    $region99: #{gsgm_forward.6} parent=1 // pred_check_branch
      %191 = sbr.rel (0) target = $region101
    $region100: #{gsgm_forward.6} parent=1 // pred_region
      %192 = dma.done [#allocation11], 256
    $region101: #{gsgm_forward.6} parent=1 // pred_fallthru
      _
    // Predicated region
    $region102: #{gsgm_forward.6} parent=1 // pred_check
      _
    $region103: #{gsgm_forward.6} parent=1 // pred_check_branch
      %194 = sbr.rel (0) target = $region105
    $region104: #{gsgm_forward.6} parent=1 // pred_region
      %195 = dma.done [#allocation11], 16
    $region105: #{gsgm_forward.6} parent=1 // pred_fallthru
      _
    // Predicated region
    $region106: #{gsgm_forward.6} parent=1 // pred_check
      _
    $region107: #{gsgm_forward.6} parent=1 // pred_check_branch
      %197 = sbr.rel (0) target = $region109
    $region108: #{gsgm_forward.6} parent=1 // pred_region
      %198 = dma.done [#allocation14], 16
    $region109: #{gsgm_forward.6} parent=1 // pred_fallthru
      _
    // Predicated region
    $region110: #{gsgm_forward.6} parent=1 // pred_check
      _
    $region111: #{gsgm_forward.6} parent=1 // pred_check_branch
      %200 = sbr.rel (0) target = $region113
    $region112: #{gsgm_forward.6} parent=1 // pred_region
      %201 = dma.done [#allocation14], 512
    $region113: #{gsgm_forward.6} parent=1 // pred_fallthru
      _
    // Predicated region
    $region114: #{gsgm_forward.6} parent=1 // pred_check
      _
    $region115: #{gsgm_forward.6} parent=1 // pred_check_branch
      %203 = sbr.rel (0) target = $region117
    $region116: #{gsgm_forward.6} parent=1 // pred_region
      %204 = dma.done [#allocation17], 512
    $region117: #{gsgm_forward.6} parent=1 // pred_fallthru
      _
    // Predicated region
    $region118: #{gsgm_forward.6} parent=1 // pred_check
      _
    $region119: #{gsgm_forward.6} parent=1 // pred_check_branch
      %206 = sbr.rel (0) target = $region121
    $region120: #{gsgm_forward.6} parent=1 // pred_region
      %207 = dma.done [#allocation17], 512
    $region121: #{gsgm_forward.6} parent=1 // pred_fallthru
      _
    // Predicated region
    $region122: #{gsgm_forward.6} parent=1 // pred_check
      _
    $region123: #{gsgm_forward.6} parent=1 // pred_check_branch
      %209 = sbr.rel (0) target = $region125
    $region124: #{gsgm_forward.6} parent=1 // pred_region
      %210 = dma.done [#allocation20], 16
    $region125: #{gsgm_forward.6} parent=1 // pred_fallthru
      _
    %v211 = vld [vmem:[%s0] sm:$0xf]
    %v212 = vld [vmem:[#allocation2] sm:$0xff]
    %v213 = vld [vmem:[#allocation2 + $0x8] sm:$0xff]
    %v214 = vld [vmem:[#allocation2 + $0x10] sm:$0xff]
    %v215 = vld [vmem:[#allocation2 + $0x18] sm:$0xff]
    %v216 = vld [vmem:[%s4] sm:$0x1]
    %v218 = vlaneseq
    %v219 = vshrl.u32 %v218, 7
    %v220 = vsub.s32 0, %v219
    %v221 = vrot.slane %v216, %v220
    %vm223 = vcmask 261120
    %v225 = vsel %vm223, %v211, 0
    %227 = vmatprep.subr.mxu0 0.0
    %228 = vmatpush1.msra.mxu0 %v212
    %229 = vmatprep.subr.mxu0 0.0
    %230 = vmatpush1.msra.mxu0 %v213
    %231 = vmatprep.subr.mxu0 0.0
    %232 = vmatpush1.msra.mxu0 %v214
    %233 = vmatprep.subr.mxu0 0.0
    %234 = vmatpush1.msra.mxu0 %v215
    %235 = vmatprep.subr.mxu0 0.0
    %236 = vmatpush1.msra.mxu0 0.0
    %237 = vmatprep.subr.mxu0 0.0
    %238 = vmatpush1.msra.mxu0 0.0
    %239 = vmatprep.subr.mxu0 0.0
    %240 = vmatpush1.msra.mxu0 0.0
    %241 = vmatprep.subr.mxu0 0.0
    %242 = vmatpush1.msra.mxu0 0.0
    %243 = vmatprep.subr.mxu0 0.0
    %244 = vmatpush1.msra.mxu0 0.0
    %245 = vmatprep.subr.mxu0 0.0
    %246 = vmatpush1.msra.mxu0 0.0
    %247 = vmatprep.subr.mxu0 0.0
    %248 = vmatpush1.msra.mxu0 0.0
    %249 = vmatprep.subr.mxu0 0.0
    %250 = vmatpush1.msra.mxu0 0.0
    %251 = vmatprep.subr.mxu0 0.0
    %252 = vmatpush1.msra.mxu0 0.0
    %253 = vmatprep.subr.mxu0 0.0
    %254 = vmatpush1.msra.mxu0 0.0
    %255 = vmatprep.subr.mxu0 0.0
    %256 = vmatpush1.msra.mxu0 0.0
    %257 = vmatprep.subr.mxu0 0.0
    %258 = vmatpush1.msra.mxu0 0.0
    %259 = vmatprep.subr.mxu0 0.0
    %260 = vmatpush1.msra.mxu0 0.0
    %261 = vmatprep.subr.mxu0 0.0
    %262 = vmatpush1.msra.mxu0 0.0
    %263 = vmatprep.subr.mxu0 0.0
    %264 = vmatpush1.msra.mxu0 0.0
    %265 = vmatprep.subr.mxu0 0.0
    %266 = vmatpush1.msra.mxu0 0.0
    %267 = vmatprep.subr.mxu0 0.0
    %268 = vmatpush1.msra.mxu0 0.0
    %269 = vmatprep.subr.mxu0 0.0
    %270 = vmatpush1.msra.mxu0 0.0
    %271 = vmatprep.subr.mxu0 0.0
    %272 = vmatpush1.msra.mxu0 0.0
    %273 = vmatprep.subr.mxu0 0.0
    %274 = vmatpush1.msra.mxu0 0.0
    %275 = vmatprep.subr.mxu0 0.0
    %276 = vmatpush1.msra.mxu0 0.0
    %277 = vmatprep.subr.mxu0 0.0
    %278 = vmatpush1.msra.mxu0 0.0
    %279 = vmatprep.subr.mxu0 0.0
    %280 = vmatpush1.msra.mxu0 0.0
    %281 = vmatprep.subr.mxu0 0.0
    %282 = vmatpush1.msra.mxu0 0.0
    %283 = vmatprep.subr.mxu0 0.0
    %284 = vmatpush1.msra.mxu0 0.0
    %285 = vmatprep.subr.mxu0 0.0
    %286 = vmatpush1.msra.mxu0 0.0
    %287 = vmatprep.subr.mxu0 0.0
    %288 = vmatpush1.msra.mxu0 0.0
    %289 = vmatprep.subr.mxu0 0.0
    %290 = vmatpush1.msra.mxu0 0.0
    %291 = vmatprep.mubr.f32.mxu0 0.0
    %292 = vmatmul.mubr.f32.gmra.mrb[0].mxu0 %v225
    %v293 = vpop.f32.mrb[0].mxu0
    %v294 = vadd.f32 %v221, %v293
    %v295 = vpop.f32.mrb[0].mxu0
    %296 = vdwg.mxu0
    %v297 = vxor.u32 %v294, 2147483648
    %v298 = vmul.f32 %v297, 1.442695
    %v299 = vpow.pop %v298
    %v300 = vadd.f32 %v299, 1.0
    %v301 = vrcp.pop %v300
    %v302 = vmul.f32 1.0, %v301
    %v303 = vmul.f32 %v294, %v302
    %v304 = vld [vmem:[%s5] sm:$0xff]
    %v305 = vld [vmem:[%s5 + $0x8] sm:$0xff]
    %v306 = vld [vmem:[%s5 + $0x10] sm:$0xff]
    %v307 = vld [vmem:[%s5 + $0x18] sm:$0xff]
    %v308 = vld [vmem:[%s5 + $0x20] sm:$0xff]
    %v309 = vld [vmem:[%s5 + $0x28] sm:$0xff]
    %v310 = vld [vmem:[%s5 + $0x30] sm:$0xff]
    %v311 = vld [vmem:[%s5 + $0x38] sm:$0xff]
    %v312 = vld [vmem:[#allocation4] sm:$0x1]
    %v314 = vlaneseq
    %v315 = vshrl.u32 %v314, 7
    %v316 = vsub.s32 0, %v315
    %v317 = vrot.slane %v312, %v316
    %vm319 = vcmask 523264
    %v321 = vsel %vm319, %v303, 0
    %323 = vmatprep.subr.mxu0 0.0
    %324 = vmatpush1.msra.mxu0 %v304
    %325 = vmatprep.subr.mxu0 0.0
    %326 = vmatpush1.msra.mxu0 %v305
    %327 = vmatprep.subr.mxu0 0.0
    %328 = vmatpush1.msra.mxu0 %v306
    %329 = vmatprep.subr.mxu0 0.0
    %330 = vmatpush1.msra.mxu0 %v307
    %331 = vmatprep.subr.mxu0 0.0
    %332 = vmatpush1.msra.mxu0 %v308
    %333 = vmatprep.subr.mxu0 0.0
    %334 = vmatpush1.msra.mxu0 %v309
    %335 = vmatprep.subr.mxu0 0.0
    %336 = vmatpush1.msra.mxu0 %v310
    %337 = vmatprep.subr.mxu0 0.0
    %338 = vmatpush1.msra.mxu0 %v311
    %339 = vmatprep.subr.mxu0 0.0
    %340 = vmatpush1.msra.mxu0 0.0
    %341 = vmatprep.subr.mxu0 0.0
    %342 = vmatpush1.msra.mxu0 0.0
    %343 = vmatprep.subr.mxu0 0.0
    %344 = vmatpush1.msra.mxu0 0.0
    %345 = vmatprep.subr.mxu0 0.0
    %346 = vmatpush1.msra.mxu0 0.0
    %347 = vmatprep.subr.mxu0 0.0
    %348 = vmatpush1.msra.mxu0 0.0
    %349 = vmatprep.subr.mxu0 0.0
    %350 = vmatpush1.msra.mxu0 0.0
    %351 = vmatprep.subr.mxu0 0.0
    %352 = vmatpush1.msra.mxu0 0.0
    %353 = vmatprep.subr.mxu0 0.0
    %354 = vmatpush1.msra.mxu0 0.0
    %355 = vmatprep.subr.mxu0 0.0
    %356 = vmatpush1.msra.mxu0 0.0
    %357 = vmatprep.subr.mxu0 0.0
    %358 = vmatpush1.msra.mxu0 0.0
    %359 = vmatprep.subr.mxu0 0.0
    %360 = vmatpush1.msra.mxu0 0.0
    %361 = vmatprep.subr.mxu0 0.0
    %362 = vmatpush1.msra.mxu0 0.0
    %363 = vmatprep.subr.mxu0 0.0
    %364 = vmatpush1.msra.mxu0 0.0
    %365 = vmatprep.subr.mxu0 0.0
    %366 = vmatpush1.msra.mxu0 0.0
    %367 = vmatprep.subr.mxu0 0.0
    %368 = vmatpush1.msra.mxu0 0.0
    %369 = vmatprep.subr.mxu0 0.0
    %370 = vmatpush1.msra.mxu0 0.0
    %371 = vmatprep.subr.mxu0 0.0
    %372 = vmatpush1.msra.mxu0 0.0
    %373 = vmatprep.subr.mxu0 0.0
    %374 = vmatpush1.msra.mxu0 0.0
    %375 = vmatprep.subr.mxu0 0.0
    %376 = vmatpush1.msra.mxu0 0.0
    %377 = vmatprep.subr.mxu0 0.0
    %378 = vmatpush1.msra.mxu0 0.0
    %379 = vmatprep.subr.mxu0 0.0
    %380 = vmatpush1.msra.mxu0 0.0
    %381 = vmatprep.subr.mxu0 0.0
    %382 = vmatpush1.msra.mxu0 0.0
    %383 = vmatprep.subr.mxu0 0.0
    %384 = vmatpush1.msra.mxu0 0.0
    %385 = vmatprep.subr.mxu0 0.0
    %386 = vmatpush1.msra.mxu0 0.0
    %387 = vmatprep.mubr.f32.mxu0 0.0
    %388 = vmatmul.mubr.f32.gmra.mrb[0].mxu0 %v321
    %v389 = vpop.f32.mrb[0].mxu0
    %v390 = vadd.f32 %v317, %v389
    %v391 = vpop.f32.mrb[0].mxu0
    %392 = vdwg.mxu0
    %v393 = vxor.u32 %v390, 2147483648
    %v394 = vmul.f32 %v393, 1.442695
    %v395 = vpow.pop %v394
    %v396 = vadd.f32 %v395, 1.0
    %v397 = vrcp.pop %v396
    %v398 = vmul.f32 1.0, %v397
    %v399 = vmul.f32 %v390, %v398
    %v400 = vld [vmem:[%s1] sm:$0xf]
    %v401 = vld [vmem:[#allocation6] sm:$0xf]
    %v402 = vld [vmem:[#allocation7] sm:$0x1]
    %v404 = vlaneseq
    %v405 = vshrl.u32 %v404, 7
    %v406 = vsub.s32 0, %v405
    %v407 = vrot.slane %v402, %v406
    %vm409 = vcmask 31744
    %v411 = vsel %vm409, %v400, 0
    %vm413 = vcmask 1043456
    %v415 = vsel %vm413, %v401, 0
    %417 = vmatprep.subr.mxu0 0.0
    %418 = vmatpush1.msra.mxu0 %v415
    %419 = vmatprep.subr.mxu0 0.0
    %420 = vmatpush1.msra.mxu0 0.0
    %421 = vmatprep.subr.mxu0 0.0
    %422 = vmatpush1.msra.mxu0 0.0
    %423 = vmatprep.subr.mxu0 0.0
    %424 = vmatpush1.msra.mxu0 0.0
    %425 = vmatprep.subr.mxu0 0.0
    %426 = vmatpush1.msra.mxu0 0.0
    %427 = vmatprep.subr.mxu0 0.0
    %428 = vmatpush1.msra.mxu0 0.0
    %429 = vmatprep.subr.mxu0 0.0
    %430 = vmatpush1.msra.mxu0 0.0
    %431 = vmatprep.subr.mxu0 0.0
    %432 = vmatpush1.msra.mxu0 0.0
    %433 = vmatprep.subr.mxu0 0.0
    %434 = vmatpush1.msra.mxu0 0.0
    %435 = vmatprep.subr.mxu0 0.0
    %436 = vmatpush1.msra.mxu0 0.0
    %437 = vmatprep.subr.mxu0 0.0
    %438 = vmatpush1.msra.mxu0 0.0
    %439 = vmatprep.subr.mxu0 0.0
    %440 = vmatpush1.msra.mxu0 0.0
    %441 = vmatprep.subr.mxu0 0.0
    %442 = vmatpush1.msra.mxu0 0.0
    %443 = vmatprep.subr.mxu0 0.0
    %444 = vmatpush1.msra.mxu0 0.0
    %445 = vmatprep.subr.mxu0 0.0
    %446 = vmatpush1.msra.mxu0 0.0
    %447 = vmatprep.subr.mxu0 0.0
    %448 = vmatpush1.msra.mxu0 0.0
    %449 = vmatprep.subr.mxu0 0.0
    %450 = vmatpush1.msra.mxu0 0.0
    %451 = vmatprep.subr.mxu0 0.0
    %452 = vmatpush1.msra.mxu0 0.0
    %453 = vmatprep.subr.mxu0 0.0
    %454 = vmatpush1.msra.mxu0 0.0
    %455 = vmatprep.subr.mxu0 0.0
    %456 = vmatpush1.msra.mxu0 0.0
    %457 = vmatprep.subr.mxu0 0.0
    %458 = vmatpush1.msra.mxu0 0.0
    %459 = vmatprep.subr.mxu0 0.0
    %460 = vmatpush1.msra.mxu0 0.0
    %461 = vmatprep.subr.mxu0 0.0
    %462 = vmatpush1.msra.mxu0 0.0
    %463 = vmatprep.subr.mxu0 0.0
    %464 = vmatpush1.msra.mxu0 0.0
    %465 = vmatprep.subr.mxu0 0.0
    %466 = vmatpush1.msra.mxu0 0.0
    %467 = vmatprep.subr.mxu0 0.0
    %468 = vmatpush1.msra.mxu0 0.0
    %469 = vmatprep.subr.mxu0 0.0
    %470 = vmatpush1.msra.mxu0 0.0
    %471 = vmatprep.subr.mxu0 0.0
    %472 = vmatpush1.msra.mxu0 0.0
    %473 = vmatprep.subr.mxu0 0.0
    %474 = vmatpush1.msra.mxu0 0.0
    %475 = vmatprep.subr.mxu0 0.0
    %476 = vmatpush1.msra.mxu0 0.0
    %477 = vmatprep.subr.mxu0 0.0
    %478 = vmatpush1.msra.mxu0 0.0
    %479 = vmatprep.subr.mxu0 0.0
    %480 = vmatpush1.msra.mxu0 0.0
    %481 = vmatprep.mubr.f32.mxu0 0.0
    %482 = vmatmul.mubr.f32.gmra.mrb[0].mxu0 %v411
    %v483 = vpop.f32.mrb[0].mxu0
    %v484 = vadd.f32 %v407, %v483
    %v485 = vpop.f32.mrb[0].mxu0
    %486 = vdwg.mxu0
    %v487 = vld [vmem:[%s9] sm:$0xff]
    %v488 = vld [vmem:[%s9 + $0x8] sm:$0xff]
    %v489 = vld [vmem:[%s9 + $0x10] sm:$0xff]
    %v490 = vld [vmem:[%s9 + $0x18] sm:$0xff]
    %v491 = vld [vmem:[%s9 + $0x20] sm:$0xff]
    %v492 = vld [vmem:[%s9 + $0x28] sm:$0xff]
    %v493 = vld [vmem:[%s9 + $0x30] sm:$0xff]
    %v494 = vld [vmem:[%s9 + $0x38] sm:$0xff]
    %v495 = vld [vmem:[#allocation9] sm:$0x1]
    %v497 = vlaneseq
    %v498 = vshrl.u32 %v497, 7
    %v499 = vsub.s32 0, %v498
    %v500 = vrot.slane %v495, %v499
    %v503 = vsel %vm319, %v484, 0
    %505 = vmatprep.subr.mxu0 0.0
    %506 = vmatpush1.msra.mxu0 %v487
    %507 = vmatprep.subr.mxu0 0.0
    %508 = vmatpush1.msra.mxu0 %v488
    %509 = vmatprep.subr.mxu0 0.0
    %510 = vmatpush1.msra.mxu0 %v489
    %511 = vmatprep.subr.mxu0 0.0
    %512 = vmatpush1.msra.mxu0 %v490
    %513 = vmatprep.subr.mxu0 0.0
    %514 = vmatpush1.msra.mxu0 %v491
    %515 = vmatprep.subr.mxu0 0.0
    %516 = vmatpush1.msra.mxu0 %v492
    %517 = vmatprep.subr.mxu0 0.0
    %518 = vmatpush1.msra.mxu0 %v493
    %519 = vmatprep.subr.mxu0 0.0
    %520 = vmatpush1.msra.mxu0 %v494
    %521 = vmatprep.subr.mxu0 0.0
    %522 = vmatpush1.msra.mxu0 0.0
    %523 = vmatprep.subr.mxu0 0.0
    %524 = vmatpush1.msra.mxu0 0.0
    %525 = vmatprep.subr.mxu0 0.0
    %526 = vmatpush1.msra.mxu0 0.0
    %527 = vmatprep.subr.mxu0 0.0
    %528 = vmatpush1.msra.mxu0 0.0
    %529 = vmatprep.subr.mxu0 0.0
    %530 = vmatpush1.msra.mxu0 0.0
    %531 = vmatprep.subr.mxu0 0.0
    %532 = vmatpush1.msra.mxu0 0.0
    %533 = vmatprep.subr.mxu0 0.0
    %534 = vmatpush1.msra.mxu0 0.0
    %535 = vmatprep.subr.mxu0 0.0
    %536 = vmatpush1.msra.mxu0 0.0
    %537 = vmatprep.subr.mxu0 0.0
    %538 = vmatpush1.msra.mxu0 0.0
    %539 = vmatprep.subr.mxu0 0.0
    %540 = vmatpush1.msra.mxu0 0.0
    %541 = vmatprep.subr.mxu0 0.0
    %542 = vmatpush1.msra.mxu0 0.0
    %543 = vmatprep.subr.mxu0 0.0
    %544 = vmatpush1.msra.mxu0 0.0
    %545 = vmatprep.subr.mxu0 0.0
    %546 = vmatpush1.msra.mxu0 0.0
    %547 = vmatprep.subr.mxu0 0.0
    %548 = vmatpush1.msra.mxu0 0.0
    %549 = vmatprep.subr.mxu0 0.0
    %550 = vmatpush1.msra.mxu0 0.0
    %551 = vmatprep.subr.mxu0 0.0
    %552 = vmatpush1.msra.mxu0 0.0
    %553 = vmatprep.subr.mxu0 0.0
    %554 = vmatpush1.msra.mxu0 0.0
    %555 = vmatprep.subr.mxu0 0.0
    %556 = vmatpush1.msra.mxu0 0.0
    %557 = vmatprep.subr.mxu0 0.0
    %558 = vmatpush1.msra.mxu0 0.0
    %559 = vmatprep.subr.mxu0 0.0
    %560 = vmatpush1.msra.mxu0 0.0
    %561 = vmatprep.subr.mxu0 0.0
    %562 = vmatpush1.msra.mxu0 0.0
    %563 = vmatprep.subr.mxu0 0.0
    %564 = vmatpush1.msra.mxu0 0.0
    %565 = vmatprep.subr.mxu0 0.0
    %566 = vmatpush1.msra.mxu0 0.0
    %567 = vmatprep.subr.mxu0 0.0
    %568 = vmatpush1.msra.mxu0 0.0
    %569 = vmatprep.mubr.f32.mxu0 0.0
    %570 = vmatmul.mubr.f32.gmra.mrb[0].mxu0 %v503
    %v571 = vpop.f32.mrb[0].mxu0
    %v572 = vadd.f32 %v500, %v571
    %v573 = vpop.f32.mrb[0].mxu0
    %574 = vdwg.mxu0
    %v575 = vxor.u32 %v572, 2147483648
    %v576 = vmul.f32 %v575, 1.442695
    %v577 = vpow.pop %v576
    %v578 = vadd.f32 %v577, 1.0
    %v579 = vrcp.pop %v578
    %v580 = vmul.f32 1.0, %v579
    %v581 = vmul.f32 %v572, %v580
    %v582 = vld [vmem:[%s2] sm:$0xf]
    %v583 = vld [vmem:[#allocation10] sm:$0xff]
    %v584 = vld [vmem:[#allocation10 + $0x8] sm:$0x1]
    %v585 = vld [vmem:[#allocation12] sm:$0x1]
    %v587 = vlaneseq
    %v588 = vshrl.u32 %v587, 7
    %v589 = vsub.s32 0, %v588
    %v590 = vrot.slane %v585, %v589
    %vm592 = vcmask 72704
    %v594 = vsel %vm592, %v582, 0
    %vm596 = vcmask 1040384
    %v598 = vsel %vm596, %v584, 0
    %600 = vmatprep.subr.mxu0 0.0
    %601 = vmatpush1.msra.mxu0 %v583
    %602 = vmatprep.subr.mxu0 0.0
    %603 = vmatpush1.msra.mxu0 %v598
    %604 = vmatprep.subr.mxu0 0.0
    %605 = vmatpush1.msra.mxu0 0.0
    %606 = vmatprep.subr.mxu0 0.0
    %607 = vmatpush1.msra.mxu0 0.0
    %608 = vmatprep.subr.mxu0 0.0
    %609 = vmatpush1.msra.mxu0 0.0
    %610 = vmatprep.subr.mxu0 0.0
    %611 = vmatpush1.msra.mxu0 0.0
    %612 = vmatprep.subr.mxu0 0.0
    %613 = vmatpush1.msra.mxu0 0.0
    %614 = vmatprep.subr.mxu0 0.0
    %615 = vmatpush1.msra.mxu0 0.0
    %616 = vmatprep.subr.mxu0 0.0
    %617 = vmatpush1.msra.mxu0 0.0
    %618 = vmatprep.subr.mxu0 0.0
    %619 = vmatpush1.msra.mxu0 0.0
    %620 = vmatprep.subr.mxu0 0.0
    %621 = vmatpush1.msra.mxu0 0.0
    %622 = vmatprep.subr.mxu0 0.0
    %623 = vmatpush1.msra.mxu0 0.0
    %624 = vmatprep.subr.mxu0 0.0
    %625 = vmatpush1.msra.mxu0 0.0
    %626 = vmatprep.subr.mxu0 0.0
    %627 = vmatpush1.msra.mxu0 0.0
    %628 = vmatprep.subr.mxu0 0.0
    %629 = vmatpush1.msra.mxu0 0.0
    %630 = vmatprep.subr.mxu0 0.0
    %631 = vmatpush1.msra.mxu0 0.0
    %632 = vmatprep.subr.mxu0 0.0
    %633 = vmatpush1.msra.mxu0 0.0
    %634 = vmatprep.subr.mxu0 0.0
    %635 = vmatpush1.msra.mxu0 0.0
    %636 = vmatprep.subr.mxu0 0.0
    %637 = vmatpush1.msra.mxu0 0.0
    %638 = vmatprep.subr.mxu0 0.0
    %639 = vmatpush1.msra.mxu0 0.0
    %640 = vmatprep.subr.mxu0 0.0
    %641 = vmatpush1.msra.mxu0 0.0
    %642 = vmatprep.subr.mxu0 0.0
    %643 = vmatpush1.msra.mxu0 0.0
    %644 = vmatprep.subr.mxu0 0.0
    %645 = vmatpush1.msra.mxu0 0.0
    %646 = vmatprep.subr.mxu0 0.0
    %647 = vmatpush1.msra.mxu0 0.0
    %648 = vmatprep.subr.mxu0 0.0
    %649 = vmatpush1.msra.mxu0 0.0
    %650 = vmatprep.subr.mxu0 0.0
    %651 = vmatpush1.msra.mxu0 0.0
    %652 = vmatprep.subr.mxu0 0.0
    %653 = vmatpush1.msra.mxu0 0.0
    %654 = vmatprep.subr.mxu0 0.0
    %655 = vmatpush1.msra.mxu0 0.0
    %656 = vmatprep.subr.mxu0 0.0
    %657 = vmatpush1.msra.mxu0 0.0
    %658 = vmatprep.subr.mxu0 0.0
    %659 = vmatpush1.msra.mxu0 0.0
    %660 = vmatprep.subr.mxu0 0.0
    %661 = vmatpush1.msra.mxu0 0.0
    %662 = vmatprep.subr.mxu0 0.0
    %663 = vmatpush1.msra.mxu0 0.0
    %664 = vmatprep.mubr.f32.mxu0 0.0
    %665 = vmatmul.mubr.f32.gmra.mrb[0].mxu0 %v594
    %v666 = vpop.f32.mrb[0].mxu0
    %v667 = vadd.f32 %v590, %v666
    %v668 = vpop.f32.mrb[0].mxu0
    %669 = vdwg.mxu0
    %v670 = vld [vmem:[%s13] sm:$0xff]
    %v671 = vld [vmem:[%s13 + $0x8] sm:$0xff]
    %v672 = vld [vmem:[%s13 + $0x10] sm:$0xff]
    %v673 = vld [vmem:[%s13 + $0x18] sm:$0xff]
    %v674 = vld [vmem:[%s13 + $0x20] sm:$0xff]
    %v675 = vld [vmem:[%s13 + $0x28] sm:$0xff]
    %v676 = vld [vmem:[%s13 + $0x30] sm:$0xff]
    %v677 = vld [vmem:[%s13 + $0x38] sm:$0xff]
    %v678 = vld [vmem:[#allocation13] sm:$0x1]
    %v680 = vlaneseq
    %v681 = vshrl.u32 %v680, 7
    %v682 = vsub.s32 0, %v681
    %v683 = vrot.slane %v678, %v682
    %v686 = vsel %vm319, %v667, 0
    %688 = vmatprep.subr.mxu0 0.0
    %689 = vmatpush1.msra.mxu0 %v670
    %690 = vmatprep.subr.mxu0 0.0
    %691 = vmatpush1.msra.mxu0 %v671
    %692 = vmatprep.subr.mxu0 0.0
    %693 = vmatpush1.msra.mxu0 %v672
    %694 = vmatprep.subr.mxu0 0.0
    %695 = vmatpush1.msra.mxu0 %v673
    %696 = vmatprep.subr.mxu0 0.0
    %697 = vmatpush1.msra.mxu0 %v674
    %698 = vmatprep.subr.mxu0 0.0
    %699 = vmatpush1.msra.mxu0 %v675
    %700 = vmatprep.subr.mxu0 0.0
    %701 = vmatpush1.msra.mxu0 %v676
    %702 = vmatprep.subr.mxu0 0.0
    %703 = vmatpush1.msra.mxu0 %v677
    %704 = vmatprep.subr.mxu0 0.0
    %705 = vmatpush1.msra.mxu0 0.0
    %706 = vmatprep.subr.mxu0 0.0
    %707 = vmatpush1.msra.mxu0 0.0
    %708 = vmatprep.subr.mxu0 0.0
    %709 = vmatpush1.msra.mxu0 0.0
    %710 = vmatprep.subr.mxu0 0.0
    %711 = vmatpush1.msra.mxu0 0.0
    %712 = vmatprep.subr.mxu0 0.0
    %713 = vmatpush1.msra.mxu0 0.0
    %714 = vmatprep.subr.mxu0 0.0
    %715 = vmatpush1.msra.mxu0 0.0
    %716 = vmatprep.subr.mxu0 0.0
    %717 = vmatpush1.msra.mxu0 0.0
    %718 = vmatprep.subr.mxu0 0.0
    %719 = vmatpush1.msra.mxu0 0.0
    %720 = vmatprep.subr.mxu0 0.0
    %721 = vmatpush1.msra.mxu0 0.0
    %722 = vmatprep.subr.mxu0 0.0
    %723 = vmatpush1.msra.mxu0 0.0
    %724 = vmatprep.subr.mxu0 0.0
    %725 = vmatpush1.msra.mxu0 0.0
    %726 = vmatprep.subr.mxu0 0.0
    %727 = vmatpush1.msra.mxu0 0.0
    %728 = vmatprep.subr.mxu0 0.0
    %729 = vmatpush1.msra.mxu0 0.0
    %730 = vmatprep.subr.mxu0 0.0
    %731 = vmatpush1.msra.mxu0 0.0
    %732 = vmatprep.subr.mxu0 0.0
    %733 = vmatpush1.msra.mxu0 0.0
    %734 = vmatprep.subr.mxu0 0.0
    %735 = vmatpush1.msra.mxu0 0.0
    %736 = vmatprep.subr.mxu0 0.0
    %737 = vmatpush1.msra.mxu0 0.0
    %738 = vmatprep.subr.mxu0 0.0
    %739 = vmatpush1.msra.mxu0 0.0
    %740 = vmatprep.subr.mxu0 0.0
    %741 = vmatpush1.msra.mxu0 0.0
    %742 = vmatprep.subr.mxu0 0.0
    %743 = vmatpush1.msra.mxu0 0.0
    %744 = vmatprep.subr.mxu0 0.0
    %745 = vmatpush1.msra.mxu0 0.0
    %746 = vmatprep.subr.mxu0 0.0
    %747 = vmatpush1.msra.mxu0 0.0
    %748 = vmatprep.subr.mxu0 0.0
    %749 = vmatpush1.msra.mxu0 0.0
    %750 = vmatprep.subr.mxu0 0.0
    %751 = vmatpush1.msra.mxu0 0.0
    %752 = vmatprep.mubr.f32.mxu0 0.0
    %753 = vmatmul.mubr.f32.gmra.mrb[0].mxu0 %v686
    %v754 = vpop.f32.mrb[0].mxu0
    %v755 = vadd.f32 %v683, %v754
    %v756 = vpop.f32.mrb[0].mxu0
    %757 = vdwg.mxu0
    %v758 = vxor.u32 %v755, 2147483648
    %v759 = vmul.f32 %v758, 1.442695
    %v760 = vpow.pop %v759
    %v761 = vadd.f32 %v760, 1.0
    %v762 = vrcp.pop %v761
    %v763 = vmul.f32 1.0, %v762
    %v764 = vmul.f32 %v755, %v763
    %v765 = vld [vmem:[#allocation15] sm:$0xff]
    %v766 = vld [vmem:[#allocation15 + $0x8] sm:$0xff]
    %v767 = vld [vmem:[#allocation15 + $0x10] sm:$0xff]
    %v768 = vld [vmem:[#allocation15 + $0x18] sm:$0xff]
    %v769 = vld [vmem:[#allocation16] sm:$0xff]
    %v770 = vld [vmem:[#allocation16 + $0x8] sm:$0xff]
    %v771 = vld [vmem:[#allocation16 + $0x10] sm:$0xff]
    %v772 = vld [vmem:[#allocation16 + $0x18] sm:$0xff]
    %v774 = vsel %vm223, %v581, 0
    %776 = vmatprep.subr.mxu0 0.0
    %777 = vmatpush1.msra.mxu0 %v769
    %778 = vmatprep.subr.mxu0 0.0
    %779 = vmatpush1.msra.mxu0 %v770
    %780 = vmatprep.subr.mxu0 0.0
    %781 = vmatpush1.msra.mxu0 %v771
    %782 = vmatprep.subr.mxu0 0.0
    %783 = vmatpush1.msra.mxu0 %v772
    %784 = vmatprep.subr.mxu0 0.0
    %785 = vmatpush1.msra.mxu0 0.0
    %786 = vmatprep.subr.mxu0 0.0
    %787 = vmatpush1.msra.mxu0 0.0
    %788 = vmatprep.subr.mxu0 0.0
    %789 = vmatpush1.msra.mxu0 0.0
    %790 = vmatprep.subr.mxu0 0.0
    %791 = vmatpush1.msra.mxu0 0.0
    %792 = vmatprep.subr.mxu0 0.0
    %793 = vmatpush1.msra.mxu0 0.0
    %794 = vmatprep.subr.mxu0 0.0
    %795 = vmatpush1.msra.mxu0 0.0
    %796 = vmatprep.subr.mxu0 0.0
    %797 = vmatpush1.msra.mxu0 0.0
    %798 = vmatprep.subr.mxu0 0.0
    %799 = vmatpush1.msra.mxu0 0.0
    %800 = vmatprep.subr.mxu0 0.0
    %801 = vmatpush1.msra.mxu0 0.0
    %802 = vmatprep.subr.mxu0 0.0
    %803 = vmatpush1.msra.mxu0 0.0
    %804 = vmatprep.subr.mxu0 0.0
    %805 = vmatpush1.msra.mxu0 0.0
    %806 = vmatprep.subr.mxu0 0.0
    %807 = vmatpush1.msra.mxu0 0.0
    %808 = vmatprep.subr.mxu0 0.0
    %809 = vmatpush1.msra.mxu0 0.0
    %810 = vmatprep.subr.mxu0 0.0
    %811 = vmatpush1.msra.mxu0 0.0
    %812 = vmatprep.subr.mxu0 0.0
    %813 = vmatpush1.msra.mxu0 0.0
    %814 = vmatprep.subr.mxu0 0.0
    %815 = vmatpush1.msra.mxu0 0.0
    %816 = vmatprep.subr.mxu0 0.0
    %817 = vmatpush1.msra.mxu0 0.0
    %818 = vmatprep.subr.mxu0 0.0
    %819 = vmatpush1.msra.mxu0 0.0
    %820 = vmatprep.subr.mxu0 0.0
    %821 = vmatpush1.msra.mxu0 0.0
    %822 = vmatprep.subr.mxu0 0.0
    %823 = vmatpush1.msra.mxu0 0.0
    %824 = vmatprep.subr.mxu0 0.0
    %825 = vmatpush1.msra.mxu0 0.0
    %826 = vmatprep.subr.mxu0 0.0
    %827 = vmatpush1.msra.mxu0 0.0
    %828 = vmatprep.subr.mxu0 0.0
    %829 = vmatpush1.msra.mxu0 0.0
    %830 = vmatprep.subr.mxu0 0.0
    %831 = vmatpush1.msra.mxu0 0.0
    %832 = vmatprep.subr.mxu0 0.0
    %833 = vmatpush1.msra.mxu0 0.0
    %834 = vmatprep.subr.mxu0 0.0
    %835 = vmatpush1.msra.mxu0 0.0
    %836 = vmatprep.subr.mxu0 0.0
    %837 = vmatpush1.msra.mxu0 0.0
    %838 = vmatprep.subr.mxu0 0.0
    %839 = vmatpush1.msra.mxu0 0.0
    %840 = vmatprep.mubr.f32.mxu0 0.0
    %841 = vmatmul.mubr.f32.gmra.mrb[0].mxu0 %v774
    %v842 = vpop.f32.mrb[0].mxu0
    %v843 = vadd.f32 0.0, %v842
    %v844 = vpop.f32.mrb[0].mxu0
    %845 = vdwg.mxu0
    %v847 = vsel %vm223, %v399, 0
    %849 = vmatprep.subr.mxu0 0.0
    %850 = vmatpush1.msra.mxu0 %v765
    %851 = vmatprep.subr.mxu0 0.0
    %852 = vmatpush1.msra.mxu0 %v766
    %853 = vmatprep.subr.mxu0 0.0
    %854 = vmatpush1.msra.mxu0 %v767
    %855 = vmatprep.subr.mxu0 0.0
    %856 = vmatpush1.msra.mxu0 %v768
    %857 = vmatprep.subr.mxu0 0.0
    %858 = vmatpush1.msra.mxu0 0.0
    %859 = vmatprep.subr.mxu0 0.0
    %860 = vmatpush1.msra.mxu0 0.0
    %861 = vmatprep.subr.mxu0 0.0
    %862 = vmatpush1.msra.mxu0 0.0
    %863 = vmatprep.subr.mxu0 0.0
    %864 = vmatpush1.msra.mxu0 0.0
    %865 = vmatprep.subr.mxu0 0.0
    %866 = vmatpush1.msra.mxu0 0.0
    %867 = vmatprep.subr.mxu0 0.0
    %868 = vmatpush1.msra.mxu0 0.0
    %869 = vmatprep.subr.mxu0 0.0
    %870 = vmatpush1.msra.mxu0 0.0
    %871 = vmatprep.subr.mxu0 0.0
    %872 = vmatpush1.msra.mxu0 0.0
    %873 = vmatprep.subr.mxu0 0.0
    %874 = vmatpush1.msra.mxu0 0.0
    %875 = vmatprep.subr.mxu0 0.0
    %876 = vmatpush1.msra.mxu0 0.0
    %877 = vmatprep.subr.mxu0 0.0
    %878 = vmatpush1.msra.mxu0 0.0
    %879 = vmatprep.subr.mxu0 0.0
    %880 = vmatpush1.msra.mxu0 0.0
    %881 = vmatprep.subr.mxu0 0.0
    %882 = vmatpush1.msra.mxu0 0.0
    %883 = vmatprep.subr.mxu0 0.0
    %884 = vmatpush1.msra.mxu0 0.0
    %885 = vmatprep.subr.mxu0 0.0
    %886 = vmatpush1.msra.mxu0 0.0
    %887 = vmatprep.subr.mxu0 0.0
    %888 = vmatpush1.msra.mxu0 0.0
    %889 = vmatprep.subr.mxu0 0.0
    %890 = vmatpush1.msra.mxu0 0.0
    %891 = vmatprep.subr.mxu0 0.0
    %892 = vmatpush1.msra.mxu0 0.0
    %893 = vmatprep.subr.mxu0 0.0
    %894 = vmatpush1.msra.mxu0 0.0
    %895 = vmatprep.subr.mxu0 0.0
    %896 = vmatpush1.msra.mxu0 0.0
    %897 = vmatprep.subr.mxu0 0.0
    %898 = vmatpush1.msra.mxu0 0.0
    %899 = vmatprep.subr.mxu0 0.0
    %900 = vmatpush1.msra.mxu0 0.0
    %901 = vmatprep.subr.mxu0 0.0
    %902 = vmatpush1.msra.mxu0 0.0
    %903 = vmatprep.subr.mxu0 0.0
    %904 = vmatpush1.msra.mxu0 0.0
    %905 = vmatprep.subr.mxu0 0.0
    %906 = vmatpush1.msra.mxu0 0.0
    %907 = vmatprep.subr.mxu0 0.0
    %908 = vmatpush1.msra.mxu0 0.0
    %909 = vmatprep.subr.mxu0 0.0
    %910 = vmatpush1.msra.mxu0 0.0
    %911 = vmatprep.subr.mxu0 0.0
    %912 = vmatpush1.msra.mxu0 0.0
    %913 = vmatprep.mubr.f32.mxu0 0.0
    %914 = vmatmul.mubr.f32.gmra.mrb[0].mxu0 %v847
    %v915 = vpop.f32.mrb[0].mxu0
    %v916 = vadd.f32 %v843, %v915
    %v917 = vpop.f32.mrb[0].mxu0
    %918 = vdwg.mxu0
    %v919 = vld [vmem:[#allocation18] sm:$0xff]
    %v920 = vld [vmem:[#allocation18 + $0x8] sm:$0xff]
    %v921 = vld [vmem:[#allocation18 + $0x10] sm:$0xff]
    %v922 = vld [vmem:[#allocation18 + $0x18] sm:$0xff]
    %v924 = vsel %vm223, %v764, 0
    %926 = vmatprep.subr.mxu0 0.0
    %927 = vmatpush1.msra.mxu0 %v919
    %928 = vmatprep.subr.mxu0 0.0
    %929 = vmatpush1.msra.mxu0 %v920
    %930 = vmatprep.subr.mxu0 0.0
    %931 = vmatpush1.msra.mxu0 %v921
    %932 = vmatprep.subr.mxu0 0.0
    %933 = vmatpush1.msra.mxu0 %v922
    %934 = vmatprep.subr.mxu0 0.0
    %935 = vmatpush1.msra.mxu0 0.0
    %936 = vmatprep.subr.mxu0 0.0
    %937 = vmatpush1.msra.mxu0 0.0
    %938 = vmatprep.subr.mxu0 0.0
    %939 = vmatpush1.msra.mxu0 0.0
    %940 = vmatprep.subr.mxu0 0.0
    %941 = vmatpush1.msra.mxu0 0.0
    %942 = vmatprep.subr.mxu0 0.0
    %943 = vmatpush1.msra.mxu0 0.0
    %944 = vmatprep.subr.mxu0 0.0
    %945 = vmatpush1.msra.mxu0 0.0
    %946 = vmatprep.subr.mxu0 0.0
    %947 = vmatpush1.msra.mxu0 0.0
    %948 = vmatprep.subr.mxu0 0.0
    %949 = vmatpush1.msra.mxu0 0.0
    %950 = vmatprep.subr.mxu0 0.0
    %951 = vmatpush1.msra.mxu0 0.0
    %952 = vmatprep.subr.mxu0 0.0
    %953 = vmatpush1.msra.mxu0 0.0
    %954 = vmatprep.subr.mxu0 0.0
    %955 = vmatpush1.msra.mxu0 0.0
    %956 = vmatprep.subr.mxu0 0.0
    %957 = vmatpush1.msra.mxu0 0.0
    %958 = vmatprep.subr.mxu0 0.0
    %959 = vmatpush1.msra.mxu0 0.0
    %960 = vmatprep.subr.mxu0 0.0
    %961 = vmatpush1.msra.mxu0 0.0
    %962 = vmatprep.subr.mxu0 0.0
    %963 = vmatpush1.msra.mxu0 0.0
    %964 = vmatprep.subr.mxu0 0.0
    %965 = vmatpush1.msra.mxu0 0.0
    %966 = vmatprep.subr.mxu0 0.0
    %967 = vmatpush1.msra.mxu0 0.0
    %968 = vmatprep.subr.mxu0 0.0
    %969 = vmatpush1.msra.mxu0 0.0
    %970 = vmatprep.subr.mxu0 0.0
    %971 = vmatpush1.msra.mxu0 0.0
    %972 = vmatprep.subr.mxu0 0.0
    %973 = vmatpush1.msra.mxu0 0.0
    %974 = vmatprep.subr.mxu0 0.0
    %975 = vmatpush1.msra.mxu0 0.0
    %976 = vmatprep.subr.mxu0 0.0
    %977 = vmatpush1.msra.mxu0 0.0
    %978 = vmatprep.subr.mxu0 0.0
    %979 = vmatpush1.msra.mxu0 0.0
    %980 = vmatprep.subr.mxu0 0.0
    %981 = vmatpush1.msra.mxu0 0.0
    %982 = vmatprep.subr.mxu0 0.0
    %983 = vmatpush1.msra.mxu0 0.0
    %984 = vmatprep.subr.mxu0 0.0
    %985 = vmatpush1.msra.mxu0 0.0
    %986 = vmatprep.subr.mxu0 0.0
    %987 = vmatpush1.msra.mxu0 0.0
    %988 = vmatprep.subr.mxu0 0.0
    %989 = vmatpush1.msra.mxu0 0.0
    %990 = vmatprep.mubr.f32.mxu0 0.0
    %991 = vmatmul.mubr.f32.gmra.mrb[0].mxu0 %v924
    %v992 = vpop.f32.mrb[0].mxu0
    %v993 = vadd.f32 0.0, %v992
    %v994 = vpop.f32.mrb[0].mxu0
    %995 = vdwg.mxu0
    %v996 = vadd.f32 %v916, %v993
    %v997 = vld [vmem:[#allocation19] sm:$0x1]
    %v999 = vlaneseq
    %v1000 = vshrl.u32 %v999, 7
    %v1001 = vsub.s32 0, %v1000
    %v1002 = vrot.slane %v997, %v1001
    %v1004 = vadd.f32 %v996, %v1002
    %v1005 = vxor.u32 %v1004, 2147483648
    %v1006 = vmul.f32 %v1005, 1.442695
    %v1007 = vpow.pop %v1006
    %v1008 = vadd.f32 %v1007, 1.0
    %v1009 = vrcp.pop %v1008
    %v1010 = vmul.f32 1.0, %v1009
    %v1011 = vmul.f32 %v1004, %v1010
    %vm1012 = vcmask 781312
    %1013 = vst.msk [vmem:[%s19] sm:$0xf] %vm1012, %v1011
    // Predicated region
    $region126: #{gsgm_forward.6} parent=1 // pred_check
      _
    $region127: #{gsgm_forward.6} parent=1 // pred_check_branch
      %1015 = sbr.rel (0) target = $region129
    $region128: #{gsgm_forward.6} parent=1 // pred_region
      _
    $region129: #{gsgm_forward.6} parent=1 // pred_fallthru
      _
    // Predicated region
    $region130: #{gsgm_forward.6} parent=1 // pred_check
      _
    $region131: #{gsgm_forward.6} parent=1 // pred_check_branch
      %1017 = sbr.rel (0) target = $region133
    $region132: #{gsgm_forward.6} parent=1 // pred_region
      _
    $region133: #{gsgm_forward.6} parent=1 // pred_fallthru
      _
    %1018 = vsyncpa [#allocation3], 1
    %1019 = vsyncpa [#allocation5], 1
    %1020 = vsyncpa [#allocation8], 1
    %1021 = vsyncpa [#allocation11], 1
    %1022 = vsyncpa [#allocation14], 1
    %1023 = vsyncpa [#allocation17], 1
    %1024 = vsyncpa [#allocation20], 1

// kernel: gsgm_forward.4
$region0: #{gsgm_forward.4}
  #allocation0 [shape = 'u32[]', space=smem, size = 0x4, offset = 0x4, fixed_abs, tag = 'smem constant byte address 0x4 - core index']
  #allocation1 [shape = 'u32[144,128]{1,0:T(1,128)}', space=vmem, size = 0x12000, scoped, tag = 'internal scratch']
  %s0 = inlined_call_operand.vmem [shape: f32[2,32], index: 0, kind: input, shape index: {}]
  %s1 = inlined_call_operand.vmem [shape: f32[2,9], index: 1, kind: input, shape index: {}]
  %s2 = inlined_call_operand.vmem [shape: f32[32,64], index: 2, kind: input, shape index: {}]
  %s3 = inlined_call_operand.vmem [shape: f32[1,64], index: 3, kind: input, shape index: {}]
  %s4 = inlined_call_operand.vmem [shape: f32[64,32], index: 4, kind: input, shape index: {}]
  %s5 = inlined_call_operand.vmem [shape: f32[1,32], index: 5, kind: input, shape index: {}]
  %s6 = inlined_call_operand.vmem [shape: f32[9,64], index: 6, kind: input, shape index: {}]
  %s7 = inlined_call_operand.vmem [shape: f32[1,64], index: 7, kind: input, shape index: {}]
  %s8 = inlined_call_operand.vmem [shape: f32[64,32], index: 8, kind: input, shape index: {}]
  %s9 = inlined_call_operand.vmem [shape: f32[1,32], index: 9, kind: input, shape index: {}]
  %s10 = inlined_call_operand.vmem [shape: f32[32,64], index: 10, kind: input, shape index: {}]
  %s11 = inlined_call_operand.vmem [shape: f32[32,64], index: 11, kind: input, shape index: {}]
  %s12 = inlined_call_operand.vmem [shape: f32[1,64], index: 12, kind: input, shape index: {}]
  %s13 = inlined_call_operand.vmem [shape: f32[2,64], index: 13, kind: output, shape index: {}]
  %s14 = sld [smem:[#allocation0]]
  $region62: #{gsgm_forward.4} parent=0
    _
  %s16 = ssub.s32 1, %s14
  %s17 = scalar_select 0, %s16, %s14
  // Predicated region
  $region2: #{gsgm_forward.4} parent=0 // pred_check
    _
  $region3: #{gsgm_forward.4} parent=0 // pred_check_branch
    %19 = sbr.rel (0) target = $region5
  $region4: #{gsgm_forward.4} parent=0 // pred_region
    _
  $region5: #{gsgm_forward.4} parent=0 // pred_fallthru
    _
  // Predicated region
  $region6: #{gsgm_forward.4} parent=0 // pred_check
    _
  $region7: #{gsgm_forward.4} parent=0 // pred_check_branch
    %21 = sbr.rel (0) target = $region9
  $region8: #{gsgm_forward.4} parent=0 // pred_region
    _
  $region9: #{gsgm_forward.4} parent=0 // pred_fallthru
    _
  // Predicated region
  $region10: #{gsgm_forward.4} parent=0 // pred_check
    _
  $region11: #{gsgm_forward.4} parent=0 // pred_check_branch
    %23 = sbr.rel (0) target = $region13
  $region12: #{gsgm_forward.4} parent=0 // pred_region
    _
  $region13: #{gsgm_forward.4} parent=0 // pred_fallthru
    _
  // Predicated region
  $region14: #{gsgm_forward.4} parent=0 // pred_check
    _
  $region15: #{gsgm_forward.4} parent=0 // pred_check_branch
    %25 = sbr.rel (0) target = $region17
  $region16: #{gsgm_forward.4} parent=0 // pred_region
    _
  $region17: #{gsgm_forward.4} parent=0 // pred_fallthru
    _
  // Predicated region
  $region18: #{gsgm_forward.4} parent=0 // pred_check
    _
  $region19: #{gsgm_forward.4} parent=0 // pred_check_branch
    %27 = sbr.rel (0) target = $region21
  $region20: #{gsgm_forward.4} parent=0 // pred_region
    _
  $region21: #{gsgm_forward.4} parent=0 // pred_fallthru
    _
  // Predicated region
  $region22: #{gsgm_forward.4} parent=0 // pred_check
    _
  $region23: #{gsgm_forward.4} parent=0 // pred_check_branch
    %29 = sbr.rel (0) target = $region25
  $region24: #{gsgm_forward.4} parent=0 // pred_region
    _
  $region25: #{gsgm_forward.4} parent=0 // pred_fallthru
    _
  // Predicated region
  $region26: #{gsgm_forward.4} parent=0 // pred_check
    _
  $region27: #{gsgm_forward.4} parent=0 // pred_check_branch
    %31 = sbr.rel (0) target = $region29
  $region28: #{gsgm_forward.4} parent=0 // pred_region
    _
  $region29: #{gsgm_forward.4} parent=0 // pred_fallthru
    _
  // Predicated region
  $region30: #{gsgm_forward.4} parent=0 // pred_check
    _
  $region31: #{gsgm_forward.4} parent=0 // pred_check_branch
    %33 = sbr.rel (0) target = $region33
  $region32: #{gsgm_forward.4} parent=0 // pred_region
    _
  $region33: #{gsgm_forward.4} parent=0 // pred_fallthru
    _
  // Predicated region
  $region34: #{gsgm_forward.4} parent=0 // pred_check
    _
  $region35: #{gsgm_forward.4} parent=0 // pred_check_branch
    %35 = sbr.rel (0) target = $region37
  $region36: #{gsgm_forward.4} parent=0 // pred_region
    _
  $region37: #{gsgm_forward.4} parent=0 // pred_fallthru
    _
  // Predicated region
  $region38: #{gsgm_forward.4} parent=0 // pred_check
    _
  $region39: #{gsgm_forward.4} parent=0 // pred_check_branch
    %37 = sbr.rel (0) target = $region41
  $region40: #{gsgm_forward.4} parent=0 // pred_region
    _
  $region41: #{gsgm_forward.4} parent=0 // pred_fallthru
    _
  // Predicated region
  $region42: #{gsgm_forward.4} parent=0 // pred_check
    _
  $region43: #{gsgm_forward.4} parent=0 // pred_check_branch
    %39 = sbr.rel (0) target = $region45
  $region44: #{gsgm_forward.4} parent=0 // pred_region
    _
  $region45: #{gsgm_forward.4} parent=0 // pred_fallthru
    _
  // Predicated region
  $region46: #{gsgm_forward.4} parent=0 // pred_check
    _
  $region47: #{gsgm_forward.4} parent=0 // pred_check_branch
    %41 = sbr.rel (0) target = $region49
  $region48: #{gsgm_forward.4} parent=0 // pred_region
    _
  $region49: #{gsgm_forward.4} parent=0 // pred_fallthru
    _
  // Predicated region
  $region50: #{gsgm_forward.4} parent=0 // pred_check
    _
  $region51: #{gsgm_forward.4} parent=0 // pred_check_branch
    %43 = sbr.rel (0) target = $region53
  $region52: #{gsgm_forward.4} parent=0 // pred_region
    _
  $region53: #{gsgm_forward.4} parent=0 // pred_fallthru
    _
  %v44 = vld [vmem:[%s0] sm:$0x3]
  %v45 = vld [vmem:[%s2] sm:$0xff]
  %v46 = vld [vmem:[%s2 + $0x8] sm:$0xff]
  %v47 = vld [vmem:[%s2 + $0x10] sm:$0xff]
  %v48 = vld [vmem:[%s2 + $0x18] sm:$0xff]
  %v49 = vld [vmem:[%s3] sm:$0x1]
  %v51 = vlaneseq
  %v52 = vshrl.u32 %v51, 7
  %v53 = vsub.s32 0, %v52
  %v54 = vrot.slane %v49, %v53
  %vm56 = vcmask 261120
  %v58 = vsel %vm56, %v44, 0
  %60 = vmatprep.subr.mxu0 0.0
  %61 = vmatpush1.msra.mxu0 %v45
  %62 = vmatprep.subr.mxu0 0.0
  %63 = vmatpush1.msra.mxu0 %v46
  %64 = vmatprep.subr.mxu0 0.0
  %65 = vmatpush1.msra.mxu0 %v47
  %66 = vmatprep.subr.mxu0 0.0
  %67 = vmatpush1.msra.mxu0 %v48
  %68 = vmatprep.subr.mxu0 0.0
  %69 = vmatpush1.msra.mxu0 0.0
  %70 = vmatprep.subr.mxu0 0.0
  %71 = vmatpush1.msra.mxu0 0.0
  %72 = vmatprep.subr.mxu0 0.0
  %73 = vmatpush1.msra.mxu0 0.0
  %74 = vmatprep.subr.mxu0 0.0
  %75 = vmatpush1.msra.mxu0 0.0
  %76 = vmatprep.subr.mxu0 0.0
  %77 = vmatpush1.msra.mxu0 0.0
  %78 = vmatprep.subr.mxu0 0.0
  %79 = vmatpush1.msra.mxu0 0.0
  %80 = vmatprep.subr.mxu0 0.0
  %81 = vmatpush1.msra.mxu0 0.0
  %82 = vmatprep.subr.mxu0 0.0
  %83 = vmatpush1.msra.mxu0 0.0
  %84 = vmatprep.subr.mxu0 0.0
  %85 = vmatpush1.msra.mxu0 0.0
  %86 = vmatprep.subr.mxu0 0.0
  %87 = vmatpush1.msra.mxu0 0.0
  %88 = vmatprep.subr.mxu0 0.0
  %89 = vmatpush1.msra.mxu0 0.0
  %90 = vmatprep.subr.mxu0 0.0
  %91 = vmatpush1.msra.mxu0 0.0
  %92 = vmatprep.subr.mxu0 0.0
  %93 = vmatpush1.msra.mxu0 0.0
  %94 = vmatprep.subr.mxu0 0.0
  %95 = vmatpush1.msra.mxu0 0.0
  %96 = vmatprep.subr.mxu0 0.0
  %97 = vmatpush1.msra.mxu0 0.0
  %98 = vmatprep.subr.mxu0 0.0
  %99 = vmatpush1.msra.mxu0 0.0
  %100 = vmatprep.subr.mxu0 0.0
  %101 = vmatpush1.msra.mxu0 0.0
  %102 = vmatprep.subr.mxu0 0.0
  %103 = vmatpush1.msra.mxu0 0.0
  %104 = vmatprep.subr.mxu0 0.0
  %105 = vmatpush1.msra.mxu0 0.0
  %106 = vmatprep.subr.mxu0 0.0
  %107 = vmatpush1.msra.mxu0 0.0
  %108 = vmatprep.subr.mxu0 0.0
  %109 = vmatpush1.msra.mxu0 0.0
  %110 = vmatprep.subr.mxu0 0.0
  %111 = vmatpush1.msra.mxu0 0.0
  %112 = vmatprep.subr.mxu0 0.0
  %113 = vmatpush1.msra.mxu0 0.0
  %114 = vmatprep.subr.mxu0 0.0
  %115 = vmatpush1.msra.mxu0 0.0
  %116 = vmatprep.subr.mxu0 0.0
  %117 = vmatpush1.msra.mxu0 0.0
  %118 = vmatprep.subr.mxu0 0.0
  %119 = vmatpush1.msra.mxu0 0.0
  %120 = vmatprep.subr.mxu0 0.0
  %121 = vmatpush1.msra.mxu0 0.0
  %122 = vmatprep.subr.mxu0 0.0
  %123 = vmatpush1.msra.mxu0 0.0
  %124 = vmatprep.mubr.f32.mxu0 0.0
  %125 = vmatmul.mubr.f32.gmra.mrb[0].mxu0 %v58
  %v126 = vpop.f32.mrb[0].mxu0
  %v127 = vadd.f32 %v54, %v126
  %v128 = vpop.f32.mrb[0].mxu0
  %129 = vdwg.mxu0
  %v130 = vxor.u32 %v127, 2147483648
  %v131 = vmul.f32 %v130, 1.442695
  %v132 = vpow.pop %v131
  %v133 = vadd.f32 %v132, 1.0
  %v134 = vrcp.pop %v133
  %v135 = vmul.f32 1.0, %v134
  %v136 = vmul.f32 %v127, %v135
  %v137 = vld [vmem:[%s4] sm:$0xff]
  %v138 = vld [vmem:[%s4 + $0x8] sm:$0xff]
  %v139 = vld [vmem:[%s4 + $0x10] sm:$0xff]
  %v140 = vld [vmem:[%s4 + $0x18] sm:$0xff]
  %v141 = vld [vmem:[%s4 + $0x20] sm:$0xff]
  %v142 = vld [vmem:[%s4 + $0x28] sm:$0xff]
  %v143 = vld [vmem:[%s4 + $0x30] sm:$0xff]
  %v144 = vld [vmem:[%s4 + $0x38] sm:$0xff]
  %v145 = vld [vmem:[%s5] sm:$0x1]
  %v147 = vlaneseq
  %v148 = vshrl.u32 %v147, 7
  %v149 = vsub.s32 0, %v148
  %v150 = vrot.slane %v145, %v149
  %vm152 = vcmask 523264
  %v154 = vsel %vm152, %v136, 0
  %156 = vmatprep.subr.mxu0 0.0
  %157 = vmatpush1.msra.mxu0 %v137
  %158 = vmatprep.subr.mxu0 0.0
  %159 = vmatpush1.msra.mxu0 %v138
  %160 = vmatprep.subr.mxu0 0.0
  %161 = vmatpush1.msra.mxu0 %v139
  %162 = vmatprep.subr.mxu0 0.0
  %163 = vmatpush1.msra.mxu0 %v140
  %164 = vmatprep.subr.mxu0 0.0
  %165 = vmatpush1.msra.mxu0 %v141
  %166 = vmatprep.subr.mxu0 0.0
  %167 = vmatpush1.msra.mxu0 %v142
  %168 = vmatprep.subr.mxu0 0.0
  %169 = vmatpush1.msra.mxu0 %v143
  %170 = vmatprep.subr.mxu0 0.0
  %171 = vmatpush1.msra.mxu0 %v144
  %172 = vmatprep.subr.mxu0 0.0
  %173 = vmatpush1.msra.mxu0 0.0
  %174 = vmatprep.subr.mxu0 0.0
  %175 = vmatpush1.msra.mxu0 0.0
  %176 = vmatprep.subr.mxu0 0.0
  %177 = vmatpush1.msra.mxu0 0.0
  %178 = vmatprep.subr.mxu0 0.0
  %179 = vmatpush1.msra.mxu0 0.0
  %180 = vmatprep.subr.mxu0 0.0
  %181 = vmatpush1.msra.mxu0 0.0
  %182 = vmatprep.subr.mxu0 0.0
  %183 = vmatpush1.msra.mxu0 0.0
  %184 = vmatprep.subr.mxu0 0.0
  %185 = vmatpush1.msra.mxu0 0.0
  %186 = vmatprep.subr.mxu0 0.0
  %187 = vmatpush1.msra.mxu0 0.0
  %188 = vmatprep.subr.mxu0 0.0
  %189 = vmatpush1.msra.mxu0 0.0
  %190 = vmatprep.subr.mxu0 0.0
  %191 = vmatpush1.msra.mxu0 0.0
  %192 = vmatprep.subr.mxu0 0.0
  %193 = vmatpush1.msra.mxu0 0.0
  %194 = vmatprep.subr.mxu0 0.0
  %195 = vmatpush1.msra.mxu0 0.0
  %196 = vmatprep.subr.mxu0 0.0
  %197 = vmatpush1.msra.mxu0 0.0
  %198 = vmatprep.subr.mxu0 0.0
  %199 = vmatpush1.msra.mxu0 0.0
  %200 = vmatprep.subr.mxu0 0.0
  %201 = vmatpush1.msra.mxu0 0.0
  %202 = vmatprep.subr.mxu0 0.0
  %203 = vmatpush1.msra.mxu0 0.0
  %204 = vmatprep.subr.mxu0 0.0
  %205 = vmatpush1.msra.mxu0 0.0
  %206 = vmatprep.subr.mxu0 0.0
  %207 = vmatpush1.msra.mxu0 0.0
  %208 = vmatprep.subr.mxu0 0.0
  %209 = vmatpush1.msra.mxu0 0.0
  %210 = vmatprep.subr.mxu0 0.0
  %211 = vmatpush1.msra.mxu0 0.0
  %212 = vmatprep.subr.mxu0 0.0
  %213 = vmatpush1.msra.mxu0 0.0
  %214 = vmatprep.subr.mxu0 0.0
  %215 = vmatpush1.msra.mxu0 0.0
  %216 = vmatprep.subr.mxu0 0.0
  %217 = vmatpush1.msra.mxu0 0.0
  %218 = vmatprep.subr.mxu0 0.0
  %219 = vmatpush1.msra.mxu0 0.0
  %220 = vmatprep.mubr.f32.mxu0 0.0
  %221 = vmatmul.mubr.f32.gmra.mrb[0].mxu0 %v154
  %v222 = vpop.f32.mrb[0].mxu0
  %v223 = vadd.f32 %v150, %v222
  %v224 = vpop.f32.mrb[0].mxu0
  %225 = vdwg.mxu0
  %v226 = vxor.u32 %v223, 2147483648
  %v227 = vmul.f32 %v226, 1.442695
  %v228 = vpow.pop %v227
  %v229 = vadd.f32 %v228, 1.0
  %v230 = vrcp.pop %v229
  %v231 = vmul.f32 1.0, %v230
  %v232 = vmul.f32 %v223, %v231
  %v233 = vld [vmem:[%s1] sm:$0x3]
  %v234 = vld [vmem:[%s6] sm:$0xff]
  %v235 = vld [vmem:[%s6 + $0x8] sm:$0x1]
  %v236 = vld [vmem:[%s7] sm:$0x1]
  %v238 = vlaneseq
  %v239 = vshrl.u32 %v238, 7
  %v240 = vsub.s32 0, %v239
  %v241 = vrot.slane %v236, %v240
  %vm243 = vcmask 72704
  %v245 = vsel %vm243, %v233, 0
  %vm247 = vcmask 1040384
  %v249 = vsel %vm247, %v235, 0
  %251 = vmatprep.subr.mxu0 0.0
  %252 = vmatpush1.msra.mxu0 %v234
  %253 = vmatprep.subr.mxu0 0.0
  %254 = vmatpush1.msra.mxu0 %v249
  %255 = vmatprep.subr.mxu0 0.0
  %256 = vmatpush1.msra.mxu0 0.0
  %257 = vmatprep.subr.mxu0 0.0
  %258 = vmatpush1.msra.mxu0 0.0
  %259 = vmatprep.subr.mxu0 0.0
  %260 = vmatpush1.msra.mxu0 0.0
  %261 = vmatprep.subr.mxu0 0.0
  %262 = vmatpush1.msra.mxu0 0.0
  %263 = vmatprep.subr.mxu0 0.0
  %264 = vmatpush1.msra.mxu0 0.0
  %265 = vmatprep.subr.mxu0 0.0
  %266 = vmatpush1.msra.mxu0 0.0
  %267 = vmatprep.subr.mxu0 0.0
  %268 = vmatpush1.msra.mxu0 0.0
  %269 = vmatprep.subr.mxu0 0.0
  %270 = vmatpush1.msra.mxu0 0.0
  %271 = vmatprep.subr.mxu0 0.0
  %272 = vmatpush1.msra.mxu0 0.0
  %273 = vmatprep.subr.mxu0 0.0
  %274 = vmatpush1.msra.mxu0 0.0
  %275 = vmatprep.subr.mxu0 0.0
  %276 = vmatpush1.msra.mxu0 0.0
  %277 = vmatprep.subr.mxu0 0.0
  %278 = vmatpush1.msra.mxu0 0.0
  %279 = vmatprep.subr.mxu0 0.0
  %280 = vmatpush1.msra.mxu0 0.0
  %281 = vmatprep.subr.mxu0 0.0
  %282 = vmatpush1.msra.mxu0 0.0
  %283 = vmatprep.subr.mxu0 0.0
  %284 = vmatpush1.msra.mxu0 0.0
  %285 = vmatprep.subr.mxu0 0.0
  %286 = vmatpush1.msra.mxu0 0.0
  %287 = vmatprep.subr.mxu0 0.0
  %288 = vmatpush1.msra.mxu0 0.0
  %289 = vmatprep.subr.mxu0 0.0
  %290 = vmatpush1.msra.mxu0 0.0
  %291 = vmatprep.subr.mxu0 0.0
  %292 = vmatpush1.msra.mxu0 0.0
  %293 = vmatprep.subr.mxu0 0.0
  %294 = vmatpush1.msra.mxu0 0.0
  %295 = vmatprep.subr.mxu0 0.0
  %296 = vmatpush1.msra.mxu0 0.0
  %297 = vmatprep.subr.mxu0 0.0
  %298 = vmatpush1.msra.mxu0 0.0
  %299 = vmatprep.subr.mxu0 0.0
  %300 = vmatpush1.msra.mxu0 0.0
  %301 = vmatprep.subr.mxu0 0.0
  %302 = vmatpush1.msra.mxu0 0.0
  %303 = vmatprep.subr.mxu0 0.0
  %304 = vmatpush1.msra.mxu0 0.0
  %305 = vmatprep.subr.mxu0 0.0
  %306 = vmatpush1.msra.mxu0 0.0
  %307 = vmatprep.subr.mxu0 0.0
  %308 = vmatpush1.msra.mxu0 0.0
  %309 = vmatprep.subr.mxu0 0.0
  %310 = vmatpush1.msra.mxu0 0.0
  %311 = vmatprep.subr.mxu0 0.0
  %312 = vmatpush1.msra.mxu0 0.0
  %313 = vmatprep.subr.mxu0 0.0
  %314 = vmatpush1.msra.mxu0 0.0
  %315 = vmatprep.mubr.f32.mxu0 0.0
  %316 = vmatmul.mubr.f32.gmra.mrb[0].mxu0 %v245
  %v317 = vpop.f32.mrb[0].mxu0
  %v318 = vadd.f32 %v241, %v317
  %v319 = vpop.f32.mrb[0].mxu0
  %320 = vdwg.mxu0
  %v321 = vld [vmem:[%s8] sm:$0xff]
  %v322 = vld [vmem:[%s8 + $0x8] sm:$0xff]
  %v323 = vld [vmem:[%s8 + $0x10] sm:$0xff]
  %v324 = vld [vmem:[%s8 + $0x18] sm:$0xff]
  %v325 = vld [vmem:[%s8 + $0x20] sm:$0xff]
  %v326 = vld [vmem:[%s8 + $0x28] sm:$0xff]
  %v327 = vld [vmem:[%s8 + $0x30] sm:$0xff]
  %v328 = vld [vmem:[%s8 + $0x38] sm:$0xff]
  %v329 = vld [vmem:[%s9] sm:$0x1]
  %v331 = vlaneseq
  %v332 = vshrl.u32 %v331, 7
  %v333 = vsub.s32 0, %v332
  %v334 = vrot.slane %v329, %v333
  %v337 = vsel %vm152, %v318, 0
  %339 = vmatprep.subr.mxu0 0.0
  %340 = vmatpush1.msra.mxu0 %v321
  %341 = vmatprep.subr.mxu0 0.0
  %342 = vmatpush1.msra.mxu0 %v322
  %343 = vmatprep.subr.mxu0 0.0
  %344 = vmatpush1.msra.mxu0 %v323
  %345 = vmatprep.subr.mxu0 0.0
  %346 = vmatpush1.msra.mxu0 %v324
  %347 = vmatprep.subr.mxu0 0.0
  %348 = vmatpush1.msra.mxu0 %v325
  %349 = vmatprep.subr.mxu0 0.0
  %350 = vmatpush1.msra.mxu0 %v326
  %351 = vmatprep.subr.mxu0 0.0
  %352 = vmatpush1.msra.mxu0 %v327
  %353 = vmatprep.subr.mxu0 0.0
  %354 = vmatpush1.msra.mxu0 %v328
  %355 = vmatprep.subr.mxu0 0.0
  %356 = vmatpush1.msra.mxu0 0.0
  %357 = vmatprep.subr.mxu0 0.0
  %358 = vmatpush1.msra.mxu0 0.0
  %359 = vmatprep.subr.mxu0 0.0
  %360 = vmatpush1.msra.mxu0 0.0
  %361 = vmatprep.subr.mxu0 0.0
  %362 = vmatpush1.msra.mxu0 0.0
  %363 = vmatprep.subr.mxu0 0.0
  %364 = vmatpush1.msra.mxu0 0.0
  %365 = vmatprep.subr.mxu0 0.0
  %366 = vmatpush1.msra.mxu0 0.0
  %367 = vmatprep.subr.mxu0 0.0
  %368 = vmatpush1.msra.mxu0 0.0
  %369 = vmatprep.subr.mxu0 0.0
  %370 = vmatpush1.msra.mxu0 0.0
  %371 = vmatprep.subr.mxu0 0.0
  %372 = vmatpush1.msra.mxu0 0.0
  %373 = vmatprep.subr.mxu0 0.0
  %374 = vmatpush1.msra.mxu0 0.0
  %375 = vmatprep.subr.mxu0 0.0
  %376 = vmatpush1.msra.mxu0 0.0
  %377 = vmatprep.subr.mxu0 0.0
  %378 = vmatpush1.msra.mxu0 0.0
  %379 = vmatprep.subr.mxu0 0.0
  %380 = vmatpush1.msra.mxu0 0.0
  %381 = vmatprep.subr.mxu0 0.0
  %382 = vmatpush1.msra.mxu0 0.0
  %383 = vmatprep.subr.mxu0 0.0
  %384 = vmatpush1.msra.mxu0 0.0
  %385 = vmatprep.subr.mxu0 0.0
  %386 = vmatpush1.msra.mxu0 0.0
  %387 = vmatprep.subr.mxu0 0.0
  %388 = vmatpush1.msra.mxu0 0.0
  %389 = vmatprep.subr.mxu0 0.0
  %390 = vmatpush1.msra.mxu0 0.0
  %391 = vmatprep.subr.mxu0 0.0
  %392 = vmatpush1.msra.mxu0 0.0
  %393 = vmatprep.subr.mxu0 0.0
  %394 = vmatpush1.msra.mxu0 0.0
  %395 = vmatprep.subr.mxu0 0.0
  %396 = vmatpush1.msra.mxu0 0.0
  %397 = vmatprep.subr.mxu0 0.0
  %398 = vmatpush1.msra.mxu0 0.0
  %399 = vmatprep.subr.mxu0 0.0
  %400 = vmatpush1.msra.mxu0 0.0
  %401 = vmatprep.subr.mxu0 0.0
  %402 = vmatpush1.msra.mxu0 0.0
  %403 = vmatprep.mubr.f32.mxu0 0.0
  %404 = vmatmul.mubr.f32.gmra.mrb[0].mxu0 %v337
  %v405 = vpop.f32.mrb[0].mxu0
  %v406 = vadd.f32 %v334, %v405
  %v407 = vpop.f32.mrb[0].mxu0
  %408 = vdwg.mxu0
  %v409 = vxor.u32 %v406, 2147483648
  %v410 = vmul.f32 %v409, 1.442695
  %v411 = vpow.pop %v410
  %v412 = vadd.f32 %v411, 1.0
  %v413 = vrcp.pop %v412
  %v414 = vmul.f32 1.0, %v413
  %v415 = vmul.f32 %v406, %v414
  %v416 = vld [vmem:[%s10] sm:$0xff]
  %v417 = vld [vmem:[%s10 + $0x8] sm:$0xff]
  %v418 = vld [vmem:[%s10 + $0x10] sm:$0xff]
  %v419 = vld [vmem:[%s10 + $0x18] sm:$0xff]
  %v420 = vld [vmem:[%s11] sm:$0xff]
  %v421 = vld [vmem:[%s11 + $0x8] sm:$0xff]
  %v422 = vld [vmem:[%s11 + $0x10] sm:$0xff]
  %v423 = vld [vmem:[%s11 + $0x18] sm:$0xff]
  %v425 = vsel %vm56, %v415, 0
  %427 = vmatprep.subr.mxu0 0.0
  %428 = vmatpush1.msra.mxu0 %v420
  %429 = vmatprep.subr.mxu0 0.0
  %430 = vmatpush1.msra.mxu0 %v421
  %431 = vmatprep.subr.mxu0 0.0
  %432 = vmatpush1.msra.mxu0 %v422
  %433 = vmatprep.subr.mxu0 0.0
  %434 = vmatpush1.msra.mxu0 %v423
  %435 = vmatprep.subr.mxu0 0.0
  %436 = vmatpush1.msra.mxu0 0.0
  %437 = vmatprep.subr.mxu0 0.0
  %438 = vmatpush1.msra.mxu0 0.0
  %439 = vmatprep.subr.mxu0 0.0
  %440 = vmatpush1.msra.mxu0 0.0
  %441 = vmatprep.subr.mxu0 0.0
  %442 = vmatpush1.msra.mxu0 0.0
  %443 = vmatprep.subr.mxu0 0.0
  %444 = vmatpush1.msra.mxu0 0.0
  %445 = vmatprep.subr.mxu0 0.0
  %446 = vmatpush1.msra.mxu0 0.0
  %447 = vmatprep.subr.mxu0 0.0
  %448 = vmatpush1.msra.mxu0 0.0
  %449 = vmatprep.subr.mxu0 0.0
  %450 = vmatpush1.msra.mxu0 0.0
  %451 = vmatprep.subr.mxu0 0.0
  %452 = vmatpush1.msra.mxu0 0.0
  %453 = vmatprep.subr.mxu0 0.0
  %454 = vmatpush1.msra.mxu0 0.0
  %455 = vmatprep.subr.mxu0 0.0
  %456 = vmatpush1.msra.mxu0 0.0
  %457 = vmatprep.subr.mxu0 0.0
  %458 = vmatpush1.msra.mxu0 0.0
  %459 = vmatprep.subr.mxu0 0.0
  %460 = vmatpush1.msra.mxu0 0.0
  %461 = vmatprep.subr.mxu0 0.0
  %462 = vmatpush1.msra.mxu0 0.0
  %463 = vmatprep.subr.mxu0 0.0
  %464 = vmatpush1.msra.mxu0 0.0
  %465 = vmatprep.subr.mxu0 0.0
  %466 = vmatpush1.msra.mxu0 0.0
  %467 = vmatprep.subr.mxu0 0.0
  %468 = vmatpush1.msra.mxu0 0.0
  %469 = vmatprep.subr.mxu0 0.0
  %470 = vmatpush1.msra.mxu0 0.0
  %471 = vmatprep.subr.mxu0 0.0
  %472 = vmatpush1.msra.mxu0 0.0
  %473 = vmatprep.subr.mxu0 0.0
  %474 = vmatpush1.msra.mxu0 0.0
  %475 = vmatprep.subr.mxu0 0.0
  %476 = vmatpush1.msra.mxu0 0.0
  %477 = vmatprep.subr.mxu0 0.0
  %478 = vmatpush1.msra.mxu0 0.0
  %479 = vmatprep.subr.mxu0 0.0
  %480 = vmatpush1.msra.mxu0 0.0
  %481 = vmatprep.subr.mxu0 0.0
  %482 = vmatpush1.msra.mxu0 0.0
  %483 = vmatprep.subr.mxu0 0.0
  %484 = vmatpush1.msra.mxu0 0.0
  %485 = vmatprep.subr.mxu0 0.0
  %486 = vmatpush1.msra.mxu0 0.0
  %487 = vmatprep.subr.mxu0 0.0
  %488 = vmatpush1.msra.mxu0 0.0
  %489 = vmatprep.subr.mxu0 0.0
  %490 = vmatpush1.msra.mxu0 0.0
  %491 = vmatprep.mubr.f32.mxu0 0.0
  %492 = vmatmul.mubr.f32.gmra.mrb[0].mxu0 %v425
  %v493 = vpop.f32.mrb[0].mxu0
  %v494 = vadd.f32 0.0, %v493
  %v495 = vpop.f32.mrb[0].mxu0
  %496 = vdwg.mxu0
  %v498 = vsel %vm56, %v232, 0
  %500 = vmatprep.subr.mxu0 0.0
  %501 = vmatpush1.msra.mxu0 %v416
  %502 = vmatprep.subr.mxu0 0.0
  %503 = vmatpush1.msra.mxu0 %v417
  %504 = vmatprep.subr.mxu0 0.0
  %505 = vmatpush1.msra.mxu0 %v418
  %506 = vmatprep.subr.mxu0 0.0
  %507 = vmatpush1.msra.mxu0 %v419
  %508 = vmatprep.subr.mxu0 0.0
  %509 = vmatpush1.msra.mxu0 0.0
  %510 = vmatprep.subr.mxu0 0.0
  %511 = vmatpush1.msra.mxu0 0.0
  %512 = vmatprep.subr.mxu0 0.0
  %513 = vmatpush1.msra.mxu0 0.0
  %514 = vmatprep.subr.mxu0 0.0
  %515 = vmatpush1.msra.mxu0 0.0
  %516 = vmatprep.subr.mxu0 0.0
  %517 = vmatpush1.msra.mxu0 0.0
  %518 = vmatprep.subr.mxu0 0.0
  %519 = vmatpush1.msra.mxu0 0.0
  %520 = vmatprep.subr.mxu0 0.0
  %521 = vmatpush1.msra.mxu0 0.0
  %522 = vmatprep.subr.mxu0 0.0
  %523 = vmatpush1.msra.mxu0 0.0
  %524 = vmatprep.subr.mxu0 0.0
  %525 = vmatpush1.msra.mxu0 0.0
  %526 = vmatprep.subr.mxu0 0.0
  %527 = vmatpush1.msra.mxu0 0.0
  %528 = vmatprep.subr.mxu0 0.0
  %529 = vmatpush1.msra.mxu0 0.0
  %530 = vmatprep.subr.mxu0 0.0
  %531 = vmatpush1.msra.mxu0 0.0
  %532 = vmatprep.subr.mxu0 0.0
  %533 = vmatpush1.msra.mxu0 0.0
  %534 = vmatprep.subr.mxu0 0.0
  %535 = vmatpush1.msra.mxu0 0.0
  %536 = vmatprep.subr.mxu0 0.0
  %537 = vmatpush1.msra.mxu0 0.0
  %538 = vmatprep.subr.mxu0 0.0
  %539 = vmatpush1.msra.mxu0 0.0
  %540 = vmatprep.subr.mxu0 0.0
  %541 = vmatpush1.msra.mxu0 0.0
  %542 = vmatprep.subr.mxu0 0.0
  %543 = vmatpush1.msra.mxu0 0.0
  %544 = vmatprep.subr.mxu0 0.0
  %545 = vmatpush1.msra.mxu0 0.0
  %546 = vmatprep.subr.mxu0 0.0
  %547 = vmatpush1.msra.mxu0 0.0
  %548 = vmatprep.subr.mxu0 0.0
  %549 = vmatpush1.msra.mxu0 0.0
  %550 = vmatprep.subr.mxu0 0.0
  %551 = vmatpush1.msra.mxu0 0.0
  %552 = vmatprep.subr.mxu0 0.0
  %553 = vmatpush1.msra.mxu0 0.0
  %554 = vmatprep.subr.mxu0 0.0
  %555 = vmatpush1.msra.mxu0 0.0
  %556 = vmatprep.subr.mxu0 0.0
  %557 = vmatpush1.msra.mxu0 0.0
  %558 = vmatprep.subr.mxu0 0.0
  %559 = vmatpush1.msra.mxu0 0.0
  %560 = vmatprep.subr.mxu0 0.0
  %561 = vmatpush1.msra.mxu0 0.0
  %562 = vmatprep.subr.mxu0 0.0
  %563 = vmatpush1.msra.mxu0 0.0
  %564 = vmatprep.mubr.f32.mxu0 0.0
  %565 = vmatmul.mubr.f32.gmra.mrb[0].mxu0 %v498
  %v566 = vpop.f32.mrb[0].mxu0
  %v567 = vadd.f32 %v494, %v566
  %v568 = vpop.f32.mrb[0].mxu0
  %569 = vdwg.mxu0
  %v570 = vld [vmem:[%s12] sm:$0x1]
  %v572 = vlaneseq
  %v573 = vshrl.u32 %v572, 7
  %v574 = vsub.s32 0, %v573
  %v575 = vrot.slane %v570, %v574
  %v577 = vadd.f32 %v567, %v575
  %v578 = vxor.u32 %v577, 2147483648
  %v579 = vmul.f32 %v578, 1.442695
  %v580 = vpow.pop %v579
  %v581 = vadd.f32 %v580, 1.0
  %v582 = vrcp.pop %v581
  %v583 = vmul.f32 1.0, %v582
  %v584 = vmul.f32 %v577, %v583
  %vm585 = vcmask 517120
  %586 = vst.msk [vmem:[%s13] sm:$0x3] %vm585, %v584
  // Predicated region
  $region54: #{gsgm_forward.4} parent=0 // pred_check
    _
  $region55: #{gsgm_forward.4} parent=0 // pred_check_branch
    %588 = sbr.rel (0) target = $region57
  $region56: #{gsgm_forward.4} parent=0 // pred_region
    _
  $region57: #{gsgm_forward.4} parent=0 // pred_fallthru
    _
  // Predicated region
  $region58: #{gsgm_forward.4} parent=0 // pred_check
    _
  $region59: #{gsgm_forward.4} parent=0 // pred_check_branch
    %590 = sbr.rel (0) target = $region61
  $region60: #{gsgm_forward.4} parent=0 // pred_region
    _
  $region61: #{gsgm_forward.4} parent=0 // pred_fallthru
    _

// kernel: gsgm_forward.7
$region0: #{gsgm_forward.7}
  #allocation0 [shape = 'u32[]', space=smem, size = 0x4, offset = 0x4, fixed_abs, tag = 'smem constant byte address 0x4 - core index']
  #allocation1 [shape = 'u32[144,128]{1,0:T(1,128)}', space=vmem, size = 0x12000, scoped, tag = 'internal scratch']
  %s0 = inlined_call_operand.smem [shape: u32[34], index: -1, kind: input, shape index: {}]
  %s1 = sld [smem:[%s0]]
  %s2 = scalar_lea.smem %s0, 1
  %s3 = sld [smem:[%s2]]
  %s4 = scalar_lea.smem %s0, 2
  %s5 = sld [smem:[%s4]]
  %s6 = scalar_lea.smem %s0, 3
  %s7 = sld [smem:[%s6]]
  %s8 = scalar_lea.smem %s0, 4
  %s9 = sld [smem:[%s8]]
  %s10 = scalar_lea.smem %s0, 5
  %s11 = sld [smem:[%s10]]
  %s12 = scalar_lea.smem %s0, 6
  %s13 = sld [smem:[%s12]]
  %s14 = scalar_lea.smem %s0, 7
  %s15 = sld [smem:[%s14]]
  %s16 = scalar_lea.smem %s0, 8
  %s17 = sld [smem:[%s16]]
  %s18 = scalar_lea.smem %s0, 9
  %s19 = sld [smem:[%s18]]
  %s20 = scalar_lea.smem %s0, 10
  %s21 = sld [smem:[%s20]]
  %s22 = scalar_lea.smem %s0, 11
  %s23 = sld [smem:[%s22]]
  %s24 = scalar_lea.smem %s0, 12
  %s25 = sld [smem:[%s24]]
  %s26 = scalar_lea.smem %s0, 13
  %s27 = sld [smem:[%s26]]
  %s28 = scalar_lea.smem %s0, 14
  %s29 = sld [smem:[%s28]]
  %s30 = scalar_lea.smem %s0, 15
  %s31 = sld [smem:[%s30]]
  %s32 = scalar_lea.smem %s0, 16
  %s33 = sld [smem:[%s32]]
  %s34 = scalar_lea.smem %s0, 17
  %s35 = sld [smem:[%s34]]
  %s36 = scalar_lea.smem %s0, 18
  %s37 = sld [smem:[%s36]]
  %s38 = scalar_lea.smem %s0, 19
  %s39 = sld [smem:[%s38]]
  %s40 = scalar_lea.smem %s0, 20
  %s41 = sld [smem:[%s40]]
  %s42 = scalar_lea.smem %s0, 21
  %s43 = sld [smem:[%s42]]
  %s44 = scalar_lea.smem %s0, 22
  %s45 = sld [smem:[%s44]]
  %s46 = scalar_lea.smem %s0, 23
  %s47 = sld [smem:[%s46]]
  %s48 = scalar_lea.smem %s0, 24
  %s49 = sld [smem:[%s48]]
  %s50 = scalar_lea.smem %s0, 25
  %s51 = sld [smem:[%s50]]
  %s52 = scalar_lea.smem %s0, 26
  %s53 = sld [smem:[%s52]]
  %s54 = scalar_lea.smem %s0, 27
  %s55 = sld [smem:[%s54]]
  %s56 = scalar_lea.smem %s0, 28
  %s57 = sld [smem:[%s56]]
  %s58 = scalar_lea.smem %s0, 29
  %s59 = sld [smem:[%s58]]
  %s60 = scalar_lea.smem %s0, 30
  %s61 = sld [smem:[%s60]]
  %s62 = scalar_lea.smem %s0, 31
  %s63 = sld [smem:[%s62]]
  %s64 = scalar_lea.smem %s0, 32
  %s65 = sld [smem:[%s64]]
  %s66 = scalar_lea.smem %s0, 33
  %s67 = sld [smem:[%s66]]
  %s68 = sld [smem:[#allocation0]]
  $region249: #{gsgm_forward.7} parent=0
    _
  %s70 = ssub.s32 1, %s68
  %s71 = scalar_select 0, %s70, %s68
  $region1: #{gsgm_forward.7} parent=0
    #allocation2 [shape = 'u8[49152]{0}', space=vmem, size = 0xc000, scoped, tag = 'input window, operand 4, single buffered']
    #allocation3 [shape = 's32[1]{0}', space=sflag, size = 0x4, scoped, tag = 'scoped memory for gsgm_forward.7']
    #allocation4 [shape = 'u8[1024]{0}', space=vmem, size = 0x400, scoped, tag = 'input window, operand 5, single buffered']
    #allocation5 [shape = 's32[1]{0}', space=sflag, size = 0x4, scoped, tag = 'scoped memory for gsgm_forward.7']
    #allocation6 [shape = 'u8[65536]{0}', space=vmem, size = 0x10000, scoped, tag = 'input window, operand 6, single buffered']
    #allocation7 [shape = 'u8[512]{0}', space=vmem, size = 0x400, scoped, tag = 'input window, operand 7, single buffered']
    #allocation8 [shape = 's32[1]{0}', space=sflag, size = 0x4, scoped, tag = 'scoped memory for gsgm_forward.7']
    #allocation9 [shape = 'u8[1024]{0}', space=vmem, size = 0x400, scoped, tag = 'input window, operand 8, single buffered']
    #allocation10 [shape = 'u8[512]{0}', space=vmem, size = 0x400, scoped, tag = 'input window, operand 9, single buffered']
    #allocation11 [shape = 's32[1]{0}', space=sflag, size = 0x4, scoped, tag = 'scoped memory for gsgm_forward.7']
    #allocation12 [shape = 'u8[512]{0}', space=vmem, size = 0x400, scoped, tag = 'input window, operand 12, single buffered']
    #allocation13 [shape = 'u8[32768]{0}', space=vmem, size = 0x8000, scoped, tag = 'input window, operand 13, single buffered']
    #allocation14 [shape = 's32[1]{0}', space=sflag, size = 0x4, scoped, tag = 'scoped memory for gsgm_forward.7']
    #allocation15 [shape = 'u8[512]{0}', space=vmem, size = 0x400, scoped, tag = 'input window, operand 14, single buffered']
    #allocation16 [shape = 'u8[3072]{0}', space=vmem, size = 0xc00, scoped, tag = 'input window, operand 15, single buffered']
    #allocation17 [shape = 's32[1]{0}', space=sflag, size = 0x4, scoped, tag = 'scoped memory for gsgm_forward.7']
    #allocation18 [shape = 'u8[3072]{0}', space=vmem, size = 0xc00, scoped, tag = 'input window, operand 16, single buffered']
    #allocation19 [shape = 'u8[9216]{0}', space=vmem, size = 0x2400, scoped, tag = 'input window, operand 18, single buffered']
    #allocation20 [shape = 's32[1]{0}', space=sflag, size = 0x4, scoped, tag = 'scoped memory for gsgm_forward.7']
    #allocation21 [shape = 'u8[196608]{0}', space=vmem, size = 0x30000, scoped, tag = 'input window, operand 19, single buffered']
    #allocation22 [shape = 'u8[3072]{0}', space=vmem, size = 0xc00, scoped, tag = 'input window, operand 20, single buffered']
    #allocation23 [shape = 's32[1]{0}', space=sflag, size = 0x4, scoped, tag = 'scoped memory for gsgm_forward.7']
    #allocation24 [shape = 'u8[3072]{0}', space=vmem, size = 0xc00, scoped, tag = 'input window, operand 21, single buffered']
    #allocation25 [shape = 'u8[3072]{0}', space=vmem, size = 0xc00, scoped, tag = 'input window, operand 22, single buffered']
    #allocation26 [shape = 's32[1]{0}', space=sflag, size = 0x4, scoped, tag = 'scoped memory for gsgm_forward.7']
    #allocation27 [shape = 'u8[786432]{0}', space=vmem, size = 0xc0000, scoped, tag = 'input window, operand 23, single buffered']
    #allocation28 [shape = 'u8[12288]{0}', space=vmem, size = 0x3000, scoped, tag = 'input window, operand 24, single buffered']
    #allocation29 [shape = 's32[1]{0}', space=sflag, size = 0x4, scoped, tag = 'scoped memory for gsgm_forward.7']
    #allocation30 [shape = 'u8[786432]{0}', space=vmem, size = 0xc0000, scoped, tag = 'input window, operand 25, single buffered']
    #allocation31 [shape = 'u8[3072]{0}', space=vmem, size = 0xc00, scoped, tag = 'input window, operand 26, single buffered']
    #allocation32 [shape = 's32[1]{0}', space=sflag, size = 0x4, scoped, tag = 'scoped memory for gsgm_forward.7']
    #allocation33 [shape = 'u8[512]{0}', space=vmem, size = 0x400, scoped, tag = 'input window, operand 27, single buffered']
    #allocation34 [shape = 'u8[512]{0}', space=vmem, size = 0x400, scoped, tag = 'input window, operand 28, single buffered']
    #allocation35 [shape = 's32[1]{0}', space=sflag, size = 0x4, scoped, tag = 'scoped memory for gsgm_forward.7']
    #allocation36 [shape = 'u8[65536]{0}', space=vmem, size = 0x10000, scoped, tag = 'input window, operand 29, single buffered']
    #allocation37 [shape = 'u8[1024]{0}', space=vmem, size = 0x400, scoped, tag = 'input window, operand 30, single buffered']
    #allocation38 [shape = 's32[1]{0}', space=sflag, size = 0x4, scoped, tag = 'scoped memory for gsgm_forward.7']
    #allocation39 [shape = 'u8[512]{0}', space=vmem, size = 0x400, scoped, tag = 'input window, operand 32, single buffered']
    %72 = vsyncpa [#allocation3], 0
    %73 = vsyncpa [#allocation5], 0
    %74 = vsyncpa [#allocation8], 0
    %75 = vsyncpa [#allocation11], 0
    %76 = vsyncpa [#allocation14], 0
    %77 = vsyncpa [#allocation17], 0
    %78 = vsyncpa [#allocation20], 0
    %79 = vsyncpa [#allocation23], 0
    %80 = vsyncpa [#allocation26], 0
    %81 = vsyncpa [#allocation29], 0
    %82 = vsyncpa [#allocation32], 0
    %83 = vsyncpa [#allocation35], 0
    %84 = vsyncpa [#allocation38], 0
    // Predicated region
    $region2: #{gsgm_forward.7} parent=1 // pred_check
      _
    $region3: #{gsgm_forward.7} parent=1 // pred_check_branch
      %86 = sbr.rel (0) target = $region5
    $region4: #{gsgm_forward.7} parent=1 // pred_region
      _
    $region5: #{gsgm_forward.7} parent=1 // pred_fallthru
      _
    // Predicated region
    $region6: #{gsgm_forward.7} parent=1 // pred_check
      _
    $region7: #{gsgm_forward.7} parent=1 // pred_check_branch
      %88 = sbr.rel (0) target = $region9
    $region8: #{gsgm_forward.7} parent=1 // pred_region
      _
    $region9: #{gsgm_forward.7} parent=1 // pred_fallthru
      _
    // Predicated region
    $region10: #{gsgm_forward.7} parent=1 // pred_check
      _
    $region11: #{gsgm_forward.7} parent=1 // pred_check_branch
      %90 = sbr.rel (0) target = $region13
    $region12: #{gsgm_forward.7} parent=1 // pred_region
      _
    $region13: #{gsgm_forward.7} parent=1 // pred_fallthru
      _
    // Predicated region
    $region14: #{gsgm_forward.7} parent=1 // pred_check
      _
    $region15: #{gsgm_forward.7} parent=1 // pred_check_branch
      %92 = sbr.rel (0) target = $region17
    $region16: #{gsgm_forward.7} parent=1 // pred_region
      _
    $region17: #{gsgm_forward.7} parent=1 // pred_fallthru
      _
    // Predicated region
    $region18: #{gsgm_forward.7} parent=1 // pred_check
      _
    $region19: #{gsgm_forward.7} parent=1 // pred_check_branch
      %94 = sbr.rel (0) target = $region21
    $region20: #{gsgm_forward.7} parent=1 // pred_region
      %s96 = ssub.s32 1536, 1536
      %97 = vsyncadd [#allocation3], %s96
      %s98 = sshll.u32 [#allocation2], 4
      %s99 = int_to_ptr.vmem [resolvable:$true] %s98
      %104 = dma.hbm_to_vmem [thread:$0]  %s9, 1536, %s99, [#allocation3], 128, 128, 8
    $region21: #{gsgm_forward.7} parent=1 // pred_fallthru
      _
    // Predicated region
    $region22: #{gsgm_forward.7} parent=1 // pred_check
      _
    $region23: #{gsgm_forward.7} parent=1 // pred_check_branch
      %106 = sbr.rel (0) target = $region25
    $region24: #{gsgm_forward.7} parent=1 // pred_region
      %s108 = ssub.s32 32, 32
      %109 = vsyncadd [#allocation5], %s108
      %s111 = sshll.u32 [#allocation4], 4
      %s112 = int_to_ptr.vmem [resolvable:$true] %s111
      %114 = dma.hbm_to_vmem [thread:$0]  %s11, 32, %s112, [#allocation5]
    $region25: #{gsgm_forward.7} parent=1 // pred_fallthru
      _
    // Predicated region
    $region26: #{gsgm_forward.7} parent=1 // pred_check
      _
    $region27: #{gsgm_forward.7} parent=1 // pred_check_branch
      %116 = sbr.rel (0) target = $region29
    $region28: #{gsgm_forward.7} parent=1 // pred_region
      %s118 = ssub.s32 2048, 2048
      %119 = vsyncadd [#allocation5], %s118
      %s120 = sshll.u32 [#allocation6], 4
      %s121 = int_to_ptr.vmem [resolvable:$true] %s120
      %126 = dma.hbm_to_vmem [thread:$0]  %s13, 2048, %s121, [#allocation5], 64, 64, 4
    $region29: #{gsgm_forward.7} parent=1 // pred_fallthru
      _
    // Predicated region
    $region30: #{gsgm_forward.7} parent=1 // pred_check
      _
    $region31: #{gsgm_forward.7} parent=1 // pred_check_branch
      %128 = sbr.rel (0) target = $region33
    $region32: #{gsgm_forward.7} parent=1 // pred_region
      %s130 = ssub.s32 16, 16
      %131 = vsyncadd [#allocation8], %s130
      %s133 = sshll.u32 [#allocation7], 4
      %s134 = int_to_ptr.vmem [resolvable:$true] %s133
      %136 = dma.hbm_to_vmem [thread:$0]  %s15, 16, %s134, [#allocation8]
    $region33: #{gsgm_forward.7} parent=1 // pred_fallthru
      _
    // Predicated region
    $region34: #{gsgm_forward.7} parent=1 // pred_check
      _
    $region35: #{gsgm_forward.7} parent=1 // pred_check_branch
      %138 = sbr.rel (0) target = $region37
    $region36: #{gsgm_forward.7} parent=1 // pred_region
      %s140 = ssub.s32 32, 32
      %141 = vsyncadd [#allocation8], %s140
      %s143 = sshll.u32 [#allocation9], 4
      %s144 = int_to_ptr.vmem [resolvable:$true] %s143
      %146 = dma.hbm_to_vmem [thread:$0]  %s17, 32, %s144, [#allocation8]
    $region37: #{gsgm_forward.7} parent=1 // pred_fallthru
      _
    // Predicated region
    $region38: #{gsgm_forward.7} parent=1 // pred_check
      _
    $region39: #{gsgm_forward.7} parent=1 // pred_check_branch
      %148 = sbr.rel (0) target = $region41
    $region40: #{gsgm_forward.7} parent=1 // pred_region
      %s150 = ssub.s32 16, 16
      %151 = vsyncadd [#allocation11], %s150
      %s153 = sshll.u32 [#allocation10], 4
      %s154 = int_to_ptr.vmem [resolvable:$true] %s153
      %156 = dma.hbm_to_vmem [thread:$0]  %s19, 16, %s154, [#allocation11]
    $region41: #{gsgm_forward.7} parent=1 // pred_fallthru
      _
    // Predicated region
    $region42: #{gsgm_forward.7} parent=1 // pred_check
      _
    $region43: #{gsgm_forward.7} parent=1 // pred_check_branch
      %158 = sbr.rel (0) target = $region45
    $region44: #{gsgm_forward.7} parent=1 // pred_region
      _
    $region45: #{gsgm_forward.7} parent=1 // pred_fallthru
      _
    // Predicated region
    $region46: #{gsgm_forward.7} parent=1 // pred_check
      _
    $region47: #{gsgm_forward.7} parent=1 // pred_check_branch
      %160 = sbr.rel (0) target = $region49
    $region48: #{gsgm_forward.7} parent=1 // pred_region
      _
    $region49: #{gsgm_forward.7} parent=1 // pred_fallthru
      _
    // Predicated region
    $region50: #{gsgm_forward.7} parent=1 // pred_check
      _
    $region51: #{gsgm_forward.7} parent=1 // pred_check_branch
      %162 = sbr.rel (0) target = $region53
    $region52: #{gsgm_forward.7} parent=1 // pred_region
      %s164 = ssub.s32 16, 16
      %165 = vsyncadd [#allocation11], %s164
      %s167 = sshll.u32 [#allocation12], 4
      %s168 = int_to_ptr.vmem [resolvable:$true] %s167
      %170 = dma.hbm_to_vmem [thread:$0]  %s25, 16, %s168, [#allocation11]
    $region53: #{gsgm_forward.7} parent=1 // pred_fallthru
      _
    // Predicated region
    $region54: #{gsgm_forward.7} parent=1 // pred_check
      _
    $region55: #{gsgm_forward.7} parent=1 // pred_check_branch
      %172 = sbr.rel (0) target = $region57
    $region56: #{gsgm_forward.7} parent=1 // pred_region
      %s174 = ssub.s32 1024, 1024
      %175 = vsyncadd [#allocation14], %s174
      %s176 = sshll.u32 [#allocation13], 4
      %s177 = int_to_ptr.vmem [resolvable:$true] %s176
      %182 = dma.hbm_to_vmem [thread:$0]  %s27, 1024, %s177, [#allocation14], 64, 64, 4
    $region57: #{gsgm_forward.7} parent=1 // pred_fallthru
      _
    // Predicated region
    $region58: #{gsgm_forward.7} parent=1 // pred_check
      _
    $region59: #{gsgm_forward.7} parent=1 // pred_check_branch
      %184 = sbr.rel (0) target = $region61
    $region60: #{gsgm_forward.7} parent=1 // pred_region
      %s186 = ssub.s32 16, 16
      %187 = vsyncadd [#allocation14], %s186
      %s189 = sshll.u32 [#allocation15], 4
      %s190 = int_to_ptr.vmem [resolvable:$true] %s189
      %192 = dma.hbm_to_vmem [thread:$0]  %s29, 16, %s190, [#allocation14]
    $region61: #{gsgm_forward.7} parent=1 // pred_fallthru
      _
    // Predicated region
    $region62: #{gsgm_forward.7} parent=1 // pred_check
      _
    $region63: #{gsgm_forward.7} parent=1 // pred_check_branch
      %194 = sbr.rel (0) target = $region65
    $region64: #{gsgm_forward.7} parent=1 // pred_region
      %s196 = ssub.s32 96, 96
      %197 = vsyncadd [#allocation17], %s196
      %s198 = sshll.u32 [#allocation16], 4
      %s199 = int_to_ptr.vmem [resolvable:$true] %s198
      %204 = dma.hbm_to_vmem [thread:$0]  %s31, 96, %s199, [#allocation17], 16, 16, 1
    $region65: #{gsgm_forward.7} parent=1 // pred_fallthru
      _
    // Predicated region
    $region66: #{gsgm_forward.7} parent=1 // pred_check
      _
    $region67: #{gsgm_forward.7} parent=1 // pred_check_branch
      %206 = sbr.rel (0) target = $region69
    $region68: #{gsgm_forward.7} parent=1 // pred_region
      %s208 = ssub.s32 96, 96
      %209 = vsyncadd [#allocation17], %s208
      %s210 = sshll.u32 [#allocation18], 4
      %s211 = int_to_ptr.vmem [resolvable:$true] %s210
      %216 = dma.hbm_to_vmem [thread:$0]  %s33, 96, %s211, [#allocation17], 16, 16, 1
    $region69: #{gsgm_forward.7} parent=1 // pred_fallthru
      _
    // Predicated region
    $region70: #{gsgm_forward.7} parent=1 // pred_check
      _
    $region71: #{gsgm_forward.7} parent=1 // pred_check_branch
      %218 = sbr.rel (0) target = $region73
    $region72: #{gsgm_forward.7} parent=1 // pred_region
      _
    $region73: #{gsgm_forward.7} parent=1 // pred_fallthru
      _
    // Predicated region
    $region74: #{gsgm_forward.7} parent=1 // pred_check
      _
    $region75: #{gsgm_forward.7} parent=1 // pred_check_branch
      %220 = sbr.rel (0) target = $region77
    $region76: #{gsgm_forward.7} parent=1 // pred_region
      %s222 = ssub.s32 288, 288
      %223 = vsyncadd [#allocation20], %s222
      %s224 = sshll.u32 [#allocation19], 4
      %s225 = int_to_ptr.vmem [resolvable:$true] %s224
      %230 = dma.hbm_to_vmem [thread:$0]  %s37, 288, %s225, [#allocation20], 48, 48, 3
    $region77: #{gsgm_forward.7} parent=1 // pred_fallthru
      _
    // Predicated region
    $region78: #{gsgm_forward.7} parent=1 // pred_check
      _
    $region79: #{gsgm_forward.7} parent=1 // pred_check_branch
      %232 = sbr.rel (0) target = $region81
    $region80: #{gsgm_forward.7} parent=1 // pred_region
      %s234 = ssub.s32 6144, 6144
      %235 = vsyncadd [#allocation20], %s234
      %s236 = sshll.u32 [#allocation21], 4
      %s237 = int_to_ptr.vmem [resolvable:$true] %s236
      %242 = dma.hbm_to_vmem [thread:$0]  %s39, 6144, %s237, [#allocation20], 64, 64, 4
    $region81: #{gsgm_forward.7} parent=1 // pred_fallthru
      _
    // Predicated region
    $region82: #{gsgm_forward.7} parent=1 // pred_check
      _
    $region83: #{gsgm_forward.7} parent=1 // pred_check_branch
      %244 = sbr.rel (0) target = $region85
    $region84: #{gsgm_forward.7} parent=1 // pred_region
      %s246 = ssub.s32 96, 96
      %247 = vsyncadd [#allocation23], %s246
      %s248 = sshll.u32 [#allocation22], 4
      %s249 = int_to_ptr.vmem [resolvable:$true] %s248
      %254 = dma.hbm_to_vmem [thread:$0]  %s41, 96, %s249, [#allocation23], 16, 16, 1
    $region85: #{gsgm_forward.7} parent=1 // pred_fallthru
      _
    // Predicated region
    $region86: #{gsgm_forward.7} parent=1 // pred_check
      _
    $region87: #{gsgm_forward.7} parent=1 // pred_check_branch
      %256 = sbr.rel (0) target = $region89
    $region88: #{gsgm_forward.7} parent=1 // pred_region
      %s258 = ssub.s32 96, 96
      %259 = vsyncadd [#allocation23], %s258
      %s260 = sshll.u32 [#allocation24], 4
      %s261 = int_to_ptr.vmem [resolvable:$true] %s260
      %266 = dma.hbm_to_vmem [thread:$0]  %s43, 96, %s261, [#allocation23], 16, 16, 1
    $region89: #{gsgm_forward.7} parent=1 // pred_fallthru
      _
    // Predicated region
    $region90: #{gsgm_forward.7} parent=1 // pred_check
      _
    $region91: #{gsgm_forward.7} parent=1 // pred_check_branch
      %268 = sbr.rel (0) target = $region93
    $region92: #{gsgm_forward.7} parent=1 // pred_region
      %s270 = ssub.s32 96, 96
      %271 = vsyncadd [#allocation26], %s270
      %s272 = sshll.u32 [#allocation25], 4
      %s273 = int_to_ptr.vmem [resolvable:$true] %s272
      %278 = dma.hbm_to_vmem [thread:$0]  %s45, 96, %s273, [#allocation26], 16, 16, 1
    $region93: #{gsgm_forward.7} parent=1 // pred_fallthru
      _
    // Predicated region
    $region94: #{gsgm_forward.7} parent=1 // pred_check
      _
    $region95: #{gsgm_forward.7} parent=1 // pred_check_branch
      %280 = sbr.rel (0) target = $region97
    $region96: #{gsgm_forward.7} parent=1 // pred_region
      %s282 = ssub.s32 24576, 24576
      %283 = vsyncadd [#allocation26], %s282
      %s284 = sshll.u32 [#allocation27], 4
      %s285 = int_to_ptr.vmem [resolvable:$true] %s284
      %290 = dma.hbm_to_vmem [thread:$0]  %s47, 24576, %s285, [#allocation26], 256, 256, 16
    $region97: #{gsgm_forward.7} parent=1 // pred_fallthru
      _
    // Predicated region
    $region98: #{gsgm_forward.7} parent=1 // pred_check
      _
    $region99: #{gsgm_forward.7} parent=1 // pred_check_branch
      %292 = sbr.rel (0) target = $region101
    $region100: #{gsgm_forward.7} parent=1 // pred_region
      %s294 = ssub.s32 384, 384
      %295 = vsyncadd [#allocation29], %s294
      %s296 = sshll.u32 [#allocation28], 4
      %s297 = int_to_ptr.vmem [resolvable:$true] %s296
      %302 = dma.hbm_to_vmem [thread:$0]  %s49, 384, %s297, [#allocation29], 64, 64, 4
    $region101: #{gsgm_forward.7} parent=1 // pred_fallthru
      _
    // Predicated region
    $region102: #{gsgm_forward.7} parent=1 // pred_check
      _
    $region103: #{gsgm_forward.7} parent=1 // pred_check_branch
      %304 = sbr.rel (0) target = $region105
    $region104: #{gsgm_forward.7} parent=1 // pred_region
      %s306 = ssub.s32 24576, 24576
      %307 = vsyncadd [#allocation29], %s306
      %s308 = sshll.u32 [#allocation30], 4
      %s309 = int_to_ptr.vmem [resolvable:$true] %s308
      %314 = dma.hbm_to_vmem [thread:$0]  %s51, 24576, %s309, [#allocation29], 64, 64, 4
    $region105: #{gsgm_forward.7} parent=1 // pred_fallthru
      _
    // Predicated region
    $region106: #{gsgm_forward.7} parent=1 // pred_check
      _
    $region107: #{gsgm_forward.7} parent=1 // pred_check_branch
      %316 = sbr.rel (0) target = $region109
    $region108: #{gsgm_forward.7} parent=1 // pred_region
      %s318 = ssub.s32 96, 96
      %319 = vsyncadd [#allocation32], %s318
      %s320 = sshll.u32 [#allocation31], 4
      %s321 = int_to_ptr.vmem [resolvable:$true] %s320
      %326 = dma.hbm_to_vmem [thread:$0]  %s53, 96, %s321, [#allocation32], 16, 16, 1
    $region109: #{gsgm_forward.7} parent=1 // pred_fallthru
      _
    // Predicated region
    $region110: #{gsgm_forward.7} parent=1 // pred_check
      _
    $region111: #{gsgm_forward.7} parent=1 // pred_check_branch
      %328 = sbr.rel (0) target = $region113
    $region112: #{gsgm_forward.7} parent=1 // pred_region
      %s330 = ssub.s32 16, 16
      %331 = vsyncadd [#allocation32], %s330
      %s333 = sshll.u32 [#allocation33], 4
      %s334 = int_to_ptr.vmem [resolvable:$true] %s333
      %336 = dma.hbm_to_vmem [thread:$0]  %s55, 16, %s334, [#allocation32]
    $region113: #{gsgm_forward.7} parent=1 // pred_fallthru
      _
    // Predicated region
    $region114: #{gsgm_forward.7} parent=1 // pred_check
      _
    $region115: #{gsgm_forward.7} parent=1 // pred_check_branch
      %338 = sbr.rel (0) target = $region117
    $region116: #{gsgm_forward.7} parent=1 // pred_region
      %s340 = ssub.s32 16, 16
      %341 = vsyncadd [#allocation35], %s340
      %s343 = sshll.u32 [#allocation34], 4
      %s344 = int_to_ptr.vmem [resolvable:$true] %s343
      %346 = dma.hbm_to_vmem [thread:$0]  %s57, 16, %s344, [#allocation35]
    $region117: #{gsgm_forward.7} parent=1 // pred_fallthru
      _
    // Predicated region
    $region118: #{gsgm_forward.7} parent=1 // pred_check
      _
    $region119: #{gsgm_forward.7} parent=1 // pred_check_branch
      %348 = sbr.rel (0) target = $region121
    $region120: #{gsgm_forward.7} parent=1 // pred_region
      %s350 = ssub.s32 2048, 2048
      %351 = vsyncadd [#allocation35], %s350
      %s352 = sshll.u32 [#allocation36], 4
      %s353 = int_to_ptr.vmem [resolvable:$true] %s352
      %358 = dma.hbm_to_vmem [thread:$0]  %s59, 2048, %s353, [#allocation35], 128, 128, 8
    $region121: #{gsgm_forward.7} parent=1 // pred_fallthru
      _
    // Predicated region
    $region122: #{gsgm_forward.7} parent=1 // pred_check
      _
    $region123: #{gsgm_forward.7} parent=1 // pred_check_branch
      %360 = sbr.rel (0) target = $region125
    $region124: #{gsgm_forward.7} parent=1 // pred_region
      %s362 = ssub.s32 32, 32
      %363 = vsyncadd [#allocation38], %s362
      %s365 = sshll.u32 [#allocation37], 4
      %s366 = int_to_ptr.vmem [resolvable:$true] %s365
      %368 = dma.hbm_to_vmem [thread:$0]  %s61, 32, %s366, [#allocation38]
    $region125: #{gsgm_forward.7} parent=1 // pred_fallthru
      _
    // Predicated region
    $region126: #{gsgm_forward.7} parent=1 // pred_check
      _
    $region127: #{gsgm_forward.7} parent=1 // pred_check_branch
      %370 = sbr.rel (0) target = $region129
    $region128: #{gsgm_forward.7} parent=1 // pred_region
      _
    $region129: #{gsgm_forward.7} parent=1 // pred_fallthru
      _
    // Predicated region
    $region130: #{gsgm_forward.7} parent=1 // pred_check
      _
    $region131: #{gsgm_forward.7} parent=1 // pred_check_branch
      %372 = sbr.rel (0) target = $region133
    $region132: #{gsgm_forward.7} parent=1 // pred_region
      %s374 = ssub.s32 16, 16
      %375 = vsyncadd [#allocation38], %s374
      %s377 = sshll.u32 [#allocation39], 4
      %s378 = int_to_ptr.vmem [resolvable:$true] %s377
      %380 = dma.hbm_to_vmem [thread:$0]  %s65, 16, %s378, [#allocation38]
    $region133: #{gsgm_forward.7} parent=1 // pred_fallthru
      _
    // Predicated region
    $region134: #{gsgm_forward.7} parent=1 // pred_check
      _
    $region135: #{gsgm_forward.7} parent=1 // pred_check_branch
      %382 = sbr.rel (0) target = $region137
    $region136: #{gsgm_forward.7} parent=1 // pred_region
      %383 = dma.done [#allocation3], 1536
    $region137: #{gsgm_forward.7} parent=1 // pred_fallthru
      _
    // Predicated region
    $region138: #{gsgm_forward.7} parent=1 // pred_check
      _
    $region139: #{gsgm_forward.7} parent=1 // pred_check_branch
      %385 = sbr.rel (0) target = $region141
    $region140: #{gsgm_forward.7} parent=1 // pred_region
      %386 = dma.done [#allocation5], 32
    $region141: #{gsgm_forward.7} parent=1 // pred_fallthru
      _
    // Predicated region
    $region142: #{gsgm_forward.7} parent=1 // pred_check
      _
    $region143: #{gsgm_forward.7} parent=1 // pred_check_branch
      %388 = sbr.rel (0) target = $region145
    $region144: #{gsgm_forward.7} parent=1 // pred_region
      %389 = dma.done [#allocation5], 2048
    $region145: #{gsgm_forward.7} parent=1 // pred_fallthru
      _
    // Predicated region
    $region146: #{gsgm_forward.7} parent=1 // pred_check
      _
    $region147: #{gsgm_forward.7} parent=1 // pred_check_branch
      %391 = sbr.rel (0) target = $region149
    $region148: #{gsgm_forward.7} parent=1 // pred_region
      %392 = dma.done [#allocation8], 16
    $region149: #{gsgm_forward.7} parent=1 // pred_fallthru
      _
    // Predicated region
    $region150: #{gsgm_forward.7} parent=1 // pred_check
      _
    $region151: #{gsgm_forward.7} parent=1 // pred_check_branch
      %394 = sbr.rel (0) target = $region153
    $region152: #{gsgm_forward.7} parent=1 // pred_region
      %395 = dma.done [#allocation8], 32
    $region153: #{gsgm_forward.7} parent=1 // pred_fallthru
      _
    // Predicated region
    $region154: #{gsgm_forward.7} parent=1 // pred_check
      _
    $region155: #{gsgm_forward.7} parent=1 // pred_check_branch
      %397 = sbr.rel (0) target = $region157
    $region156: #{gsgm_forward.7} parent=1 // pred_region
      %398 = dma.done [#allocation11], 16
    $region157: #{gsgm_forward.7} parent=1 // pred_fallthru
      _
    // Predicated region
    $region158: #{gsgm_forward.7} parent=1 // pred_check
      _
    $region159: #{gsgm_forward.7} parent=1 // pred_check_branch
      %400 = sbr.rel (0) target = $region161
    $region160: #{gsgm_forward.7} parent=1 // pred_region
      %401 = dma.done [#allocation11], 16
    $region161: #{gsgm_forward.7} parent=1 // pred_fallthru
      _
    // Predicated region
    $region162: #{gsgm_forward.7} parent=1 // pred_check
      _
    $region163: #{gsgm_forward.7} parent=1 // pred_check_branch
      %403 = sbr.rel (0) target = $region165
    $region164: #{gsgm_forward.7} parent=1 // pred_region
      %404 = dma.done [#allocation14], 1024
    $region165: #{gsgm_forward.7} parent=1 // pred_fallthru
      _
    // Predicated region
    $region166: #{gsgm_forward.7} parent=1 // pred_check
      _
    $region167: #{gsgm_forward.7} parent=1 // pred_check_branch
      %406 = sbr.rel (0) target = $region169
    $region168: #{gsgm_forward.7} parent=1 // pred_region
      %407 = dma.done [#allocation14], 16
    $region169: #{gsgm_forward.7} parent=1 // pred_fallthru
      _
    // Predicated region
    $region170: #{gsgm_forward.7} parent=1 // pred_check
      _
    $region171: #{gsgm_forward.7} parent=1 // pred_check_branch
      %409 = sbr.rel (0) target = $region173
    $region172: #{gsgm_forward.7} parent=1 // pred_region
      %410 = dma.done [#allocation17], 96
    $region173: #{gsgm_forward.7} parent=1 // pred_fallthru
      _
    // Predicated region
    $region174: #{gsgm_forward.7} parent=1 // pred_check
      _
    $region175: #{gsgm_forward.7} parent=1 // pred_check_branch
      %412 = sbr.rel (0) target = $region177
    $region176: #{gsgm_forward.7} parent=1 // pred_region
      %413 = dma.done [#allocation17], 96
    $region177: #{gsgm_forward.7} parent=1 // pred_fallthru
      _
    // Predicated region
    $region178: #{gsgm_forward.7} parent=1 // pred_check
      _
    $region179: #{gsgm_forward.7} parent=1 // pred_check_branch
      %415 = sbr.rel (0) target = $region181
    $region180: #{gsgm_forward.7} parent=1 // pred_region
      %416 = dma.done [#allocation20], 288
    $region181: #{gsgm_forward.7} parent=1 // pred_fallthru
      _
    // Predicated region
    $region182: #{gsgm_forward.7} parent=1 // pred_check
      _
    $region183: #{gsgm_forward.7} parent=1 // pred_check_branch
      %418 = sbr.rel (0) target = $region185
    $region184: #{gsgm_forward.7} parent=1 // pred_region
      %419 = dma.done [#allocation20], 6144
    $region185: #{gsgm_forward.7} parent=1 // pred_fallthru
      _
    // Predicated region
    $region186: #{gsgm_forward.7} parent=1 // pred_check
      _
    $region187: #{gsgm_forward.7} parent=1 // pred_check_branch
      %421 = sbr.rel (0) target = $region189
    $region188: #{gsgm_forward.7} parent=1 // pred_region
      %422 = dma.done [#allocation23], 96
    $region189: #{gsgm_forward.7} parent=1 // pred_fallthru
      _
    // Predicated region
    $region190: #{gsgm_forward.7} parent=1 // pred_check
      _
    $region191: #{gsgm_forward.7} parent=1 // pred_check_branch
      %424 = sbr.rel (0) target = $region193
    $region192: #{gsgm_forward.7} parent=1 // pred_region
      %425 = dma.done [#allocation23], 96
    $region193: #{gsgm_forward.7} parent=1 // pred_fallthru
      _
    // Predicated region
    $region194: #{gsgm_forward.7} parent=1 // pred_check
      _
    $region195: #{gsgm_forward.7} parent=1 // pred_check_branch
      %427 = sbr.rel (0) target = $region197
    $region196: #{gsgm_forward.7} parent=1 // pred_region
      %428 = dma.done [#allocation26], 96
    $region197: #{gsgm_forward.7} parent=1 // pred_fallthru
      _
    // Predicated region
    $region198: #{gsgm_forward.7} parent=1 // pred_check
      _
    $region199: #{gsgm_forward.7} parent=1 // pred_check_branch
      %430 = sbr.rel (0) target = $region201
    $region200: #{gsgm_forward.7} parent=1 // pred_region
      %431 = dma.done [#allocation26], 24576
    $region201: #{gsgm_forward.7} parent=1 // pred_fallthru
      _
    // Predicated region
    $region202: #{gsgm_forward.7} parent=1 // pred_check
      _
    $region203: #{gsgm_forward.7} parent=1 // pred_check_branch
      %433 = sbr.rel (0) target = $region205
    $region204: #{gsgm_forward.7} parent=1 // pred_region
      %434 = dma.done [#allocation29], 384
    $region205: #{gsgm_forward.7} parent=1 // pred_fallthru
      _
    // Predicated region
    $region206: #{gsgm_forward.7} parent=1 // pred_check
      _
    $region207: #{gsgm_forward.7} parent=1 // pred_check_branch
      %436 = sbr.rel (0) target = $region209
    $region208: #{gsgm_forward.7} parent=1 // pred_region
      %437 = dma.done [#allocation29], 24576
    $region209: #{gsgm_forward.7} parent=1 // pred_fallthru
      _
    // Predicated region
    $region210: #{gsgm_forward.7} parent=1 // pred_check
      _
    $region211: #{gsgm_forward.7} parent=1 // pred_check_branch
      %439 = sbr.rel (0) target = $region213
    $region212: #{gsgm_forward.7} parent=1 // pred_region
      %440 = dma.done [#allocation32], 96
    $region213: #{gsgm_forward.7} parent=1 // pred_fallthru
      _
    // Predicated region
    $region214: #{gsgm_forward.7} parent=1 // pred_check
      _
    $region215: #{gsgm_forward.7} parent=1 // pred_check_branch
      %442 = sbr.rel (0) target = $region217
    $region216: #{gsgm_forward.7} parent=1 // pred_region
      %443 = dma.done [#allocation32], 16
    $region217: #{gsgm_forward.7} parent=1 // pred_fallthru
      _
    // Predicated region
    $region218: #{gsgm_forward.7} parent=1 // pred_check
      _
    $region219: #{gsgm_forward.7} parent=1 // pred_check_branch
      %445 = sbr.rel (0) target = $region221
    $region220: #{gsgm_forward.7} parent=1 // pred_region
      %446 = dma.done [#allocation35], 16
    $region221: #{gsgm_forward.7} parent=1 // pred_fallthru
      _
    // Predicated region
    $region222: #{gsgm_forward.7} parent=1 // pred_check
      _
    $region223: #{gsgm_forward.7} parent=1 // pred_check_branch
      %448 = sbr.rel (0) target = $region225
    $region224: #{gsgm_forward.7} parent=1 // pred_region
      %449 = dma.done [#allocation35], 2048
    $region225: #{gsgm_forward.7} parent=1 // pred_fallthru
      _
    // Predicated region
    $region226: #{gsgm_forward.7} parent=1 // pred_check
      _
    $region227: #{gsgm_forward.7} parent=1 // pred_check_branch
      %451 = sbr.rel (0) target = $region229
    $region228: #{gsgm_forward.7} parent=1 // pred_region
      %452 = dma.done [#allocation38], 32
    $region229: #{gsgm_forward.7} parent=1 // pred_fallthru
      _
    // Predicated region
    $region230: #{gsgm_forward.7} parent=1 // pred_check
      _
    $region231: #{gsgm_forward.7} parent=1 // pred_check_branch
      %454 = sbr.rel (0) target = $region233
    $region232: #{gsgm_forward.7} parent=1 // pred_region
      %455 = dma.done [#allocation38], 16
    $region233: #{gsgm_forward.7} parent=1 // pred_fallthru
      _
    %v457 = vld [vmem:[%s1] sm:$0xff]
    %v458 = vld [vmem:[%s1 + $0x8] sm:$0xff]
    %v459 = vld [vmem:[%s1 + $0x10] sm:$0xff]
    %v460 = vld [vmem:[%s1 + $0x18] sm:$0xff]
    %v461 = vld [vmem:[%s3] sm:$0xff]
    %v462 = vld [vmem:[%s3 + $0x8] sm:$0xff]
    %v463 = vld [vmem:[%s3 + $0x10] sm:$0xff]
    %v464 = vld [vmem:[%s3 + $0x18] sm:$0xff]
    %v465 = vld [vmem:[%s5] sm:$0xff]
    %v466 = vld [vmem:[%s5 + $0x8] sm:$0xff]
    %v467 = vld [vmem:[%s5 + $0x10] sm:$0xff]
    %v468 = vld [vmem:[%s5 + $0x18] sm:$0xff]
    %v469 = vld [vmem:[#allocation2] sm:$0xff]
    %v470 = vld [vmem:[#allocation2 + $0x8] sm:$0xff]
    %v471 = vld [vmem:[#allocation2 + $0x10] sm:$0xff]
    %v472 = vld [vmem:[#allocation2 + $0x18] sm:$0xff]
    %v473 = vld [vmem:[#allocation2 + $0x20] sm:$0xff]
    %v474 = vld [vmem:[#allocation2 + $0x28] sm:$0xff]
    %v475 = vld [vmem:[#allocation2 + $0x30] sm:$0xff]
    %v476 = vld [vmem:[#allocation2 + $0x38] sm:$0xff]
    %v477 = vld [vmem:[#allocation2 + $0x40] sm:$0xff]
    %v478 = vld [vmem:[#allocation2 + $0x48] sm:$0xff]
    %v479 = vld [vmem:[#allocation2 + $0x50] sm:$0xff]
    %v480 = vld [vmem:[#allocation2 + $0x58] sm:$0xff]
    %v481 = vpack.c.bf16 %v462, %v461
    %v482 = vpack.c.bf16 %v464, %v463
    %v483 = vld [vmem:[#allocation4] sm:$0x3]
    %v485 = vlaneseq
    %v486 = vshrl.u32 %v485, 7
    %v487 = vsub.s32 0, %v486
    %v488 = vrot.slane %v483, %v487
    %v489 = vlaneseq
    %v490 = vshrl.u32 %v489, 7
    %v491 = vsub.s32 1, %v490
    %v492 = vrot.slane %v483, %v491
    %v507 = vunpack.c.l.b16 %v469
    %v508 = vunpack.c.h.b16 %v469
    %v509 = vunpack.c.l.b16 %v470
    %v510 = vunpack.c.h.b16 %v470
    %v511 = vunpack.c.l.b16 %v471
    %v512 = vunpack.c.h.b16 %v471
    %v513 = vunpack.c.l.b16 %v472
    %v514 = vunpack.c.h.b16 %v472
    %v515 = vunpack.c.l.b16 %v473
    %v516 = vunpack.c.h.b16 %v473
    %v517 = vunpack.c.l.b16 %v474
    %v518 = vunpack.c.h.b16 %v474
    %v519 = vunpack.c.l.b16 %v475
    %v520 = vunpack.c.h.b16 %v475
    %v521 = vunpack.c.l.b16 %v476
    %v522 = vunpack.c.h.b16 %v476
    %v523 = vunpack.c.l.b16 %v477
    %v524 = vunpack.c.h.b16 %v477
    %v525 = vunpack.c.l.b16 %v478
    %v526 = vunpack.c.h.b16 %v478
    %v527 = vunpack.c.l.b16 %v479
    %v528 = vunpack.c.h.b16 %v479
    %v529 = vunpack.c.l.b16 %v480
    %v530 = vunpack.c.h.b16 %v480
    %v531 = vpack.c.b16 %v509, %v507
    %v532 = vpack.c.b16 %v510, %v508
    %v533 = vpack.c.b16 %v513, %v511
    %v534 = vpack.c.b16 %v514, %v512
    %v535 = vpack.c.b16 %v517, %v515
    %v536 = vpack.c.b16 %v518, %v516
    %v537 = vpack.c.b16 %v521, %v519
    %v538 = vpack.c.b16 %v522, %v520
    %v539 = vpack.c.b16 %v525, %v523
    %v540 = vpack.c.b16 %v526, %v524
    %v541 = vpack.c.b16 %v529, %v527
    %v542 = vpack.c.b16 %v530, %v528
    %vm555 = vcmask 785408
    %v557 = vsel %vm555, %v481, 0
    %v560 = vsel %vm555, %v482, 0
    %562 = vmatprep.subr.bf16.mxu0 %v532
    %563 = vmatpush1.bf16.msra.mxu0 %v531
    %564 = vmatprep.subr.bf16.mxu0 %v534
    %565 = vmatpush1.bf16.msra.mxu0 %v533
    %566 = vmatprep.subr.bf16.mxu0 %v536
    %567 = vmatpush1.bf16.msra.mxu0 %v535
    %568 = vmatprep.subr.bf16.mxu0 %v538
    %569 = vmatpush1.bf16.msra.mxu0 %v537
    %570 = vmatprep.subr.bf16.mxu0 %v540
    %571 = vmatpush1.bf16.msra.mxu0 %v539
    %572 = vmatprep.subr.bf16.mxu0 %v542
    %573 = vmatpush1.bf16.msra.mxu0 %v541
    %574 = vmatprep.subr.bf16.mxu0 0
    %575 = vmatpush1.bf16.msra.mxu0 0
    %576 = vmatprep.subr.bf16.mxu0 0
    %577 = vmatpush1.bf16.msra.mxu0 0
    %578 = vmatprep.subr.bf16.mxu0 0
    %579 = vmatpush1.bf16.msra.mxu0 0
    %580 = vmatprep.subr.bf16.mxu0 0
    %581 = vmatpush1.bf16.msra.mxu0 0
    %582 = vmatprep.subr.bf16.mxu0 0
    %583 = vmatpush1.bf16.msra.mxu0 0
    %584 = vmatprep.subr.bf16.mxu0 0
    %585 = vmatpush1.bf16.msra.mxu0 0
    %586 = vmatprep.subr.bf16.mxu0 0
    %587 = vmatpush1.bf16.msra.mxu0 0
    %588 = vmatprep.subr.bf16.mxu0 0
    %589 = vmatpush1.bf16.msra.mxu0 0
    %590 = vmatprep.subr.bf16.mxu0 0
    %591 = vmatpush1.bf16.msra.mxu0 0
    %592 = vmatprep.subr.bf16.mxu0 0
    %593 = vmatpush1.bf16.msra.mxu0 0
    %594 = vmatprep.mubr.bf16.mxu0 0
    %595 = vmatmul.mubr.bf16.gmra.mrb[0].mxu0 %v557
    %v596 = vpop.f32.mrb[0].mxu0
    %v597 = vadd.f32 %v488, %v596
    %v598 = vpop.f32.mrb[0].mxu0
    %v599 = vadd.f32 %v492, %v598
    %v600 = vpop.f32.mrb[0].mxu0
    %v601 = vadd.f32 %v488, %v600
    %v602 = vpop.f32.mrb[0].mxu0
    %v603 = vadd.f32 %v492, %v602
    %604 = vmatprep.mubr.bf16.mxu0 0
    %605 = vmatmul.mubr.bf16.gmra.mrb[0].mxu0 %v560
    %v606 = vpop.f32.mrb[0].mxu0
    %v607 = vadd.f32 %v488, %v606
    %v608 = vpop.f32.mrb[0].mxu0
    %v609 = vadd.f32 %v492, %v608
    %v610 = vpop.f32.mrb[0].mxu0
    %v611 = vadd.f32 %v488, %v610
    %v612 = vpop.f32.mrb[0].mxu0
    %v613 = vadd.f32 %v492, %v612
    %614 = vdwg.mxu0
    %vm615 = vcmp.gt.f32.partialorder %v597, 0.0
    %vm616 = vcmp.gt.f32.partialorder %v599, 0.0
    %vm617 = vcmp.gt.f32.partialorder %v601, 0.0
    %vm618 = vcmp.gt.f32.partialorder %v603, 0.0
    %vm619 = vcmp.gt.f32.partialorder %v607, 0.0
    %vm620 = vcmp.gt.f32.partialorder %v609, 0.0
    %vm621 = vcmp.gt.f32.partialorder %v611, 0.0
    %vm622 = vcmp.gt.f32.partialorder %v613, 0.0
    %v623 = vmul.f32 %v597, 0.01
    %v624 = vmul.f32 %v599, 0.01
    %v625 = vmul.f32 %v601, 0.01
    %v626 = vmul.f32 %v603, 0.01
    %v627 = vmul.f32 %v607, 0.01
    %v628 = vmul.f32 %v609, 0.01
    %v629 = vmul.f32 %v611, 0.01
    %v630 = vmul.f32 %v613, 0.01
    %v631 = vsel %vm615, %v597, %v623
    %v632 = vsel %vm616, %v599, %v624
    %v633 = vsel %vm617, %v601, %v625
    %v634 = vsel %vm618, %v603, %v626
    %v635 = vsel %vm619, %v607, %v627
    %v636 = vsel %vm620, %v609, %v628
    %v637 = vsel %vm621, %v611, %v629
    %v638 = vsel %vm622, %v613, %v630
    %v639 = vld [vmem:[#allocation6] sm:$0xf]
    %v640 = vld [vmem:[#allocation6 + $0x4] sm:$0xf]
    %v641 = vld [vmem:[#allocation6 + $0x8] sm:$0xf]
    %v642 = vld [vmem:[#allocation6 + $0xc] sm:$0xf]
    %v643 = vld [vmem:[#allocation6 + $0x10] sm:$0xf]
    %v644 = vld [vmem:[#allocation6 + $0x14] sm:$0xf]
    %v645 = vld [vmem:[#allocation6 + $0x18] sm:$0xf]
    %v646 = vld [vmem:[#allocation6 + $0x1c] sm:$0xf]
    %v647 = vld [vmem:[#allocation6 + $0x20] sm:$0xf]
    %v648 = vld [vmem:[#allocation6 + $0x24] sm:$0xf]
    %v649 = vld [vmem:[#allocation6 + $0x28] sm:$0xf]
    %v650 = vld [vmem:[#allocation6 + $0x2c] sm:$0xf]
    %v651 = vld [vmem:[#allocation6 + $0x30] sm:$0xf]
    %v652 = vld [vmem:[#allocation6 + $0x34] sm:$0xf]
    %v653 = vld [vmem:[#allocation6 + $0x38] sm:$0xf]
    %v654 = vld [vmem:[#allocation6 + $0x3c] sm:$0xf]
    %v655 = vld [vmem:[#allocation6 + $0x40] sm:$0xf]
    %v656 = vld [vmem:[#allocation6 + $0x44] sm:$0xf]
    %v657 = vld [vmem:[#allocation6 + $0x48] sm:$0xf]
    %v658 = vld [vmem:[#allocation6 + $0x4c] sm:$0xf]
    %v659 = vld [vmem:[#allocation6 + $0x50] sm:$0xf]
    %v660 = vld [vmem:[#allocation6 + $0x54] sm:$0xf]
    %v661 = vld [vmem:[#allocation6 + $0x58] sm:$0xf]
    %v662 = vld [vmem:[#allocation6 + $0x5c] sm:$0xf]
    %v663 = vld [vmem:[#allocation6 + $0x60] sm:$0xf]
    %v664 = vld [vmem:[#allocation6 + $0x64] sm:$0xf]
    %v665 = vld [vmem:[#allocation6 + $0x68] sm:$0xf]
    %v666 = vld [vmem:[#allocation6 + $0x6c] sm:$0xf]
    %v667 = vld [vmem:[#allocation6 + $0x70] sm:$0xf]
    %v668 = vld [vmem:[#allocation6 + $0x74] sm:$0xf]
    %v669 = vld [vmem:[#allocation6 + $0x78] sm:$0xf]
    %v670 = vld [vmem:[#allocation6 + $0x7c] sm:$0xf]
    %v671 = vpack.c.bf16 %v633, %v631
    %v672 = vpack.c.bf16 %v634, %v632
    %v673 = vpack.c.bf16 %v637, %v635
    %v674 = vpack.c.bf16 %v638, %v636
    %v675 = vld [vmem:[#allocation7] sm:$0x1]
    %v677 = vlaneseq
    %v678 = vshrl.u32 %v677, 7
    %v679 = vsub.s32 0, %v678
    %v680 = vrot.slane %v675, %v679
    %v714 = vunpack.c.l.b16 %v639
    %v715 = vunpack.c.l.b16 %v640
    %v716 = vunpack.c.l.b16 %v641
    %v717 = vunpack.c.l.b16 %v642
    %v718 = vunpack.c.l.b16 %v643
    %v719 = vunpack.c.l.b16 %v644
    %v720 = vunpack.c.l.b16 %v645
    %v721 = vunpack.c.l.b16 %v646
    %v722 = vunpack.c.l.b16 %v647
    %v723 = vunpack.c.l.b16 %v648
    %v724 = vunpack.c.l.b16 %v649
    %v725 = vunpack.c.l.b16 %v650
    %v726 = vunpack.c.l.b16 %v651
    %v727 = vunpack.c.l.b16 %v652
    %v728 = vunpack.c.l.b16 %v653
    %v729 = vunpack.c.l.b16 %v654
    %v730 = vunpack.c.l.b16 %v655
    %v731 = vunpack.c.l.b16 %v656
    %v732 = vunpack.c.l.b16 %v657
    %v733 = vunpack.c.l.b16 %v658
    %v734 = vunpack.c.l.b16 %v659
    %v735 = vunpack.c.l.b16 %v660
    %v736 = vunpack.c.l.b16 %v661
    %v737 = vunpack.c.l.b16 %v662
    %v738 = vunpack.c.l.b16 %v663
    %v739 = vunpack.c.l.b16 %v664
    %v740 = vunpack.c.l.b16 %v665
    %v741 = vunpack.c.l.b16 %v666
    %v742 = vunpack.c.l.b16 %v667
    %v743 = vunpack.c.l.b16 %v668
    %v744 = vunpack.c.l.b16 %v669
    %v745 = vunpack.c.l.b16 %v670
    %v746 = vpack.c.b16 %v715, %v714
    %v747 = vpack.c.b16 %v717, %v716
    %v748 = vpack.c.b16 %v719, %v718
    %v749 = vpack.c.b16 %v721, %v720
    %v750 = vpack.c.b16 %v723, %v722
    %v751 = vpack.c.b16 %v725, %v724
    %v752 = vpack.c.b16 %v727, %v726
    %v753 = vpack.c.b16 %v729, %v728
    %v754 = vpack.c.b16 %v731, %v730
    %v755 = vpack.c.b16 %v733, %v732
    %v756 = vpack.c.b16 %v735, %v734
    %v757 = vpack.c.b16 %v737, %v736
    %v758 = vpack.c.b16 %v739, %v738
    %v759 = vpack.c.b16 %v741, %v740
    %v760 = vpack.c.b16 %v743, %v742
    %v761 = vpack.c.b16 %v745, %v744
    %778 = vmatprep.subr.bf16.mxu0 0
    %779 = vmatpush1.bf16.msra.mxu0 %v746
    %780 = vmatprep.subr.bf16.mxu0 0
    %781 = vmatpush1.bf16.msra.mxu0 %v747
    %782 = vmatprep.subr.bf16.mxu0 0
    %783 = vmatpush1.bf16.msra.mxu0 %v748
    %784 = vmatprep.subr.bf16.mxu0 0
    %785 = vmatpush1.bf16.msra.mxu0 %v749
    %786 = vmatprep.subr.bf16.mxu0 0
    %787 = vmatpush1.bf16.msra.mxu0 %v750
    %788 = vmatprep.subr.bf16.mxu0 0
    %789 = vmatpush1.bf16.msra.mxu0 %v751
    %790 = vmatprep.subr.bf16.mxu0 0
    %791 = vmatpush1.bf16.msra.mxu0 %v752
    %792 = vmatprep.subr.bf16.mxu0 0
    %793 = vmatpush1.bf16.msra.mxu0 %v753
    %794 = vmatprep.subr.bf16.mxu0 0
    %795 = vmatpush1.bf16.msra.mxu0 %v754
    %796 = vmatprep.subr.bf16.mxu0 0
    %797 = vmatpush1.bf16.msra.mxu0 %v755
    %798 = vmatprep.subr.bf16.mxu0 0
    %799 = vmatpush1.bf16.msra.mxu0 %v756
    %800 = vmatprep.subr.bf16.mxu0 0
    %801 = vmatpush1.bf16.msra.mxu0 %v757
    %802 = vmatprep.subr.bf16.mxu0 0
    %803 = vmatpush1.bf16.msra.mxu0 %v758
    %804 = vmatprep.subr.bf16.mxu0 0
    %805 = vmatpush1.bf16.msra.mxu0 %v759
    %806 = vmatprep.subr.bf16.mxu0 0
    %807 = vmatpush1.bf16.msra.mxu0 %v760
    %808 = vmatprep.subr.bf16.mxu0 0
    %809 = vmatpush1.bf16.msra.mxu0 %v761
    %810 = vmatprep.mubr.bf16.mxu0 %v672
    %811 = vmatmul.mubr.bf16.gmra.mrb[0].mxu0 %v671
    %v812 = vpop.f32.mrb[0].mxu0
    %v813 = vadd.f32 %v680, %v812
    %v814 = vpop.f32.mrb[0].mxu0
    %v815 = vpop.f32.mrb[0].mxu0
    %v816 = vadd.f32 %v680, %v815
    %v817 = vpop.f32.mrb[0].mxu0
    %818 = vmatprep.mubr.bf16.mxu0 %v674
    %819 = vmatmul.mubr.bf16.gmra.mrb[0].mxu0 %v673
    %v820 = vpop.f32.mrb[0].mxu0
    %v821 = vadd.f32 %v680, %v820
    %v822 = vpop.f32.mrb[0].mxu0
    %v823 = vpop.f32.mrb[0].mxu0
    %v824 = vadd.f32 %v680, %v823
    %v825 = vpop.f32.mrb[0].mxu0
    %826 = vdwg.mxu0
    %v827 = vld [vmem:[#allocation9] sm:$0x3]
    %v828 = vpack.c.bf16 %v458, %v457
    %v829 = vpack.c.bf16 %v460, %v459
    %v830 = vld [vmem:[#allocation10] sm:$0x1]
    %v832 = vlaneseq
    %v833 = vshrl.u32 %v832, 7
    %v834 = vsub.s32 0, %v833
    %v835 = vrot.slane %v830, %v834
    %vm837 = vcmask 23552
    %v839 = vsel %vm837, %v828, 0
    %v842 = vsel %vm837, %v829, 0
    %vm844 = vcmask 1040384
    %vm845 = vcmask 1041408
    %v846 = vsel %vm844, 4294967295, 65535
    %v847 = vsel %vm845, %v846, 0
    %v849 = vand.u32 %v827, %v847
    %851 = vmatprep.subr.bf16.mxu0 0
    %852 = vmatpush1.bf16.msra.mxu0 %v849
    %853 = vmatprep.subr.bf16.mxu0 0
    %854 = vmatpush1.bf16.msra.mxu0 0
    %855 = vmatprep.subr.bf16.mxu0 0
    %856 = vmatpush1.bf16.msra.mxu0 0
    %857 = vmatprep.subr.bf16.mxu0 0
    %858 = vmatpush1.bf16.msra.mxu0 0
    %859 = vmatprep.subr.bf16.mxu0 0
    %860 = vmatpush1.bf16.msra.mxu0 0
    %861 = vmatprep.subr.bf16.mxu0 0
    %862 = vmatpush1.bf16.msra.mxu0 0
    %863 = vmatprep.subr.bf16.mxu0 0
    %864 = vmatpush1.bf16.msra.mxu0 0
    %865 = vmatprep.subr.bf16.mxu0 0
    %866 = vmatpush1.bf16.msra.mxu0 0
    %867 = vmatprep.subr.bf16.mxu0 0
    %868 = vmatpush1.bf16.msra.mxu0 0
    %869 = vmatprep.subr.bf16.mxu0 0
    %870 = vmatpush1.bf16.msra.mxu0 0
    %871 = vmatprep.subr.bf16.mxu0 0
    %872 = vmatpush1.bf16.msra.mxu0 0
    %873 = vmatprep.subr.bf16.mxu0 0
    %874 = vmatpush1.bf16.msra.mxu0 0
    %875 = vmatprep.subr.bf16.mxu0 0
    %876 = vmatpush1.bf16.msra.mxu0 0
    %877 = vmatprep.subr.bf16.mxu0 0
    %878 = vmatpush1.bf16.msra.mxu0 0
    %879 = vmatprep.subr.bf16.mxu0 0
    %880 = vmatpush1.bf16.msra.mxu0 0
    %881 = vmatprep.subr.bf16.mxu0 0
    %882 = vmatpush1.bf16.msra.mxu0 0
    %883 = vmatprep.mubr.bf16.mxu0 0
    %884 = vmatmul.mubr.bf16.gmra.mrb[0].mxu0 %v839
    %v885 = vpop.f32.mrb[0].mxu0
    %v886 = vadd.f32 %v835, %v885
    %v887 = vpop.f32.mrb[0].mxu0
    %v888 = vpop.f32.mrb[0].mxu0
    %v889 = vadd.f32 %v835, %v888
    %v890 = vpop.f32.mrb[0].mxu0
    %891 = vmatprep.mubr.bf16.mxu0 0
    %892 = vmatmul.mubr.bf16.gmra.mrb[0].mxu0 %v842
    %v893 = vpop.f32.mrb[0].mxu0
    %v894 = vadd.f32 %v835, %v893
    %v895 = vpop.f32.mrb[0].mxu0
    %v896 = vpop.f32.mrb[0].mxu0
    %v897 = vadd.f32 %v835, %v896
    %v898 = vpop.f32.mrb[0].mxu0
    %899 = vdwg.mxu0
    %v900 = vld [vmem:[%s21] sm:$0xf]
    %v901 = vld [vmem:[%s21 + $0x4] sm:$0xf]
    %v902 = vld [vmem:[%s21 + $0x8] sm:$0xf]
    %v903 = vld [vmem:[%s21 + $0xc] sm:$0xf]
    %v904 = vld [vmem:[%s21 + $0x10] sm:$0xf]
    %v905 = vld [vmem:[%s21 + $0x14] sm:$0xf]
    %v906 = vld [vmem:[%s21 + $0x18] sm:$0xf]
    %v907 = vld [vmem:[%s21 + $0x1c] sm:$0xf]
    %v908 = vld [vmem:[%s21 + $0x20] sm:$0xf]
    %v909 = vld [vmem:[%s21 + $0x24] sm:$0xf]
    %v910 = vld [vmem:[%s21 + $0x28] sm:$0xf]
    %v911 = vld [vmem:[%s21 + $0x2c] sm:$0xf]
    %v912 = vld [vmem:[%s21 + $0x30] sm:$0xf]
    %v913 = vld [vmem:[%s21 + $0x34] sm:$0xf]
    %v914 = vld [vmem:[%s21 + $0x38] sm:$0xf]
    %v915 = vld [vmem:[%s21 + $0x3c] sm:$0xf]
    %v916 = vpack.c.bf16 %v889, %v886
    %v917 = vpack.c.bf16 %v897, %v894
    %v918 = vld [vmem:[%s23] sm:$0xf]
    %v919 = vld [vmem:[%s23 + $0x4] sm:$0xf]
    %v920 = vld [vmem:[%s23 + $0x8] sm:$0xf]
    %v921 = vld [vmem:[%s23 + $0xc] sm:$0xf]
    %v922 = vld [vmem:[%s23 + $0x10] sm:$0xf]
    %v923 = vld [vmem:[%s23 + $0x14] sm:$0xf]
    %v924 = vld [vmem:[%s23 + $0x18] sm:$0xf]
    %v925 = vld [vmem:[%s23 + $0x1c] sm:$0xf]
    %v926 = vld [vmem:[%s23 + $0x20] sm:$0xf]
    %v927 = vld [vmem:[%s23 + $0x24] sm:$0xf]
    %v928 = vld [vmem:[%s23 + $0x28] sm:$0xf]
    %v929 = vld [vmem:[%s23 + $0x2c] sm:$0xf]
    %v930 = vld [vmem:[%s23 + $0x30] sm:$0xf]
    %v931 = vld [vmem:[%s23 + $0x34] sm:$0xf]
    %v932 = vld [vmem:[%s23 + $0x38] sm:$0xf]
    %v933 = vld [vmem:[%s23 + $0x3c] sm:$0xf]
    %v934 = vpack.c.bf16 %v816, %v813
    %v935 = vpack.c.bf16 %v824, %v821
    %v952 = vunpack.c.l.b16 %v918
    %v953 = vunpack.c.l.b16 %v919
    %v954 = vunpack.c.l.b16 %v920
    %v955 = vunpack.c.l.b16 %v921
    %v956 = vunpack.c.l.b16 %v922
    %v957 = vunpack.c.l.b16 %v923
    %v958 = vunpack.c.l.b16 %v924
    %v959 = vunpack.c.l.b16 %v925
    %v960 = vunpack.c.l.b16 %v926
    %v961 = vunpack.c.l.b16 %v927
    %v962 = vunpack.c.l.b16 %v928
    %v963 = vunpack.c.l.b16 %v929
    %v964 = vunpack.c.l.b16 %v930
    %v965 = vunpack.c.l.b16 %v931
    %v966 = vunpack.c.l.b16 %v932
    %v967 = vunpack.c.l.b16 %v933
    %v968 = vpack.c.b16 %v953, %v952
    %v969 = vpack.c.b16 %v955, %v954
    %v970 = vpack.c.b16 %v957, %v956
    %v971 = vpack.c.b16 %v959, %v958
    %v972 = vpack.c.b16 %v961, %v960
    %v973 = vpack.c.b16 %v963, %v962
    %v974 = vpack.c.b16 %v965, %v964
    %v975 = vpack.c.b16 %v967, %v966
    %984 = vmatprep.subr.bf16.mxu0 0
    %985 = vmatpush1.bf16.msra.mxu0 %v968
    %986 = vmatprep.subr.bf16.mxu0 0
    %987 = vmatpush1.bf16.msra.mxu0 %v969
    %988 = vmatprep.subr.bf16.mxu0 0
    %989 = vmatpush1.bf16.msra.mxu0 %v970
    %990 = vmatprep.subr.bf16.mxu0 0
    %991 = vmatpush1.bf16.msra.mxu0 %v971
    %992 = vmatprep.subr.bf16.mxu0 0
    %993 = vmatpush1.bf16.msra.mxu0 %v972
    %994 = vmatprep.subr.bf16.mxu0 0
    %995 = vmatpush1.bf16.msra.mxu0 %v973
    %996 = vmatprep.subr.bf16.mxu0 0
    %997 = vmatpush1.bf16.msra.mxu0 %v974
    %998 = vmatprep.subr.bf16.mxu0 0
    %999 = vmatpush1.bf16.msra.mxu0 %v975
    %1000 = vmatprep.subr.bf16.mxu0 0
    %1001 = vmatpush1.bf16.msra.mxu0 0
    %1002 = vmatprep.subr.bf16.mxu0 0
    %1003 = vmatpush1.bf16.msra.mxu0 0
    %1004 = vmatprep.subr.bf16.mxu0 0
    %1005 = vmatpush1.bf16.msra.mxu0 0
    %1006 = vmatprep.subr.bf16.mxu0 0
    %1007 = vmatpush1.bf16.msra.mxu0 0
    %1008 = vmatprep.subr.bf16.mxu0 0
    %1009 = vmatpush1.bf16.msra.mxu0 0
    %1010 = vmatprep.subr.bf16.mxu0 0
    %1011 = vmatpush1.bf16.msra.mxu0 0
    %1012 = vmatprep.subr.bf16.mxu0 0
    %1013 = vmatpush1.bf16.msra.mxu0 0
    %1014 = vmatprep.subr.bf16.mxu0 0
    %1015 = vmatpush1.bf16.msra.mxu0 0
    %1016 = vmatprep.mubr.bf16.mxu0 0
    %1017 = vmatmul.mubr.bf16.gmra.mrb[0].mxu0 %v934
    %v1018 = vpop.f32.mrb[0].mxu0
    %v1019 = vadd.f32 0.0, %v1018
    %v1020 = vpop.f32.mrb[0].mxu0
    %v1021 = vpop.f32.mrb[0].mxu0
    %v1022 = vadd.f32 0.0, %v1021
    %v1023 = vpop.f32.mrb[0].mxu0
    %1024 = vmatprep.mubr.bf16.mxu0 0
    %1025 = vmatmul.mubr.bf16.gmra.mrb[0].mxu0 %v935
    %v1026 = vpop.f32.mrb[0].mxu0
    %v1027 = vadd.f32 0.0, %v1026
    %v1028 = vpop.f32.mrb[0].mxu0
    %v1029 = vpop.f32.mrb[0].mxu0
    %v1030 = vadd.f32 0.0, %v1029
    %v1031 = vpop.f32.mrb[0].mxu0
    %1032 = vdwg.mxu0
    %v1049 = vunpack.c.l.b16 %v900
    %v1050 = vunpack.c.l.b16 %v901
    %v1051 = vunpack.c.l.b16 %v902
    %v1052 = vunpack.c.l.b16 %v903
    %v1053 = vunpack.c.l.b16 %v904
    %v1054 = vunpack.c.l.b16 %v905
    %v1055 = vunpack.c.l.b16 %v906
    %v1056 = vunpack.c.l.b16 %v907
    %v1057 = vunpack.c.l.b16 %v908
    %v1058 = vunpack.c.l.b16 %v909
    %v1059 = vunpack.c.l.b16 %v910
    %v1060 = vunpack.c.l.b16 %v911
    %v1061 = vunpack.c.l.b16 %v912
    %v1062 = vunpack.c.l.b16 %v913
    %v1063 = vunpack.c.l.b16 %v914
    %v1064 = vunpack.c.l.b16 %v915
    %v1065 = vpack.c.b16 %v1050, %v1049
    %v1066 = vpack.c.b16 %v1052, %v1051
    %v1067 = vpack.c.b16 %v1054, %v1053
    %v1068 = vpack.c.b16 %v1056, %v1055
    %v1069 = vpack.c.b16 %v1058, %v1057
    %v1070 = vpack.c.b16 %v1060, %v1059
    %v1071 = vpack.c.b16 %v1062, %v1061
    %v1072 = vpack.c.b16 %v1064, %v1063
    %1081 = vmatprep.subr.bf16.mxu0 0
    %1082 = vmatpush1.bf16.msra.mxu0 %v1065
    %1083 = vmatprep.subr.bf16.mxu0 0
    %1084 = vmatpush1.bf16.msra.mxu0 %v1066
    %1085 = vmatprep.subr.bf16.mxu0 0
    %1086 = vmatpush1.bf16.msra.mxu0 %v1067
    %1087 = vmatprep.subr.bf16.mxu0 0
    %1088 = vmatpush1.bf16.msra.mxu0 %v1068
    %1089 = vmatprep.subr.bf16.mxu0 0
    %1090 = vmatpush1.bf16.msra.mxu0 %v1069
    %1091 = vmatprep.subr.bf16.mxu0 0
    %1092 = vmatpush1.bf16.msra.mxu0 %v1070
    %1093 = vmatprep.subr.bf16.mxu0 0
    %1094 = vmatpush1.bf16.msra.mxu0 %v1071
    %1095 = vmatprep.subr.bf16.mxu0 0
    %1096 = vmatpush1.bf16.msra.mxu0 %v1072
    %1097 = vmatprep.subr.bf16.mxu0 0
    %1098 = vmatpush1.bf16.msra.mxu0 0
    %1099 = vmatprep.subr.bf16.mxu0 0
    %1100 = vmatpush1.bf16.msra.mxu0 0
    %1101 = vmatprep.subr.bf16.mxu0 0
    %1102 = vmatpush1.bf16.msra.mxu0 0
    %1103 = vmatprep.subr.bf16.mxu0 0
    %1104 = vmatpush1.bf16.msra.mxu0 0
    %1105 = vmatprep.subr.bf16.mxu0 0
    %1106 = vmatpush1.bf16.msra.mxu0 0
    %1107 = vmatprep.subr.bf16.mxu0 0
    %1108 = vmatpush1.bf16.msra.mxu0 0
    %1109 = vmatprep.subr.bf16.mxu0 0
    %1110 = vmatpush1.bf16.msra.mxu0 0
    %1111 = vmatprep.subr.bf16.mxu0 0
    %1112 = vmatpush1.bf16.msra.mxu0 0
    %1113 = vmatprep.mubr.bf16.mxu0 0
    %1114 = vmatmul.mubr.bf16.gmra.mrb[0].mxu0 %v916
    %v1115 = vpop.f32.mrb[0].mxu0
    %v1116 = vadd.f32 %v1019, %v1115
    %v1117 = vpop.f32.mrb[0].mxu0
    %v1118 = vpop.f32.mrb[0].mxu0
    %v1119 = vadd.f32 %v1022, %v1118
    %v1120 = vpop.f32.mrb[0].mxu0
    %1121 = vmatprep.mubr.bf16.mxu0 0
    %1122 = vmatmul.mubr.bf16.gmra.mrb[0].mxu0 %v917
    %v1123 = vpop.f32.mrb[0].mxu0
    %v1124 = vadd.f32 %v1027, %v1123
    %v1125 = vpop.f32.mrb[0].mxu0
    %v1126 = vpop.f32.mrb[0].mxu0
    %v1127 = vadd.f32 %v1030, %v1126
    %v1128 = vpop.f32.mrb[0].mxu0
    %1129 = vdwg.mxu0
    %v1130 = vld [vmem:[#allocation12] sm:$0x1]
    %v1132 = vlaneseq
    %v1133 = vshrl.u32 %v1132, 7
    %v1134 = vsub.s32 0, %v1133
    %v1135 = vrot.slane %v1130, %v1134
    %v1137 = vadd.f32 %v1116, %v1135
    %v1138 = vadd.f32 %v1119, %v1135
    %v1139 = vadd.f32 %v1124, %v1135
    %v1140 = vadd.f32 %v1127, %v1135
    %vm1141 = vcmp.gt.f32.partialorder %v1137, 0.0
    %vm1142 = vcmp.gt.f32.partialorder %v1138, 0.0
    %vm1143 = vcmp.gt.f32.partialorder %v1139, 0.0
    %vm1144 = vcmp.gt.f32.partialorder %v1140, 0.0
    %v1145 = vmul.f32 %v1137, 0.01
    %v1146 = vmul.f32 %v1138, 0.01
    %v1147 = vmul.f32 %v1139, 0.01
    %v1148 = vmul.f32 %v1140, 0.01
    %v1149 = vsel %vm1141, %v1137, %v1145
    %v1150 = vsel %vm1142, %v1138, %v1146
    %v1151 = vsel %vm1143, %v1139, %v1147
    %v1152 = vsel %vm1144, %v1140, %v1148
    %v1153 = vld [vmem:[#allocation13] sm:$0xf]
    %v1154 = vld [vmem:[#allocation13 + $0x4] sm:$0xf]
    %v1155 = vld [vmem:[#allocation13 + $0x8] sm:$0xf]
    %v1156 = vld [vmem:[#allocation13 + $0xc] sm:$0xf]
    %v1157 = vld [vmem:[#allocation13 + $0x10] sm:$0xf]
    %v1158 = vld [vmem:[#allocation13 + $0x14] sm:$0xf]
    %v1159 = vld [vmem:[#allocation13 + $0x18] sm:$0xf]
    %v1160 = vld [vmem:[#allocation13 + $0x1c] sm:$0xf]
    %v1161 = vld [vmem:[#allocation13 + $0x20] sm:$0xf]
    %v1162 = vld [vmem:[#allocation13 + $0x24] sm:$0xf]
    %v1163 = vld [vmem:[#allocation13 + $0x28] sm:$0xf]
    %v1164 = vld [vmem:[#allocation13 + $0x2c] sm:$0xf]
    %v1165 = vld [vmem:[#allocation13 + $0x30] sm:$0xf]
    %v1166 = vld [vmem:[#allocation13 + $0x34] sm:$0xf]
    %v1167 = vld [vmem:[#allocation13 + $0x38] sm:$0xf]
    %v1168 = vld [vmem:[#allocation13 + $0x3c] sm:$0xf]
    %v1169 = vpack.c.bf16 %v1150, %v1149
    %v1170 = vpack.c.bf16 %v1152, %v1151
    %v1171 = vld [vmem:[#allocation15] sm:$0x1]
    %v1173 = vlaneseq
    %v1174 = vshrl.u32 %v1173, 7
    %v1175 = vsub.s32 0, %v1174
    %v1176 = vrot.slane %v1171, %v1175
    %v1194 = vunpack.c.l.b16 %v1153
    %v1195 = vunpack.c.l.b16 %v1154
    %v1196 = vunpack.c.l.b16 %v1155
    %v1197 = vunpack.c.l.b16 %v1156
    %v1198 = vunpack.c.l.b16 %v1157
    %v1199 = vunpack.c.l.b16 %v1158
    %v1200 = vunpack.c.l.b16 %v1159
    %v1201 = vunpack.c.l.b16 %v1160
    %v1202 = vunpack.c.l.b16 %v1161
    %v1203 = vunpack.c.l.b16 %v1162
    %v1204 = vunpack.c.l.b16 %v1163
    %v1205 = vunpack.c.l.b16 %v1164
    %v1206 = vunpack.c.l.b16 %v1165
    %v1207 = vunpack.c.l.b16 %v1166
    %v1208 = vunpack.c.l.b16 %v1167
    %v1209 = vunpack.c.l.b16 %v1168
    %v1210 = vpack.c.b16 %v1195, %v1194
    %v1211 = vpack.c.b16 %v1197, %v1196
    %v1212 = vpack.c.b16 %v1199, %v1198
    %v1213 = vpack.c.b16 %v1201, %v1200
    %v1214 = vpack.c.b16 %v1203, %v1202
    %v1215 = vpack.c.b16 %v1205, %v1204
    %v1216 = vpack.c.b16 %v1207, %v1206
    %v1217 = vpack.c.b16 %v1209, %v1208
    %1226 = vmatprep.subr.bf16.mxu0 0
    %1227 = vmatpush1.bf16.msra.mxu0 %v1210
    %1228 = vmatprep.subr.bf16.mxu0 0
    %1229 = vmatpush1.bf16.msra.mxu0 %v1211
    %1230 = vmatprep.subr.bf16.mxu0 0
    %1231 = vmatpush1.bf16.msra.mxu0 %v1212
    %1232 = vmatprep.subr.bf16.mxu0 0
    %1233 = vmatpush1.bf16.msra.mxu0 %v1213
    %1234 = vmatprep.subr.bf16.mxu0 0
    %1235 = vmatpush1.bf16.msra.mxu0 %v1214
    %1236 = vmatprep.subr.bf16.mxu0 0
    %1237 = vmatpush1.bf16.msra.mxu0 %v1215
    %1238 = vmatprep.subr.bf16.mxu0 0
    %1239 = vmatpush1.bf16.msra.mxu0 %v1216
    %1240 = vmatprep.subr.bf16.mxu0 0
    %1241 = vmatpush1.bf16.msra.mxu0 %v1217
    %1242 = vmatprep.subr.bf16.mxu0 0
    %1243 = vmatpush1.bf16.msra.mxu0 0
    %1244 = vmatprep.subr.bf16.mxu0 0
    %1245 = vmatpush1.bf16.msra.mxu0 0
    %1246 = vmatprep.subr.bf16.mxu0 0
    %1247 = vmatpush1.bf16.msra.mxu0 0
    %1248 = vmatprep.subr.bf16.mxu0 0
    %1249 = vmatpush1.bf16.msra.mxu0 0
    %1250 = vmatprep.subr.bf16.mxu0 0
    %1251 = vmatpush1.bf16.msra.mxu0 0
    %1252 = vmatprep.subr.bf16.mxu0 0
    %1253 = vmatpush1.bf16.msra.mxu0 0
    %1254 = vmatprep.subr.bf16.mxu0 0
    %1255 = vmatpush1.bf16.msra.mxu0 0
    %1256 = vmatprep.subr.bf16.mxu0 0
    %1257 = vmatpush1.bf16.msra.mxu0 0
    %1258 = vmatprep.mubr.bf16.mxu0 0
    %1259 = vmatmul.mubr.bf16.gmra.mrb[0].mxu0 %v1169
    %v1260 = vpop.f32.mrb[0].mxu0
    %v1261 = vadd.f32 %v1176, %v1260
    %v1262 = vpop.f32.mrb[0].mxu0
    %v1263 = vpop.f32.mrb[0].mxu0
    %v1264 = vadd.f32 %v1176, %v1263
    %v1265 = vpop.f32.mrb[0].mxu0
    %1266 = vmatprep.mubr.bf16.mxu0 0
    %1267 = vmatmul.mubr.bf16.gmra.mrb[0].mxu0 %v1170
    %v1268 = vpop.f32.mrb[0].mxu0
    %v1269 = vadd.f32 %v1176, %v1268
    %v1270 = vpop.f32.mrb[0].mxu0
    %v1271 = vpop.f32.mrb[0].mxu0
    %v1272 = vadd.f32 %v1176, %v1271
    %v1273 = vpop.f32.mrb[0].mxu0
    %1274 = vdwg.mxu0
    loop: start=0, step=1, limit=6
    $region234: #{gsgm_forward.7} parent=1 // loop_pre_header
      _
    $region235: #{gsgm_forward.7} parent=1 // loop_header
      %s1276 = sphi 0, %s1280
      %p1277 = scmp.ge.s32.totalorder %s1276, 6
      %v1281 = vphi %v1261, %v3105
      %v1282 = vphi %v1264, %v3106
      %v1283 = vphi %v1269, %v3107
      %v1284 = vphi %v1272, %v3108
    $region236: #{gsgm_forward.7} parent=1 // loop_header_branch
      %1279 = sbr.rel (%p1277) target = $region240
    $region237: #{gsgm_forward.7} parent=1 // loop_body
      %s1285 = scalar_lea.vmem [#allocation16], %s1276
      %v1286 = vld [vmem:[%s1285] sm:$0x1]
      %s1287 = scalar_lea.vmem [#allocation18], %s1276
      %v1288 = vld [vmem:[%s1287] sm:$0x1]
      %1289 = vadd.xlane.f32.xlu0 %v1281
      %v1290 = vpop.xlane.xlu0 %1289
      %1291 = vadd.xlane.f32.xlu0 %v1282
      %v1292 = vpop.xlane.xlu0 %1291
      %1293 = vadd.xlane.f32.xlu0 %v1283
      %v1294 = vpop.xlane.xlu0 %1293
      %1295 = vadd.xlane.f32.xlu0 %v1284
      %v1296 = vpop.xlane.xlu0 %1295
      %v1297 = vrcp.pop 128.0
      %v1298 = vmul.f32 %v1290, %v1297
      %v1299 = vmul.f32 %v1292, %v1297
      %v1300 = vmul.f32 %v1294, %v1297
      %v1301 = vmul.f32 %v1296, %v1297
      %v1302 = vsub.f32 %v1281, %v1298
      %v1303 = vsub.f32 %v1282, %v1299
      %v1304 = vsub.f32 %v1283, %v1300
      %v1305 = vsub.f32 %v1284, %v1301
      %v1306 = vmul.f32 %v1302, %v1302
      %v1307 = vmul.f32 %v1303, %v1303
      %v1308 = vmul.f32 %v1304, %v1304
      %v1309 = vmul.f32 %v1305, %v1305
      %1310 = vadd.xlane.f32.xlu0 %v1306
      %v1311 = vpop.xlane.xlu0 %1310
      %1312 = vadd.xlane.f32.xlu0 %v1307
      %v1313 = vpop.xlane.xlu0 %1312
      %1314 = vadd.xlane.f32.xlu0 %v1308
      %v1315 = vpop.xlane.xlu0 %1314
      %1316 = vadd.xlane.f32.xlu0 %v1309
      %v1317 = vpop.xlane.xlu0 %1316
      %v1318 = vmul.f32 %v1311, %v1297
      %v1319 = vmul.f32 %v1313, %v1297
      %v1320 = vmul.f32 %v1315, %v1297
      %v1321 = vmul.f32 %v1317, %v1297
      %v1322 = vadd.f32 %v1318, 1e-05
      %v1323 = vadd.f32 %v1319, 1e-05
      %v1324 = vadd.f32 %v1320, 1e-05
      %v1325 = vadd.f32 %v1321, 1e-05
      %v1326 = vrsqrt.pop %v1322
      %v1327 = vrsqrt.pop %v1323
      %v1328 = vrsqrt.pop %v1324
      %v1329 = vrsqrt.pop %v1325
      %v1330 = vmul.f32 %v1302, %v1326
      %v1331 = vmul.f32 %v1303, %v1327
      %v1332 = vmul.f32 %v1304, %v1328
      %v1333 = vmul.f32 %v1305, %v1329
      %v1335 = vlaneseq
      %v1336 = vshrl.u32 %v1335, 7
      %v1337 = vsub.s32 0, %v1336
      %v1338 = vrot.slane %v1286, %v1337
      %v1340 = vmul.f32 %v1330, %v1338
      %v1341 = vmul.f32 %v1331, %v1338
      %v1342 = vmul.f32 %v1332, %v1338
      %v1343 = vmul.f32 %v1333, %v1338
      %v1345 = vlaneseq
      %v1346 = vshrl.u32 %v1345, 7
      %v1347 = vsub.s32 0, %v1346
      %v1348 = vrot.slane %v1288, %v1347
      %v1350 = vadd.f32 %v1340, %v1348
      %v1351 = vadd.f32 %v1341, %v1348
      %v1352 = vadd.f32 %v1342, %v1348
      %v1353 = vadd.f32 %v1343, %v1348
      %s1354 = smul.u32 %s1276, 48
      %s1355 = smul.addr %s1354, 4
      %s1356 = scalar_lea.vmem %s35, %s1355
      %v1357 = vld [vmem:[%s1356] sm:$0xff]
      %v1358 = vld [vmem:[%s1356 + $0x8] sm:$0xf]
      %v1359 = vld [vmem:[%s1356 + $0xc] sm:$0xff]
      %v1360 = vld [vmem:[%s1356 + $0x14] sm:$0xf]
      %v1361 = vld [vmem:[%s1356 + $0x18] sm:$0xff]
      %v1362 = vld [vmem:[%s1356 + $0x20] sm:$0xf]
      %v1363 = vld [vmem:[%s1356 + $0x24] sm:$0xff]
      %v1364 = vld [vmem:[%s1356 + $0x2c] sm:$0xf]
      %v1365 = vld [vmem:[%s1356 + $0x30] sm:$0xff]
      %v1366 = vld [vmem:[%s1356 + $0x38] sm:$0xf]
      %v1367 = vld [vmem:[%s1356 + $0x3c] sm:$0xff]
      %v1368 = vld [vmem:[%s1356 + $0x44] sm:$0xf]
      %v1369 = vld [vmem:[%s1356 + $0x48] sm:$0xff]
      %v1370 = vld [vmem:[%s1356 + $0x50] sm:$0xf]
      %v1371 = vld [vmem:[%s1356 + $0x54] sm:$0xff]
      %v1372 = vld [vmem:[%s1356 + $0x5c] sm:$0xf]
      %v1373 = vld [vmem:[%s1356 + $0x60] sm:$0xff]
      %v1374 = vld [vmem:[%s1356 + $0x68] sm:$0xf]
      %v1375 = vld [vmem:[%s1356 + $0x6c] sm:$0xff]
      %v1376 = vld [vmem:[%s1356 + $0x74] sm:$0xf]
      %v1377 = vld [vmem:[%s1356 + $0x78] sm:$0xff]
      %v1378 = vld [vmem:[%s1356 + $0x80] sm:$0xf]
      %v1379 = vld [vmem:[%s1356 + $0x84] sm:$0xff]
      %v1380 = vld [vmem:[%s1356 + $0x8c] sm:$0xf]
      %v1381 = vld [vmem:[%s1356 + $0x90] sm:$0xff]
      %v1382 = vld [vmem:[%s1356 + $0x98] sm:$0xf]
      %v1383 = vld [vmem:[%s1356 + $0x9c] sm:$0xff]
      %v1384 = vld [vmem:[%s1356 + $0xa4] sm:$0xf]
      %v1385 = vld [vmem:[%s1356 + $0xa8] sm:$0xff]
      %v1386 = vld [vmem:[%s1356 + $0xb0] sm:$0xf]
      %v1387 = vld [vmem:[%s1356 + $0xb4] sm:$0xff]
      %v1388 = vld [vmem:[%s1356 + $0xbc] sm:$0xf]
      %v1389 = vpack.c.bf16 %v1351, %v1350
      %v1390 = vpack.c.bf16 %v1353, %v1352
      %s1391 = smul.u32 %s1276, 3
      %s1392 = scalar_lea.vmem [#allocation19], %s1391
      %v1393 = vld [vmem:[%s1392] sm:$0x7]
      %v1395 = vlaneseq
      %v1396 = vshrl.u32 %v1395, 7
      %v1397 = vsub.s32 0, %v1396
      %v1398 = vrot.slane %v1393, %v1397
      %v1399 = vlaneseq
      %v1400 = vshrl.u32 %v1399, 7
      %v1401 = vsub.s32 1, %v1400
      %v1402 = vrot.slane %v1393, %v1401
      %v1403 = vlaneseq
      %v1404 = vshrl.u32 %v1403, 7
      %v1405 = vsub.s32 2, %v1404
      %v1406 = vrot.slane %v1393, %v1405
      %v1442 = vunpack.c.l.b16 %v1357
      %v1443 = vunpack.c.h.b16 %v1357
      %v1444 = vunpack.c.l.b16 %v1358
      %v1445 = vunpack.c.l.b16 %v1359
      %v1446 = vunpack.c.h.b16 %v1359
      %v1447 = vunpack.c.l.b16 %v1360
      %v1448 = vunpack.c.l.b16 %v1361
      %v1449 = vunpack.c.h.b16 %v1361
      %v1450 = vunpack.c.l.b16 %v1362
      %v1451 = vunpack.c.l.b16 %v1363
      %v1452 = vunpack.c.h.b16 %v1363
      %v1453 = vunpack.c.l.b16 %v1364
      %v1454 = vunpack.c.l.b16 %v1365
      %v1455 = vunpack.c.h.b16 %v1365
      %v1456 = vunpack.c.l.b16 %v1366
      %v1457 = vunpack.c.l.b16 %v1367
      %v1458 = vunpack.c.h.b16 %v1367
      %v1459 = vunpack.c.l.b16 %v1368
      %v1460 = vunpack.c.l.b16 %v1369
      %v1461 = vunpack.c.h.b16 %v1369
      %v1462 = vunpack.c.l.b16 %v1370
      %v1463 = vunpack.c.l.b16 %v1371
      %v1464 = vunpack.c.h.b16 %v1371
      %v1465 = vunpack.c.l.b16 %v1372
      %v1466 = vunpack.c.l.b16 %v1373
      %v1467 = vunpack.c.h.b16 %v1373
      %v1468 = vunpack.c.l.b16 %v1374
      %v1469 = vunpack.c.l.b16 %v1375
      %v1470 = vunpack.c.h.b16 %v1375
      %v1471 = vunpack.c.l.b16 %v1376
      %v1472 = vunpack.c.l.b16 %v1377
      %v1473 = vunpack.c.h.b16 %v1377
      %v1474 = vunpack.c.l.b16 %v1378
      %v1475 = vunpack.c.l.b16 %v1379
      %v1476 = vunpack.c.h.b16 %v1379
      %v1477 = vunpack.c.l.b16 %v1380
      %v1478 = vunpack.c.l.b16 %v1381
      %v1479 = vunpack.c.h.b16 %v1381
      %v1480 = vunpack.c.l.b16 %v1382
      %v1481 = vunpack.c.l.b16 %v1383
      %v1482 = vunpack.c.h.b16 %v1383
      %v1483 = vunpack.c.l.b16 %v1384
      %v1484 = vunpack.c.l.b16 %v1385
      %v1485 = vunpack.c.h.b16 %v1385
      %v1486 = vunpack.c.l.b16 %v1386
      %v1487 = vunpack.c.l.b16 %v1387
      %v1488 = vunpack.c.h.b16 %v1387
      %v1489 = vunpack.c.l.b16 %v1388
      %v1490 = vpack.c.b16 %v1445, %v1442
      %v1491 = vpack.c.b16 %v1446, %v1443
      %v1492 = vpack.c.b16 %v1447, %v1444
      %v1493 = vpack.c.b16 %v1451, %v1448
      %v1494 = vpack.c.b16 %v1452, %v1449
      %v1495 = vpack.c.b16 %v1453, %v1450
      %v1496 = vpack.c.b16 %v1457, %v1454
      %v1497 = vpack.c.b16 %v1458, %v1455
      %v1498 = vpack.c.b16 %v1459, %v1456
      %v1499 = vpack.c.b16 %v1463, %v1460
      %v1500 = vpack.c.b16 %v1464, %v1461
      %v1501 = vpack.c.b16 %v1465, %v1462
      %v1502 = vpack.c.b16 %v1469, %v1466
      %v1503 = vpack.c.b16 %v1470, %v1467
      %v1504 = vpack.c.b16 %v1471, %v1468
      %v1505 = vpack.c.b16 %v1475, %v1472
      %v1506 = vpack.c.b16 %v1476, %v1473
      %v1507 = vpack.c.b16 %v1477, %v1474
      %v1508 = vpack.c.b16 %v1481, %v1478
      %v1509 = vpack.c.b16 %v1482, %v1479
      %v1510 = vpack.c.b16 %v1483, %v1480
      %v1511 = vpack.c.b16 %v1487, %v1484
      %v1512 = vpack.c.b16 %v1488, %v1485
      %v1513 = vpack.c.b16 %v1489, %v1486
      %1538 = vmatprep.subr.bf16.mxu0 %v1491
      %1539 = vmatpush1.bf16.msra.mxu0 %v1490
      %1540 = vmatprep.subr.bf16.mxu0 %v1494
      %1541 = vmatpush1.bf16.msra.mxu0 %v1493
      %1542 = vmatprep.subr.bf16.mxu0 %v1497
      %1543 = vmatpush1.bf16.msra.mxu0 %v1496
      %1544 = vmatprep.subr.bf16.mxu0 %v1500
      %1545 = vmatpush1.bf16.msra.mxu0 %v1499
      %1546 = vmatprep.subr.bf16.mxu0 %v1503
      %1547 = vmatpush1.bf16.msra.mxu0 %v1502
      %1548 = vmatprep.subr.bf16.mxu0 %v1506
      %1549 = vmatpush1.bf16.msra.mxu0 %v1505
      %1550 = vmatprep.subr.bf16.mxu0 %v1509
      %1551 = vmatpush1.bf16.msra.mxu0 %v1508
      %1552 = vmatprep.subr.bf16.mxu0 %v1512
      %1553 = vmatpush1.bf16.msra.mxu0 %v1511
      %1554 = vmatprep.subr.bf16.mxu0 0
      %1555 = vmatpush1.bf16.msra.mxu0 0
      %1556 = vmatprep.subr.bf16.mxu0 0
      %1557 = vmatpush1.bf16.msra.mxu0 0
      %1558 = vmatprep.subr.bf16.mxu0 0
      %1559 = vmatpush1.bf16.msra.mxu0 0
      %1560 = vmatprep.subr.bf16.mxu0 0
      %1561 = vmatpush1.bf16.msra.mxu0 0
      %1562 = vmatprep.subr.bf16.mxu0 0
      %1563 = vmatpush1.bf16.msra.mxu0 0
      %1564 = vmatprep.subr.bf16.mxu0 0
      %1565 = vmatpush1.bf16.msra.mxu0 0
      %1566 = vmatprep.subr.bf16.mxu0 0
      %1567 = vmatpush1.bf16.msra.mxu0 0
      %1568 = vmatprep.subr.bf16.mxu0 0
      %1569 = vmatpush1.bf16.msra.mxu0 0
      %1570 = vmatprep.mubr.bf16.mxu0 0
      %1571 = vmatmul.mubr.bf16.gmra.mrb[0].mxu0 %v1389
      %v1572 = vpop.f32.mrb[0].mxu0
      %v1573 = vadd.f32 %v1398, %v1572
      %v1574 = vpop.f32.mrb[0].mxu0
      %v1575 = vadd.f32 %v1402, %v1574
      %v1576 = vpop.f32.mrb[0].mxu0
      %v1577 = vadd.f32 %v1398, %v1576
      %v1578 = vpop.f32.mrb[0].mxu0
      %v1579 = vadd.f32 %v1402, %v1578
      %1580 = vmatprep.mubr.bf16.mxu0 0
      %1581 = vmatmul.mubr.bf16.gmra.mrb[0].mxu0 %v1390
      %v1582 = vpop.f32.mrb[0].mxu0
      %v1583 = vadd.f32 %v1398, %v1582
      %v1584 = vpop.f32.mrb[0].mxu0
      %v1585 = vadd.f32 %v1402, %v1584
      %v1586 = vpop.f32.mrb[0].mxu0
      %v1587 = vadd.f32 %v1398, %v1586
      %v1588 = vpop.f32.mrb[0].mxu0
      %v1589 = vadd.f32 %v1402, %v1588
      %1590 = vdwg.mxu0
      %1591 = vmatprep.subr.bf16.mxu0 0
      %1592 = vmatpush1.bf16.msra.mxu0 %v1492
      %1593 = vmatprep.subr.bf16.mxu0 0
      %1594 = vmatpush1.bf16.msra.mxu0 %v1495
      %1595 = vmatprep.subr.bf16.mxu0 0
      %1596 = vmatpush1.bf16.msra.mxu0 %v1498
      %1597 = vmatprep.subr.bf16.mxu0 0
      %1598 = vmatpush1.bf16.msra.mxu0 %v1501
      %1599 = vmatprep.subr.bf16.mxu0 0
      %1600 = vmatpush1.bf16.msra.mxu0 %v1504
      %1601 = vmatprep.subr.bf16.mxu0 0
      %1602 = vmatpush1.bf16.msra.mxu0 %v1507
      %1603 = vmatprep.subr.bf16.mxu0 0
      %1604 = vmatpush1.bf16.msra.mxu0 %v1510
      %1605 = vmatprep.subr.bf16.mxu0 0
      %1606 = vmatpush1.bf16.msra.mxu0 %v1513
      %1607 = vmatprep.subr.bf16.mxu0 0
      %1608 = vmatpush1.bf16.msra.mxu0 0
      %1609 = vmatprep.subr.bf16.mxu0 0
      %1610 = vmatpush1.bf16.msra.mxu0 0
      %1611 = vmatprep.subr.bf16.mxu0 0
      %1612 = vmatpush1.bf16.msra.mxu0 0
      %1613 = vmatprep.subr.bf16.mxu0 0
      %1614 = vmatpush1.bf16.msra.mxu0 0
      %1615 = vmatprep.subr.bf16.mxu0 0
      %1616 = vmatpush1.bf16.msra.mxu0 0
      %1617 = vmatprep.subr.bf16.mxu0 0
      %1618 = vmatpush1.bf16.msra.mxu0 0
      %1619 = vmatprep.subr.bf16.mxu0 0
      %1620 = vmatpush1.bf16.msra.mxu0 0
      %1621 = vmatprep.subr.bf16.mxu0 0
      %1622 = vmatpush1.bf16.msra.mxu0 0
      %1623 = vmatprep.mubr.bf16.mxu0 0
      %1624 = vmatmul.mubr.bf16.gmra.mrb[0].mxu0 %v1389
      %v1625 = vpop.f32.mrb[0].mxu0
      %v1626 = vadd.f32 %v1406, %v1625
      %v1627 = vpop.f32.mrb[0].mxu0
      %v1628 = vpop.f32.mrb[0].mxu0
      %v1629 = vadd.f32 %v1406, %v1628
      %v1630 = vpop.f32.mrb[0].mxu0
      %1631 = vmatprep.mubr.bf16.mxu0 0
      %1632 = vmatmul.mubr.bf16.gmra.mrb[0].mxu0 %v1390
      %v1633 = vpop.f32.mrb[0].mxu0
      %v1634 = vadd.f32 %v1406, %v1633
      %v1635 = vpop.f32.mrb[0].mxu0
      %v1636 = vpop.f32.mrb[0].mxu0
      %v1637 = vadd.f32 %v1406, %v1636
      %v1638 = vpop.f32.mrb[0].mxu0
      %1639 = vdwg.mxu0
      %v1640 = vpack.c.bf16 %v1577, %v1573
      %v1641 = vpack.c.bf16 %v1587, %v1583
      %v1642 = vpack.c.bf16 %v1579, %v1575
      %v1643 = vpack.c.bf16 %v1589, %v1585
      %vm1644 = vcmask 523264
      %v1646 = vsel %vm1644, %v1640, 0
      %v1649 = vsel %vm1644, %v1641, 0
      %v1652 = vsel %vm1644, %v1642, 0
      %v1655 = vsel %vm1644, %v1643, 0
      %1657 = vmatprep.subr.bf16.mxu0 0
      %1658 = vmatpush1.bf16.xpose.msra.mxu0 %v1652
      %1659 = vmatprep.subr.bf16.mxu0 0
      %1660 = vmatpush1.bf16.xpose.msra.mxu0 %v1655
      %1661 = vmatprep.subr.bf16.mxu0 0
      %1662 = vmatpush1.bf16.xpose.msra.mxu0 0
      %1663 = vmatprep.subr.bf16.mxu0 0
      %1664 = vmatpush1.bf16.xpose.msra.mxu0 0
      %1665 = vmatprep.subr.bf16.mxu0 0
      %1666 = vmatpush1.bf16.xpose.msra.mxu0 0
      %1667 = vmatprep.subr.bf16.mxu0 0
      %1668 = vmatpush1.bf16.xpose.msra.mxu0 0
      %1669 = vmatprep.subr.bf16.mxu0 0
      %1670 = vmatpush1.bf16.xpose.msra.mxu0 0
      %1671 = vmatprep.subr.bf16.mxu0 0
      %1672 = vmatpush1.bf16.xpose.msra.mxu0 0
      %1673 = vmatprep.subr.bf16.mxu0 0
      %1674 = vmatpush1.bf16.xpose.msra.mxu0 0
      %1675 = vmatprep.subr.bf16.mxu0 0
      %1676 = vmatpush1.bf16.xpose.msra.mxu0 0
      %1677 = vmatprep.subr.bf16.mxu0 0
      %1678 = vmatpush1.bf16.xpose.msra.mxu0 0
      %1679 = vmatprep.subr.bf16.mxu0 0
      %1680 = vmatpush1.bf16.xpose.msra.mxu0 0
      %1681 = vmatprep.subr.bf16.mxu0 0
      %1682 = vmatpush1.bf16.xpose.msra.mxu0 0
      %1683 = vmatprep.subr.bf16.mxu0 0
      %1684 = vmatpush1.bf16.xpose.msra.mxu0 0
      %1685 = vmatprep.subr.bf16.mxu0 0
      %1686 = vmatpush1.bf16.xpose.msra.mxu0 0
      %1687 = vmatprep.subr.bf16.mxu0 0
      %1688 = vmatpush1.bf16.xpose.msra.mxu0 0
      %1689 = vmatprep.mubr.bf16.mxu0 0
      %1690 = vmatmul.mubr.bf16.gmra.mrb[0].mxu0 %v1646
      %v1691 = vpop.f32.mrb[0].mxu0
      %v1692 = vadd.f32 0.0, %v1691
      %v1693 = vpop.f32.mrb[0].mxu0
      %v1694 = vpop.f32.mrb[0].mxu0
      %v1695 = vadd.f32 0.0, %v1694
      %v1696 = vpop.f32.mrb[0].mxu0
      %1697 = vmatprep.mubr.bf16.mxu0 0
      %1698 = vmatmul.mubr.bf16.gmra.mrb[0].mxu0 %v1649
      %v1699 = vpop.f32.mrb[0].mxu0
      %v1700 = vadd.f32 0.0, %v1699
      %v1701 = vpop.f32.mrb[0].mxu0
      %v1702 = vpop.f32.mrb[0].mxu0
      %v1703 = vadd.f32 0.0, %v1702
      %v1704 = vpop.f32.mrb[0].mxu0
      %1705 = vdwg.mxu0
      %v1706 = vmul.f32 %v1692, 0.125
      %v1707 = vmul.f32 %v1695, 0.125
      %v1708 = vmul.f32 %v1700, 0.125
      %v1709 = vmul.f32 %v1703, 0.125
      %v1710 = vadd.f32 %v1706, %v465
      %v1711 = vadd.f32 %v1707, %v466
      %v1712 = vadd.f32 %v1708, %v467
      %v1713 = vadd.f32 %v1709, %v468
      %vm1714 = vcmask 261120
      %v1715 = vsel %vm1714, %v1710, -inf
      %1716 = vmax.xlane.f32.xlu0 %v1715
      %v1717 = vpop.xlane.xlu0 %1716
      %v1718 = vsel %vm1714, %v1711, -inf
      %1719 = vmax.xlane.f32.xlu0 %v1718
      %v1720 = vpop.xlane.xlu0 %1719
      %v1721 = vsel %vm1714, %v1712, -inf
      %1722 = vmax.xlane.f32.xlu0 %v1721
      %v1723 = vpop.xlane.xlu0 %1722
      %v1724 = vsel %vm1714, %v1713, -inf
      %1725 = vmax.xlane.f32.xlu0 %v1724
      %v1726 = vpop.xlane.xlu0 %1725
      %v1727 = vsub.f32 %v1710, %v1717
      %v1728 = vsub.f32 %v1711, %v1720
      %v1729 = vsub.f32 %v1712, %v1723
      %v1730 = vsub.f32 %v1713, %v1726
      %v1731 = vmul.f32 %v1727, 1.442695
      %v1732 = vpow.pop %v1731
      %v1733 = vmul.f32 %v1728, 1.442695
      %v1734 = vpow.pop %v1733
      %v1735 = vmul.f32 %v1729, 1.442695
      %v1736 = vpow.pop %v1735
      %v1737 = vmul.f32 %v1730, 1.442695
      %v1738 = vpow.pop %v1737
      %v1739 = vsel %vm1714, %v1732, 0.0
      %1740 = vadd.xlane.f32.xlu0 %v1739
      %v1741 = vpop.xlane.xlu0 %1740
      %v1742 = vsel %vm1714, %v1734, 0.0
      %1743 = vadd.xlane.f32.xlu0 %v1742
      %v1744 = vpop.xlane.xlu0 %1743
      %v1745 = vsel %vm1714, %v1736, 0.0
      %1746 = vadd.xlane.f32.xlu0 %v1745
      %v1747 = vpop.xlane.xlu0 %1746
      %v1748 = vsel %vm1714, %v1738, 0.0
      %1749 = vadd.xlane.f32.xlu0 %v1748
      %v1750 = vpop.xlane.xlu0 %1749
      %v1751 = vrcp.pop %v1741
      %v1752 = vrcp.pop %v1744
      %v1753 = vrcp.pop %v1747
      %v1754 = vrcp.pop %v1750
      %v1755 = vmul.f32 %v1732, %v1751
      %v1756 = vmul.f32 %v1734, %v1752
      %v1757 = vmul.f32 %v1736, %v1753
      %v1758 = vmul.f32 %v1738, %v1754
      %v1759 = vpack.c.bf16 %v1756, %v1755
      %v1760 = vpack.c.bf16 %v1758, %v1757
      %v1761 = vpack.c.bf16 %v1629, %v1626
      %v1762 = vpack.c.bf16 %v1637, %v1634
      %v1764 = vsel %vm1714, %v1759, 0
      %v1767 = vsel %vm1714, %v1760, 0
      %1769 = vmatprep.subr.bf16.mxu0 0
      %1770 = vmatpush1.bf16.msra.mxu0 %v1761
      %1771 = vmatprep.subr.bf16.mxu0 0
      %1772 = vmatpush1.bf16.msra.mxu0 %v1762
      %1773 = vmatprep.subr.bf16.mxu0 0
      %1774 = vmatpush1.bf16.msra.mxu0 0
      %1775 = vmatprep.subr.bf16.mxu0 0
      %1776 = vmatpush1.bf16.msra.mxu0 0
      %1777 = vmatprep.subr.bf16.mxu0 0
      %1778 = vmatpush1.bf16.msra.mxu0 0
      %1779 = vmatprep.subr.bf16.mxu0 0
      %1780 = vmatpush1.bf16.msra.mxu0 0
      %1781 = vmatprep.subr.bf16.mxu0 0
      %1782 = vmatpush1.bf16.msra.mxu0 0
      %1783 = vmatprep.subr.bf16.mxu0 0
      %1784 = vmatpush1.bf16.msra.mxu0 0
      %1785 = vmatprep.subr.bf16.mxu0 0
      %1786 = vmatpush1.bf16.msra.mxu0 0
      %1787 = vmatprep.subr.bf16.mxu0 0
      %1788 = vmatpush1.bf16.msra.mxu0 0
      %1789 = vmatprep.subr.bf16.mxu0 0
      %1790 = vmatpush1.bf16.msra.mxu0 0
      %1791 = vmatprep.subr.bf16.mxu0 0
      %1792 = vmatpush1.bf16.msra.mxu0 0
      %1793 = vmatprep.subr.bf16.mxu0 0
      %1794 = vmatpush1.bf16.msra.mxu0 0
      %1795 = vmatprep.subr.bf16.mxu0 0
      %1796 = vmatpush1.bf16.msra.mxu0 0
      %1797 = vmatprep.subr.bf16.mxu0 0
      %1798 = vmatpush1.bf16.msra.mxu0 0
      %1799 = vmatprep.subr.bf16.mxu0 0
      %1800 = vmatpush1.bf16.msra.mxu0 0
      %1801 = vmatprep.mubr.bf16.mxu0 0
      %1802 = vmatmul.mubr.bf16.gmra.mrb[0].mxu0 %v1764
      %v1803 = vpop.f32.mrb[0].mxu0
      %v1804 = vadd.f32 0.0, %v1803
      %v1805 = vpop.f32.mrb[0].mxu0
      %v1806 = vpop.f32.mrb[0].mxu0
      %v1807 = vadd.f32 0.0, %v1806
      %v1808 = vpop.f32.mrb[0].mxu0
      %1809 = vmatprep.mubr.bf16.mxu0 0
      %1810 = vmatmul.mubr.bf16.gmra.mrb[0].mxu0 %v1767
      %v1811 = vpop.f32.mrb[0].mxu0
      %v1812 = vadd.f32 0.0, %v1811
      %v1813 = vpop.f32.mrb[0].mxu0
      %v1814 = vpop.f32.mrb[0].mxu0
      %v1815 = vadd.f32 0.0, %v1814
      %v1816 = vpop.f32.mrb[0].mxu0
      %1817 = vdwg.mxu0
      %1820 = vrot.lane.b32.xlu0 %v1640, 64
      %v1821 = vpop.permute.xlu0 %1820
      %1822 = vrot.lane.b32.xlu0 %v1641, 64
      %v1823 = vpop.permute.xlu0 %1822
      %1826 = vrot.lane.b32.xlu0 %v1642, 64
      %v1827 = vpop.permute.xlu0 %1826
      %1828 = vrot.lane.b32.xlu0 %v1643, 64
      %v1829 = vpop.permute.xlu0 %1828
      %v1831 = vsel %vm1644, %v1821, 0
      %v1834 = vsel %vm1644, %v1823, 0
      %v1837 = vsel %vm1644, %v1827, 0
      %v1840 = vsel %vm1644, %v1829, 0
      %1842 = vmatprep.subr.bf16.mxu0 0
      %1843 = vmatpush1.bf16.xpose.msra.mxu0 %v1837
      %1844 = vmatprep.subr.bf16.mxu0 0
      %1845 = vmatpush1.bf16.xpose.msra.mxu0 %v1840
      %1846 = vmatprep.subr.bf16.mxu0 0
      %1847 = vmatpush1.bf16.xpose.msra.mxu0 0
      %1848 = vmatprep.subr.bf16.mxu0 0
      %1849 = vmatpush1.bf16.xpose.msra.mxu0 0
      %1850 = vmatprep.subr.bf16.mxu0 0
      %1851 = vmatpush1.bf16.xpose.msra.mxu0 0
      %1852 = vmatprep.subr.bf16.mxu0 0
      %1853 = vmatpush1.bf16.xpose.msra.mxu0 0
      %1854 = vmatprep.subr.bf16.mxu0 0
      %1855 = vmatpush1.bf16.xpose.msra.mxu0 0
      %1856 = vmatprep.subr.bf16.mxu0 0
      %1857 = vmatpush1.bf16.xpose.msra.mxu0 0
      %1858 = vmatprep.subr.bf16.mxu0 0
      %1859 = vmatpush1.bf16.xpose.msra.mxu0 0
      %1860 = vmatprep.subr.bf16.mxu0 0
      %1861 = vmatpush1.bf16.xpose.msra.mxu0 0
      %1862 = vmatprep.subr.bf16.mxu0 0
      %1863 = vmatpush1.bf16.xpose.msra.mxu0 0
      %1864 = vmatprep.subr.bf16.mxu0 0
      %1865 = vmatpush1.bf16.xpose.msra.mxu0 0
      %1866 = vmatprep.subr.bf16.mxu0 0
      %1867 = vmatpush1.bf16.xpose.msra.mxu0 0
      %1868 = vmatprep.subr.bf16.mxu0 0
      %1869 = vmatpush1.bf16.xpose.msra.mxu0 0
      %1870 = vmatprep.subr.bf16.mxu0 0
      %1871 = vmatpush1.bf16.xpose.msra.mxu0 0
      %1872 = vmatprep.subr.bf16.mxu0 0
      %1873 = vmatpush1.bf16.xpose.msra.mxu0 0
      %1874 = vmatprep.mubr.bf16.mxu0 0
      %1875 = vmatmul.mubr.bf16.gmra.mrb[0].mxu0 %v1831
      %v1876 = vpop.f32.mrb[0].mxu0
      %v1877 = vadd.f32 0.0, %v1876
      %v1878 = vpop.f32.mrb[0].mxu0
      %v1879 = vpop.f32.mrb[0].mxu0
      %v1880 = vadd.f32 0.0, %v1879
      %v1881 = vpop.f32.mrb[0].mxu0
      %1882 = vmatprep.mubr.bf16.mxu0 0
      %1883 = vmatmul.mubr.bf16.gmra.mrb[0].mxu0 %v1834
      %v1884 = vpop.f32.mrb[0].mxu0
      %v1885 = vadd.f32 0.0, %v1884
      %v1886 = vpop.f32.mrb[0].mxu0
      %v1887 = vpop.f32.mrb[0].mxu0
      %v1888 = vadd.f32 0.0, %v1887
      %v1889 = vpop.f32.mrb[0].mxu0
      %1890 = vdwg.mxu0
      %v1891 = vmul.f32 %v1877, 0.125
      %v1892 = vmul.f32 %v1880, 0.125
      %v1893 = vmul.f32 %v1885, 0.125
      %v1894 = vmul.f32 %v1888, 0.125
      %v1895 = vadd.f32 %v1891, %v465
      %v1896 = vadd.f32 %v1892, %v466
      %v1897 = vadd.f32 %v1893, %v467
      %v1898 = vadd.f32 %v1894, %v468
      %v1899 = vsel %vm1714, %v1895, -inf
      %1900 = vmax.xlane.f32.xlu0 %v1899
      %v1901 = vpop.xlane.xlu0 %1900
      %v1902 = vsel %vm1714, %v1896, -inf
      %1903 = vmax.xlane.f32.xlu0 %v1902
      %v1904 = vpop.xlane.xlu0 %1903
      %v1905 = vsel %vm1714, %v1897, -inf
      %1906 = vmax.xlane.f32.xlu0 %v1905
      %v1907 = vpop.xlane.xlu0 %1906
      %v1908 = vsel %vm1714, %v1898, -inf
      %1909 = vmax.xlane.f32.xlu0 %v1908
      %v1910 = vpop.xlane.xlu0 %1909
      %v1911 = vsub.f32 %v1895, %v1901
      %v1912 = vsub.f32 %v1896, %v1904
      %v1913 = vsub.f32 %v1897, %v1907
      %v1914 = vsub.f32 %v1898, %v1910
      %v1915 = vmul.f32 %v1911, 1.442695
      %v1916 = vpow.pop %v1915
      %v1917 = vmul.f32 %v1912, 1.442695
      %v1918 = vpow.pop %v1917
      %v1919 = vmul.f32 %v1913, 1.442695
      %v1920 = vpow.pop %v1919
      %v1921 = vmul.f32 %v1914, 1.442695
      %v1922 = vpow.pop %v1921
      %v1923 = vsel %vm1714, %v1916, 0.0
      %1924 = vadd.xlane.f32.xlu0 %v1923
      %v1925 = vpop.xlane.xlu0 %1924
      %v1926 = vsel %vm1714, %v1918, 0.0
      %1927 = vadd.xlane.f32.xlu0 %v1926
      %v1928 = vpop.xlane.xlu0 %1927
      %v1929 = vsel %vm1714, %v1920, 0.0
      %1930 = vadd.xlane.f32.xlu0 %v1929
      %v1931 = vpop.xlane.xlu0 %1930
      %v1932 = vsel %vm1714, %v1922, 0.0
      %1933 = vadd.xlane.f32.xlu0 %v1932
      %v1934 = vpop.xlane.xlu0 %1933
      %v1935 = vrcp.pop %v1925
      %v1936 = vrcp.pop %v1928
      %v1937 = vrcp.pop %v1931
      %v1938 = vrcp.pop %v1934
      %v1939 = vmul.f32 %v1916, %v1935
      %v1940 = vmul.f32 %v1918, %v1936
      %v1941 = vmul.f32 %v1920, %v1937
      %v1942 = vmul.f32 %v1922, %v1938
      %v1943 = vpack.c.bf16 %v1940, %v1939
      %v1944 = vpack.c.bf16 %v1942, %v1941
      %1947 = vrot.lane.b32.xlu0 %v1761, 64
      %v1948 = vpop.permute.xlu0 %1947
      %1949 = vrot.lane.b32.xlu0 %v1762, 64
      %v1950 = vpop.permute.xlu0 %1949
      %v1954 = vsel %vm1714, %v1943, 0
      %v1957 = vsel %vm1714, %v1944, 0
      %1959 = vmatprep.subr.bf16.mxu0 0
      %1960 = vmatpush1.bf16.msra.mxu0 %v1948
      %1961 = vmatprep.subr.bf16.mxu0 0
      %1962 = vmatpush1.bf16.msra.mxu0 %v1950
      %1963 = vmatprep.subr.bf16.mxu0 0
      %1964 = vmatpush1.bf16.msra.mxu0 0
      %1965 = vmatprep.subr.bf16.mxu0 0
      %1966 = vmatpush1.bf16.msra.mxu0 0
      %1967 = vmatprep.subr.bf16.mxu0 0
      %1968 = vmatpush1.bf16.msra.mxu0 0
      %1969 = vmatprep.subr.bf16.mxu0 0
      %1970 = vmatpush1.bf16.msra.mxu0 0
      %1971 = vmatprep.subr.bf16.mxu0 0
      %1972 = vmatpush1.bf16.msra.mxu0 0
      %1973 = vmatprep.subr.bf16.mxu0 0
      %1974 = vmatpush1.bf16.msra.mxu0 0
      %1975 = vmatprep.subr.bf16.mxu0 0
      %1976 = vmatpush1.bf16.msra.mxu0 0
      %1977 = vmatprep.subr.bf16.mxu0 0
      %1978 = vmatpush1.bf16.msra.mxu0 0
      %1979 = vmatprep.subr.bf16.mxu0 0
      %1980 = vmatpush1.bf16.msra.mxu0 0
      %1981 = vmatprep.subr.bf16.mxu0 0
      %1982 = vmatpush1.bf16.msra.mxu0 0
      %1983 = vmatprep.subr.bf16.mxu0 0
      %1984 = vmatpush1.bf16.msra.mxu0 0
      %1985 = vmatprep.subr.bf16.mxu0 0
      %1986 = vmatpush1.bf16.msra.mxu0 0
      %1987 = vmatprep.subr.bf16.mxu0 0
      %1988 = vmatpush1.bf16.msra.mxu0 0
      %1989 = vmatprep.subr.bf16.mxu0 0
      %1990 = vmatpush1.bf16.msra.mxu0 0
      %1991 = vmatprep.mubr.bf16.mxu0 0
      %1992 = vmatmul.mubr.bf16.gmra.mrb[0].mxu0 %v1954
      %v1993 = vpop.f32.mrb[0].mxu0
      %v1994 = vadd.f32 0.0, %v1993
      %v1995 = vpop.f32.mrb[0].mxu0
      %v1996 = vpop.f32.mrb[0].mxu0
      %v1997 = vadd.f32 0.0, %v1996
      %v1998 = vpop.f32.mrb[0].mxu0
      %1999 = vmatprep.mubr.bf16.mxu0 0
      %2000 = vmatmul.mubr.bf16.gmra.mrb[0].mxu0 %v1957
      %v2001 = vpop.f32.mrb[0].mxu0
      %v2002 = vadd.f32 0.0, %v2001
      %v2003 = vpop.f32.mrb[0].mxu0
      %v2004 = vpop.f32.mrb[0].mxu0
      %v2005 = vadd.f32 0.0, %v2004
      %v2006 = vpop.f32.mrb[0].mxu0
      %2007 = vdwg.mxu0
      %2012 = vrot.lane.b32.xlu0 %v1994, 64
      %v2013 = vpop.permute.xlu0 %2012
      %2014 = vrot.lane.b32.xlu0 %v1997, 64
      %v2015 = vpop.permute.xlu0 %2014
      %2016 = vrot.lane.b32.xlu0 %v2002, 64
      %v2017 = vpop.permute.xlu0 %2016
      %2018 = vrot.lane.b32.xlu0 %v2005, 64
      %v2019 = vpop.permute.xlu0 %2018
      %v2024 = vsel %vm1644, %v1804, %v2013
      %v2025 = vsel %vm1644, %v1807, %v2015
      %v2026 = vsel %vm1644, %v1812, %v2017
      %v2027 = vsel %vm1644, %v1815, %v2019
      %s2028 = smul.u32 %s1276, 16
      %s2029 = smul.addr %s2028, 4
      %s2030 = scalar_lea.vmem [#allocation21], %s2029
      %v2031 = vld [vmem:[%s2030] sm:$0xf]
      %v2032 = vld [vmem:[%s2030 + $0x4] sm:$0xf]
      %v2033 = vld [vmem:[%s2030 + $0x8] sm:$0xf]
      %v2034 = vld [vmem:[%s2030 + $0xc] sm:$0xf]
      %v2035 = vld [vmem:[%s2030 + $0x10] sm:$0xf]
      %v2036 = vld [vmem:[%s2030 + $0x14] sm:$0xf]
      %v2037 = vld [vmem:[%s2030 + $0x18] sm:$0xf]
      %v2038 = vld [vmem:[%s2030 + $0x1c] sm:$0xf]
      %v2039 = vld [vmem:[%s2030 + $0x20] sm:$0xf]
      %v2040 = vld [vmem:[%s2030 + $0x24] sm:$0xf]
      %v2041 = vld [vmem:[%s2030 + $0x28] sm:$0xf]
      %v2042 = vld [vmem:[%s2030 + $0x2c] sm:$0xf]
      %v2043 = vld [vmem:[%s2030 + $0x30] sm:$0xf]
      %v2044 = vld [vmem:[%s2030 + $0x34] sm:$0xf]
      %v2045 = vld [vmem:[%s2030 + $0x38] sm:$0xf]
      %v2046 = vld [vmem:[%s2030 + $0x3c] sm:$0xf]
      %v2047 = vpack.c.bf16 %v2025, %v2024
      %v2048 = vpack.c.bf16 %v2027, %v2026
      %s2049 = scalar_lea.vmem [#allocation22], %s1276
      %v2050 = vld [vmem:[%s2049] sm:$0x1]
      %v2052 = vlaneseq
      %v2053 = vshrl.u32 %v2052, 7
      %v2054 = vsub.s32 0, %v2053
      %v2055 = vrot.slane %v2050, %v2054
      %v2073 = vunpack.c.l.b16 %v2031
      %v2074 = vunpack.c.l.b16 %v2032
      %v2075 = vunpack.c.l.b16 %v2033
      %v2076 = vunpack.c.l.b16 %v2034
      %v2077 = vunpack.c.l.b16 %v2035
      %v2078 = vunpack.c.l.b16 %v2036
      %v2079 = vunpack.c.l.b16 %v2037
      %v2080 = vunpack.c.l.b16 %v2038
      %v2081 = vunpack.c.l.b16 %v2039
      %v2082 = vunpack.c.l.b16 %v2040
      %v2083 = vunpack.c.l.b16 %v2041
      %v2084 = vunpack.c.l.b16 %v2042
      %v2085 = vunpack.c.l.b16 %v2043
      %v2086 = vunpack.c.l.b16 %v2044
      %v2087 = vunpack.c.l.b16 %v2045
      %v2088 = vunpack.c.l.b16 %v2046
      %v2089 = vpack.c.b16 %v2074, %v2073
      %v2090 = vpack.c.b16 %v2076, %v2075
      %v2091 = vpack.c.b16 %v2078, %v2077
      %v2092 = vpack.c.b16 %v2080, %v2079
      %v2093 = vpack.c.b16 %v2082, %v2081
      %v2094 = vpack.c.b16 %v2084, %v2083
      %v2095 = vpack.c.b16 %v2086, %v2085
      %v2096 = vpack.c.b16 %v2088, %v2087
      %2105 = vmatprep.subr.bf16.mxu0 0
      %2106 = vmatpush1.bf16.msra.mxu0 %v2089
      %2107 = vmatprep.subr.bf16.mxu0 0
      %2108 = vmatpush1.bf16.msra.mxu0 %v2090
      %2109 = vmatprep.subr.bf16.mxu0 0
      %2110 = vmatpush1.bf16.msra.mxu0 %v2091
      %2111 = vmatprep.subr.bf16.mxu0 0
      %2112 = vmatpush1.bf16.msra.mxu0 %v2092
      %2113 = vmatprep.subr.bf16.mxu0 0
      %2114 = vmatpush1.bf16.msra.mxu0 %v2093
      %2115 = vmatprep.subr.bf16.mxu0 0
      %2116 = vmatpush1.bf16.msra.mxu0 %v2094
      %2117 = vmatprep.subr.bf16.mxu0 0
      %2118 = vmatpush1.bf16.msra.mxu0 %v2095
      %2119 = vmatprep.subr.bf16.mxu0 0
      %2120 = vmatpush1.bf16.msra.mxu0 %v2096
      %2121 = vmatprep.subr.bf16.mxu0 0
      %2122 = vmatpush1.bf16.msra.mxu0 0
      %2123 = vmatprep.subr.bf16.mxu0 0
      %2124 = vmatpush1.bf16.msra.mxu0 0
      %2125 = vmatprep.subr.bf16.mxu0 0
      %2126 = vmatpush1.bf16.msra.mxu0 0
      %2127 = vmatprep.subr.bf16.mxu0 0
      %2128 = vmatpush1.bf16.msra.mxu0 0
      %2129 = vmatprep.subr.bf16.mxu0 0
      %2130 = vmatpush1.bf16.msra.mxu0 0
      %2131 = vmatprep.subr.bf16.mxu0 0
      %2132 = vmatpush1.bf16.msra.mxu0 0
      %2133 = vmatprep.subr.bf16.mxu0 0
      %2134 = vmatpush1.bf16.msra.mxu0 0
      %2135 = vmatprep.subr.bf16.mxu0 0
      %2136 = vmatpush1.bf16.msra.mxu0 0
      %2137 = vmatprep.mubr.bf16.mxu0 0
      %2138 = vmatmul.mubr.bf16.gmra.mrb[0].mxu0 %v2047
      %v2139 = vpop.f32.mrb[0].mxu0
      %v2140 = vadd.f32 %v2055, %v2139
      %v2141 = vpop.f32.mrb[0].mxu0
      %v2142 = vpop.f32.mrb[0].mxu0
      %v2143 = vadd.f32 %v2055, %v2142
      %v2144 = vpop.f32.mrb[0].mxu0
      %2145 = vmatprep.mubr.bf16.mxu0 0
      %2146 = vmatmul.mubr.bf16.gmra.mrb[0].mxu0 %v2048
      %v2147 = vpop.f32.mrb[0].mxu0
      %v2148 = vadd.f32 %v2055, %v2147
      %v2149 = vpop.f32.mrb[0].mxu0
      %v2150 = vpop.f32.mrb[0].mxu0
      %v2151 = vadd.f32 %v2055, %v2150
      %v2152 = vpop.f32.mrb[0].mxu0
      %2153 = vdwg.mxu0
      %v2154 = vadd.f32 %v2140, %v1281
      %v2155 = vadd.f32 %v2143, %v1282
      %v2156 = vadd.f32 %v2148, %v1283
      %v2157 = vadd.f32 %v2151, %v1284
      %s2158 = scalar_lea.vmem [#allocation24], %s1276
      %v2159 = vld [vmem:[%s2158] sm:$0x1]
      %s2160 = scalar_lea.vmem [#allocation25], %s1276
      %v2161 = vld [vmem:[%s2160] sm:$0x1]
      %2162 = vadd.xlane.f32.xlu0 %v2154
      %v2163 = vpop.xlane.xlu0 %2162
      %2164 = vadd.xlane.f32.xlu0 %v2155
      %v2165 = vpop.xlane.xlu0 %2164
      %2166 = vadd.xlane.f32.xlu0 %v2156
      %v2167 = vpop.xlane.xlu0 %2166
      %2168 = vadd.xlane.f32.xlu0 %v2157
      %v2169 = vpop.xlane.xlu0 %2168
      %v2170 = vmul.f32 %v2163, %v1297
      %v2171 = vmul.f32 %v2165, %v1297
      %v2172 = vmul.f32 %v2167, %v1297
      %v2173 = vmul.f32 %v2169, %v1297
      %v2174 = vsub.f32 %v2154, %v2170
      %v2175 = vsub.f32 %v2155, %v2171
      %v2176 = vsub.f32 %v2156, %v2172
      %v2177 = vsub.f32 %v2157, %v2173
      %v2178 = vmul.f32 %v2174, %v2174
      %v2179 = vmul.f32 %v2175, %v2175
      %v2180 = vmul.f32 %v2176, %v2176
      %v2181 = vmul.f32 %v2177, %v2177
      %2182 = vadd.xlane.f32.xlu0 %v2178
      %v2183 = vpop.xlane.xlu0 %2182
      %2184 = vadd.xlane.f32.xlu0 %v2179
      %v2185 = vpop.xlane.xlu0 %2184
      %2186 = vadd.xlane.f32.xlu0 %v2180
      %v2187 = vpop.xlane.xlu0 %2186
      %2188 = vadd.xlane.f32.xlu0 %v2181
      %v2189 = vpop.xlane.xlu0 %2188
      %v2190 = vmul.f32 %v2183, %v1297
      %v2191 = vmul.f32 %v2185, %v1297
      %v2192 = vmul.f32 %v2187, %v1297
      %v2193 = vmul.f32 %v2189, %v1297
      %v2194 = vadd.f32 %v2190, 1e-05
      %v2195 = vadd.f32 %v2191, 1e-05
      %v2196 = vadd.f32 %v2192, 1e-05
      %v2197 = vadd.f32 %v2193, 1e-05
      %v2198 = vrsqrt.pop %v2194
      %v2199 = vrsqrt.pop %v2195
      %v2200 = vrsqrt.pop %v2196
      %v2201 = vrsqrt.pop %v2197
      %v2202 = vmul.f32 %v2174, %v2198
      %v2203 = vmul.f32 %v2175, %v2199
      %v2204 = vmul.f32 %v2176, %v2200
      %v2205 = vmul.f32 %v2177, %v2201
      %v2207 = vlaneseq
      %v2208 = vshrl.u32 %v2207, 7
      %v2209 = vsub.s32 0, %v2208
      %v2210 = vrot.slane %v2159, %v2209
      %v2212 = vmul.f32 %v2202, %v2210
      %v2213 = vmul.f32 %v2203, %v2210
      %v2214 = vmul.f32 %v2204, %v2210
      %v2215 = vmul.f32 %v2205, %v2210
      %v2217 = vlaneseq
      %v2218 = vshrl.u32 %v2217, 7
      %v2219 = vsub.s32 0, %v2218
      %v2220 = vrot.slane %v2161, %v2219
      %v2222 = vadd.f32 %v2212, %v2220
      %v2223 = vadd.f32 %v2213, %v2220
      %v2224 = vadd.f32 %v2214, %v2220
      %v2225 = vadd.f32 %v2215, %v2220
      %s2226 = smul.u32 %s1276, 64
      %s2227 = smul.addr %s2226, 4
      %s2228 = scalar_lea.vmem [#allocation27], %s2227
      %v2229 = vld [vmem:[%s2228] sm:$0xff]
      %v2230 = vld [vmem:[%s2228 + $0x8] sm:$0xff]
      %v2231 = vld [vmem:[%s2228 + $0x10] sm:$0xff]
      %v2232 = vld [vmem:[%s2228 + $0x18] sm:$0xff]
      %v2233 = vld [vmem:[%s2228 + $0x20] sm:$0xff]
      %v2234 = vld [vmem:[%s2228 + $0x28] sm:$0xff]
      %v2235 = vld [vmem:[%s2228 + $0x30] sm:$0xff]
      %v2236 = vld [vmem:[%s2228 + $0x38] sm:$0xff]
      %v2237 = vld [vmem:[%s2228 + $0x40] sm:$0xff]
      %v2238 = vld [vmem:[%s2228 + $0x48] sm:$0xff]
      %v2239 = vld [vmem:[%s2228 + $0x50] sm:$0xff]
      %v2240 = vld [vmem:[%s2228 + $0x58] sm:$0xff]
      %v2241 = vld [vmem:[%s2228 + $0x60] sm:$0xff]
      %v2242 = vld [vmem:[%s2228 + $0x68] sm:$0xff]
      %v2243 = vld [vmem:[%s2228 + $0x70] sm:$0xff]
      %v2244 = vld [vmem:[%s2228 + $0x78] sm:$0xff]
      %v2245 = vld [vmem:[%s2228 + $0x80] sm:$0xff]
      %v2246 = vld [vmem:[%s2228 + $0x88] sm:$0xff]
      %v2247 = vld [vmem:[%s2228 + $0x90] sm:$0xff]
      %v2248 = vld [vmem:[%s2228 + $0x98] sm:$0xff]
      %v2249 = vld [vmem:[%s2228 + $0xa0] sm:$0xff]
      %v2250 = vld [vmem:[%s2228 + $0xa8] sm:$0xff]
      %v2251 = vld [vmem:[%s2228 + $0xb0] sm:$0xff]
      %v2252 = vld [vmem:[%s2228 + $0xb8] sm:$0xff]
      %v2253 = vld [vmem:[%s2228 + $0xc0] sm:$0xff]
      %v2254 = vld [vmem:[%s2228 + $0xc8] sm:$0xff]
      %v2255 = vld [vmem:[%s2228 + $0xd0] sm:$0xff]
      %v2256 = vld [vmem:[%s2228 + $0xd8] sm:$0xff]
      %v2257 = vld [vmem:[%s2228 + $0xe0] sm:$0xff]
      %v2258 = vld [vmem:[%s2228 + $0xe8] sm:$0xff]
      %v2259 = vld [vmem:[%s2228 + $0xf0] sm:$0xff]
      %v2260 = vld [vmem:[%s2228 + $0xf8] sm:$0xff]
      %v2261 = vpack.c.bf16 %v2223, %v2222
      %v2262 = vpack.c.bf16 %v2225, %v2224
      %s2263 = smul.u32 %s1276, 4
      %s2264 = scalar_lea.vmem [#allocation28], %s2263
      %v2265 = vld [vmem:[%s2264] sm:$0xf]
      %v2267 = vlaneseq
      %v2268 = vshrl.u32 %v2267, 7
      %v2269 = vsub.s32 0, %v2268
      %v2270 = vrot.slane %v2265, %v2269
      %v2271 = vlaneseq
      %v2272 = vshrl.u32 %v2271, 7
      %v2273 = vsub.s32 1, %v2272
      %v2274 = vrot.slane %v2265, %v2273
      %v2275 = vlaneseq
      %v2276 = vshrl.u32 %v2275, 7
      %v2277 = vsub.s32 2, %v2276
      %v2278 = vrot.slane %v2265, %v2277
      %v2279 = vlaneseq
      %v2280 = vshrl.u32 %v2279, 7
      %v2281 = vsub.s32 3, %v2280
      %v2282 = vrot.slane %v2265, %v2281
      %v2319 = vunpack.c.l.b16 %v2229
      %v2320 = vunpack.c.h.b16 %v2229
      %v2321 = vunpack.c.l.b16 %v2230
      %v2322 = vunpack.c.h.b16 %v2230
      %v2323 = vunpack.c.l.b16 %v2231
      %v2324 = vunpack.c.h.b16 %v2231
      %v2325 = vunpack.c.l.b16 %v2232
      %v2326 = vunpack.c.h.b16 %v2232
      %v2327 = vunpack.c.l.b16 %v2233
      %v2328 = vunpack.c.h.b16 %v2233
      %v2329 = vunpack.c.l.b16 %v2234
      %v2330 = vunpack.c.h.b16 %v2234
      %v2331 = vunpack.c.l.b16 %v2235
      %v2332 = vunpack.c.h.b16 %v2235
      %v2333 = vunpack.c.l.b16 %v2236
      %v2334 = vunpack.c.h.b16 %v2236
      %v2335 = vunpack.c.l.b16 %v2237
      %v2336 = vunpack.c.h.b16 %v2237
      %v2337 = vunpack.c.l.b16 %v2238
      %v2338 = vunpack.c.h.b16 %v2238
      %v2339 = vunpack.c.l.b16 %v2239
      %v2340 = vunpack.c.h.b16 %v2239
      %v2341 = vunpack.c.l.b16 %v2240
      %v2342 = vunpack.c.h.b16 %v2240
      %v2343 = vunpack.c.l.b16 %v2241
      %v2344 = vunpack.c.h.b16 %v2241
      %v2345 = vunpack.c.l.b16 %v2242
      %v2346 = vunpack.c.h.b16 %v2242
      %v2347 = vunpack.c.l.b16 %v2243
      %v2348 = vunpack.c.h.b16 %v2243
      %v2349 = vunpack.c.l.b16 %v2244
      %v2350 = vunpack.c.h.b16 %v2244
      %v2351 = vunpack.c.l.b16 %v2245
      %v2352 = vunpack.c.h.b16 %v2245
      %v2353 = vunpack.c.l.b16 %v2246
      %v2354 = vunpack.c.h.b16 %v2246
      %v2355 = vunpack.c.l.b16 %v2247
      %v2356 = vunpack.c.h.b16 %v2247
      %v2357 = vunpack.c.l.b16 %v2248
      %v2358 = vunpack.c.h.b16 %v2248
      %v2359 = vunpack.c.l.b16 %v2249
      %v2360 = vunpack.c.h.b16 %v2249
      %v2361 = vunpack.c.l.b16 %v2250
      %v2362 = vunpack.c.h.b16 %v2250
      %v2363 = vunpack.c.l.b16 %v2251
      %v2364 = vunpack.c.h.b16 %v2251
      %v2365 = vunpack.c.l.b16 %v2252
      %v2366 = vunpack.c.h.b16 %v2252
      %v2367 = vunpack.c.l.b16 %v2253
      %v2368 = vunpack.c.h.b16 %v2253
      %v2369 = vunpack.c.l.b16 %v2254
      %v2370 = vunpack.c.h.b16 %v2254
      %v2371 = vunpack.c.l.b16 %v2255
      %v2372 = vunpack.c.h.b16 %v2255
      %v2373 = vunpack.c.l.b16 %v2256
      %v2374 = vunpack.c.h.b16 %v2256
      %v2375 = vunpack.c.l.b16 %v2257
      %v2376 = vunpack.c.h.b16 %v2257
      %v2377 = vunpack.c.l.b16 %v2258
      %v2378 = vunpack.c.h.b16 %v2258
      %v2379 = vunpack.c.l.b16 %v2259
      %v2380 = vunpack.c.h.b16 %v2259
      %v2381 = vunpack.c.l.b16 %v2260
      %v2382 = vunpack.c.h.b16 %v2260
      %v2383 = vpack.c.b16 %v2323, %v2319
      %v2384 = vpack.c.b16 %v2324, %v2320
      %v2385 = vpack.c.b16 %v2325, %v2321
      %v2386 = vpack.c.b16 %v2326, %v2322
      %v2387 = vpack.c.b16 %v2331, %v2327
      %v2388 = vpack.c.b16 %v2332, %v2328
      %v2389 = vpack.c.b16 %v2333, %v2329
      %v2390 = vpack.c.b16 %v2334, %v2330
      %v2391 = vpack.c.b16 %v2339, %v2335
      %v2392 = vpack.c.b16 %v2340, %v2336
      %v2393 = vpack.c.b16 %v2341, %v2337
      %v2394 = vpack.c.b16 %v2342, %v2338
      %v2395 = vpack.c.b16 %v2347, %v2343
      %v2396 = vpack.c.b16 %v2348, %v2344
      %v2397 = vpack.c.b16 %v2349, %v2345
      %v2398 = vpack.c.b16 %v2350, %v2346
      %v2399 = vpack.c.b16 %v2355, %v2351
      %v2400 = vpack.c.b16 %v2356, %v2352
      %v2401 = vpack.c.b16 %v2357, %v2353
      %v2402 = vpack.c.b16 %v2358, %v2354
      %v2403 = vpack.c.b16 %v2363, %v2359
      %v2404 = vpack.c.b16 %v2364, %v2360
      %v2405 = vpack.c.b16 %v2365, %v2361
      %v2406 = vpack.c.b16 %v2366, %v2362
      %v2407 = vpack.c.b16 %v2371, %v2367
      %v2408 = vpack.c.b16 %v2372, %v2368
      %v2409 = vpack.c.b16 %v2373, %v2369
      %v2410 = vpack.c.b16 %v2374, %v2370
      %v2411 = vpack.c.b16 %v2379, %v2375
      %v2412 = vpack.c.b16 %v2380, %v2376
      %v2413 = vpack.c.b16 %v2381, %v2377
      %v2414 = vpack.c.b16 %v2382, %v2378
      %2447 = vmatprep.subr.bf16.mxu0 %v2384
      %2448 = vmatpush1.bf16.msra.mxu0 %v2383
      %2449 = vmatprep.subr.bf16.mxu0 %v2388
      %2450 = vmatpush1.bf16.msra.mxu0 %v2387
      %2451 = vmatprep.subr.bf16.mxu0 %v2392
      %2452 = vmatpush1.bf16.msra.mxu0 %v2391
      %2453 = vmatprep.subr.bf16.mxu0 %v2396
      %2454 = vmatpush1.bf16.msra.mxu0 %v2395
      %2455 = vmatprep.subr.bf16.mxu0 %v2400
      %2456 = vmatpush1.bf16.msra.mxu0 %v2399
      %2457 = vmatprep.subr.bf16.mxu0 %v2404
      %2458 = vmatpush1.bf16.msra.mxu0 %v2403
      %2459 = vmatprep.subr.bf16.mxu0 %v2408
      %2460 = vmatpush1.bf16.msra.mxu0 %v2407
      %2461 = vmatprep.subr.bf16.mxu0 %v2412
      %2462 = vmatpush1.bf16.msra.mxu0 %v2411
      %2463 = vmatprep.subr.bf16.mxu0 0
      %2464 = vmatpush1.bf16.msra.mxu0 0
      %2465 = vmatprep.subr.bf16.mxu0 0
      %2466 = vmatpush1.bf16.msra.mxu0 0
      %2467 = vmatprep.subr.bf16.mxu0 0
      %2468 = vmatpush1.bf16.msra.mxu0 0
      %2469 = vmatprep.subr.bf16.mxu0 0
      %2470 = vmatpush1.bf16.msra.mxu0 0
      %2471 = vmatprep.subr.bf16.mxu0 0
      %2472 = vmatpush1.bf16.msra.mxu0 0
      %2473 = vmatprep.subr.bf16.mxu0 0
      %2474 = vmatpush1.bf16.msra.mxu0 0
      %2475 = vmatprep.subr.bf16.mxu0 0
      %2476 = vmatpush1.bf16.msra.mxu0 0
      %2477 = vmatprep.subr.bf16.mxu0 0
      %2478 = vmatpush1.bf16.msra.mxu0 0
      %2479 = vmatprep.mubr.bf16.mxu0 0
      %2480 = vmatmul.mubr.bf16.gmra.mrb[0].mxu0 %v2261
      %v2481 = vpop.f32.mrb[0].mxu0
      %v2482 = vadd.f32 %v2270, %v2481
      %v2483 = vpop.f32.mrb[0].mxu0
      %v2484 = vadd.f32 %v2274, %v2483
      %v2485 = vpop.f32.mrb[0].mxu0
      %v2486 = vadd.f32 %v2270, %v2485
      %v2487 = vpop.f32.mrb[0].mxu0
      %v2488 = vadd.f32 %v2274, %v2487
      %2489 = vmatprep.mubr.bf16.mxu0 0
      %2490 = vmatmul.mubr.bf16.gmra.mrb[0].mxu0 %v2262
      %v2491 = vpop.f32.mrb[0].mxu0
      %v2492 = vadd.f32 %v2270, %v2491
      %v2493 = vpop.f32.mrb[0].mxu0
      %v2494 = vadd.f32 %v2274, %v2493
      %v2495 = vpop.f32.mrb[0].mxu0
      %v2496 = vadd.f32 %v2270, %v2495
      %v2497 = vpop.f32.mrb[0].mxu0
      %v2498 = vadd.f32 %v2274, %v2497
      %2499 = vdwg.mxu0
      %2500 = vmatprep.subr.bf16.mxu0 %v2386
      %2501 = vmatpush1.bf16.msra.mxu0 %v2385
      %2502 = vmatprep.subr.bf16.mxu0 %v2390
      %2503 = vmatpush1.bf16.msra.mxu0 %v2389
      %2504 = vmatprep.subr.bf16.mxu0 %v2394
      %2505 = vmatpush1.bf16.msra.mxu0 %v2393
      %2506 = vmatprep.subr.bf16.mxu0 %v2398
      %2507 = vmatpush1.bf16.msra.mxu0 %v2397
      %2508 = vmatprep.subr.bf16.mxu0 %v2402
      %2509 = vmatpush1.bf16.msra.mxu0 %v2401
      %2510 = vmatprep.subr.bf16.mxu0 %v2406
      %2511 = vmatpush1.bf16.msra.mxu0 %v2405
      %2512 = vmatprep.subr.bf16.mxu0 %v2410
      %2513 = vmatpush1.bf16.msra.mxu0 %v2409
      %2514 = vmatprep.subr.bf16.mxu0 %v2414
      %2515 = vmatpush1.bf16.msra.mxu0 %v2413
      %2516 = vmatprep.subr.bf16.mxu0 0
      %2517 = vmatpush1.bf16.msra.mxu0 0
      %2518 = vmatprep.subr.bf16.mxu0 0
      %2519 = vmatpush1.bf16.msra.mxu0 0
      %2520 = vmatprep.subr.bf16.mxu0 0
      %2521 = vmatpush1.bf16.msra.mxu0 0
      %2522 = vmatprep.subr.bf16.mxu0 0
      %2523 = vmatpush1.bf16.msra.mxu0 0
      %2524 = vmatprep.subr.bf16.mxu0 0
      %2525 = vmatpush1.bf16.msra.mxu0 0
      %2526 = vmatprep.subr.bf16.mxu0 0
      %2527 = vmatpush1.bf16.msra.mxu0 0
      %2528 = vmatprep.subr.bf16.mxu0 0
      %2529 = vmatpush1.bf16.msra.mxu0 0
      %2530 = vmatprep.subr.bf16.mxu0 0
      %2531 = vmatpush1.bf16.msra.mxu0 0
      %2532 = vmatprep.mubr.bf16.mxu0 0
      %2533 = vmatmul.mubr.bf16.gmra.mrb[0].mxu0 %v2261
      %v2534 = vpop.f32.mrb[0].mxu0
      %v2535 = vadd.f32 %v2278, %v2534
      %v2536 = vpop.f32.mrb[0].mxu0
      %v2537 = vadd.f32 %v2282, %v2536
      %v2538 = vpop.f32.mrb[0].mxu0
      %v2539 = vadd.f32 %v2278, %v2538
      %v2540 = vpop.f32.mrb[0].mxu0
      %v2541 = vadd.f32 %v2282, %v2540
      %2542 = vmatprep.mubr.bf16.mxu0 0
      %2543 = vmatmul.mubr.bf16.gmra.mrb[0].mxu0 %v2262
      %v2544 = vpop.f32.mrb[0].mxu0
      %v2545 = vadd.f32 %v2278, %v2544
      %v2546 = vpop.f32.mrb[0].mxu0
      %v2547 = vadd.f32 %v2282, %v2546
      %v2548 = vpop.f32.mrb[0].mxu0
      %v2549 = vadd.f32 %v2278, %v2548
      %v2550 = vpop.f32.mrb[0].mxu0
      %v2551 = vadd.f32 %v2282, %v2550
      %2552 = vdwg.mxu0
      %v2553 = vmul.f32 %v2482, %v2482
      %v2554 = vmul.f32 %v2484, %v2484
      %v2555 = vmul.f32 %v2535, %v2535
      %v2556 = vmul.f32 %v2537, %v2537
      %v2557 = vmul.f32 %v2486, %v2486
      %v2558 = vmul.f32 %v2488, %v2488
      %v2559 = vmul.f32 %v2539, %v2539
      %v2560 = vmul.f32 %v2541, %v2541
      %v2561 = vmul.f32 %v2492, %v2492
      %v2562 = vmul.f32 %v2494, %v2494
      %v2563 = vmul.f32 %v2545, %v2545
      %v2564 = vmul.f32 %v2547, %v2547
      %v2565 = vmul.f32 %v2496, %v2496
      %v2566 = vmul.f32 %v2498, %v2498
      %v2567 = vmul.f32 %v2549, %v2549
      %v2568 = vmul.f32 %v2551, %v2551
      %v2569 = vmul.f32 %v2482, %v2553
      %v2570 = vmul.f32 %v2484, %v2554
      %v2571 = vmul.f32 %v2535, %v2555
      %v2572 = vmul.f32 %v2537, %v2556
      %v2573 = vmul.f32 %v2486, %v2557
      %v2574 = vmul.f32 %v2488, %v2558
      %v2575 = vmul.f32 %v2539, %v2559
      %v2576 = vmul.f32 %v2541, %v2560
      %v2577 = vmul.f32 %v2492, %v2561
      %v2578 = vmul.f32 %v2494, %v2562
      %v2579 = vmul.f32 %v2545, %v2563
      %v2580 = vmul.f32 %v2547, %v2564
      %v2581 = vmul.f32 %v2496, %v2565
      %v2582 = vmul.f32 %v2498, %v2566
      %v2583 = vmul.f32 %v2549, %v2567
      %v2584 = vmul.f32 %v2551, %v2568
      %v2585 = vmul.f32 %v2569, 0.044715
      %v2586 = vmul.f32 %v2570, 0.044715
      %v2587 = vmul.f32 %v2571, 0.044715
      %v2588 = vmul.f32 %v2572, 0.044715
      %v2589 = vmul.f32 %v2573, 0.044715
      %v2590 = vmul.f32 %v2574, 0.044715
      %v2591 = vmul.f32 %v2575, 0.044715
      %v2592 = vmul.f32 %v2576, 0.044715
      %v2593 = vmul.f32 %v2577, 0.044715
      %v2594 = vmul.f32 %v2578, 0.044715
      %v2595 = vmul.f32 %v2579, 0.044715
      %v2596 = vmul.f32 %v2580, 0.044715
      %v2597 = vmul.f32 %v2581, 0.044715
      %v2598 = vmul.f32 %v2582, 0.044715
      %v2599 = vmul.f32 %v2583, 0.044715
      %v2600 = vmul.f32 %v2584, 0.044715
      %v2601 = vadd.f32 %v2482, %v2585
      %v2602 = vadd.f32 %v2484, %v2586
      %v2603 = vadd.f32 %v2535, %v2587
      %v2604 = vadd.f32 %v2537, %v2588
      %v2605 = vadd.f32 %v2486, %v2589
      %v2606 = vadd.f32 %v2488, %v2590
      %v2607 = vadd.f32 %v2539, %v2591
      %v2608 = vadd.f32 %v2541, %v2592
      %v2609 = vadd.f32 %v2492, %v2593
      %v2610 = vadd.f32 %v2494, %v2594
      %v2611 = vadd.f32 %v2545, %v2595
      %v2612 = vadd.f32 %v2547, %v2596
      %v2613 = vadd.f32 %v2496, %v2597
      %v2614 = vadd.f32 %v2498, %v2598
      %v2615 = vadd.f32 %v2549, %v2599
      %v2616 = vadd.f32 %v2551, %v2600
      %v2617 = vmul.f32 %v2601, 0.7978846
      %v2618 = vmul.f32 %v2602, 0.7978846
      %v2619 = vmul.f32 %v2603, 0.7978846
      %v2620 = vmul.f32 %v2604, 0.7978846
      %v2621 = vmul.f32 %v2605, 0.7978846
      %v2622 = vmul.f32 %v2606, 0.7978846
      %v2623 = vmul.f32 %v2607, 0.7978846
      %v2624 = vmul.f32 %v2608, 0.7978846
      %v2625 = vmul.f32 %v2609, 0.7978846
      %v2626 = vmul.f32 %v2610, 0.7978846
      %v2627 = vmul.f32 %v2611, 0.7978846
      %v2628 = vmul.f32 %v2612, 0.7978846
      %v2629 = vmul.f32 %v2613, 0.7978846
      %v2630 = vmul.f32 %v2614, 0.7978846
      %v2631 = vmul.f32 %v2615, 0.7978846
      %v2632 = vmul.f32 %v2616, 0.7978846
      %v2633 = vtanh.pop %v2617
      %v2634 = vtanh.pop %v2618
      %v2635 = vtanh.pop %v2619
      %v2636 = vtanh.pop %v2620
      %v2637 = vtanh.pop %v2621
      %v2638 = vtanh.pop %v2622
      %v2639 = vtanh.pop %v2623
      %v2640 = vtanh.pop %v2624
      %v2641 = vtanh.pop %v2625
      %v2642 = vtanh.pop %v2626
      %v2643 = vtanh.pop %v2627
      %v2644 = vtanh.pop %v2628
      %v2645 = vtanh.pop %v2629
      %v2646 = vtanh.pop %v2630
      %v2647 = vtanh.pop %v2631
      %v2648 = vtanh.pop %v2632
      %v2649 = vadd.f32 %v2633, 1.0
      %v2650 = vadd.f32 %v2634, 1.0
      %v2651 = vadd.f32 %v2635, 1.0
      %v2652 = vadd.f32 %v2636, 1.0
      %v2653 = vadd.f32 %v2637, 1.0
      %v2654 = vadd.f32 %v2638, 1.0
      %v2655 = vadd.f32 %v2639, 1.0
      %v2656 = vadd.f32 %v2640, 1.0
      %v2657 = vadd.f32 %v2641, 1.0
      %v2658 = vadd.f32 %v2642, 1.0
      %v2659 = vadd.f32 %v2643, 1.0
      %v2660 = vadd.f32 %v2644, 1.0
      %v2661 = vadd.f32 %v2645, 1.0
      %v2662 = vadd.f32 %v2646, 1.0
      %v2663 = vadd.f32 %v2647, 1.0
      %v2664 = vadd.f32 %v2648, 1.0
      %v2665 = vmul.f32 %v2649, 0.5
      %v2666 = vmul.f32 %v2650, 0.5
      %v2667 = vmul.f32 %v2651, 0.5
      %v2668 = vmul.f32 %v2652, 0.5
      %v2669 = vmul.f32 %v2653, 0.5
      %v2670 = vmul.f32 %v2654, 0.5
      %v2671 = vmul.f32 %v2655, 0.5
      %v2672 = vmul.f32 %v2656, 0.5
      %v2673 = vmul.f32 %v2657, 0.5
      %v2674 = vmul.f32 %v2658, 0.5
      %v2675 = vmul.f32 %v2659, 0.5
      %v2676 = vmul.f32 %v2660, 0.5
      %v2677 = vmul.f32 %v2661, 0.5
      %v2678 = vmul.f32 %v2662, 0.5
      %v2679 = vmul.f32 %v2663, 0.5
      %v2680 = vmul.f32 %v2664, 0.5
      %v2681 = vmul.f32 %v2482, %v2665
      %v2682 = vmul.f32 %v2484, %v2666
      %v2683 = vmul.f32 %v2535, %v2667
      %v2684 = vmul.f32 %v2537, %v2668
      %v2685 = vmul.f32 %v2486, %v2669
      %v2686 = vmul.f32 %v2488, %v2670
      %v2687 = vmul.f32 %v2539, %v2671
      %v2688 = vmul.f32 %v2541, %v2672
      %v2689 = vmul.f32 %v2492, %v2673
      %v2690 = vmul.f32 %v2494, %v2674
      %v2691 = vmul.f32 %v2545, %v2675
      %v2692 = vmul.f32 %v2547, %v2676
      %v2693 = vmul.f32 %v2496, %v2677
      %v2694 = vmul.f32 %v2498, %v2678
      %v2695 = vmul.f32 %v2549, %v2679
      %v2696 = vmul.f32 %v2551, %v2680
      %s2697 = smul.addr %s2226, 4
      %s2698 = scalar_lea.vmem [#allocation30], %s2697
      %v2699 = vld [vmem:[%s2698] sm:$0xf]
      %v2700 = vld [vmem:[%s2698 + $0x4] sm:$0xf]
      %v2701 = vld [vmem:[%s2698 + $0x8] sm:$0xf]
      %v2702 = vld [vmem:[%s2698 + $0xc] sm:$0xf]
      %v2703 = vld [vmem:[%s2698 + $0x10] sm:$0xf]
      %v2704 = vld [vmem:[%s2698 + $0x14] sm:$0xf]
      %v2705 = vld [vmem:[%s2698 + $0x18] sm:$0xf]
      %v2706 = vld [vmem:[%s2698 + $0x1c] sm:$0xf]
      %v2707 = vld [vmem:[%s2698 + $0x20] sm:$0xf]
      %v2708 = vld [vmem:[%s2698 + $0x24] sm:$0xf]
      %v2709 = vld [vmem:[%s2698 + $0x28] sm:$0xf]
      %v2710 = vld [vmem:[%s2698 + $0x2c] sm:$0xf]
      %v2711 = vld [vmem:[%s2698 + $0x30] sm:$0xf]
      %v2712 = vld [vmem:[%s2698 + $0x34] sm:$0xf]
      %v2713 = vld [vmem:[%s2698 + $0x38] sm:$0xf]
      %v2714 = vld [vmem:[%s2698 + $0x3c] sm:$0xf]
      %v2715 = vld [vmem:[%s2698 + $0x40] sm:$0xf]
      %v2716 = vld [vmem:[%s2698 + $0x44] sm:$0xf]
      %v2717 = vld [vmem:[%s2698 + $0x48] sm:$0xf]
      %v2718 = vld [vmem:[%s2698 + $0x4c] sm:$0xf]
      %v2719 = vld [vmem:[%s2698 + $0x50] sm:$0xf]
      %v2720 = vld [vmem:[%s2698 + $0x54] sm:$0xf]
      %v2721 = vld [vmem:[%s2698 + $0x58] sm:$0xf]
      %v2722 = vld [vmem:[%s2698 + $0x5c] sm:$0xf]
      %v2723 = vld [vmem:[%s2698 + $0x60] sm:$0xf]
      %v2724 = vld [vmem:[%s2698 + $0x64] sm:$0xf]
      %v2725 = vld [vmem:[%s2698 + $0x68] sm:$0xf]
      %v2726 = vld [vmem:[%s2698 + $0x6c] sm:$0xf]
      %v2727 = vld [vmem:[%s2698 + $0x70] sm:$0xf]
      %v2728 = vld [vmem:[%s2698 + $0x74] sm:$0xf]
      %v2729 = vld [vmem:[%s2698 + $0x78] sm:$0xf]
      %v2730 = vld [vmem:[%s2698 + $0x7c] sm:$0xf]
      %v2731 = vld [vmem:[%s2698 + $0x80] sm:$0xf]
      %v2732 = vld [vmem:[%s2698 + $0x84] sm:$0xf]
      %v2733 = vld [vmem:[%s2698 + $0x88] sm:$0xf]
      %v2734 = vld [vmem:[%s2698 + $0x8c] sm:$0xf]
      %v2735 = vld [vmem:[%s2698 + $0x90] sm:$0xf]
      %v2736 = vld [vmem:[%s2698 + $0x94] sm:$0xf]
      %v2737 = vld [vmem:[%s2698 + $0x98] sm:$0xf]
      %v2738 = vld [vmem:[%s2698 + $0x9c] sm:$0xf]
      %v2739 = vld [vmem:[%s2698 + $0xa0] sm:$0xf]
      %v2740 = vld [vmem:[%s2698 + $0xa4] sm:$0xf]
      %v2741 = vld [vmem:[%s2698 + $0xa8] sm:$0xf]
      %v2742 = vld [vmem:[%s2698 + $0xac] sm:$0xf]
      %v2743 = vld [vmem:[%s2698 + $0xb0] sm:$0xf]
      %v2744 = vld [vmem:[%s2698 + $0xb4] sm:$0xf]
      %v2745 = vld [vmem:[%s2698 + $0xb8] sm:$0xf]
      %v2746 = vld [vmem:[%s2698 + $0xbc] sm:$0xf]
      %v2747 = vld [vmem:[%s2698 + $0xc0] sm:$0xf]
      %v2748 = vld [vmem:[%s2698 + $0xc4] sm:$0xf]
      %v2749 = vld [vmem:[%s2698 + $0xc8] sm:$0xf]
      %v2750 = vld [vmem:[%s2698 + $0xcc] sm:$0xf]
      %v2751 = vld [vmem:[%s2698 + $0xd0] sm:$0xf]
      %v2752 = vld [vmem:[%s2698 + $0xd4] sm:$0xf]
      %v2753 = vld [vmem:[%s2698 + $0xd8] sm:$0xf]
      %v2754 = vld [vmem:[%s2698 + $0xdc] sm:$0xf]
      %v2755 = vld [vmem:[%s2698 + $0xe0] sm:$0xf]
      %v2756 = vld [vmem:[%s2698 + $0xe4] sm:$0xf]
      %v2757 = vld [vmem:[%s2698 + $0xe8] sm:$0xf]
      %v2758 = vld [vmem:[%s2698 + $0xec] sm:$0xf]
      %v2759 = vld [vmem:[%s2698 + $0xf0] sm:$0xf]
      %v2760 = vld [vmem:[%s2698 + $0xf4] sm:$0xf]
      %v2761 = vld [vmem:[%s2698 + $0xf8] sm:$0xf]
      %v2762 = vld [vmem:[%s2698 + $0xfc] sm:$0xf]
      %v2763 = vpack.c.bf16 %v2685, %v2681
      %v2764 = vpack.c.bf16 %v2686, %v2682
      %v2765 = vpack.c.bf16 %v2687, %v2683
      %v2766 = vpack.c.bf16 %v2688, %v2684
      %v2767 = vpack.c.bf16 %v2693, %v2689
      %v2768 = vpack.c.bf16 %v2694, %v2690
      %v2769 = vpack.c.bf16 %v2695, %v2691
      %v2770 = vpack.c.bf16 %v2696, %v2692
      %s2771 = scalar_lea.vmem [#allocation31], %s1276
      %v2772 = vld [vmem:[%s2771] sm:$0x1]
      %v2774 = vlaneseq
      %v2775 = vshrl.u32 %v2774, 7
      %v2776 = vsub.s32 0, %v2775
      %v2777 = vrot.slane %v2772, %v2776
      %v2843 = vunpack.c.l.b16 %v2699
      %v2844 = vunpack.c.l.b16 %v2700
      %v2845 = vunpack.c.l.b16 %v2701
      %v2846 = vunpack.c.l.b16 %v2702
      %v2847 = vunpack.c.l.b16 %v2703
      %v2848 = vunpack.c.l.b16 %v2704
      %v2849 = vunpack.c.l.b16 %v2705
      %v2850 = vunpack.c.l.b16 %v2706
      %v2851 = vunpack.c.l.b16 %v2707
      %v2852 = vunpack.c.l.b16 %v2708
      %v2853 = vunpack.c.l.b16 %v2709
      %v2854 = vunpack.c.l.b16 %v2710
      %v2855 = vunpack.c.l.b16 %v2711
      %v2856 = vunpack.c.l.b16 %v2712
      %v2857 = vunpack.c.l.b16 %v2713
      %v2858 = vunpack.c.l.b16 %v2714
      %v2859 = vunpack.c.l.b16 %v2715
      %v2860 = vunpack.c.l.b16 %v2716
      %v2861 = vunpack.c.l.b16 %v2717
      %v2862 = vunpack.c.l.b16 %v2718
      %v2863 = vunpack.c.l.b16 %v2719
      %v2864 = vunpack.c.l.b16 %v2720
      %v2865 = vunpack.c.l.b16 %v2721
      %v2866 = vunpack.c.l.b16 %v2722
      %v2867 = vunpack.c.l.b16 %v2723
      %v2868 = vunpack.c.l.b16 %v2724
      %v2869 = vunpack.c.l.b16 %v2725
      %v2870 = vunpack.c.l.b16 %v2726
      %v2871 = vunpack.c.l.b16 %v2727
      %v2872 = vunpack.c.l.b16 %v2728
      %v2873 = vunpack.c.l.b16 %v2729
      %v2874 = vunpack.c.l.b16 %v2730
      %v2875 = vunpack.c.l.b16 %v2731
      %v2876 = vunpack.c.l.b16 %v2732
      %v2877 = vunpack.c.l.b16 %v2733
      %v2878 = vunpack.c.l.b16 %v2734
      %v2879 = vunpack.c.l.b16 %v2735
      %v2880 = vunpack.c.l.b16 %v2736
      %v2881 = vunpack.c.l.b16 %v2737
      %v2882 = vunpack.c.l.b16 %v2738
      %v2883 = vunpack.c.l.b16 %v2739
      %v2884 = vunpack.c.l.b16 %v2740
      %v2885 = vunpack.c.l.b16 %v2741
      %v2886 = vunpack.c.l.b16 %v2742
      %v2887 = vunpack.c.l.b16 %v2743
      %v2888 = vunpack.c.l.b16 %v2744
      %v2889 = vunpack.c.l.b16 %v2745
      %v2890 = vunpack.c.l.b16 %v2746
      %v2891 = vunpack.c.l.b16 %v2747
      %v2892 = vunpack.c.l.b16 %v2748
      %v2893 = vunpack.c.l.b16 %v2749
      %v2894 = vunpack.c.l.b16 %v2750
      %v2895 = vunpack.c.l.b16 %v2751
      %v2896 = vunpack.c.l.b16 %v2752
      %v2897 = vunpack.c.l.b16 %v2753
      %v2898 = vunpack.c.l.b16 %v2754
      %v2899 = vunpack.c.l.b16 %v2755
      %v2900 = vunpack.c.l.b16 %v2756
      %v2901 = vunpack.c.l.b16 %v2757
      %v2902 = vunpack.c.l.b16 %v2758
      %v2903 = vunpack.c.l.b16 %v2759
      %v2904 = vunpack.c.l.b16 %v2760
      %v2905 = vunpack.c.l.b16 %v2761
      %v2906 = vunpack.c.l.b16 %v2762
      %v2907 = vpack.c.b16 %v2844, %v2843
      %v2908 = vpack.c.b16 %v2846, %v2845
      %v2909 = vpack.c.b16 %v2848, %v2847
      %v2910 = vpack.c.b16 %v2850, %v2849
      %v2911 = vpack.c.b16 %v2852, %v2851
      %v2912 = vpack.c.b16 %v2854, %v2853
      %v2913 = vpack.c.b16 %v2856, %v2855
      %v2914 = vpack.c.b16 %v2858, %v2857
      %v2915 = vpack.c.b16 %v2860, %v2859
      %v2916 = vpack.c.b16 %v2862, %v2861
      %v2917 = vpack.c.b16 %v2864, %v2863
      %v2918 = vpack.c.b16 %v2866, %v2865
      %v2919 = vpack.c.b16 %v2868, %v2867
      %v2920 = vpack.c.b16 %v2870, %v2869
      %v2921 = vpack.c.b16 %v2872, %v2871
      %v2922 = vpack.c.b16 %v2874, %v2873
      %v2923 = vpack.c.b16 %v2876, %v2875
      %v2924 = vpack.c.b16 %v2878, %v2877
      %v2925 = vpack.c.b16 %v2880, %v2879
      %v2926 = vpack.c.b16 %v2882, %v2881
      %v2927 = vpack.c.b16 %v2884, %v2883
      %v2928 = vpack.c.b16 %v2886, %v2885
      %v2929 = vpack.c.b16 %v2888, %v2887
      %v2930 = vpack.c.b16 %v2890, %v2889
      %v2931 = vpack.c.b16 %v2892, %v2891
      %v2932 = vpack.c.b16 %v2894, %v2893
      %v2933 = vpack.c.b16 %v2896, %v2895
      %v2934 = vpack.c.b16 %v2898, %v2897
      %v2935 = vpack.c.b16 %v2900, %v2899
      %v2936 = vpack.c.b16 %v2902, %v2901
      %v2937 = vpack.c.b16 %v2904, %v2903
      %v2938 = vpack.c.b16 %v2906, %v2905
      %2971 = vmatprep.subr.bf16.mxu0 0
      %2972 = vmatpush1.bf16.msra.mxu0 %v2907
      %2973 = vmatprep.subr.bf16.mxu0 0
      %2974 = vmatpush1.bf16.msra.mxu0 %v2908
      %2975 = vmatprep.subr.bf16.mxu0 0
      %2976 = vmatpush1.bf16.msra.mxu0 %v2909
      %2977 = vmatprep.subr.bf16.mxu0 0
      %2978 = vmatpush1.bf16.msra.mxu0 %v2910
      %2979 = vmatprep.subr.bf16.mxu0 0
      %2980 = vmatpush1.bf16.msra.mxu0 %v2911
      %2981 = vmatprep.subr.bf16.mxu0 0
      %2982 = vmatpush1.bf16.msra.mxu0 %v2912
      %2983 = vmatprep.subr.bf16.mxu0 0
      %2984 = vmatpush1.bf16.msra.mxu0 %v2913
      %2985 = vmatprep.subr.bf16.mxu0 0
      %2986 = vmatpush1.bf16.msra.mxu0 %v2914
      %2987 = vmatprep.subr.bf16.mxu0 0
      %2988 = vmatpush1.bf16.msra.mxu0 %v2915
      %2989 = vmatprep.subr.bf16.mxu0 0
      %2990 = vmatpush1.bf16.msra.mxu0 %v2916
      %2991 = vmatprep.subr.bf16.mxu0 0
      %2992 = vmatpush1.bf16.msra.mxu0 %v2917
      %2993 = vmatprep.subr.bf16.mxu0 0
      %2994 = vmatpush1.bf16.msra.mxu0 %v2918
      %2995 = vmatprep.subr.bf16.mxu0 0
      %2996 = vmatpush1.bf16.msra.mxu0 %v2919
      %2997 = vmatprep.subr.bf16.mxu0 0
      %2998 = vmatpush1.bf16.msra.mxu0 %v2920
      %2999 = vmatprep.subr.bf16.mxu0 0
      %3000 = vmatpush1.bf16.msra.mxu0 %v2921
      %3001 = vmatprep.subr.bf16.mxu0 0
      %3002 = vmatpush1.bf16.msra.mxu0 %v2922
      %3003 = vmatprep.mubr.bf16.mxu0 %v2764
      %3004 = vmatmul.mubr.bf16.gmra.mrb[0].mxu0 %v2763
      %v3005 = vpop.f32.mrb[0].mxu0
      %v3006 = vadd.f32 %v2777, %v3005
      %v3007 = vpop.f32.mrb[0].mxu0
      %v3008 = vpop.f32.mrb[0].mxu0
      %v3009 = vadd.f32 %v2777, %v3008
      %v3010 = vpop.f32.mrb[0].mxu0
      %3011 = vmatprep.mubr.bf16.mxu0 %v2768
      %3012 = vmatmul.mubr.bf16.gmra.mrb[0].mxu0 %v2767
      %v3013 = vpop.f32.mrb[0].mxu0
      %v3014 = vadd.f32 %v2777, %v3013
      %v3015 = vpop.f32.mrb[0].mxu0
      %v3016 = vpop.f32.mrb[0].mxu0
      %v3017 = vadd.f32 %v2777, %v3016
      %v3018 = vpop.f32.mrb[0].mxu0
      %3019 = vdwg.mxu0
      %3020 = vmatprep.subr.bf16.mxu0 0
      %3021 = vmatpush1.bf16.msra.mxu0 %v2923
      %3022 = vmatprep.subr.bf16.mxu0 0
      %3023 = vmatpush1.bf16.msra.mxu0 %v2924
      %3024 = vmatprep.subr.bf16.mxu0 0
      %3025 = vmatpush1.bf16.msra.mxu0 %v2925
      %3026 = vmatprep.subr.bf16.mxu0 0
      %3027 = vmatpush1.bf16.msra.mxu0 %v2926
      %3028 = vmatprep.subr.bf16.mxu0 0
      %3029 = vmatpush1.bf16.msra.mxu0 %v2927
      %3030 = vmatprep.subr.bf16.mxu0 0
      %3031 = vmatpush1.bf16.msra.mxu0 %v2928
      %3032 = vmatprep.subr.bf16.mxu0 0
      %3033 = vmatpush1.bf16.msra.mxu0 %v2929
      %3034 = vmatprep.subr.bf16.mxu0 0
      %3035 = vmatpush1.bf16.msra.mxu0 %v2930
      %3036 = vmatprep.subr.bf16.mxu0 0
      %3037 = vmatpush1.bf16.msra.mxu0 %v2931
      %3038 = vmatprep.subr.bf16.mxu0 0
      %3039 = vmatpush1.bf16.msra.mxu0 %v2932
      %3040 = vmatprep.subr.bf16.mxu0 0
      %3041 = vmatpush1.bf16.msra.mxu0 %v2933
      %3042 = vmatprep.subr.bf16.mxu0 0
      %3043 = vmatpush1.bf16.msra.mxu0 %v2934
      %3044 = vmatprep.subr.bf16.mxu0 0
      %3045 = vmatpush1.bf16.msra.mxu0 %v2935
      %3046 = vmatprep.subr.bf16.mxu0 0
      %3047 = vmatpush1.bf16.msra.mxu0 %v2936
      %3048 = vmatprep.subr.bf16.mxu0 0
      %3049 = vmatpush1.bf16.msra.mxu0 %v2937
      %3050 = vmatprep.subr.bf16.mxu0 0
      %3051 = vmatpush1.bf16.msra.mxu0 %v2938
      %3052 = vmatprep.mubr.bf16.mxu0 %v2766
      %3053 = vmatmul.mubr.bf16.gmra.mrb[0].mxu0 %v2765
      %v3054 = vpop.f32.mrb[0].mxu0
      %v3055 = vadd.f32 %v3006, %v3054
      %v3056 = vpop.f32.mrb[0].mxu0
      %v3057 = vpop.f32.mrb[0].mxu0
      %v3058 = vadd.f32 %v3009, %v3057
      %v3059 = vpop.f32.mrb[0].mxu0
      %3060 = vmatprep.mubr.bf16.mxu0 %v2770
      %3061 = vmatmul.mubr.bf16.gmra.mrb[0].mxu0 %v2769
      %v3062 = vpop.f32.mrb[0].mxu0
      %v3063 = vadd.f32 %v3014, %v3062
      %v3064 = vpop.f32.mrb[0].mxu0
      %v3065 = vpop.f32.mrb[0].mxu0
      %v3066 = vadd.f32 %v3017, %v3065
      %v3067 = vpop.f32.mrb[0].mxu0
      %3068 = vdwg.mxu0
      %v3069 = vmul.f32 %v3055, %v3055
      %v3070 = vmul.f32 %v3058, %v3058
      %v3071 = vmul.f32 %v3063, %v3063
      %v3072 = vmul.f32 %v3066, %v3066
      %v3073 = vmul.f32 %v3055, %v3069
      %v3074 = vmul.f32 %v3058, %v3070
      %v3075 = vmul.f32 %v3063, %v3071
      %v3076 = vmul.f32 %v3066, %v3072
      %v3077 = vmul.f32 %v3073, 0.044715
      %v3078 = vmul.f32 %v3074, 0.044715
      %v3079 = vmul.f32 %v3075, 0.044715
      %v3080 = vmul.f32 %v3076, 0.044715
      %v3081 = vadd.f32 %v3055, %v3077
      %v3082 = vadd.f32 %v3058, %v3078
      %v3083 = vadd.f32 %v3063, %v3079
      %v3084 = vadd.f32 %v3066, %v3080
      %v3085 = vmul.f32 %v3081, 0.7978846
      %v3086 = vmul.f32 %v3082, 0.7978846
      %v3087 = vmul.f32 %v3083, 0.7978846
      %v3088 = vmul.f32 %v3084, 0.7978846
      %v3089 = vtanh.pop %v3085
      %v3090 = vtanh.pop %v3086
      %v3091 = vtanh.pop %v3087
      %v3092 = vtanh.pop %v3088
      %v3093 = vadd.f32 %v3089, 1.0
      %v3094 = vadd.f32 %v3090, 1.0
      %v3095 = vadd.f32 %v3091, 1.0
      %v3096 = vadd.f32 %v3092, 1.0
      %v3097 = vmul.f32 %v3093, 0.5
      %v3098 = vmul.f32 %v3094, 0.5
      %v3099 = vmul.f32 %v3095, 0.5
      %v3100 = vmul.f32 %v3096, 0.5
      %v3101 = vmul.f32 %v3055, %v3097
      %v3102 = vmul.f32 %v3058, %v3098
      %v3103 = vmul.f32 %v3063, %v3099
      %v3104 = vmul.f32 %v3066, %v3100
      %v3105 = vadd.f32 %v3101, %v2154
      %v3106 = vadd.f32 %v3102, %v2155
      %v3107 = vadd.f32 %v3103, %v2156
      %v3108 = vadd.f32 %v3104, %v2157
    $region238: #{gsgm_forward.7} parent=1 // loop_footer
      %s1280 = sadd.s32 1, %s1276
    $region239: #{gsgm_forward.7} parent=1 // loop_footer_branch
      %1275 = sbr.rel target = $region235
    $region240: #{gsgm_forward.7} parent=1 // loop_exit
      _
    %v3109 = vld [vmem:[#allocation33] sm:$0x1]
    %v3110 = vld [vmem:[#allocation34] sm:$0x1]
    %3111 = vadd.xlane.f32.xlu0 %v1281
    %v3112 = vpop.xlane.xlu0 %3111
    %3113 = vadd.xlane.f32.xlu0 %v1282
    %v3114 = vpop.xlane.xlu0 %3113
    %3115 = vadd.xlane.f32.xlu0 %v1283
    %v3116 = vpop.xlane.xlu0 %3115
    %3117 = vadd.xlane.f32.xlu0 %v1284
    %v3118 = vpop.xlane.xlu0 %3117
    %v3119 = vrcp.pop 128.0
    %v3120 = vmul.f32 %v3112, %v3119
    %v3121 = vmul.f32 %v3114, %v3119
    %v3122 = vmul.f32 %v3116, %v3119
    %v3123 = vmul.f32 %v3118, %v3119
    %v3124 = vsub.f32 %v1281, %v3120
    %v3125 = vsub.f32 %v1282, %v3121
    %v3126 = vsub.f32 %v1283, %v3122
    %v3127 = vsub.f32 %v1284, %v3123
    %v3128 = vmul.f32 %v3124, %v3124
    %v3129 = vmul.f32 %v3125, %v3125
    %v3130 = vmul.f32 %v3126, %v3126
    %v3131 = vmul.f32 %v3127, %v3127
    %3132 = vadd.xlane.f32.xlu0 %v3128
    %v3133 = vpop.xlane.xlu0 %3132
    %3134 = vadd.xlane.f32.xlu0 %v3129
    %v3135 = vpop.xlane.xlu0 %3134
    %3136 = vadd.xlane.f32.xlu0 %v3130
    %v3137 = vpop.xlane.xlu0 %3136
    %3138 = vadd.xlane.f32.xlu0 %v3131
    %v3139 = vpop.xlane.xlu0 %3138
    %v3140 = vmul.f32 %v3133, %v3119
    %v3141 = vmul.f32 %v3135, %v3119
    %v3142 = vmul.f32 %v3137, %v3119
    %v3143 = vmul.f32 %v3139, %v3119
    %v3144 = vadd.f32 %v3140, 1e-05
    %v3145 = vadd.f32 %v3141, 1e-05
    %v3146 = vadd.f32 %v3142, 1e-05
    %v3147 = vadd.f32 %v3143, 1e-05
    %v3148 = vrsqrt.pop %v3144
    %v3149 = vrsqrt.pop %v3145
    %v3150 = vrsqrt.pop %v3146
    %v3151 = vrsqrt.pop %v3147
    %v3152 = vmul.f32 %v3124, %v3148
    %v3153 = vmul.f32 %v3125, %v3149
    %v3154 = vmul.f32 %v3126, %v3150
    %v3155 = vmul.f32 %v3127, %v3151
    %v3157 = vlaneseq
    %v3158 = vshrl.u32 %v3157, 7
    %v3159 = vsub.s32 0, %v3158
    %v3160 = vrot.slane %v3109, %v3159
    %v3162 = vmul.f32 %v3152, %v3160
    %v3163 = vmul.f32 %v3153, %v3160
    %v3164 = vmul.f32 %v3154, %v3160
    %v3165 = vmul.f32 %v3155, %v3160
    %v3167 = vlaneseq
    %v3168 = vshrl.u32 %v3167, 7
    %v3169 = vsub.s32 0, %v3168
    %v3170 = vrot.slane %v3110, %v3169
    %v3172 = vadd.f32 %v3162, %v3170
    %v3173 = vadd.f32 %v3163, %v3170
    %v3174 = vadd.f32 %v3164, %v3170
    %v3175 = vadd.f32 %v3165, %v3170
    %v3176 = vld [vmem:[#allocation36] sm:$0xff]
    %v3177 = vld [vmem:[#allocation36 + $0x8] sm:$0xff]
    %v3178 = vld [vmem:[#allocation36 + $0x10] sm:$0xff]
    %v3179 = vld [vmem:[#allocation36 + $0x18] sm:$0xff]
    %v3180 = vld [vmem:[#allocation36 + $0x20] sm:$0xff]
    %v3181 = vld [vmem:[#allocation36 + $0x28] sm:$0xff]
    %v3182 = vld [vmem:[#allocation36 + $0x30] sm:$0xff]
    %v3183 = vld [vmem:[#allocation36 + $0x38] sm:$0xff]
    %v3184 = vld [vmem:[#allocation36 + $0x40] sm:$0xff]
    %v3185 = vld [vmem:[#allocation36 + $0x48] sm:$0xff]
    %v3186 = vld [vmem:[#allocation36 + $0x50] sm:$0xff]
    %v3187 = vld [vmem:[#allocation36 + $0x58] sm:$0xff]
    %v3188 = vld [vmem:[#allocation36 + $0x60] sm:$0xff]
    %v3189 = vld [vmem:[#allocation36 + $0x68] sm:$0xff]
    %v3190 = vld [vmem:[#allocation36 + $0x70] sm:$0xff]
    %v3191 = vld [vmem:[#allocation36 + $0x78] sm:$0xff]
    %v3192 = vpack.c.bf16 %v3173, %v3172
    %v3193 = vpack.c.bf16 %v3175, %v3174
    %v3194 = vld [vmem:[#allocation37] sm:$0x3]
    %v3196 = vlaneseq
    %v3197 = vshrl.u32 %v3196, 7
    %v3198 = vsub.s32 0, %v3197
    %v3199 = vrot.slane %v3194, %v3198
    %v3200 = vlaneseq
    %v3201 = vshrl.u32 %v3200, 7
    %v3202 = vsub.s32 1, %v3201
    %v3203 = vrot.slane %v3194, %v3202
    %v3222 = vunpack.c.l.b16 %v3176
    %v3223 = vunpack.c.h.b16 %v3176
    %v3224 = vunpack.c.l.b16 %v3177
    %v3225 = vunpack.c.h.b16 %v3177
    %v3226 = vunpack.c.l.b16 %v3178
    %v3227 = vunpack.c.h.b16 %v3178
    %v3228 = vunpack.c.l.b16 %v3179
    %v3229 = vunpack.c.h.b16 %v3179
    %v3230 = vunpack.c.l.b16 %v3180
    %v3231 = vunpack.c.h.b16 %v3180
    %v3232 = vunpack.c.l.b16 %v3181
    %v3233 = vunpack.c.h.b16 %v3181
    %v3234 = vunpack.c.l.b16 %v3182
    %v3235 = vunpack.c.h.b16 %v3182
    %v3236 = vunpack.c.l.b16 %v3183
    %v3237 = vunpack.c.h.b16 %v3183
    %v3238 = vunpack.c.l.b16 %v3184
    %v3239 = vunpack.c.h.b16 %v3184
    %v3240 = vunpack.c.l.b16 %v3185
    %v3241 = vunpack.c.h.b16 %v3185
    %v3242 = vunpack.c.l.b16 %v3186
    %v3243 = vunpack.c.h.b16 %v3186
    %v3244 = vunpack.c.l.b16 %v3187
    %v3245 = vunpack.c.h.b16 %v3187
    %v3246 = vunpack.c.l.b16 %v3188
    %v3247 = vunpack.c.h.b16 %v3188
    %v3248 = vunpack.c.l.b16 %v3189
    %v3249 = vunpack.c.h.b16 %v3189
    %v3250 = vunpack.c.l.b16 %v3190
    %v3251 = vunpack.c.h.b16 %v3190
    %v3252 = vunpack.c.l.b16 %v3191
    %v3253 = vunpack.c.h.b16 %v3191
    %v3254 = vpack.c.b16 %v3224, %v3222
    %v3255 = vpack.c.b16 %v3225, %v3223
    %v3256 = vpack.c.b16 %v3228, %v3226
    %v3257 = vpack.c.b16 %v3229, %v3227
    %v3258 = vpack.c.b16 %v3232, %v3230
    %v3259 = vpack.c.b16 %v3233, %v3231
    %v3260 = vpack.c.b16 %v3236, %v3234
    %v3261 = vpack.c.b16 %v3237, %v3235
    %v3262 = vpack.c.b16 %v3240, %v3238
    %v3263 = vpack.c.b16 %v3241, %v3239
    %v3264 = vpack.c.b16 %v3244, %v3242
    %v3265 = vpack.c.b16 %v3245, %v3243
    %v3266 = vpack.c.b16 %v3248, %v3246
    %v3267 = vpack.c.b16 %v3249, %v3247
    %v3268 = vpack.c.b16 %v3252, %v3250
    %v3269 = vpack.c.b16 %v3253, %v3251
    %3286 = vmatprep.subr.bf16.mxu0 %v3255
    %3287 = vmatpush1.bf16.msra.mxu0 %v3254
    %3288 = vmatprep.subr.bf16.mxu0 %v3257
    %3289 = vmatpush1.bf16.msra.mxu0 %v3256
    %3290 = vmatprep.subr.bf16.mxu0 %v3259
    %3291 = vmatpush1.bf16.msra.mxu0 %v3258
    %3292 = vmatprep.subr.bf16.mxu0 %v3261
    %3293 = vmatpush1.bf16.msra.mxu0 %v3260
    %3294 = vmatprep.subr.bf16.mxu0 %v3263
    %3295 = vmatpush1.bf16.msra.mxu0 %v3262
    %3296 = vmatprep.subr.bf16.mxu0 %v3265
    %3297 = vmatpush1.bf16.msra.mxu0 %v3264
    %3298 = vmatprep.subr.bf16.mxu0 %v3267
    %3299 = vmatpush1.bf16.msra.mxu0 %v3266
    %3300 = vmatprep.subr.bf16.mxu0 %v3269
    %3301 = vmatpush1.bf16.msra.mxu0 %v3268
    %3302 = vmatprep.subr.bf16.mxu0 0
    %3303 = vmatpush1.bf16.msra.mxu0 0
    %3304 = vmatprep.subr.bf16.mxu0 0
    %3305 = vmatpush1.bf16.msra.mxu0 0
    %3306 = vmatprep.subr.bf16.mxu0 0
    %3307 = vmatpush1.bf16.msra.mxu0 0
    %3308 = vmatprep.subr.bf16.mxu0 0
    %3309 = vmatpush1.bf16.msra.mxu0 0
    %3310 = vmatprep.subr.bf16.mxu0 0
    %3311 = vmatpush1.bf16.msra.mxu0 0
    %3312 = vmatprep.subr.bf16.mxu0 0
    %3313 = vmatpush1.bf16.msra.mxu0 0
    %3314 = vmatprep.subr.bf16.mxu0 0
    %3315 = vmatpush1.bf16.msra.mxu0 0
    %3316 = vmatprep.subr.bf16.mxu0 0
    %3317 = vmatpush1.bf16.msra.mxu0 0
    %3318 = vmatprep.mubr.bf16.mxu0 0
    %3319 = vmatmul.mubr.bf16.gmra.mrb[0].mxu0 %v3192
    %v3320 = vpop.f32.mrb[0].mxu0
    %v3321 = vadd.f32 %v3199, %v3320
    %v3322 = vpop.f32.mrb[0].mxu0
    %v3323 = vadd.f32 %v3203, %v3322
    %v3324 = vpop.f32.mrb[0].mxu0
    %v3325 = vadd.f32 %v3199, %v3324
    %v3326 = vpop.f32.mrb[0].mxu0
    %v3327 = vadd.f32 %v3203, %v3326
    %3328 = vmatprep.mubr.bf16.mxu0 0
    %3329 = vmatmul.mubr.bf16.gmra.mrb[0].mxu0 %v3193
    %v3330 = vpop.f32.mrb[0].mxu0
    %v3331 = vadd.f32 %v3199, %v3330
    %v3332 = vpop.f32.mrb[0].mxu0
    %v3333 = vadd.f32 %v3203, %v3332
    %v3334 = vpop.f32.mrb[0].mxu0
    %v3335 = vadd.f32 %v3199, %v3334
    %v3336 = vpop.f32.mrb[0].mxu0
    %v3337 = vadd.f32 %v3203, %v3336
    %3338 = vdwg.mxu0
    %vm3339 = vcmp.gt.f32.partialorder %v3321, 0.0
    %vm3340 = vcmp.gt.f32.partialorder %v3323, 0.0
    %vm3341 = vcmp.gt.f32.partialorder %v3325, 0.0
    %vm3342 = vcmp.gt.f32.partialorder %v3327, 0.0
    %vm3343 = vcmp.gt.f32.partialorder %v3331, 0.0
    %vm3344 = vcmp.gt.f32.partialorder %v3333, 0.0
    %vm3345 = vcmp.gt.f32.partialorder %v3335, 0.0
    %vm3346 = vcmp.gt.f32.partialorder %v3337, 0.0
    %v3347 = vmul.f32 %v3321, 0.01
    %v3348 = vmul.f32 %v3323, 0.01
    %v3349 = vmul.f32 %v3325, 0.01
    %v3350 = vmul.f32 %v3327, 0.01
    %v3351 = vmul.f32 %v3331, 0.01
    %v3352 = vmul.f32 %v3333, 0.01
    %v3353 = vmul.f32 %v3335, 0.01
    %v3354 = vmul.f32 %v3337, 0.01
    %v3355 = vsel %vm3339, %v3321, %v3347
    %v3356 = vsel %vm3340, %v3323, %v3348
    %v3357 = vsel %vm3341, %v3325, %v3349
    %v3358 = vsel %vm3342, %v3327, %v3350
    %v3359 = vsel %vm3343, %v3331, %v3351
    %v3360 = vsel %vm3344, %v3333, %v3352
    %v3361 = vsel %vm3345, %v3335, %v3353
    %v3362 = vsel %vm3346, %v3337, %v3354
    %v3363 = vld [vmem:[%s63] sm:$0xf]
    %v3364 = vld [vmem:[%s63 + $0x4] sm:$0xf]
    %v3365 = vld [vmem:[%s63 + $0x8] sm:$0xf]
    %v3366 = vld [vmem:[%s63 + $0xc] sm:$0xf]
    %v3367 = vld [vmem:[%s63 + $0x10] sm:$0xf]
    %v3368 = vld [vmem:[%s63 + $0x14] sm:$0xf]
    %v3369 = vld [vmem:[%s63 + $0x18] sm:$0xf]
    %v3370 = vld [vmem:[%s63 + $0x1c] sm:$0xf]
    %v3371 = vld [vmem:[%s63 + $0x20] sm:$0xf]
    %v3372 = vld [vmem:[%s63 + $0x24] sm:$0xf]
    %v3373 = vld [vmem:[%s63 + $0x28] sm:$0xf]
    %v3374 = vld [vmem:[%s63 + $0x2c] sm:$0xf]
    %v3375 = vld [vmem:[%s63 + $0x30] sm:$0xf]
    %v3376 = vld [vmem:[%s63 + $0x34] sm:$0xf]
    %v3377 = vld [vmem:[%s63 + $0x38] sm:$0xf]
    %v3378 = vld [vmem:[%s63 + $0x3c] sm:$0xf]
    %v3379 = vld [vmem:[%s63 + $0x40] sm:$0xf]
    %v3380 = vld [vmem:[%s63 + $0x44] sm:$0xf]
    %v3381 = vld [vmem:[%s63 + $0x48] sm:$0xf]
    %v3382 = vld [vmem:[%s63 + $0x4c] sm:$0xf]
    %v3383 = vld [vmem:[%s63 + $0x50] sm:$0xf]
    %v3384 = vld [vmem:[%s63 + $0x54] sm:$0xf]
    %v3385 = vld [vmem:[%s63 + $0x58] sm:$0xf]
    %v3386 = vld [vmem:[%s63 + $0x5c] sm:$0xf]
    %v3387 = vld [vmem:[%s63 + $0x60] sm:$0xf]
    %v3388 = vld [vmem:[%s63 + $0x64] sm:$0xf]
    %v3389 = vld [vmem:[%s63 + $0x68] sm:$0xf]
    %v3390 = vld [vmem:[%s63 + $0x6c] sm:$0xf]
    %v3391 = vld [vmem:[%s63 + $0x70] sm:$0xf]
    %v3392 = vld [vmem:[%s63 + $0x74] sm:$0xf]
    %v3393 = vld [vmem:[%s63 + $0x78] sm:$0xf]
    %v3394 = vld [vmem:[%s63 + $0x7c] sm:$0xf]
    %v3395 = vpack.c.bf16 %v3357, %v3355
    %v3396 = vpack.c.bf16 %v3358, %v3356
    %v3397 = vpack.c.bf16 %v3361, %v3359
    %v3398 = vpack.c.bf16 %v3362, %v3360
    %v3399 = vld [vmem:[#allocation39] sm:$0x1]
    %v3401 = vlaneseq
    %v3402 = vshrl.u32 %v3401, 7
    %v3403 = vsub.s32 0, %v3402
    %v3404 = vrot.slane %v3399, %v3403
    %v3438 = vunpack.c.l.b16 %v3363
    %v3439 = vunpack.c.l.b16 %v3364
    %v3440 = vunpack.c.l.b16 %v3365
    %v3441 = vunpack.c.l.b16 %v3366
    %v3442 = vunpack.c.l.b16 %v3367
    %v3443 = vunpack.c.l.b16 %v3368
    %v3444 = vunpack.c.l.b16 %v3369
    %v3445 = vunpack.c.l.b16 %v3370
    %v3446 = vunpack.c.l.b16 %v3371
    %v3447 = vunpack.c.l.b16 %v3372
    %v3448 = vunpack.c.l.b16 %v3373
    %v3449 = vunpack.c.l.b16 %v3374
    %v3450 = vunpack.c.l.b16 %v3375
    %v3451 = vunpack.c.l.b16 %v3376
    %v3452 = vunpack.c.l.b16 %v3377
    %v3453 = vunpack.c.l.b16 %v3378
    %v3454 = vunpack.c.l.b16 %v3379
    %v3455 = vunpack.c.l.b16 %v3380
    %v3456 = vunpack.c.l.b16 %v3381
    %v3457 = vunpack.c.l.b16 %v3382
    %v3458 = vunpack.c.l.b16 %v3383
    %v3459 = vunpack.c.l.b16 %v3384
    %v3460 = vunpack.c.l.b16 %v3385
    %v3461 = vunpack.c.l.b16 %v3386
    %v3462 = vunpack.c.l.b16 %v3387
    %v3463 = vunpack.c.l.b16 %v3388
    %v3464 = vunpack.c.l.b16 %v3389
    %v3465 = vunpack.c.l.b16 %v3390
    %v3466 = vunpack.c.l.b16 %v3391
    %v3467 = vunpack.c.l.b16 %v3392
    %v3468 = vunpack.c.l.b16 %v3393
    %v3469 = vunpack.c.l.b16 %v3394
    %v3470 = vpack.c.b16 %v3439, %v3438
    %v3471 = vpack.c.b16 %v3441, %v3440
    %v3472 = vpack.c.b16 %v3443, %v3442
    %v3473 = vpack.c.b16 %v3445, %v3444
    %v3474 = vpack.c.b16 %v3447, %v3446
    %v3475 = vpack.c.b16 %v3449, %v3448
    %v3476 = vpack.c.b16 %v3451, %v3450
    %v3477 = vpack.c.b16 %v3453, %v3452
    %v3478 = vpack.c.b16 %v3455, %v3454
    %v3479 = vpack.c.b16 %v3457, %v3456
    %v3480 = vpack.c.b16 %v3459, %v3458
    %v3481 = vpack.c.b16 %v3461, %v3460
    %v3482 = vpack.c.b16 %v3463, %v3462
    %v3483 = vpack.c.b16 %v3465, %v3464
    %v3484 = vpack.c.b16 %v3467, %v3466
    %v3485 = vpack.c.b16 %v3469, %v3468
    %3502 = vmatprep.subr.bf16.mxu0 0
    %3503 = vmatpush1.bf16.msra.mxu0 %v3470
    %3504 = vmatprep.subr.bf16.mxu0 0
    %3505 = vmatpush1.bf16.msra.mxu0 %v3471
    %3506 = vmatprep.subr.bf16.mxu0 0
    %3507 = vmatpush1.bf16.msra.mxu0 %v3472
    %3508 = vmatprep.subr.bf16.mxu0 0
    %3509 = vmatpush1.bf16.msra.mxu0 %v3473
    %3510 = vmatprep.subr.bf16.mxu0 0
    %3511 = vmatpush1.bf16.msra.mxu0 %v3474
    %3512 = vmatprep.subr.bf16.mxu0 0
    %3513 = vmatpush1.bf16.msra.mxu0 %v3475
    %3514 = vmatprep.subr.bf16.mxu0 0
    %3515 = vmatpush1.bf16.msra.mxu0 %v3476
    %3516 = vmatprep.subr.bf16.mxu0 0
    %3517 = vmatpush1.bf16.msra.mxu0 %v3477
    %3518 = vmatprep.subr.bf16.mxu0 0
    %3519 = vmatpush1.bf16.msra.mxu0 %v3478
    %3520 = vmatprep.subr.bf16.mxu0 0
    %3521 = vmatpush1.bf16.msra.mxu0 %v3479
    %3522 = vmatprep.subr.bf16.mxu0 0
    %3523 = vmatpush1.bf16.msra.mxu0 %v3480
    %3524 = vmatprep.subr.bf16.mxu0 0
    %3525 = vmatpush1.bf16.msra.mxu0 %v3481
    %3526 = vmatprep.subr.bf16.mxu0 0
    %3527 = vmatpush1.bf16.msra.mxu0 %v3482
    %3528 = vmatprep.subr.bf16.mxu0 0
    %3529 = vmatpush1.bf16.msra.mxu0 %v3483
    %3530 = vmatprep.subr.bf16.mxu0 0
    %3531 = vmatpush1.bf16.msra.mxu0 %v3484
    %3532 = vmatprep.subr.bf16.mxu0 0
    %3533 = vmatpush1.bf16.msra.mxu0 %v3485
    %3534 = vmatprep.mubr.bf16.mxu0 %v3396
    %3535 = vmatmul.mubr.bf16.gmra.mrb[0].mxu0 %v3395
    %v3536 = vpop.f32.mrb[0].mxu0
    %v3537 = vadd.f32 %v3404, %v3536
    %v3538 = vpop.f32.mrb[0].mxu0
    %v3539 = vpop.f32.mrb[0].mxu0
    %v3540 = vadd.f32 %v3404, %v3539
    %v3541 = vpop.f32.mrb[0].mxu0
    %3542 = vmatprep.mubr.bf16.mxu0 %v3398
    %3543 = vmatmul.mubr.bf16.gmra.mrb[0].mxu0 %v3397
    %v3544 = vpop.f32.mrb[0].mxu0
    %v3545 = vadd.f32 %v3404, %v3544
    %v3546 = vpop.f32.mrb[0].mxu0
    %v3547 = vpop.f32.mrb[0].mxu0
    %v3548 = vadd.f32 %v3404, %v3547
    %v3549 = vpop.f32.mrb[0].mxu0
    %3550 = vdwg.mxu0
    %v3551 = vld [vmem:[%s7] sm:$0xff]
    %v3552 = vld [vmem:[%s7 + $0x8] sm:$0xff]
    %v3553 = vld [vmem:[%s7 + $0x10] sm:$0xff]
    %v3554 = vld [vmem:[%s7 + $0x18] sm:$0xff]
    %3556 = vset.pattern.permute.xlu0 0
    %3557 = vperm.xlu0 %3556, %v3551
    %v3558 = vpop.permute.xlu0 %3557
    %3561 = vset.pattern.permute.xlu0 0
    %3562 = vperm.xlu0 %3561, %v3552
    %v3563 = vpop.permute.xlu0 %3562
    %3566 = vset.pattern.permute.xlu0 0
    %3567 = vperm.xlu0 %3566, %v3553
    %v3568 = vpop.permute.xlu0 %3567
    %3571 = vset.pattern.permute.xlu0 0
    %3572 = vperm.xlu0 %3571, %v3554
    %v3573 = vpop.permute.xlu0 %3572
    %v3575 = vmul.f32 %v3537, %v3558
    %v3576 = vmul.f32 %v3540, %v3563
    %v3577 = vmul.f32 %v3545, %v3568
    %v3578 = vmul.f32 %v3548, %v3573
    %3579 = vst.msk [vmem:[%s67] sm:$0xff] %vm837, %v3575
    %3580 = vst.msk [vmem:[%s67 + $0x8] sm:$0xff] %vm837, %v3576
    %3581 = vst.msk [vmem:[%s67 + $0x10] sm:$0xff] %vm837, %v3577
    %3582 = vst.msk [vmem:[%s67 + $0x18] sm:$0xff] %vm837, %v3578
    // Predicated region
    $region241: #{gsgm_forward.7} parent=1 // pred_check
      _
    $region242: #{gsgm_forward.7} parent=1 // pred_check_branch
      %3584 = sbr.rel (0) target = $region244
    $region243: #{gsgm_forward.7} parent=1 // pred_region
      _
    $region244: #{gsgm_forward.7} parent=1 // pred_fallthru
      _
    // Predicated region
    $region245: #{gsgm_forward.7} parent=1 // pred_check
      _
    $region246: #{gsgm_forward.7} parent=1 // pred_check_branch
      %3586 = sbr.rel (0) target = $region248
    $region247: #{gsgm_forward.7} parent=1 // pred_region
      _
    $region248: #{gsgm_forward.7} parent=1 // pred_fallthru
      _
    %3587 = vsyncpa [#allocation3], 1
    %3588 = vsyncpa [#allocation5], 1
    %3589 = vsyncpa [#allocation8], 1
    %3590 = vsyncpa [#allocation11], 1
    %3591 = vsyncpa [#allocation14], 1
    %3592 = vsyncpa [#allocation17], 1
    %3593 = vsyncpa [#allocation20], 1
    %3594 = vsyncpa [#allocation23], 1
    %3595 = vsyncpa [#allocation26], 1
    %3596 = vsyncpa [#allocation29], 1
    %3597 = vsyncpa [#allocation32], 1
    %3598 = vsyncpa [#allocation35], 1
    %3599 = vsyncpa [#allocation38], 1

// kernel: gsgm_forward.5
$region0: #{gsgm_forward.5}
  #allocation0 [shape = 'u32[]', space=smem, size = 0x4, offset = 0x4, fixed_abs, tag = 'smem constant byte address 0x4 - core index']
  #allocation1 [shape = 'u32[144,128]{1,0:T(1,128)}', space=vmem, size = 0x12000, scoped, tag = 'internal scratch']
  %s0 = inlined_call_operand.smem [shape: u32[34], index: -1, kind: input, shape index: {}]
  %s1 = sld [smem:[%s0]]
  %s2 = scalar_lea.smem %s0, 1
  %s3 = sld [smem:[%s2]]
  %s4 = scalar_lea.smem %s0, 2
  %s5 = sld [smem:[%s4]]
  %s6 = scalar_lea.smem %s0, 3
  %s7 = sld [smem:[%s6]]
  %s8 = scalar_lea.smem %s0, 4
  %s9 = sld [smem:[%s8]]
  %s10 = scalar_lea.smem %s0, 5
  %s11 = sld [smem:[%s10]]
  %s12 = scalar_lea.smem %s0, 6
  %s13 = sld [smem:[%s12]]
  %s14 = scalar_lea.smem %s0, 7
  %s15 = sld [smem:[%s14]]
  %s16 = scalar_lea.smem %s0, 8
  %s17 = sld [smem:[%s16]]
  %s18 = scalar_lea.smem %s0, 9
  %s19 = sld [smem:[%s18]]
  %s20 = scalar_lea.smem %s0, 10
  %s21 = sld [smem:[%s20]]
  %s22 = scalar_lea.smem %s0, 11
  %s23 = sld [smem:[%s22]]
  %s24 = scalar_lea.smem %s0, 12
  %s25 = sld [smem:[%s24]]
  %s26 = scalar_lea.smem %s0, 13
  %s27 = sld [smem:[%s26]]
  %s28 = scalar_lea.smem %s0, 14
  %s29 = sld [smem:[%s28]]
  %s30 = scalar_lea.smem %s0, 15
  %s31 = sld [smem:[%s30]]
  %s32 = scalar_lea.smem %s0, 16
  %s33 = sld [smem:[%s32]]
  %s34 = scalar_lea.smem %s0, 17
  %s35 = sld [smem:[%s34]]
  %s36 = scalar_lea.smem %s0, 18
  %s37 = sld [smem:[%s36]]
  %s38 = scalar_lea.smem %s0, 19
  %s39 = sld [smem:[%s38]]
  %s40 = scalar_lea.smem %s0, 20
  %s41 = sld [smem:[%s40]]
  %s42 = scalar_lea.smem %s0, 21
  %s43 = sld [smem:[%s42]]
  %s44 = scalar_lea.smem %s0, 22
  %s45 = sld [smem:[%s44]]
  %s46 = scalar_lea.smem %s0, 23
  %s47 = sld [smem:[%s46]]
  %s48 = scalar_lea.smem %s0, 24
  %s49 = sld [smem:[%s48]]
  %s50 = scalar_lea.smem %s0, 25
  %s51 = sld [smem:[%s50]]
  %s52 = scalar_lea.smem %s0, 26
  %s53 = sld [smem:[%s52]]
  %s54 = scalar_lea.smem %s0, 27
  %s55 = sld [smem:[%s54]]
  %s56 = scalar_lea.smem %s0, 28
  %s57 = sld [smem:[%s56]]
  %s58 = scalar_lea.smem %s0, 29
  %s59 = sld [smem:[%s58]]
  %s60 = scalar_lea.smem %s0, 30
  %s61 = sld [smem:[%s60]]
  %s62 = scalar_lea.smem %s0, 31
  %s63 = sld [smem:[%s62]]
  %s64 = scalar_lea.smem %s0, 32
  %s65 = sld [smem:[%s64]]
  %s66 = scalar_lea.smem %s0, 33
  %s67 = sld [smem:[%s66]]
  %s68 = sld [smem:[#allocation0]]
  $region161: #{gsgm_forward.5} parent=0
    _
  %s70 = ssub.s32 1, %s68
  %s71 = scalar_select 0, %s70, %s68
  $region1: #{gsgm_forward.5} parent=0
    #allocation2 [shape = 'u8[512]{0}', space=vmem, size = 0x400, scoped, tag = 'input window, operand 27, single buffered']
    #allocation3 [shape = 's32[1]{0}', space=sflag, size = 0x4, scoped, tag = 'scoped memory for gsgm_forward.5']
    #allocation4 [shape = 's32[1]{0}', space=sflag, size = 0x4, scoped, tag = 'scoped memory for gsgm_forward.5']
    #allocation5 [shape = 'u8[512]{0}', space=vmem, size = 0x400, scoped, tag = 'input window, operand 28, single buffered']
    #allocation6 [shape = 's32[1]{0}', space=sflag, size = 0x4, scoped, tag = 'scoped memory for gsgm_forward.5']
    #allocation7 [shape = 'u8[512]{0}', space=vmem, size = 0x400, scoped, tag = 'input window, operand 32, single buffered']
    #allocation8 [shape = 'u8[2048]{0}', space=vmem, size = 0x800, scoped, tag = 'output window, operand 0, single buffered']
    %72 = vsyncpa [#allocation3], 0
    %73 = vsyncpa [#allocation6], 0
    %74 = vsyncpa [#allocation4], 0
    // Predicated region
    $region2: #{gsgm_forward.5} parent=1 // pred_check
      _
    $region3: #{gsgm_forward.5} parent=1 // pred_check_branch
      %76 = sbr.rel (0) target = $region5
    $region4: #{gsgm_forward.5} parent=1 // pred_region
      _
    $region5: #{gsgm_forward.5} parent=1 // pred_fallthru
      _
    // Predicated region
    $region6: #{gsgm_forward.5} parent=1 // pred_check
      _
    $region7: #{gsgm_forward.5} parent=1 // pred_check_branch
      %78 = sbr.rel (0) target = $region9
    $region8: #{gsgm_forward.5} parent=1 // pred_region
      _
    $region9: #{gsgm_forward.5} parent=1 // pred_fallthru
      _
    // Predicated region
    $region10: #{gsgm_forward.5} parent=1 // pred_check
      _
    $region11: #{gsgm_forward.5} parent=1 // pred_check_branch
      %80 = sbr.rel (0) target = $region13
    $region12: #{gsgm_forward.5} parent=1 // pred_region
      _
    $region13: #{gsgm_forward.5} parent=1 // pred_fallthru
      _
    // Predicated region
    $region14: #{gsgm_forward.5} parent=1 // pred_check
      _
    $region15: #{gsgm_forward.5} parent=1 // pred_check_branch
      %82 = sbr.rel (0) target = $region17
    $region16: #{gsgm_forward.5} parent=1 // pred_region
      _
    $region17: #{gsgm_forward.5} parent=1 // pred_fallthru
      _
    // Predicated region
    $region18: #{gsgm_forward.5} parent=1 // pred_check
      _
    $region19: #{gsgm_forward.5} parent=1 // pred_check_branch
      %84 = sbr.rel (0) target = $region21
    $region20: #{gsgm_forward.5} parent=1 // pred_region
      _
    $region21: #{gsgm_forward.5} parent=1 // pred_fallthru
      _
    // Predicated region
    $region22: #{gsgm_forward.5} parent=1 // pred_check
      _
    $region23: #{gsgm_forward.5} parent=1 // pred_check_branch
      %86 = sbr.rel (0) target = $region25
    $region24: #{gsgm_forward.5} parent=1 // pred_region
      _
    $region25: #{gsgm_forward.5} parent=1 // pred_fallthru
      _
    // Predicated region
    $region26: #{gsgm_forward.5} parent=1 // pred_check
      _
    $region27: #{gsgm_forward.5} parent=1 // pred_check_branch
      %88 = sbr.rel (0) target = $region29
    $region28: #{gsgm_forward.5} parent=1 // pred_region
      _
    $region29: #{gsgm_forward.5} parent=1 // pred_fallthru
      _
    // Predicated region
    $region30: #{gsgm_forward.5} parent=1 // pred_check
      _
    $region31: #{gsgm_forward.5} parent=1 // pred_check_branch
      %90 = sbr.rel (0) target = $region33
    $region32: #{gsgm_forward.5} parent=1 // pred_region
      _
    $region33: #{gsgm_forward.5} parent=1 // pred_fallthru
      _
    // Predicated region
    $region34: #{gsgm_forward.5} parent=1 // pred_check
      _
    $region35: #{gsgm_forward.5} parent=1 // pred_check_branch
      %92 = sbr.rel (0) target = $region37
    $region36: #{gsgm_forward.5} parent=1 // pred_region
      _
    $region37: #{gsgm_forward.5} parent=1 // pred_fallthru
      _
    // Predicated region
    $region38: #{gsgm_forward.5} parent=1 // pred_check
      _
    $region39: #{gsgm_forward.5} parent=1 // pred_check_branch
      %94 = sbr.rel (0) target = $region41
    $region40: #{gsgm_forward.5} parent=1 // pred_region
      _
    $region41: #{gsgm_forward.5} parent=1 // pred_fallthru
      _
    // Predicated region
    $region42: #{gsgm_forward.5} parent=1 // pred_check
      _
    $region43: #{gsgm_forward.5} parent=1 // pred_check_branch
      %96 = sbr.rel (0) target = $region45
    $region44: #{gsgm_forward.5} parent=1 // pred_region
      _
    $region45: #{gsgm_forward.5} parent=1 // pred_fallthru
      _
    // Predicated region
    $region46: #{gsgm_forward.5} parent=1 // pred_check
      _
    $region47: #{gsgm_forward.5} parent=1 // pred_check_branch
      %98 = sbr.rel (0) target = $region49
    $region48: #{gsgm_forward.5} parent=1 // pred_region
      _
    $region49: #{gsgm_forward.5} parent=1 // pred_fallthru
      _
    // Predicated region
    $region50: #{gsgm_forward.5} parent=1 // pred_check
      _
    $region51: #{gsgm_forward.5} parent=1 // pred_check_branch
      %100 = sbr.rel (0) target = $region53
    $region52: #{gsgm_forward.5} parent=1 // pred_region
      _
    $region53: #{gsgm_forward.5} parent=1 // pred_fallthru
      _
    // Predicated region
    $region54: #{gsgm_forward.5} parent=1 // pred_check
      _
    $region55: #{gsgm_forward.5} parent=1 // pred_check_branch
      %102 = sbr.rel (0) target = $region57
    $region56: #{gsgm_forward.5} parent=1 // pred_region
      _
    $region57: #{gsgm_forward.5} parent=1 // pred_fallthru
      _
    // Predicated region
    $region58: #{gsgm_forward.5} parent=1 // pred_check
      _
    $region59: #{gsgm_forward.5} parent=1 // pred_check_branch
      %104 = sbr.rel (0) target = $region61
    $region60: #{gsgm_forward.5} parent=1 // pred_region
      _
    $region61: #{gsgm_forward.5} parent=1 // pred_fallthru
      _
    // Predicated region
    $region62: #{gsgm_forward.5} parent=1 // pred_check
      _
    $region63: #{gsgm_forward.5} parent=1 // pred_check_branch
      %106 = sbr.rel (0) target = $region65
    $region64: #{gsgm_forward.5} parent=1 // pred_region
      _
    $region65: #{gsgm_forward.5} parent=1 // pred_fallthru
      _
    // Predicated region
    $region66: #{gsgm_forward.5} parent=1 // pred_check
      _
    $region67: #{gsgm_forward.5} parent=1 // pred_check_branch
      %108 = sbr.rel (0) target = $region69
    $region68: #{gsgm_forward.5} parent=1 // pred_region
      _
    $region69: #{gsgm_forward.5} parent=1 // pred_fallthru
      _
    // Predicated region
    $region70: #{gsgm_forward.5} parent=1 // pred_check
      _
    $region71: #{gsgm_forward.5} parent=1 // pred_check_branch
      %110 = sbr.rel (0) target = $region73
    $region72: #{gsgm_forward.5} parent=1 // pred_region
      _
    $region73: #{gsgm_forward.5} parent=1 // pred_fallthru
      _
    // Predicated region
    $region74: #{gsgm_forward.5} parent=1 // pred_check
      _
    $region75: #{gsgm_forward.5} parent=1 // pred_check_branch
      %112 = sbr.rel (0) target = $region77
    $region76: #{gsgm_forward.5} parent=1 // pred_region
      _
    $region77: #{gsgm_forward.5} parent=1 // pred_fallthru
      _
    // Predicated region
    $region78: #{gsgm_forward.5} parent=1 // pred_check
      _
    $region79: #{gsgm_forward.5} parent=1 // pred_check_branch
      %114 = sbr.rel (0) target = $region81
    $region80: #{gsgm_forward.5} parent=1 // pred_region
      _
    $region81: #{gsgm_forward.5} parent=1 // pred_fallthru
      _
    // Predicated region
    $region82: #{gsgm_forward.5} parent=1 // pred_check
      _
    $region83: #{gsgm_forward.5} parent=1 // pred_check_branch
      %116 = sbr.rel (0) target = $region85
    $region84: #{gsgm_forward.5} parent=1 // pred_region
      _
    $region85: #{gsgm_forward.5} parent=1 // pred_fallthru
      _
    // Predicated region
    $region86: #{gsgm_forward.5} parent=1 // pred_check
      _
    $region87: #{gsgm_forward.5} parent=1 // pred_check_branch
      %118 = sbr.rel (0) target = $region89
    $region88: #{gsgm_forward.5} parent=1 // pred_region
      _
    $region89: #{gsgm_forward.5} parent=1 // pred_fallthru
      _
    // Predicated region
    $region90: #{gsgm_forward.5} parent=1 // pred_check
      _
    $region91: #{gsgm_forward.5} parent=1 // pred_check_branch
      %120 = sbr.rel (0) target = $region93
    $region92: #{gsgm_forward.5} parent=1 // pred_region
      _
    $region93: #{gsgm_forward.5} parent=1 // pred_fallthru
      _
    // Predicated region
    $region94: #{gsgm_forward.5} parent=1 // pred_check
      _
    $region95: #{gsgm_forward.5} parent=1 // pred_check_branch
      %122 = sbr.rel (0) target = $region97
    $region96: #{gsgm_forward.5} parent=1 // pred_region
      _
    $region97: #{gsgm_forward.5} parent=1 // pred_fallthru
      _
    // Predicated region
    $region98: #{gsgm_forward.5} parent=1 // pred_check
      _
    $region99: #{gsgm_forward.5} parent=1 // pred_check_branch
      %124 = sbr.rel (0) target = $region101
    $region100: #{gsgm_forward.5} parent=1 // pred_region
      _
    $region101: #{gsgm_forward.5} parent=1 // pred_fallthru
      _
    // Predicated region
    $region102: #{gsgm_forward.5} parent=1 // pred_check
      _
    $region103: #{gsgm_forward.5} parent=1 // pred_check_branch
      %126 = sbr.rel (0) target = $region105
    $region104: #{gsgm_forward.5} parent=1 // pred_region
      _
    $region105: #{gsgm_forward.5} parent=1 // pred_fallthru
      _
    // Predicated region
    $region106: #{gsgm_forward.5} parent=1 // pred_check
      _
    $region107: #{gsgm_forward.5} parent=1 // pred_check_branch
      %128 = sbr.rel (0) target = $region109
    $region108: #{gsgm_forward.5} parent=1 // pred_region
      _
    $region109: #{gsgm_forward.5} parent=1 // pred_fallthru
      _
    // Predicated region
    $region110: #{gsgm_forward.5} parent=1 // pred_check
      _
    $region111: #{gsgm_forward.5} parent=1 // pred_check_branch
      %130 = sbr.rel (0) target = $region113
    $region112: #{gsgm_forward.5} parent=1 // pred_region
      %s132 = ssub.s32 16, 16
      %133 = vsyncadd [#allocation3], %s132
      %s135 = sshll.u32 [#allocation2], 4
      %s136 = int_to_ptr.vmem [resolvable:$true] %s135
      %138 = dma.hbm_to_vmem [thread:$0]  %s55, 16, %s136, [#allocation3]
    $region113: #{gsgm_forward.5} parent=1 // pred_fallthru
      _
    // Predicated region
    $region114: #{gsgm_forward.5} parent=1 // pred_check
      _
    $region115: #{gsgm_forward.5} parent=1 // pred_check_branch
      %140 = sbr.rel (0) target = $region117
    $region116: #{gsgm_forward.5} parent=1 // pred_region
      %s142 = ssub.s32 16, 16
      %143 = vsyncadd [#allocation6], %s142
      %s145 = sshll.u32 [#allocation5], 4
      %s146 = int_to_ptr.vmem [resolvable:$true] %s145
      %148 = dma.hbm_to_vmem [thread:$0]  %s57, 16, %s146, [#allocation6]
    $region117: #{gsgm_forward.5} parent=1 // pred_fallthru
      _
    // Predicated region
    $region118: #{gsgm_forward.5} parent=1 // pred_check
      _
    $region119: #{gsgm_forward.5} parent=1 // pred_check_branch
      %150 = sbr.rel (0) target = $region121
    $region120: #{gsgm_forward.5} parent=1 // pred_region
      _
    $region121: #{gsgm_forward.5} parent=1 // pred_fallthru
      _
    // Predicated region
    $region122: #{gsgm_forward.5} parent=1 // pred_check
      _
    $region123: #{gsgm_forward.5} parent=1 // pred_check_branch
      %152 = sbr.rel (0) target = $region125
    $region124: #{gsgm_forward.5} parent=1 // pred_region
      _
    $region125: #{gsgm_forward.5} parent=1 // pred_fallthru
      _
    // Predicated region
    $region126: #{gsgm_forward.5} parent=1 // pred_check
      _
    $region127: #{gsgm_forward.5} parent=1 // pred_check_branch
      %154 = sbr.rel (0) target = $region129
    $region128: #{gsgm_forward.5} parent=1 // pred_region
      _
    $region129: #{gsgm_forward.5} parent=1 // pred_fallthru
      _
    // Predicated region
    $region130: #{gsgm_forward.5} parent=1 // pred_check
      _
    $region131: #{gsgm_forward.5} parent=1 // pred_check_branch
      %156 = sbr.rel (0) target = $region133
    $region132: #{gsgm_forward.5} parent=1 // pred_region
      %s158 = ssub.s32 16, 16
      %159 = vsyncadd [#allocation6], %s158
      %s161 = sshll.u32 [#allocation7], 4
      %s162 = int_to_ptr.vmem [resolvable:$true] %s161
      %164 = dma.hbm_to_vmem [thread:$0]  %s65, 16, %s162, [#allocation6]
    $region133: #{gsgm_forward.5} parent=1 // pred_fallthru
      _
    // Predicated region
    $region134: #{gsgm_forward.5} parent=1 // pred_check
      _
    $region135: #{gsgm_forward.5} parent=1 // pred_check_branch
      %166 = sbr.rel (0) target = $region137
    $region136: #{gsgm_forward.5} parent=1 // pred_region
      %167 = dma.done [#allocation3], 16
    $region137: #{gsgm_forward.5} parent=1 // pred_fallthru
      _
    // Predicated region
    $region138: #{gsgm_forward.5} parent=1 // pred_check
      _
    $region139: #{gsgm_forward.5} parent=1 // pred_check_branch
      %169 = sbr.rel (0) target = $region141
    $region140: #{gsgm_forward.5} parent=1 // pred_region
      %170 = dma.done [#allocation6], 16
    $region141: #{gsgm_forward.5} parent=1 // pred_fallthru
      _
    // Predicated region
    $region142: #{gsgm_forward.5} parent=1 // pred_check
      _
    $region143: #{gsgm_forward.5} parent=1 // pred_check_branch
      %172 = sbr.rel (0) target = $region145
    $region144: #{gsgm_forward.5} parent=1 // pred_region
      %173 = dma.done [#allocation6], 16
    $region145: #{gsgm_forward.5} parent=1 // pred_fallthru
      _
    %v175 = vld [vmem:[%s1] sm:$0xf]
    %v176 = vld [vmem:[%s3] sm:$0xf]
    %v177 = vld [vmem:[%s5] sm:$0xf]
    %v178 = vld [vmem:[%s9] sm:$0xff]
    %v179 = vld [vmem:[%s9 + $0x8] sm:$0xff]
    %v180 = vld [vmem:[%s9 + $0x10] sm:$0xff]
    %v181 = vld [vmem:[%s9 + $0x18] sm:$0xff]
    %v182 = vld [vmem:[%s9 + $0x20] sm:$0xff]
    %v183 = vld [vmem:[%s9 + $0x28] sm:$0xff]
    %v184 = vld [vmem:[%s9 + $0x30] sm:$0xff]
    %v185 = vld [vmem:[%s9 + $0x38] sm:$0xff]
    %v186 = vpack.c.bf16 %v176, %v176
    %v187 = vld [vmem:[%s11] sm:$0x3]
    %v189 = vlaneseq
    %v190 = vshrl.u32 %v189, 7
    %v191 = vsub.s32 0, %v190
    %v192 = vrot.slane %v187, %v191
    %v193 = vlaneseq
    %v194 = vshrl.u32 %v193, 7
    %v195 = vsub.s32 1, %v194
    %v196 = vrot.slane %v187, %v195
    %v207 = vunpack.c.l.b16 %v178
    %v208 = vunpack.c.h.b16 %v178
    %v209 = vunpack.c.l.b16 %v179
    %v210 = vunpack.c.h.b16 %v179
    %v211 = vunpack.c.l.b16 %v180
    %v212 = vunpack.c.h.b16 %v180
    %v213 = vunpack.c.l.b16 %v181
    %v214 = vunpack.c.h.b16 %v181
    %v215 = vunpack.c.l.b16 %v182
    %v216 = vunpack.c.h.b16 %v182
    %v217 = vunpack.c.l.b16 %v183
    %v218 = vunpack.c.h.b16 %v183
    %v219 = vunpack.c.l.b16 %v184
    %v220 = vunpack.c.h.b16 %v184
    %v221 = vunpack.c.l.b16 %v185
    %v222 = vunpack.c.h.b16 %v185
    %v223 = vpack.c.b16 %v209, %v207
    %v224 = vpack.c.b16 %v210, %v208
    %v225 = vpack.c.b16 %v213, %v211
    %v226 = vpack.c.b16 %v214, %v212
    %v227 = vpack.c.b16 %v217, %v215
    %v228 = vpack.c.b16 %v218, %v216
    %v229 = vpack.c.b16 %v221, %v219
    %v230 = vpack.c.b16 %v222, %v220
    %vm239 = vcmask 523264
    %v241 = vsel %vm239, %v186, 0
    %243 = vmatprep.subr.bf16.mxu0 %v224
    %244 = vmatpush1.bf16.msra.mxu0 %v223
    %245 = vmatprep.subr.bf16.mxu0 %v226
    %246 = vmatpush1.bf16.msra.mxu0 %v225
    %247 = vmatprep.subr.bf16.mxu0 %v228
    %248 = vmatpush1.bf16.msra.mxu0 %v227
    %249 = vmatprep.subr.bf16.mxu0 %v230
    %250 = vmatpush1.bf16.msra.mxu0 %v229
    %251 = vmatprep.subr.bf16.mxu0 0
    %252 = vmatpush1.bf16.msra.mxu0 0
    %253 = vmatprep.subr.bf16.mxu0 0
    %254 = vmatpush1.bf16.msra.mxu0 0
    %255 = vmatprep.subr.bf16.mxu0 0
    %256 = vmatpush1.bf16.msra.mxu0 0
    %257 = vmatprep.subr.bf16.mxu0 0
    %258 = vmatpush1.bf16.msra.mxu0 0
    %259 = vmatprep.subr.bf16.mxu0 0
    %260 = vmatpush1.bf16.msra.mxu0 0
    %261 = vmatprep.subr.bf16.mxu0 0
    %262 = vmatpush1.bf16.msra.mxu0 0
    %263 = vmatprep.subr.bf16.mxu0 0
    %264 = vmatpush1.bf16.msra.mxu0 0
    %265 = vmatprep.subr.bf16.mxu0 0
    %266 = vmatpush1.bf16.msra.mxu0 0
    %267 = vmatprep.subr.bf16.mxu0 0
    %268 = vmatpush1.bf16.msra.mxu0 0
    %269 = vmatprep.subr.bf16.mxu0 0
    %270 = vmatpush1.bf16.msra.mxu0 0
    %271 = vmatprep.subr.bf16.mxu0 0
    %272 = vmatpush1.bf16.msra.mxu0 0
    %273 = vmatprep.subr.bf16.mxu0 0
    %274 = vmatpush1.bf16.msra.mxu0 0
    %275 = vmatprep.mubr.bf16.mxu0 0
    %276 = vmatmul.mubr.bf16.gmra.mrb[0].mxu0 %v241
    %v277 = vpop.f32.mrb[0].mxu0
    %v278 = vadd.f32 %v192, %v277
    %v279 = vpop.f32.mrb[0].mxu0
    %v280 = vadd.f32 %v196, %v279
    %v281 = vpop.f32.mrb[0].mxu0
    %v282 = vpop.f32.mrb[0].mxu0
    %283 = vdwg.mxu0
    %vm284 = vcmp.gt.f32.partialorder %v278, 0.0
    %vm285 = vcmp.gt.f32.partialorder %v280, 0.0
    %v286 = vmul.f32 %v278, 0.01
    %v287 = vmul.f32 %v280, 0.01
    %v288 = vsel %vm284, %v278, %v286
    %v289 = vsel %vm285, %v280, %v287
    %v290 = vld [vmem:[%s13] sm:$0xf]
    %v291 = vld [vmem:[%s13 + $0x4] sm:$0xf]
    %v292 = vld [vmem:[%s13 + $0x8] sm:$0xf]
    %v293 = vld [vmem:[%s13 + $0xc] sm:$0xf]
    %v294 = vld [vmem:[%s13 + $0x10] sm:$0xf]
    %v295 = vld [vmem:[%s13 + $0x14] sm:$0xf]
    %v296 = vld [vmem:[%s13 + $0x18] sm:$0xf]
    %v297 = vld [vmem:[%s13 + $0x1c] sm:$0xf]
    %v298 = vld [vmem:[%s13 + $0x20] sm:$0xf]
    %v299 = vld [vmem:[%s13 + $0x24] sm:$0xf]
    %v300 = vld [vmem:[%s13 + $0x28] sm:$0xf]
    %v301 = vld [vmem:[%s13 + $0x2c] sm:$0xf]
    %v302 = vld [vmem:[%s13 + $0x30] sm:$0xf]
    %v303 = vld [vmem:[%s13 + $0x34] sm:$0xf]
    %v304 = vld [vmem:[%s13 + $0x38] sm:$0xf]
    %v305 = vld [vmem:[%s13 + $0x3c] sm:$0xf]
    %v306 = vld [vmem:[%s13 + $0x40] sm:$0xf]
    %v307 = vld [vmem:[%s13 + $0x44] sm:$0xf]
    %v308 = vld [vmem:[%s13 + $0x48] sm:$0xf]
    %v309 = vld [vmem:[%s13 + $0x4c] sm:$0xf]
    %v310 = vld [vmem:[%s13 + $0x50] sm:$0xf]
    %v311 = vld [vmem:[%s13 + $0x54] sm:$0xf]
    %v312 = vld [vmem:[%s13 + $0x58] sm:$0xf]
    %v313 = vld [vmem:[%s13 + $0x5c] sm:$0xf]
    %v314 = vld [vmem:[%s13 + $0x60] sm:$0xf]
    %v315 = vld [vmem:[%s13 + $0x64] sm:$0xf]
    %v316 = vld [vmem:[%s13 + $0x68] sm:$0xf]
    %v317 = vld [vmem:[%s13 + $0x6c] sm:$0xf]
    %v318 = vld [vmem:[%s13 + $0x70] sm:$0xf]
    %v319 = vld [vmem:[%s13 + $0x74] sm:$0xf]
    %v320 = vld [vmem:[%s13 + $0x78] sm:$0xf]
    %v321 = vld [vmem:[%s13 + $0x7c] sm:$0xf]
    %v322 = vpack.c.bf16 %v288, %v288
    %v323 = vpack.c.bf16 %v289, %v289
    %v324 = vld [vmem:[%s15] sm:$0x1]
    %v326 = vlaneseq
    %v327 = vshrl.u32 %v326, 7
    %v328 = vsub.s32 0, %v327
    %v329 = vrot.slane %v324, %v328
    %v363 = vunpack.c.l.b16 %v290
    %v364 = vunpack.c.l.b16 %v291
    %v365 = vunpack.c.l.b16 %v292
    %v366 = vunpack.c.l.b16 %v293
    %v367 = vunpack.c.l.b16 %v294
    %v368 = vunpack.c.l.b16 %v295
    %v369 = vunpack.c.l.b16 %v296
    %v370 = vunpack.c.l.b16 %v297
    %v371 = vunpack.c.l.b16 %v298
    %v372 = vunpack.c.l.b16 %v299
    %v373 = vunpack.c.l.b16 %v300
    %v374 = vunpack.c.l.b16 %v301
    %v375 = vunpack.c.l.b16 %v302
    %v376 = vunpack.c.l.b16 %v303
    %v377 = vunpack.c.l.b16 %v304
    %v378 = vunpack.c.l.b16 %v305
    %v379 = vunpack.c.l.b16 %v306
    %v380 = vunpack.c.l.b16 %v307
    %v381 = vunpack.c.l.b16 %v308
    %v382 = vunpack.c.l.b16 %v309
    %v383 = vunpack.c.l.b16 %v310
    %v384 = vunpack.c.l.b16 %v311
    %v385 = vunpack.c.l.b16 %v312
    %v386 = vunpack.c.l.b16 %v313
    %v387 = vunpack.c.l.b16 %v314
    %v388 = vunpack.c.l.b16 %v315
    %v389 = vunpack.c.l.b16 %v316
    %v390 = vunpack.c.l.b16 %v317
    %v391 = vunpack.c.l.b16 %v318
    %v392 = vunpack.c.l.b16 %v319
    %v393 = vunpack.c.l.b16 %v320
    %v394 = vunpack.c.l.b16 %v321
    %v395 = vpack.c.b16 %v364, %v363
    %v396 = vpack.c.b16 %v366, %v365
    %v397 = vpack.c.b16 %v368, %v367
    %v398 = vpack.c.b16 %v370, %v369
    %v399 = vpack.c.b16 %v372, %v371
    %v400 = vpack.c.b16 %v374, %v373
    %v401 = vpack.c.b16 %v376, %v375
    %v402 = vpack.c.b16 %v378, %v377
    %v403 = vpack.c.b16 %v380, %v379
    %v404 = vpack.c.b16 %v382, %v381
    %v405 = vpack.c.b16 %v384, %v383
    %v406 = vpack.c.b16 %v386, %v385
    %v407 = vpack.c.b16 %v388, %v387
    %v408 = vpack.c.b16 %v390, %v389
    %v409 = vpack.c.b16 %v392, %v391
    %v410 = vpack.c.b16 %v394, %v393
    %427 = vmatprep.subr.bf16.mxu0 0
    %428 = vmatpush1.bf16.msra.mxu0 %v395
    %429 = vmatprep.subr.bf16.mxu0 0
    %430 = vmatpush1.bf16.msra.mxu0 %v396
    %431 = vmatprep.subr.bf16.mxu0 0
    %432 = vmatpush1.bf16.msra.mxu0 %v397
    %433 = vmatprep.subr.bf16.mxu0 0
    %434 = vmatpush1.bf16.msra.mxu0 %v398
    %435 = vmatprep.subr.bf16.mxu0 0
    %436 = vmatpush1.bf16.msra.mxu0 %v399
    %437 = vmatprep.subr.bf16.mxu0 0
    %438 = vmatpush1.bf16.msra.mxu0 %v400
    %439 = vmatprep.subr.bf16.mxu0 0
    %440 = vmatpush1.bf16.msra.mxu0 %v401
    %441 = vmatprep.subr.bf16.mxu0 0
    %442 = vmatpush1.bf16.msra.mxu0 %v402
    %443 = vmatprep.subr.bf16.mxu0 0
    %444 = vmatpush1.bf16.msra.mxu0 %v403
    %445 = vmatprep.subr.bf16.mxu0 0
    %446 = vmatpush1.bf16.msra.mxu0 %v404
    %447 = vmatprep.subr.bf16.mxu0 0
    %448 = vmatpush1.bf16.msra.mxu0 %v405
    %449 = vmatprep.subr.bf16.mxu0 0
    %450 = vmatpush1.bf16.msra.mxu0 %v406
    %451 = vmatprep.subr.bf16.mxu0 0
    %452 = vmatpush1.bf16.msra.mxu0 %v407
    %453 = vmatprep.subr.bf16.mxu0 0
    %454 = vmatpush1.bf16.msra.mxu0 %v408
    %455 = vmatprep.subr.bf16.mxu0 0
    %456 = vmatpush1.bf16.msra.mxu0 %v409
    %457 = vmatprep.subr.bf16.mxu0 0
    %458 = vmatpush1.bf16.msra.mxu0 %v410
    %459 = vmatprep.mubr.bf16.mxu0 %v323
    %460 = vmatmul.mubr.bf16.gmra.mrb[0].mxu0 %v322
    %v461 = vpop.f32.mrb[0].mxu0
    %v462 = vadd.f32 %v329, %v461
    %v463 = vpop.f32.mrb[0].mxu0
    %v464 = vpop.f32.mrb[0].mxu0
    %v465 = vpop.f32.mrb[0].mxu0
    %466 = vdwg.mxu0
    %v467 = vld [vmem:[%s17] sm:$0x3]
    %v468 = vpack.c.bf16 %v175, %v175
    %v469 = vld [vmem:[%s19] sm:$0x1]
    %v471 = vlaneseq
    %v472 = vshrl.u32 %v471, 7
    %v473 = vsub.s32 0, %v472
    %v474 = vrot.slane %v469, %v473
    %vm476 = vcmask 31744
    %v478 = vsel %vm476, %v468, 0
    %vm480 = vcmask 1041408
    %v482 = vsel %vm480, %v467, 0
    %484 = vmatprep.subr.bf16.mxu0 0
    %485 = vmatpush1.bf16.msra.mxu0 %v482
    %486 = vmatprep.subr.bf16.mxu0 0
    %487 = vmatpush1.bf16.msra.mxu0 0
    %488 = vmatprep.subr.bf16.mxu0 0
    %489 = vmatpush1.bf16.msra.mxu0 0
    %490 = vmatprep.subr.bf16.mxu0 0
    %491 = vmatpush1.bf16.msra.mxu0 0
    %492 = vmatprep.subr.bf16.mxu0 0
    %493 = vmatpush1.bf16.msra.mxu0 0
    %494 = vmatprep.subr.bf16.mxu0 0
    %495 = vmatpush1.bf16.msra.mxu0 0
    %496 = vmatprep.subr.bf16.mxu0 0
    %497 = vmatpush1.bf16.msra.mxu0 0
    %498 = vmatprep.subr.bf16.mxu0 0
    %499 = vmatpush1.bf16.msra.mxu0 0
    %500 = vmatprep.subr.bf16.mxu0 0
    %501 = vmatpush1.bf16.msra.mxu0 0
    %502 = vmatprep.subr.bf16.mxu0 0
    %503 = vmatpush1.bf16.msra.mxu0 0
    %504 = vmatprep.subr.bf16.mxu0 0
    %505 = vmatpush1.bf16.msra.mxu0 0
    %506 = vmatprep.subr.bf16.mxu0 0
    %507 = vmatpush1.bf16.msra.mxu0 0
    %508 = vmatprep.subr.bf16.mxu0 0
    %509 = vmatpush1.bf16.msra.mxu0 0
    %510 = vmatprep.subr.bf16.mxu0 0
    %511 = vmatpush1.bf16.msra.mxu0 0
    %512 = vmatprep.subr.bf16.mxu0 0
    %513 = vmatpush1.bf16.msra.mxu0 0
    %514 = vmatprep.subr.bf16.mxu0 0
    %515 = vmatpush1.bf16.msra.mxu0 0
    %516 = vmatprep.mubr.bf16.mxu0 0
    %517 = vmatmul.mubr.bf16.gmra.mrb[0].mxu0 %v478
    %v518 = vpop.f32.mrb[0].mxu0
    %v519 = vadd.f32 %v474, %v518
    %v520 = vpop.f32.mrb[0].mxu0
    %v521 = vpop.f32.mrb[0].mxu0
    %v522 = vpop.f32.mrb[0].mxu0
    %523 = vdwg.mxu0
    %v524 = vld [vmem:[%s21] sm:$0xf]
    %v525 = vld [vmem:[%s21 + $0x4] sm:$0xf]
    %v526 = vld [vmem:[%s21 + $0x8] sm:$0xf]
    %v527 = vld [vmem:[%s21 + $0xc] sm:$0xf]
    %v528 = vld [vmem:[%s21 + $0x10] sm:$0xf]
    %v529 = vld [vmem:[%s21 + $0x14] sm:$0xf]
    %v530 = vld [vmem:[%s21 + $0x18] sm:$0xf]
    %v531 = vld [vmem:[%s21 + $0x1c] sm:$0xf]
    %v532 = vld [vmem:[%s21 + $0x20] sm:$0xf]
    %v533 = vld [vmem:[%s21 + $0x24] sm:$0xf]
    %v534 = vld [vmem:[%s21 + $0x28] sm:$0xf]
    %v535 = vld [vmem:[%s21 + $0x2c] sm:$0xf]
    %v536 = vld [vmem:[%s21 + $0x30] sm:$0xf]
    %v537 = vld [vmem:[%s21 + $0x34] sm:$0xf]
    %v538 = vld [vmem:[%s21 + $0x38] sm:$0xf]
    %v539 = vld [vmem:[%s21 + $0x3c] sm:$0xf]
    %v540 = vpack.c.bf16 %v519, %v519
    %v541 = vld [vmem:[%s23] sm:$0xf]
    %v542 = vld [vmem:[%s23 + $0x4] sm:$0xf]
    %v543 = vld [vmem:[%s23 + $0x8] sm:$0xf]
    %v544 = vld [vmem:[%s23 + $0xc] sm:$0xf]
    %v545 = vld [vmem:[%s23 + $0x10] sm:$0xf]
    %v546 = vld [vmem:[%s23 + $0x14] sm:$0xf]
    %v547 = vld [vmem:[%s23 + $0x18] sm:$0xf]
    %v548 = vld [vmem:[%s23 + $0x1c] sm:$0xf]
    %v549 = vld [vmem:[%s23 + $0x20] sm:$0xf]
    %v550 = vld [vmem:[%s23 + $0x24] sm:$0xf]
    %v551 = vld [vmem:[%s23 + $0x28] sm:$0xf]
    %v552 = vld [vmem:[%s23 + $0x2c] sm:$0xf]
    %v553 = vld [vmem:[%s23 + $0x30] sm:$0xf]
    %v554 = vld [vmem:[%s23 + $0x34] sm:$0xf]
    %v555 = vld [vmem:[%s23 + $0x38] sm:$0xf]
    %v556 = vld [vmem:[%s23 + $0x3c] sm:$0xf]
    %v557 = vpack.c.bf16 %v462, %v462
    %v574 = vunpack.c.l.b16 %v541
    %v575 = vunpack.c.l.b16 %v542
    %v576 = vunpack.c.l.b16 %v543
    %v577 = vunpack.c.l.b16 %v544
    %v578 = vunpack.c.l.b16 %v545
    %v579 = vunpack.c.l.b16 %v546
    %v580 = vunpack.c.l.b16 %v547
    %v581 = vunpack.c.l.b16 %v548
    %v582 = vunpack.c.l.b16 %v549
    %v583 = vunpack.c.l.b16 %v550
    %v584 = vunpack.c.l.b16 %v551
    %v585 = vunpack.c.l.b16 %v552
    %v586 = vunpack.c.l.b16 %v553
    %v587 = vunpack.c.l.b16 %v554
    %v588 = vunpack.c.l.b16 %v555
    %v589 = vunpack.c.l.b16 %v556
    %v590 = vpack.c.b16 %v575, %v574
    %v591 = vpack.c.b16 %v577, %v576
    %v592 = vpack.c.b16 %v579, %v578
    %v593 = vpack.c.b16 %v581, %v580
    %v594 = vpack.c.b16 %v583, %v582
    %v595 = vpack.c.b16 %v585, %v584
    %v596 = vpack.c.b16 %v587, %v586
    %v597 = vpack.c.b16 %v589, %v588
    %606 = vmatprep.subr.bf16.mxu0 0
    %607 = vmatpush1.bf16.msra.mxu0 %v590
    %608 = vmatprep.subr.bf16.mxu0 0
    %609 = vmatpush1.bf16.msra.mxu0 %v591
    %610 = vmatprep.subr.bf16.mxu0 0
    %611 = vmatpush1.bf16.msra.mxu0 %v592
    %612 = vmatprep.subr.bf16.mxu0 0
    %613 = vmatpush1.bf16.msra.mxu0 %v593
    %614 = vmatprep.subr.bf16.mxu0 0
    %615 = vmatpush1.bf16.msra.mxu0 %v594
    %616 = vmatprep.subr.bf16.mxu0 0
    %617 = vmatpush1.bf16.msra.mxu0 %v595
    %618 = vmatprep.subr.bf16.mxu0 0
    %619 = vmatpush1.bf16.msra.mxu0 %v596
    %620 = vmatprep.subr.bf16.mxu0 0
    %621 = vmatpush1.bf16.msra.mxu0 %v597
    %622 = vmatprep.subr.bf16.mxu0 0
    %623 = vmatpush1.bf16.msra.mxu0 0
    %624 = vmatprep.subr.bf16.mxu0 0
    %625 = vmatpush1.bf16.msra.mxu0 0
    %626 = vmatprep.subr.bf16.mxu0 0
    %627 = vmatpush1.bf16.msra.mxu0 0
    %628 = vmatprep.subr.bf16.mxu0 0
    %629 = vmatpush1.bf16.msra.mxu0 0
    %630 = vmatprep.subr.bf16.mxu0 0
    %631 = vmatpush1.bf16.msra.mxu0 0
    %632 = vmatprep.subr.bf16.mxu0 0
    %633 = vmatpush1.bf16.msra.mxu0 0
    %634 = vmatprep.subr.bf16.mxu0 0
    %635 = vmatpush1.bf16.msra.mxu0 0
    %636 = vmatprep.subr.bf16.mxu0 0
    %637 = vmatpush1.bf16.msra.mxu0 0
    %638 = vmatprep.mubr.bf16.mxu0 0
    %639 = vmatmul.mubr.bf16.gmra.mrb[0].mxu0 %v557
    %v640 = vpop.f32.mrb[0].mxu0
    %v641 = vadd.f32 0.0, %v640
    %v642 = vpop.f32.mrb[0].mxu0
    %v643 = vpop.f32.mrb[0].mxu0
    %v644 = vpop.f32.mrb[0].mxu0
    %645 = vdwg.mxu0
    %v662 = vunpack.c.l.b16 %v524
    %v663 = vunpack.c.l.b16 %v525
    %v664 = vunpack.c.l.b16 %v526
    %v665 = vunpack.c.l.b16 %v527
    %v666 = vunpack.c.l.b16 %v528
    %v667 = vunpack.c.l.b16 %v529
    %v668 = vunpack.c.l.b16 %v530
    %v669 = vunpack.c.l.b16 %v531
    %v670 = vunpack.c.l.b16 %v532
    %v671 = vunpack.c.l.b16 %v533
    %v672 = vunpack.c.l.b16 %v534
    %v673 = vunpack.c.l.b16 %v535
    %v674 = vunpack.c.l.b16 %v536
    %v675 = vunpack.c.l.b16 %v537
    %v676 = vunpack.c.l.b16 %v538
    %v677 = vunpack.c.l.b16 %v539
    %v678 = vpack.c.b16 %v663, %v662
    %v679 = vpack.c.b16 %v665, %v664
    %v680 = vpack.c.b16 %v667, %v666
    %v681 = vpack.c.b16 %v669, %v668
    %v682 = vpack.c.b16 %v671, %v670
    %v683 = vpack.c.b16 %v673, %v672
    %v684 = vpack.c.b16 %v675, %v674
    %v685 = vpack.c.b16 %v677, %v676
    %694 = vmatprep.subr.bf16.mxu0 0
    %695 = vmatpush1.bf16.msra.mxu0 %v678
    %696 = vmatprep.subr.bf16.mxu0 0
    %697 = vmatpush1.bf16.msra.mxu0 %v679
    %698 = vmatprep.subr.bf16.mxu0 0
    %699 = vmatpush1.bf16.msra.mxu0 %v680
    %700 = vmatprep.subr.bf16.mxu0 0
    %701 = vmatpush1.bf16.msra.mxu0 %v681
    %702 = vmatprep.subr.bf16.mxu0 0
    %703 = vmatpush1.bf16.msra.mxu0 %v682
    %704 = vmatprep.subr.bf16.mxu0 0
    %705 = vmatpush1.bf16.msra.mxu0 %v683
    %706 = vmatprep.subr.bf16.mxu0 0
    %707 = vmatpush1.bf16.msra.mxu0 %v684
    %708 = vmatprep.subr.bf16.mxu0 0
    %709 = vmatpush1.bf16.msra.mxu0 %v685
    %710 = vmatprep.subr.bf16.mxu0 0
    %711 = vmatpush1.bf16.msra.mxu0 0
    %712 = vmatprep.subr.bf16.mxu0 0
    %713 = vmatpush1.bf16.msra.mxu0 0
    %714 = vmatprep.subr.bf16.mxu0 0
    %715 = vmatpush1.bf16.msra.mxu0 0
    %716 = vmatprep.subr.bf16.mxu0 0
    %717 = vmatpush1.bf16.msra.mxu0 0
    %718 = vmatprep.subr.bf16.mxu0 0
    %719 = vmatpush1.bf16.msra.mxu0 0
    %720 = vmatprep.subr.bf16.mxu0 0
    %721 = vmatpush1.bf16.msra.mxu0 0
    %722 = vmatprep.subr.bf16.mxu0 0
    %723 = vmatpush1.bf16.msra.mxu0 0
    %724 = vmatprep.subr.bf16.mxu0 0
    %725 = vmatpush1.bf16.msra.mxu0 0
    %726 = vmatprep.mubr.bf16.mxu0 0
    %727 = vmatmul.mubr.bf16.gmra.mrb[0].mxu0 %v540
    %v728 = vpop.f32.mrb[0].mxu0
    %v729 = vadd.f32 %v641, %v728
    %v730 = vpop.f32.mrb[0].mxu0
    %v731 = vpop.f32.mrb[0].mxu0
    %v732 = vpop.f32.mrb[0].mxu0
    %733 = vdwg.mxu0
    %v734 = vld [vmem:[%s25] sm:$0x1]
    %v736 = vlaneseq
    %v737 = vshrl.u32 %v736, 7
    %v738 = vsub.s32 0, %v737
    %v739 = vrot.slane %v734, %v738
    %v741 = vadd.f32 %v729, %v739
    %vm742 = vcmp.gt.f32.partialorder %v741, 0.0
    %v743 = vmul.f32 %v741, 0.01
    %v744 = vsel %vm742, %v741, %v743
    %v745 = vld [vmem:[%s27] sm:$0xf]
    %v746 = vld [vmem:[%s27 + $0x4] sm:$0xf]
    %v747 = vld [vmem:[%s27 + $0x8] sm:$0xf]
    %v748 = vld [vmem:[%s27 + $0xc] sm:$0xf]
    %v749 = vld [vmem:[%s27 + $0x10] sm:$0xf]
    %v750 = vld [vmem:[%s27 + $0x14] sm:$0xf]
    %v751 = vld [vmem:[%s27 + $0x18] sm:$0xf]
    %v752 = vld [vmem:[%s27 + $0x1c] sm:$0xf]
    %v753 = vld [vmem:[%s27 + $0x20] sm:$0xf]
    %v754 = vld [vmem:[%s27 + $0x24] sm:$0xf]
    %v755 = vld [vmem:[%s27 + $0x28] sm:$0xf]
    %v756 = vld [vmem:[%s27 + $0x2c] sm:$0xf]
    %v757 = vld [vmem:[%s27 + $0x30] sm:$0xf]
    %v758 = vld [vmem:[%s27 + $0x34] sm:$0xf]
    %v759 = vld [vmem:[%s27 + $0x38] sm:$0xf]
    %v760 = vld [vmem:[%s27 + $0x3c] sm:$0xf]
    %v761 = vpack.c.bf16 %v744, %v744
    %v762 = vld [vmem:[%s29] sm:$0x1]
    %v764 = vlaneseq
    %v765 = vshrl.u32 %v764, 7
    %v766 = vsub.s32 0, %v765
    %v767 = vrot.slane %v762, %v766
    %v785 = vunpack.c.l.b16 %v745
    %v786 = vunpack.c.l.b16 %v746
    %v787 = vunpack.c.l.b16 %v747
    %v788 = vunpack.c.l.b16 %v748
    %v789 = vunpack.c.l.b16 %v749
    %v790 = vunpack.c.l.b16 %v750
    %v791 = vunpack.c.l.b16 %v751
    %v792 = vunpack.c.l.b16 %v752
    %v793 = vunpack.c.l.b16 %v753
    %v794 = vunpack.c.l.b16 %v754
    %v795 = vunpack.c.l.b16 %v755
    %v796 = vunpack.c.l.b16 %v756
    %v797 = vunpack.c.l.b16 %v757
    %v798 = vunpack.c.l.b16 %v758
    %v799 = vunpack.c.l.b16 %v759
    %v800 = vunpack.c.l.b16 %v760
    %v801 = vpack.c.b16 %v786, %v785
    %v802 = vpack.c.b16 %v788, %v787
    %v803 = vpack.c.b16 %v790, %v789
    %v804 = vpack.c.b16 %v792, %v791
    %v805 = vpack.c.b16 %v794, %v793
    %v806 = vpack.c.b16 %v796, %v795
    %v807 = vpack.c.b16 %v798, %v797
    %v808 = vpack.c.b16 %v800, %v799
    %817 = vmatprep.subr.bf16.mxu0 0
    %818 = vmatpush1.bf16.msra.mxu0 %v801
    %819 = vmatprep.subr.bf16.mxu0 0
    %820 = vmatpush1.bf16.msra.mxu0 %v802
    %821 = vmatprep.subr.bf16.mxu0 0
    %822 = vmatpush1.bf16.msra.mxu0 %v803
    %823 = vmatprep.subr.bf16.mxu0 0
    %824 = vmatpush1.bf16.msra.mxu0 %v804
    %825 = vmatprep.subr.bf16.mxu0 0
    %826 = vmatpush1.bf16.msra.mxu0 %v805
    %827 = vmatprep.subr.bf16.mxu0 0
    %828 = vmatpush1.bf16.msra.mxu0 %v806
    %829 = vmatprep.subr.bf16.mxu0 0
    %830 = vmatpush1.bf16.msra.mxu0 %v807
    %831 = vmatprep.subr.bf16.mxu0 0
    %832 = vmatpush1.bf16.msra.mxu0 %v808
    %833 = vmatprep.subr.bf16.mxu0 0
    %834 = vmatpush1.bf16.msra.mxu0 0
    %835 = vmatprep.subr.bf16.mxu0 0
    %836 = vmatpush1.bf16.msra.mxu0 0
    %837 = vmatprep.subr.bf16.mxu0 0
    %838 = vmatpush1.bf16.msra.mxu0 0
    %839 = vmatprep.subr.bf16.mxu0 0
    %840 = vmatpush1.bf16.msra.mxu0 0
    %841 = vmatprep.subr.bf16.mxu0 0
    %842 = vmatpush1.bf16.msra.mxu0 0
    %843 = vmatprep.subr.bf16.mxu0 0
    %844 = vmatpush1.bf16.msra.mxu0 0
    %845 = vmatprep.subr.bf16.mxu0 0
    %846 = vmatpush1.bf16.msra.mxu0 0
    %847 = vmatprep.subr.bf16.mxu0 0
    %848 = vmatpush1.bf16.msra.mxu0 0
    %849 = vmatprep.mubr.bf16.mxu0 0
    %850 = vmatmul.mubr.bf16.gmra.mrb[0].mxu0 %v761
    %v851 = vpop.f32.mrb[0].mxu0
    %v852 = vadd.f32 %v767, %v851
    %v853 = vpop.f32.mrb[0].mxu0
    %v854 = vpop.f32.mrb[0].mxu0
    %v855 = vpop.f32.mrb[0].mxu0
    %856 = vdwg.mxu0
    loop: start=0, step=1, limit=6
    $region146: #{gsgm_forward.5} parent=1 // loop_pre_header
      _
    $region147: #{gsgm_forward.5} parent=1 // loop_header
      %s858 = sphi 0, %s862
      %p859 = scmp.ge.s32.totalorder %s858, 6
      %v863 = vphi %v852, %v2236
    $region148: #{gsgm_forward.5} parent=1 // loop_header_branch
      %861 = sbr.rel (%p859) target = $region152
    $region149: #{gsgm_forward.5} parent=1 // loop_body
      %s864 = scalar_lea.vmem %s31, %s858
      %v865 = vld [vmem:[%s864] sm:$0x1]
      %s866 = scalar_lea.vmem %s33, %s858
      %v867 = vld [vmem:[%s866] sm:$0x1]
      %vm868 = vcmask 1043456
      %v869 = vsel %vm868, %v863, 0.0
      %870 = vadd.xlane.f32.xlu0 %v869
      %v871 = vpop.xlane.xlu0 %870
      %v872 = vrcp.pop 128.0
      %v873 = vmul.f32 %v871, %v872
      %v874 = vsub.f32 %v863, %v873
      %v875 = vmul.f32 %v874, %v874
      %v876 = vsel %vm868, %v875, 0.0
      %877 = vadd.xlane.f32.xlu0 %v876
      %v878 = vpop.xlane.xlu0 %877
      %v879 = vmul.f32 %v878, %v872
      %v880 = vadd.f32 %v879, 1e-05
      %v881 = vrsqrt.pop %v880
      %v882 = vmul.f32 %v874, %v881
      %v884 = vlaneseq
      %v885 = vshrl.u32 %v884, 7
      %v886 = vsub.s32 0, %v885
      %v887 = vrot.slane %v865, %v886
      %v889 = vmul.f32 %v882, %v887
      %v891 = vlaneseq
      %v892 = vshrl.u32 %v891, 7
      %v893 = vsub.s32 0, %v892
      %v894 = vrot.slane %v867, %v893
      %v896 = vadd.f32 %v889, %v894
      %s897 = smul.u32 %s858, 48
      %s898 = smul.addr %s897, 4
      %s899 = scalar_lea.vmem %s35, %s898
      %v900 = vld [vmem:[%s899] sm:$0xff]
      %v901 = vld [vmem:[%s899 + $0x8] sm:$0xf]
      %v902 = vld [vmem:[%s899 + $0xc] sm:$0xff]
      %v903 = vld [vmem:[%s899 + $0x14] sm:$0xf]
      %v904 = vld [vmem:[%s899 + $0x18] sm:$0xff]
      %v905 = vld [vmem:[%s899 + $0x20] sm:$0xf]
      %v906 = vld [vmem:[%s899 + $0x24] sm:$0xff]
      %v907 = vld [vmem:[%s899 + $0x2c] sm:$0xf]
      %v908 = vld [vmem:[%s899 + $0x30] sm:$0xff]
      %v909 = vld [vmem:[%s899 + $0x38] sm:$0xf]
      %v910 = vld [vmem:[%s899 + $0x3c] sm:$0xff]
      %v911 = vld [vmem:[%s899 + $0x44] sm:$0xf]
      %v912 = vld [vmem:[%s899 + $0x48] sm:$0xff]
      %v913 = vld [vmem:[%s899 + $0x50] sm:$0xf]
      %v914 = vld [vmem:[%s899 + $0x54] sm:$0xff]
      %v915 = vld [vmem:[%s899 + $0x5c] sm:$0xf]
      %v916 = vld [vmem:[%s899 + $0x60] sm:$0xff]
      %v917 = vld [vmem:[%s899 + $0x68] sm:$0xf]
      %v918 = vld [vmem:[%s899 + $0x6c] sm:$0xff]
      %v919 = vld [vmem:[%s899 + $0x74] sm:$0xf]
      %v920 = vld [vmem:[%s899 + $0x78] sm:$0xff]
      %v921 = vld [vmem:[%s899 + $0x80] sm:$0xf]
      %v922 = vld [vmem:[%s899 + $0x84] sm:$0xff]
      %v923 = vld [vmem:[%s899 + $0x8c] sm:$0xf]
      %v924 = vld [vmem:[%s899 + $0x90] sm:$0xff]
      %v925 = vld [vmem:[%s899 + $0x98] sm:$0xf]
      %v926 = vld [vmem:[%s899 + $0x9c] sm:$0xff]
      %v927 = vld [vmem:[%s899 + $0xa4] sm:$0xf]
      %v928 = vld [vmem:[%s899 + $0xa8] sm:$0xff]
      %v929 = vld [vmem:[%s899 + $0xb0] sm:$0xf]
      %v930 = vld [vmem:[%s899 + $0xb4] sm:$0xff]
      %v931 = vld [vmem:[%s899 + $0xbc] sm:$0xf]
      %v932 = vpack.c.bf16 %v896, %v896
      %s933 = smul.u32 %s858, 3
      %s934 = scalar_lea.vmem %s37, %s933
      %v935 = vld [vmem:[%s934] sm:$0x7]
      %v937 = vlaneseq
      %v938 = vshrl.u32 %v937, 7
      %v939 = vsub.s32 0, %v938
      %v940 = vrot.slane %v935, %v939
      %v941 = vlaneseq
      %v942 = vshrl.u32 %v941, 7
      %v943 = vsub.s32 1, %v942
      %v944 = vrot.slane %v935, %v943
      %v945 = vlaneseq
      %v946 = vshrl.u32 %v945, 7
      %v947 = vsub.s32 2, %v946
      %v948 = vrot.slane %v935, %v947
      %v984 = vunpack.c.l.b16 %v900
      %v985 = vunpack.c.h.b16 %v900
      %v986 = vunpack.c.l.b16 %v901
      %v987 = vunpack.c.l.b16 %v902
      %v988 = vunpack.c.h.b16 %v902
      %v989 = vunpack.c.l.b16 %v903
      %v990 = vunpack.c.l.b16 %v904
      %v991 = vunpack.c.h.b16 %v904
      %v992 = vunpack.c.l.b16 %v905
      %v993 = vunpack.c.l.b16 %v906
      %v994 = vunpack.c.h.b16 %v906
      %v995 = vunpack.c.l.b16 %v907
      %v996 = vunpack.c.l.b16 %v908
      %v997 = vunpack.c.h.b16 %v908
      %v998 = vunpack.c.l.b16 %v909
      %v999 = vunpack.c.l.b16 %v910
      %v1000 = vunpack.c.h.b16 %v910
      %v1001 = vunpack.c.l.b16 %v911
      %v1002 = vunpack.c.l.b16 %v912
      %v1003 = vunpack.c.h.b16 %v912
      %v1004 = vunpack.c.l.b16 %v913
      %v1005 = vunpack.c.l.b16 %v914
      %v1006 = vunpack.c.h.b16 %v914
      %v1007 = vunpack.c.l.b16 %v915
      %v1008 = vunpack.c.l.b16 %v916
      %v1009 = vunpack.c.h.b16 %v916
      %v1010 = vunpack.c.l.b16 %v917
      %v1011 = vunpack.c.l.b16 %v918
      %v1012 = vunpack.c.h.b16 %v918
      %v1013 = vunpack.c.l.b16 %v919
      %v1014 = vunpack.c.l.b16 %v920
      %v1015 = vunpack.c.h.b16 %v920
      %v1016 = vunpack.c.l.b16 %v921
      %v1017 = vunpack.c.l.b16 %v922
      %v1018 = vunpack.c.h.b16 %v922
      %v1019 = vunpack.c.l.b16 %v923
      %v1020 = vunpack.c.l.b16 %v924
      %v1021 = vunpack.c.h.b16 %v924
      %v1022 = vunpack.c.l.b16 %v925
      %v1023 = vunpack.c.l.b16 %v926
      %v1024 = vunpack.c.h.b16 %v926
      %v1025 = vunpack.c.l.b16 %v927
      %v1026 = vunpack.c.l.b16 %v928
      %v1027 = vunpack.c.h.b16 %v928
      %v1028 = vunpack.c.l.b16 %v929
      %v1029 = vunpack.c.l.b16 %v930
      %v1030 = vunpack.c.h.b16 %v930
      %v1031 = vunpack.c.l.b16 %v931
      %v1032 = vpack.c.b16 %v987, %v984
      %v1033 = vpack.c.b16 %v988, %v985
      %v1034 = vpack.c.b16 %v989, %v986
      %v1035 = vpack.c.b16 %v993, %v990
      %v1036 = vpack.c.b16 %v994, %v991
      %v1037 = vpack.c.b16 %v995, %v992
      %v1038 = vpack.c.b16 %v999, %v996
      %v1039 = vpack.c.b16 %v1000, %v997
      %v1040 = vpack.c.b16 %v1001, %v998
      %v1041 = vpack.c.b16 %v1005, %v1002
      %v1042 = vpack.c.b16 %v1006, %v1003
      %v1043 = vpack.c.b16 %v1007, %v1004
      %v1044 = vpack.c.b16 %v1011, %v1008
      %v1045 = vpack.c.b16 %v1012, %v1009
      %v1046 = vpack.c.b16 %v1013, %v1010
      %v1047 = vpack.c.b16 %v1017, %v1014
      %v1048 = vpack.c.b16 %v1018, %v1015
      %v1049 = vpack.c.b16 %v1019, %v1016
      %v1050 = vpack.c.b16 %v1023, %v1020
      %v1051 = vpack.c.b16 %v1024, %v1021
      %v1052 = vpack.c.b16 %v1025, %v1022
      %v1053 = vpack.c.b16 %v1029, %v1026
      %v1054 = vpack.c.b16 %v1030, %v1027
      %v1055 = vpack.c.b16 %v1031, %v1028
      %1080 = vmatprep.subr.bf16.mxu0 %v1033
      %1081 = vmatpush1.bf16.msra.mxu0 %v1032
      %1082 = vmatprep.subr.bf16.mxu0 %v1036
      %1083 = vmatpush1.bf16.msra.mxu0 %v1035
      %1084 = vmatprep.subr.bf16.mxu0 %v1039
      %1085 = vmatpush1.bf16.msra.mxu0 %v1038
      %1086 = vmatprep.subr.bf16.mxu0 %v1042
      %1087 = vmatpush1.bf16.msra.mxu0 %v1041
      %1088 = vmatprep.subr.bf16.mxu0 %v1045
      %1089 = vmatpush1.bf16.msra.mxu0 %v1044
      %1090 = vmatprep.subr.bf16.mxu0 %v1048
      %1091 = vmatpush1.bf16.msra.mxu0 %v1047
      %1092 = vmatprep.subr.bf16.mxu0 %v1051
      %1093 = vmatpush1.bf16.msra.mxu0 %v1050
      %1094 = vmatprep.subr.bf16.mxu0 %v1054
      %1095 = vmatpush1.bf16.msra.mxu0 %v1053
      %1096 = vmatprep.subr.bf16.mxu0 0
      %1097 = vmatpush1.bf16.msra.mxu0 0
      %1098 = vmatprep.subr.bf16.mxu0 0
      %1099 = vmatpush1.bf16.msra.mxu0 0
      %1100 = vmatprep.subr.bf16.mxu0 0
      %1101 = vmatpush1.bf16.msra.mxu0 0
      %1102 = vmatprep.subr.bf16.mxu0 0
      %1103 = vmatpush1.bf16.msra.mxu0 0
      %1104 = vmatprep.subr.bf16.mxu0 0
      %1105 = vmatpush1.bf16.msra.mxu0 0
      %1106 = vmatprep.subr.bf16.mxu0 0
      %1107 = vmatpush1.bf16.msra.mxu0 0
      %1108 = vmatprep.subr.bf16.mxu0 0
      %1109 = vmatpush1.bf16.msra.mxu0 0
      %1110 = vmatprep.subr.bf16.mxu0 0
      %1111 = vmatpush1.bf16.msra.mxu0 0
      %1112 = vmatprep.mubr.bf16.mxu0 0
      %1113 = vmatmul.mubr.bf16.gmra.mrb[0].mxu0 %v932
      %v1114 = vpop.f32.mrb[0].mxu0
      %v1115 = vadd.f32 %v940, %v1114
      %v1116 = vpop.f32.mrb[0].mxu0
      %v1117 = vadd.f32 %v944, %v1116
      %v1118 = vpop.f32.mrb[0].mxu0
      %v1119 = vpop.f32.mrb[0].mxu0
      %1120 = vdwg.mxu0
      %1121 = vmatprep.subr.bf16.mxu0 0
      %1122 = vmatpush1.bf16.msra.mxu0 %v1034
      %1123 = vmatprep.subr.bf16.mxu0 0
      %1124 = vmatpush1.bf16.msra.mxu0 %v1037
      %1125 = vmatprep.subr.bf16.mxu0 0
      %1126 = vmatpush1.bf16.msra.mxu0 %v1040
      %1127 = vmatprep.subr.bf16.mxu0 0
      %1128 = vmatpush1.bf16.msra.mxu0 %v1043
      %1129 = vmatprep.subr.bf16.mxu0 0
      %1130 = vmatpush1.bf16.msra.mxu0 %v1046
      %1131 = vmatprep.subr.bf16.mxu0 0
      %1132 = vmatpush1.bf16.msra.mxu0 %v1049
      %1133 = vmatprep.subr.bf16.mxu0 0
      %1134 = vmatpush1.bf16.msra.mxu0 %v1052
      %1135 = vmatprep.subr.bf16.mxu0 0
      %1136 = vmatpush1.bf16.msra.mxu0 %v1055
      %1137 = vmatprep.subr.bf16.mxu0 0
      %1138 = vmatpush1.bf16.msra.mxu0 0
      %1139 = vmatprep.subr.bf16.mxu0 0
      %1140 = vmatpush1.bf16.msra.mxu0 0
      %1141 = vmatprep.subr.bf16.mxu0 0
      %1142 = vmatpush1.bf16.msra.mxu0 0
      %1143 = vmatprep.subr.bf16.mxu0 0
      %1144 = vmatpush1.bf16.msra.mxu0 0
      %1145 = vmatprep.subr.bf16.mxu0 0
      %1146 = vmatpush1.bf16.msra.mxu0 0
      %1147 = vmatprep.subr.bf16.mxu0 0
      %1148 = vmatpush1.bf16.msra.mxu0 0
      %1149 = vmatprep.subr.bf16.mxu0 0
      %1150 = vmatpush1.bf16.msra.mxu0 0
      %1151 = vmatprep.subr.bf16.mxu0 0
      %1152 = vmatpush1.bf16.msra.mxu0 0
      %1153 = vmatprep.mubr.bf16.mxu0 0
      %1154 = vmatmul.mubr.bf16.gmra.mrb[0].mxu0 %v932
      %v1155 = vpop.f32.mrb[0].mxu0
      %v1156 = vadd.f32 %v948, %v1155
      %v1157 = vpop.f32.mrb[0].mxu0
      %v1158 = vpop.f32.mrb[0].mxu0
      %v1159 = vpop.f32.mrb[0].mxu0
      %1160 = vdwg.mxu0
      %v1161 = vpack.c.bf16 %v1115, %v1115
      %v1162 = vpack.c.bf16 %v1117, %v1117
      %v1164 = vsel %vm239, %v1161, 0
      %v1167 = vsel %vm239, %v1162, 0
      %1169 = vmatprep.subr.bf16.mxu0 0
      %1170 = vmatpush1.bf16.xpose.msra.mxu0 %v1167
      %1171 = vmatprep.subr.bf16.mxu0 0
      %1172 = vmatpush1.bf16.xpose.msra.mxu0 0
      %1173 = vmatprep.subr.bf16.mxu0 0
      %1174 = vmatpush1.bf16.xpose.msra.mxu0 0
      %1175 = vmatprep.subr.bf16.mxu0 0
      %1176 = vmatpush1.bf16.xpose.msra.mxu0 0
      %1177 = vmatprep.subr.bf16.mxu0 0
      %1178 = vmatpush1.bf16.xpose.msra.mxu0 0
      %1179 = vmatprep.subr.bf16.mxu0 0
      %1180 = vmatpush1.bf16.xpose.msra.mxu0 0
      %1181 = vmatprep.subr.bf16.mxu0 0
      %1182 = vmatpush1.bf16.xpose.msra.mxu0 0
      %1183 = vmatprep.subr.bf16.mxu0 0
      %1184 = vmatpush1.bf16.xpose.msra.mxu0 0
      %1185 = vmatprep.subr.bf16.mxu0 0
      %1186 = vmatpush1.bf16.xpose.msra.mxu0 0
      %1187 = vmatprep.subr.bf16.mxu0 0
      %1188 = vmatpush1.bf16.xpose.msra.mxu0 0
      %1189 = vmatprep.subr.bf16.mxu0 0
      %1190 = vmatpush1.bf16.xpose.msra.mxu0 0
      %1191 = vmatprep.subr.bf16.mxu0 0
      %1192 = vmatpush1.bf16.xpose.msra.mxu0 0
      %1193 = vmatprep.subr.bf16.mxu0 0
      %1194 = vmatpush1.bf16.xpose.msra.mxu0 0
      %1195 = vmatprep.subr.bf16.mxu0 0
      %1196 = vmatpush1.bf16.xpose.msra.mxu0 0
      %1197 = vmatprep.subr.bf16.mxu0 0
      %1198 = vmatpush1.bf16.xpose.msra.mxu0 0
      %1199 = vmatprep.subr.bf16.mxu0 0
      %1200 = vmatpush1.bf16.xpose.msra.mxu0 0
      %1201 = vmatprep.mubr.bf16.mxu0 0
      %1202 = vmatmul.mubr.bf16.gmra.mrb[0].mxu0 %v1164
      %v1203 = vpop.f32.mrb[0].mxu0
      %v1204 = vadd.f32 0.0, %v1203
      %v1205 = vpop.f32.mrb[0].mxu0
      %v1206 = vpop.f32.mrb[0].mxu0
      %v1207 = vpop.f32.mrb[0].mxu0
      %1208 = vdwg.mxu0
      %v1209 = vmul.f32 %v1204, 0.125
      %v1210 = vadd.f32 %v1209, %v177
      %vm1211 = vcmask 27648
      %v1212 = vsel %vm1211, %v1210, -inf
      %1213 = vmax.xlane.f32.xlu0 %v1212
      %v1214 = vpop.xlane.xlu0 %1213
      %v1215 = vsub.f32 %v1210, %v1214
      %v1216 = vmul.f32 %v1215, 1.442695
      %v1217 = vpow.pop %v1216
      %v1218 = vsel %vm1211, %v1217, 0.0
      %1219 = vadd.xlane.f32.xlu0 %v1218
      %v1220 = vpop.xlane.xlu0 %1219
      %v1221 = vrcp.pop %v1220
      %v1222 = vmul.f32 %v1217, %v1221
      %v1223 = vpack.c.bf16 %v1222, %v1222
      %v1224 = vpack.c.bf16 %v1156, %v1156
      %v1226 = vsel %vm476, %v1223, 0
      %v1229 = vsel %vm480, %v1224, 0
      %1231 = vmatprep.subr.bf16.mxu0 0
      %1232 = vmatpush1.bf16.msra.mxu0 %v1229
      %1233 = vmatprep.subr.bf16.mxu0 0
      %1234 = vmatpush1.bf16.msra.mxu0 0
      %1235 = vmatprep.subr.bf16.mxu0 0
      %1236 = vmatpush1.bf16.msra.mxu0 0
      %1237 = vmatprep.subr.bf16.mxu0 0
      %1238 = vmatpush1.bf16.msra.mxu0 0
      %1239 = vmatprep.subr.bf16.mxu0 0
      %1240 = vmatpush1.bf16.msra.mxu0 0
      %1241 = vmatprep.subr.bf16.mxu0 0
      %1242 = vmatpush1.bf16.msra.mxu0 0
      %1243 = vmatprep.subr.bf16.mxu0 0
      %1244 = vmatpush1.bf16.msra.mxu0 0
      %1245 = vmatprep.subr.bf16.mxu0 0
      %1246 = vmatpush1.bf16.msra.mxu0 0
      %1247 = vmatprep.subr.bf16.mxu0 0
      %1248 = vmatpush1.bf16.msra.mxu0 0
      %1249 = vmatprep.subr.bf16.mxu0 0
      %1250 = vmatpush1.bf16.msra.mxu0 0
      %1251 = vmatprep.subr.bf16.mxu0 0
      %1252 = vmatpush1.bf16.msra.mxu0 0
      %1253 = vmatprep.subr.bf16.mxu0 0
      %1254 = vmatpush1.bf16.msra.mxu0 0
      %1255 = vmatprep.subr.bf16.mxu0 0
      %1256 = vmatpush1.bf16.msra.mxu0 0
      %1257 = vmatprep.subr.bf16.mxu0 0
      %1258 = vmatpush1.bf16.msra.mxu0 0
      %1259 = vmatprep.subr.bf16.mxu0 0
      %1260 = vmatpush1.bf16.msra.mxu0 0
      %1261 = vmatprep.subr.bf16.mxu0 0
      %1262 = vmatpush1.bf16.msra.mxu0 0
      %1263 = vmatprep.mubr.bf16.mxu0 0
      %1264 = vmatmul.mubr.bf16.gmra.mrb[0].mxu0 %v1226
      %v1265 = vpop.f32.mrb[0].mxu0
      %v1266 = vadd.f32 0.0, %v1265
      %v1267 = vpop.f32.mrb[0].mxu0
      %v1268 = vpop.f32.mrb[0].mxu0
      %v1269 = vpop.f32.mrb[0].mxu0
      %1270 = vdwg.mxu0
      %1272 = vrot.lane.b32.xlu0 %v1161, 64
      %v1273 = vpop.permute.xlu0 %1272
      %1275 = vrot.lane.b32.xlu0 %v1162, 64
      %v1276 = vpop.permute.xlu0 %1275
      %v1278 = vsel %vm239, %v1273, 0
      %v1281 = vsel %vm239, %v1276, 0
      %1283 = vmatprep.subr.bf16.mxu0 0
      %1284 = vmatpush1.bf16.xpose.msra.mxu0 %v1281
      %1285 = vmatprep.subr.bf16.mxu0 0
      %1286 = vmatpush1.bf16.xpose.msra.mxu0 0
      %1287 = vmatprep.subr.bf16.mxu0 0
      %1288 = vmatpush1.bf16.xpose.msra.mxu0 0
      %1289 = vmatprep.subr.bf16.mxu0 0
      %1290 = vmatpush1.bf16.xpose.msra.mxu0 0
      %1291 = vmatprep.subr.bf16.mxu0 0
      %1292 = vmatpush1.bf16.xpose.msra.mxu0 0
      %1293 = vmatprep.subr.bf16.mxu0 0
      %1294 = vmatpush1.bf16.xpose.msra.mxu0 0
      %1295 = vmatprep.subr.bf16.mxu0 0
      %1296 = vmatpush1.bf16.xpose.msra.mxu0 0
      %1297 = vmatprep.subr.bf16.mxu0 0
      %1298 = vmatpush1.bf16.xpose.msra.mxu0 0
      %1299 = vmatprep.subr.bf16.mxu0 0
      %1300 = vmatpush1.bf16.xpose.msra.mxu0 0
      %1301 = vmatprep.subr.bf16.mxu0 0
      %1302 = vmatpush1.bf16.xpose.msra.mxu0 0
      %1303 = vmatprep.subr.bf16.mxu0 0
      %1304 = vmatpush1.bf16.xpose.msra.mxu0 0
      %1305 = vmatprep.subr.bf16.mxu0 0
      %1306 = vmatpush1.bf16.xpose.msra.mxu0 0
      %1307 = vmatprep.subr.bf16.mxu0 0
      %1308 = vmatpush1.bf16.xpose.msra.mxu0 0
      %1309 = vmatprep.subr.bf16.mxu0 0
      %1310 = vmatpush1.bf16.xpose.msra.mxu0 0
      %1311 = vmatprep.subr.bf16.mxu0 0
      %1312 = vmatpush1.bf16.xpose.msra.mxu0 0
      %1313 = vmatprep.subr.bf16.mxu0 0
      %1314 = vmatpush1.bf16.xpose.msra.mxu0 0
      %1315 = vmatprep.mubr.bf16.mxu0 0
      %1316 = vmatmul.mubr.bf16.gmra.mrb[0].mxu0 %v1278
      %v1317 = vpop.f32.mrb[0].mxu0
      %v1318 = vadd.f32 0.0, %v1317
      %v1319 = vpop.f32.mrb[0].mxu0
      %v1320 = vpop.f32.mrb[0].mxu0
      %v1321 = vpop.f32.mrb[0].mxu0
      %1322 = vdwg.mxu0
      %v1323 = vmul.f32 %v1318, 0.125
      %v1324 = vadd.f32 %v1323, %v177
      %v1325 = vsel %vm1211, %v1324, -inf
      %1326 = vmax.xlane.f32.xlu0 %v1325
      %v1327 = vpop.xlane.xlu0 %1326
      %v1328 = vsub.f32 %v1324, %v1327
      %v1329 = vmul.f32 %v1328, 1.442695
      %v1330 = vpow.pop %v1329
      %v1331 = vsel %vm1211, %v1330, 0.0
      %1332 = vadd.xlane.f32.xlu0 %v1331
      %v1333 = vpop.xlane.xlu0 %1332
      %v1334 = vrcp.pop %v1333
      %v1335 = vmul.f32 %v1330, %v1334
      %v1336 = vpack.c.bf16 %v1335, %v1335
      %1338 = vrot.lane.b32.xlu0 %v1224, 64
      %v1339 = vpop.permute.xlu0 %1338
      %v1341 = vsel %vm476, %v1336, 0
      %v1344 = vsel %vm480, %v1339, 0
      %1346 = vmatprep.subr.bf16.mxu0 0
      %1347 = vmatpush1.bf16.msra.mxu0 %v1344
      %1348 = vmatprep.subr.bf16.mxu0 0
      %1349 = vmatpush1.bf16.msra.mxu0 0
      %1350 = vmatprep.subr.bf16.mxu0 0
      %1351 = vmatpush1.bf16.msra.mxu0 0
      %1352 = vmatprep.subr.bf16.mxu0 0
      %1353 = vmatpush1.bf16.msra.mxu0 0
      %1354 = vmatprep.subr.bf16.mxu0 0
      %1355 = vmatpush1.bf16.msra.mxu0 0
      %1356 = vmatprep.subr.bf16.mxu0 0
      %1357 = vmatpush1.bf16.msra.mxu0 0
      %1358 = vmatprep.subr.bf16.mxu0 0
      %1359 = vmatpush1.bf16.msra.mxu0 0
      %1360 = vmatprep.subr.bf16.mxu0 0
      %1361 = vmatpush1.bf16.msra.mxu0 0
      %1362 = vmatprep.subr.bf16.mxu0 0
      %1363 = vmatpush1.bf16.msra.mxu0 0
      %1364 = vmatprep.subr.bf16.mxu0 0
      %1365 = vmatpush1.bf16.msra.mxu0 0
      %1366 = vmatprep.subr.bf16.mxu0 0
      %1367 = vmatpush1.bf16.msra.mxu0 0
      %1368 = vmatprep.subr.bf16.mxu0 0
      %1369 = vmatpush1.bf16.msra.mxu0 0
      %1370 = vmatprep.subr.bf16.mxu0 0
      %1371 = vmatpush1.bf16.msra.mxu0 0
      %1372 = vmatprep.subr.bf16.mxu0 0
      %1373 = vmatpush1.bf16.msra.mxu0 0
      %1374 = vmatprep.subr.bf16.mxu0 0
      %1375 = vmatpush1.bf16.msra.mxu0 0
      %1376 = vmatprep.subr.bf16.mxu0 0
      %1377 = vmatpush1.bf16.msra.mxu0 0
      %1378 = vmatprep.mubr.bf16.mxu0 0
      %1379 = vmatmul.mubr.bf16.gmra.mrb[0].mxu0 %v1341
      %v1380 = vpop.f32.mrb[0].mxu0
      %v1381 = vadd.f32 0.0, %v1380
      %v1382 = vpop.f32.mrb[0].mxu0
      %v1383 = vpop.f32.mrb[0].mxu0
      %v1384 = vpop.f32.mrb[0].mxu0
      %1385 = vdwg.mxu0
      %1387 = vrot.lane.b32.xlu0 %v1381, 64
      %v1388 = vpop.permute.xlu0 %1387
      %v1390 = vsel %vm239, %v1266, %v1388
      %s1391 = smul.u32 %s858, 16
      %s1392 = smul.addr %s1391, 4
      %s1393 = scalar_lea.vmem %s39, %s1392
      %v1394 = vld [vmem:[%s1393] sm:$0xf]
      %v1395 = vld [vmem:[%s1393 + $0x4] sm:$0xf]
      %v1396 = vld [vmem:[%s1393 + $0x8] sm:$0xf]
      %v1397 = vld [vmem:[%s1393 + $0xc] sm:$0xf]
      %v1398 = vld [vmem:[%s1393 + $0x10] sm:$0xf]
      %v1399 = vld [vmem:[%s1393 + $0x14] sm:$0xf]
      %v1400 = vld [vmem:[%s1393 + $0x18] sm:$0xf]
      %v1401 = vld [vmem:[%s1393 + $0x1c] sm:$0xf]
      %v1402 = vld [vmem:[%s1393 + $0x20] sm:$0xf]
      %v1403 = vld [vmem:[%s1393 + $0x24] sm:$0xf]
      %v1404 = vld [vmem:[%s1393 + $0x28] sm:$0xf]
      %v1405 = vld [vmem:[%s1393 + $0x2c] sm:$0xf]
      %v1406 = vld [vmem:[%s1393 + $0x30] sm:$0xf]
      %v1407 = vld [vmem:[%s1393 + $0x34] sm:$0xf]
      %v1408 = vld [vmem:[%s1393 + $0x38] sm:$0xf]
      %v1409 = vld [vmem:[%s1393 + $0x3c] sm:$0xf]
      %v1410 = vpack.c.bf16 %v1390, %v1390
      %s1411 = scalar_lea.vmem %s41, %s858
      %v1412 = vld [vmem:[%s1411] sm:$0x1]
      %v1414 = vlaneseq
      %v1415 = vshrl.u32 %v1414, 7
      %v1416 = vsub.s32 0, %v1415
      %v1417 = vrot.slane %v1412, %v1416
      %v1435 = vunpack.c.l.b16 %v1394
      %v1436 = vunpack.c.l.b16 %v1395
      %v1437 = vunpack.c.l.b16 %v1396
      %v1438 = vunpack.c.l.b16 %v1397
      %v1439 = vunpack.c.l.b16 %v1398
      %v1440 = vunpack.c.l.b16 %v1399
      %v1441 = vunpack.c.l.b16 %v1400
      %v1442 = vunpack.c.l.b16 %v1401
      %v1443 = vunpack.c.l.b16 %v1402
      %v1444 = vunpack.c.l.b16 %v1403
      %v1445 = vunpack.c.l.b16 %v1404
      %v1446 = vunpack.c.l.b16 %v1405
      %v1447 = vunpack.c.l.b16 %v1406
      %v1448 = vunpack.c.l.b16 %v1407
      %v1449 = vunpack.c.l.b16 %v1408
      %v1450 = vunpack.c.l.b16 %v1409
      %v1451 = vpack.c.b16 %v1436, %v1435
      %v1452 = vpack.c.b16 %v1438, %v1437
      %v1453 = vpack.c.b16 %v1440, %v1439
      %v1454 = vpack.c.b16 %v1442, %v1441
      %v1455 = vpack.c.b16 %v1444, %v1443
      %v1456 = vpack.c.b16 %v1446, %v1445
      %v1457 = vpack.c.b16 %v1448, %v1447
      %v1458 = vpack.c.b16 %v1450, %v1449
      %1467 = vmatprep.subr.bf16.mxu0 0
      %1468 = vmatpush1.bf16.msra.mxu0 %v1451
      %1469 = vmatprep.subr.bf16.mxu0 0
      %1470 = vmatpush1.bf16.msra.mxu0 %v1452
      %1471 = vmatprep.subr.bf16.mxu0 0
      %1472 = vmatpush1.bf16.msra.mxu0 %v1453
      %1473 = vmatprep.subr.bf16.mxu0 0
      %1474 = vmatpush1.bf16.msra.mxu0 %v1454
      %1475 = vmatprep.subr.bf16.mxu0 0
      %1476 = vmatpush1.bf16.msra.mxu0 %v1455
      %1477 = vmatprep.subr.bf16.mxu0 0
      %1478 = vmatpush1.bf16.msra.mxu0 %v1456
      %1479 = vmatprep.subr.bf16.mxu0 0
      %1480 = vmatpush1.bf16.msra.mxu0 %v1457
      %1481 = vmatprep.subr.bf16.mxu0 0
      %1482 = vmatpush1.bf16.msra.mxu0 %v1458
      %1483 = vmatprep.subr.bf16.mxu0 0
      %1484 = vmatpush1.bf16.msra.mxu0 0
      %1485 = vmatprep.subr.bf16.mxu0 0
      %1486 = vmatpush1.bf16.msra.mxu0 0
      %1487 = vmatprep.subr.bf16.mxu0 0
      %1488 = vmatpush1.bf16.msra.mxu0 0
      %1489 = vmatprep.subr.bf16.mxu0 0
      %1490 = vmatpush1.bf16.msra.mxu0 0
      %1491 = vmatprep.subr.bf16.mxu0 0
      %1492 = vmatpush1.bf16.msra.mxu0 0
      %1493 = vmatprep.subr.bf16.mxu0 0
      %1494 = vmatpush1.bf16.msra.mxu0 0
      %1495 = vmatprep.subr.bf16.mxu0 0
      %1496 = vmatpush1.bf16.msra.mxu0 0
      %1497 = vmatprep.subr.bf16.mxu0 0
      %1498 = vmatpush1.bf16.msra.mxu0 0
      %1499 = vmatprep.mubr.bf16.mxu0 0
      %1500 = vmatmul.mubr.bf16.gmra.mrb[0].mxu0 %v1410
      %v1501 = vpop.f32.mrb[0].mxu0
      %v1502 = vadd.f32 %v1417, %v1501
      %v1503 = vpop.f32.mrb[0].mxu0
      %v1504 = vpop.f32.mrb[0].mxu0
      %v1505 = vpop.f32.mrb[0].mxu0
      %1506 = vdwg.mxu0
      %v1507 = vadd.f32 %v1502, %v863
      %s1508 = scalar_lea.vmem %s43, %s858
      %v1509 = vld [vmem:[%s1508] sm:$0x1]
      %s1510 = scalar_lea.vmem %s45, %s858
      %v1511 = vld [vmem:[%s1510] sm:$0x1]
      %v1512 = vsel %vm868, %v1507, 0.0
      %1513 = vadd.xlane.f32.xlu0 %v1512
      %v1514 = vpop.xlane.xlu0 %1513
      %v1515 = vmul.f32 %v1514, %v872
      %v1516 = vsub.f32 %v1507, %v1515
      %v1517 = vmul.f32 %v1516, %v1516
      %v1518 = vsel %vm868, %v1517, 0.0
      %1519 = vadd.xlane.f32.xlu0 %v1518
      %v1520 = vpop.xlane.xlu0 %1519
      %v1521 = vmul.f32 %v1520, %v872
      %v1522 = vadd.f32 %v1521, 1e-05
      %v1523 = vrsqrt.pop %v1522
      %v1524 = vmul.f32 %v1516, %v1523
      %v1526 = vlaneseq
      %v1527 = vshrl.u32 %v1526, 7
      %v1528 = vsub.s32 0, %v1527
      %v1529 = vrot.slane %v1509, %v1528
      %v1531 = vmul.f32 %v1524, %v1529
      %v1533 = vlaneseq
      %v1534 = vshrl.u32 %v1533, 7
      %v1535 = vsub.s32 0, %v1534
      %v1536 = vrot.slane %v1511, %v1535
      %v1538 = vadd.f32 %v1531, %v1536
      %s1539 = smul.u32 %s858, 64
      %s1540 = smul.addr %s1539, 4
      %s1541 = scalar_lea.vmem %s47, %s1540
      %v1542 = vld [vmem:[%s1541] sm:$0xff]
      %v1543 = vld [vmem:[%s1541 + $0x8] sm:$0xff]
      %v1544 = vld [vmem:[%s1541 + $0x10] sm:$0xff]
      %v1545 = vld [vmem:[%s1541 + $0x18] sm:$0xff]
      %v1546 = vld [vmem:[%s1541 + $0x20] sm:$0xff]
      %v1547 = vld [vmem:[%s1541 + $0x28] sm:$0xff]
      %v1548 = vld [vmem:[%s1541 + $0x30] sm:$0xff]
      %v1549 = vld [vmem:[%s1541 + $0x38] sm:$0xff]
      %v1550 = vld [vmem:[%s1541 + $0x40] sm:$0xff]
      %v1551 = vld [vmem:[%s1541 + $0x48] sm:$0xff]
      %v1552 = vld [vmem:[%s1541 + $0x50] sm:$0xff]
      %v1553 = vld [vmem:[%s1541 + $0x58] sm:$0xff]
      %v1554 = vld [vmem:[%s1541 + $0x60] sm:$0xff]
      %v1555 = vld [vmem:[%s1541 + $0x68] sm:$0xff]
      %v1556 = vld [vmem:[%s1541 + $0x70] sm:$0xff]
      %v1557 = vld [vmem:[%s1541 + $0x78] sm:$0xff]
      %v1558 = vld [vmem:[%s1541 + $0x80] sm:$0xff]
      %v1559 = vld [vmem:[%s1541 + $0x88] sm:$0xff]
      %v1560 = vld [vmem:[%s1541 + $0x90] sm:$0xff]
      %v1561 = vld [vmem:[%s1541 + $0x98] sm:$0xff]
      %v1562 = vld [vmem:[%s1541 + $0xa0] sm:$0xff]
      %v1563 = vld [vmem:[%s1541 + $0xa8] sm:$0xff]
      %v1564 = vld [vmem:[%s1541 + $0xb0] sm:$0xff]
      %v1565 = vld [vmem:[%s1541 + $0xb8] sm:$0xff]
      %v1566 = vld [vmem:[%s1541 + $0xc0] sm:$0xff]
      %v1567 = vld [vmem:[%s1541 + $0xc8] sm:$0xff]
      %v1568 = vld [vmem:[%s1541 + $0xd0] sm:$0xff]
      %v1569 = vld [vmem:[%s1541 + $0xd8] sm:$0xff]
      %v1570 = vld [vmem:[%s1541 + $0xe0] sm:$0xff]
      %v1571 = vld [vmem:[%s1541 + $0xe8] sm:$0xff]
      %v1572 = vld [vmem:[%s1541 + $0xf0] sm:$0xff]
      %v1573 = vld [vmem:[%s1541 + $0xf8] sm:$0xff]
      %v1574 = vpack.c.bf16 %v1538, %v1538
      %s1575 = smul.u32 %s858, 4
      %s1576 = scalar_lea.vmem %s49, %s1575
      %v1577 = vld [vmem:[%s1576] sm:$0xf]
      %v1579 = vlaneseq
      %v1580 = vshrl.u32 %v1579, 7
      %v1581 = vsub.s32 0, %v1580
      %v1582 = vrot.slane %v1577, %v1581
      %v1583 = vlaneseq
      %v1584 = vshrl.u32 %v1583, 7
      %v1585 = vsub.s32 1, %v1584
      %v1586 = vrot.slane %v1577, %v1585
      %v1587 = vlaneseq
      %v1588 = vshrl.u32 %v1587, 7
      %v1589 = vsub.s32 2, %v1588
      %v1590 = vrot.slane %v1577, %v1589
      %v1591 = vlaneseq
      %v1592 = vshrl.u32 %v1591, 7
      %v1593 = vsub.s32 3, %v1592
      %v1594 = vrot.slane %v1577, %v1593
      %v1631 = vunpack.c.l.b16 %v1542
      %v1632 = vunpack.c.h.b16 %v1542
      %v1633 = vunpack.c.l.b16 %v1543
      %v1634 = vunpack.c.h.b16 %v1543
      %v1635 = vunpack.c.l.b16 %v1544
      %v1636 = vunpack.c.h.b16 %v1544
      %v1637 = vunpack.c.l.b16 %v1545
      %v1638 = vunpack.c.h.b16 %v1545
      %v1639 = vunpack.c.l.b16 %v1546
      %v1640 = vunpack.c.h.b16 %v1546
      %v1641 = vunpack.c.l.b16 %v1547
      %v1642 = vunpack.c.h.b16 %v1547
      %v1643 = vunpack.c.l.b16 %v1548
      %v1644 = vunpack.c.h.b16 %v1548
      %v1645 = vunpack.c.l.b16 %v1549
      %v1646 = vunpack.c.h.b16 %v1549
      %v1647 = vunpack.c.l.b16 %v1550
      %v1648 = vunpack.c.h.b16 %v1550
      %v1649 = vunpack.c.l.b16 %v1551
      %v1650 = vunpack.c.h.b16 %v1551
      %v1651 = vunpack.c.l.b16 %v1552
      %v1652 = vunpack.c.h.b16 %v1552
      %v1653 = vunpack.c.l.b16 %v1553
      %v1654 = vunpack.c.h.b16 %v1553
      %v1655 = vunpack.c.l.b16 %v1554
      %v1656 = vunpack.c.h.b16 %v1554
      %v1657 = vunpack.c.l.b16 %v1555
      %v1658 = vunpack.c.h.b16 %v1555
      %v1659 = vunpack.c.l.b16 %v1556
      %v1660 = vunpack.c.h.b16 %v1556
      %v1661 = vunpack.c.l.b16 %v1557
      %v1662 = vunpack.c.h.b16 %v1557
      %v1663 = vunpack.c.l.b16 %v1558
      %v1664 = vunpack.c.h.b16 %v1558
      %v1665 = vunpack.c.l.b16 %v1559
      %v1666 = vunpack.c.h.b16 %v1559
      %v1667 = vunpack.c.l.b16 %v1560
      %v1668 = vunpack.c.h.b16 %v1560
      %v1669 = vunpack.c.l.b16 %v1561
      %v1670 = vunpack.c.h.b16 %v1561
      %v1671 = vunpack.c.l.b16 %v1562
      %v1672 = vunpack.c.h.b16 %v1562
      %v1673 = vunpack.c.l.b16 %v1563
      %v1674 = vunpack.c.h.b16 %v1563
      %v1675 = vunpack.c.l.b16 %v1564
      %v1676 = vunpack.c.h.b16 %v1564
      %v1677 = vunpack.c.l.b16 %v1565
      %v1678 = vunpack.c.h.b16 %v1565
      %v1679 = vunpack.c.l.b16 %v1566
      %v1680 = vunpack.c.h.b16 %v1566
      %v1681 = vunpack.c.l.b16 %v1567
      %v1682 = vunpack.c.h.b16 %v1567
      %v1683 = vunpack.c.l.b16 %v1568
      %v1684 = vunpack.c.h.b16 %v1568
      %v1685 = vunpack.c.l.b16 %v1569
      %v1686 = vunpack.c.h.b16 %v1569
      %v1687 = vunpack.c.l.b16 %v1570
      %v1688 = vunpack.c.h.b16 %v1570
      %v1689 = vunpack.c.l.b16 %v1571
      %v1690 = vunpack.c.h.b16 %v1571
      %v1691 = vunpack.c.l.b16 %v1572
      %v1692 = vunpack.c.h.b16 %v1572
      %v1693 = vunpack.c.l.b16 %v1573
      %v1694 = vunpack.c.h.b16 %v1573
      %v1695 = vpack.c.b16 %v1635, %v1631
      %v1696 = vpack.c.b16 %v1636, %v1632
      %v1697 = vpack.c.b16 %v1637, %v1633
      %v1698 = vpack.c.b16 %v1638, %v1634
      %v1699 = vpack.c.b16 %v1643, %v1639
      %v1700 = vpack.c.b16 %v1644, %v1640
      %v1701 = vpack.c.b16 %v1645, %v1641
      %v1702 = vpack.c.b16 %v1646, %v1642
      %v1703 = vpack.c.b16 %v1651, %v1647
      %v1704 = vpack.c.b16 %v1652, %v1648
      %v1705 = vpack.c.b16 %v1653, %v1649
      %v1706 = vpack.c.b16 %v1654, %v1650
      %v1707 = vpack.c.b16 %v1659, %v1655
      %v1708 = vpack.c.b16 %v1660, %v1656
      %v1709 = vpack.c.b16 %v1661, %v1657
      %v1710 = vpack.c.b16 %v1662, %v1658
      %v1711 = vpack.c.b16 %v1667, %v1663
      %v1712 = vpack.c.b16 %v1668, %v1664
      %v1713 = vpack.c.b16 %v1669, %v1665
      %v1714 = vpack.c.b16 %v1670, %v1666
      %v1715 = vpack.c.b16 %v1675, %v1671
      %v1716 = vpack.c.b16 %v1676, %v1672
      %v1717 = vpack.c.b16 %v1677, %v1673
      %v1718 = vpack.c.b16 %v1678, %v1674
      %v1719 = vpack.c.b16 %v1683, %v1679
      %v1720 = vpack.c.b16 %v1684, %v1680
      %v1721 = vpack.c.b16 %v1685, %v1681
      %v1722 = vpack.c.b16 %v1686, %v1682
      %v1723 = vpack.c.b16 %v1691, %v1687
      %v1724 = vpack.c.b16 %v1692, %v1688
      %v1725 = vpack.c.b16 %v1693, %v1689
      %v1726 = vpack.c.b16 %v1694, %v1690
      %1759 = vmatprep.subr.bf16.mxu0 %v1696
      %1760 = vmatpush1.bf16.msra.mxu0 %v1695
      %1761 = vmatprep.subr.bf16.mxu0 %v1700
      %1762 = vmatpush1.bf16.msra.mxu0 %v1699
      %1763 = vmatprep.subr.bf16.mxu0 %v1704
      %1764 = vmatpush1.bf16.msra.mxu0 %v1703
      %1765 = vmatprep.subr.bf16.mxu0 %v1708
      %1766 = vmatpush1.bf16.msra.mxu0 %v1707
      %1767 = vmatprep.subr.bf16.mxu0 %v1712
      %1768 = vmatpush1.bf16.msra.mxu0 %v1711
      %1769 = vmatprep.subr.bf16.mxu0 %v1716
      %1770 = vmatpush1.bf16.msra.mxu0 %v1715
      %1771 = vmatprep.subr.bf16.mxu0 %v1720
      %1772 = vmatpush1.bf16.msra.mxu0 %v1719
      %1773 = vmatprep.subr.bf16.mxu0 %v1724
      %1774 = vmatpush1.bf16.msra.mxu0 %v1723
      %1775 = vmatprep.subr.bf16.mxu0 0
      %1776 = vmatpush1.bf16.msra.mxu0 0
      %1777 = vmatprep.subr.bf16.mxu0 0
      %1778 = vmatpush1.bf16.msra.mxu0 0
      %1779 = vmatprep.subr.bf16.mxu0 0
      %1780 = vmatpush1.bf16.msra.mxu0 0
      %1781 = vmatprep.subr.bf16.mxu0 0
      %1782 = vmatpush1.bf16.msra.mxu0 0
      %1783 = vmatprep.subr.bf16.mxu0 0
      %1784 = vmatpush1.bf16.msra.mxu0 0
      %1785 = vmatprep.subr.bf16.mxu0 0
      %1786 = vmatpush1.bf16.msra.mxu0 0
      %1787 = vmatprep.subr.bf16.mxu0 0
      %1788 = vmatpush1.bf16.msra.mxu0 0
      %1789 = vmatprep.subr.bf16.mxu0 0
      %1790 = vmatpush1.bf16.msra.mxu0 0
      %1791 = vmatprep.mubr.bf16.mxu0 0
      %1792 = vmatmul.mubr.bf16.gmra.mrb[0].mxu0 %v1574
      %v1793 = vpop.f32.mrb[0].mxu0
      %v1794 = vadd.f32 %v1582, %v1793
      %v1795 = vpop.f32.mrb[0].mxu0
      %v1796 = vadd.f32 %v1586, %v1795
      %v1797 = vpop.f32.mrb[0].mxu0
      %v1798 = vpop.f32.mrb[0].mxu0
      %1799 = vdwg.mxu0
      %1800 = vmatprep.subr.bf16.mxu0 %v1698
      %1801 = vmatpush1.bf16.msra.mxu0 %v1697
      %1802 = vmatprep.subr.bf16.mxu0 %v1702
      %1803 = vmatpush1.bf16.msra.mxu0 %v1701
      %1804 = vmatprep.subr.bf16.mxu0 %v1706
      %1805 = vmatpush1.bf16.msra.mxu0 %v1705
      %1806 = vmatprep.subr.bf16.mxu0 %v1710
      %1807 = vmatpush1.bf16.msra.mxu0 %v1709
      %1808 = vmatprep.subr.bf16.mxu0 %v1714
      %1809 = vmatpush1.bf16.msra.mxu0 %v1713
      %1810 = vmatprep.subr.bf16.mxu0 %v1718
      %1811 = vmatpush1.bf16.msra.mxu0 %v1717
      %1812 = vmatprep.subr.bf16.mxu0 %v1722
      %1813 = vmatpush1.bf16.msra.mxu0 %v1721
      %1814 = vmatprep.subr.bf16.mxu0 %v1726
      %1815 = vmatpush1.bf16.msra.mxu0 %v1725
      %1816 = vmatprep.subr.bf16.mxu0 0
      %1817 = vmatpush1.bf16.msra.mxu0 0
      %1818 = vmatprep.subr.bf16.mxu0 0
      %1819 = vmatpush1.bf16.msra.mxu0 0
      %1820 = vmatprep.subr.bf16.mxu0 0
      %1821 = vmatpush1.bf16.msra.mxu0 0
      %1822 = vmatprep.subr.bf16.mxu0 0
      %1823 = vmatpush1.bf16.msra.mxu0 0
      %1824 = vmatprep.subr.bf16.mxu0 0
      %1825 = vmatpush1.bf16.msra.mxu0 0
      %1826 = vmatprep.subr.bf16.mxu0 0
      %1827 = vmatpush1.bf16.msra.mxu0 0
      %1828 = vmatprep.subr.bf16.mxu0 0
      %1829 = vmatpush1.bf16.msra.mxu0 0
      %1830 = vmatprep.subr.bf16.mxu0 0
      %1831 = vmatpush1.bf16.msra.mxu0 0
      %1832 = vmatprep.mubr.bf16.mxu0 0
      %1833 = vmatmul.mubr.bf16.gmra.mrb[0].mxu0 %v1574
      %v1834 = vpop.f32.mrb[0].mxu0
      %v1835 = vadd.f32 %v1590, %v1834
      %v1836 = vpop.f32.mrb[0].mxu0
      %v1837 = vadd.f32 %v1594, %v1836
      %v1838 = vpop.f32.mrb[0].mxu0
      %v1839 = vpop.f32.mrb[0].mxu0
      %1840 = vdwg.mxu0
      %v1841 = vmul.f32 %v1794, %v1794
      %v1842 = vmul.f32 %v1796, %v1796
      %v1843 = vmul.f32 %v1835, %v1835
      %v1844 = vmul.f32 %v1837, %v1837
      %v1845 = vmul.f32 %v1794, %v1841
      %v1846 = vmul.f32 %v1796, %v1842
      %v1847 = vmul.f32 %v1835, %v1843
      %v1848 = vmul.f32 %v1837, %v1844
      %v1849 = vmul.f32 %v1845, 0.044715
      %v1850 = vmul.f32 %v1846, 0.044715
      %v1851 = vmul.f32 %v1847, 0.044715
      %v1852 = vmul.f32 %v1848, 0.044715
      %v1853 = vadd.f32 %v1794, %v1849
      %v1854 = vadd.f32 %v1796, %v1850
      %v1855 = vadd.f32 %v1835, %v1851
      %v1856 = vadd.f32 %v1837, %v1852
      %v1857 = vmul.f32 %v1853, 0.7978846
      %v1858 = vmul.f32 %v1854, 0.7978846
      %v1859 = vmul.f32 %v1855, 0.7978846
      %v1860 = vmul.f32 %v1856, 0.7978846
      %v1861 = vtanh.pop %v1857
      %v1862 = vtanh.pop %v1858
      %v1863 = vtanh.pop %v1859
      %v1864 = vtanh.pop %v1860
      %v1865 = vadd.f32 %v1861, 1.0
      %v1866 = vadd.f32 %v1862, 1.0
      %v1867 = vadd.f32 %v1863, 1.0
      %v1868 = vadd.f32 %v1864, 1.0
      %v1869 = vmul.f32 %v1865, 0.5
      %v1870 = vmul.f32 %v1866, 0.5
      %v1871 = vmul.f32 %v1867, 0.5
      %v1872 = vmul.f32 %v1868, 0.5
      %v1873 = vmul.f32 %v1794, %v1869
      %v1874 = vmul.f32 %v1796, %v1870
      %v1875 = vmul.f32 %v1835, %v1871
      %v1876 = vmul.f32 %v1837, %v1872
      %s1877 = smul.addr %s1539, 4
      %s1878 = scalar_lea.vmem %s51, %s1877
      %v1879 = vld [vmem:[%s1878] sm:$0xf]
      %v1880 = vld [vmem:[%s1878 + $0x4] sm:$0xf]
      %v1881 = vld [vmem:[%s1878 + $0x8] sm:$0xf]
      %v1882 = vld [vmem:[%s1878 + $0xc] sm:$0xf]
      %v1883 = vld [vmem:[%s1878 + $0x10] sm:$0xf]
      %v1884 = vld [vmem:[%s1878 + $0x14] sm:$0xf]
      %v1885 = vld [vmem:[%s1878 + $0x18] sm:$0xf]
      %v1886 = vld [vmem:[%s1878 + $0x1c] sm:$0xf]
      %v1887 = vld [vmem:[%s1878 + $0x20] sm:$0xf]
      %v1888 = vld [vmem:[%s1878 + $0x24] sm:$0xf]
      %v1889 = vld [vmem:[%s1878 + $0x28] sm:$0xf]
      %v1890 = vld [vmem:[%s1878 + $0x2c] sm:$0xf]
      %v1891 = vld [vmem:[%s1878 + $0x30] sm:$0xf]
      %v1892 = vld [vmem:[%s1878 + $0x34] sm:$0xf]
      %v1893 = vld [vmem:[%s1878 + $0x38] sm:$0xf]
      %v1894 = vld [vmem:[%s1878 + $0x3c] sm:$0xf]
      %v1895 = vld [vmem:[%s1878 + $0x40] sm:$0xf]
      %v1896 = vld [vmem:[%s1878 + $0x44] sm:$0xf]
      %v1897 = vld [vmem:[%s1878 + $0x48] sm:$0xf]
      %v1898 = vld [vmem:[%s1878 + $0x4c] sm:$0xf]
      %v1899 = vld [vmem:[%s1878 + $0x50] sm:$0xf]
      %v1900 = vld [vmem:[%s1878 + $0x54] sm:$0xf]
      %v1901 = vld [vmem:[%s1878 + $0x58] sm:$0xf]
      %v1902 = vld [vmem:[%s1878 + $0x5c] sm:$0xf]
      %v1903 = vld [vmem:[%s1878 + $0x60] sm:$0xf]
      %v1904 = vld [vmem:[%s1878 + $0x64] sm:$0xf]
      %v1905 = vld [vmem:[%s1878 + $0x68] sm:$0xf]
      %v1906 = vld [vmem:[%s1878 + $0x6c] sm:$0xf]
      %v1907 = vld [vmem:[%s1878 + $0x70] sm:$0xf]
      %v1908 = vld [vmem:[%s1878 + $0x74] sm:$0xf]
      %v1909 = vld [vmem:[%s1878 + $0x78] sm:$0xf]
      %v1910 = vld [vmem:[%s1878 + $0x7c] sm:$0xf]
      %v1911 = vld [vmem:[%s1878 + $0x80] sm:$0xf]
      %v1912 = vld [vmem:[%s1878 + $0x84] sm:$0xf]
      %v1913 = vld [vmem:[%s1878 + $0x88] sm:$0xf]
      %v1914 = vld [vmem:[%s1878 + $0x8c] sm:$0xf]
      %v1915 = vld [vmem:[%s1878 + $0x90] sm:$0xf]
      %v1916 = vld [vmem:[%s1878 + $0x94] sm:$0xf]
      %v1917 = vld [vmem:[%s1878 + $0x98] sm:$0xf]
      %v1918 = vld [vmem:[%s1878 + $0x9c] sm:$0xf]
      %v1919 = vld [vmem:[%s1878 + $0xa0] sm:$0xf]
      %v1920 = vld [vmem:[%s1878 + $0xa4] sm:$0xf]
      %v1921 = vld [vmem:[%s1878 + $0xa8] sm:$0xf]
      %v1922 = vld [vmem:[%s1878 + $0xac] sm:$0xf]
      %v1923 = vld [vmem:[%s1878 + $0xb0] sm:$0xf]
      %v1924 = vld [vmem:[%s1878 + $0xb4] sm:$0xf]
      %v1925 = vld [vmem:[%s1878 + $0xb8] sm:$0xf]
      %v1926 = vld [vmem:[%s1878 + $0xbc] sm:$0xf]
      %v1927 = vld [vmem:[%s1878 + $0xc0] sm:$0xf]
      %v1928 = vld [vmem:[%s1878 + $0xc4] sm:$0xf]
      %v1929 = vld [vmem:[%s1878 + $0xc8] sm:$0xf]
      %v1930 = vld [vmem:[%s1878 + $0xcc] sm:$0xf]
      %v1931 = vld [vmem:[%s1878 + $0xd0] sm:$0xf]
      %v1932 = vld [vmem:[%s1878 + $0xd4] sm:$0xf]
      %v1933 = vld [vmem:[%s1878 + $0xd8] sm:$0xf]
      %v1934 = vld [vmem:[%s1878 + $0xdc] sm:$0xf]
      %v1935 = vld [vmem:[%s1878 + $0xe0] sm:$0xf]
      %v1936 = vld [vmem:[%s1878 + $0xe4] sm:$0xf]
      %v1937 = vld [vmem:[%s1878 + $0xe8] sm:$0xf]
      %v1938 = vld [vmem:[%s1878 + $0xec] sm:$0xf]
      %v1939 = vld [vmem:[%s1878 + $0xf0] sm:$0xf]
      %v1940 = vld [vmem:[%s1878 + $0xf4] sm:$0xf]
      %v1941 = vld [vmem:[%s1878 + $0xf8] sm:$0xf]
      %v1942 = vld [vmem:[%s1878 + $0xfc] sm:$0xf]
      %v1943 = vpack.c.bf16 %v1873, %v1873
      %v1944 = vpack.c.bf16 %v1874, %v1874
      %v1945 = vpack.c.bf16 %v1875, %v1875
      %v1946 = vpack.c.bf16 %v1876, %v1876
      %s1947 = scalar_lea.vmem %s53, %s858
      %v1948 = vld [vmem:[%s1947] sm:$0x1]
      %v1950 = vlaneseq
      %v1951 = vshrl.u32 %v1950, 7
      %v1952 = vsub.s32 0, %v1951
      %v1953 = vrot.slane %v1948, %v1952
      %v2019 = vunpack.c.l.b16 %v1879
      %v2020 = vunpack.c.l.b16 %v1880
      %v2021 = vunpack.c.l.b16 %v1881
      %v2022 = vunpack.c.l.b16 %v1882
      %v2023 = vunpack.c.l.b16 %v1883
      %v2024 = vunpack.c.l.b16 %v1884
      %v2025 = vunpack.c.l.b16 %v1885
      %v2026 = vunpack.c.l.b16 %v1886
      %v2027 = vunpack.c.l.b16 %v1887
      %v2028 = vunpack.c.l.b16 %v1888
      %v2029 = vunpack.c.l.b16 %v1889
      %v2030 = vunpack.c.l.b16 %v1890
      %v2031 = vunpack.c.l.b16 %v1891
      %v2032 = vunpack.c.l.b16 %v1892
      %v2033 = vunpack.c.l.b16 %v1893
      %v2034 = vunpack.c.l.b16 %v1894
      %v2035 = vunpack.c.l.b16 %v1895
      %v2036 = vunpack.c.l.b16 %v1896
      %v2037 = vunpack.c.l.b16 %v1897
      %v2038 = vunpack.c.l.b16 %v1898
      %v2039 = vunpack.c.l.b16 %v1899
      %v2040 = vunpack.c.l.b16 %v1900
      %v2041 = vunpack.c.l.b16 %v1901
      %v2042 = vunpack.c.l.b16 %v1902
      %v2043 = vunpack.c.l.b16 %v1903
      %v2044 = vunpack.c.l.b16 %v1904
      %v2045 = vunpack.c.l.b16 %v1905
      %v2046 = vunpack.c.l.b16 %v1906
      %v2047 = vunpack.c.l.b16 %v1907
      %v2048 = vunpack.c.l.b16 %v1908
      %v2049 = vunpack.c.l.b16 %v1909
      %v2050 = vunpack.c.l.b16 %v1910
      %v2051 = vunpack.c.l.b16 %v1911
      %v2052 = vunpack.c.l.b16 %v1912
      %v2053 = vunpack.c.l.b16 %v1913
      %v2054 = vunpack.c.l.b16 %v1914
      %v2055 = vunpack.c.l.b16 %v1915
      %v2056 = vunpack.c.l.b16 %v1916
      %v2057 = vunpack.c.l.b16 %v1917
      %v2058 = vunpack.c.l.b16 %v1918
      %v2059 = vunpack.c.l.b16 %v1919
      %v2060 = vunpack.c.l.b16 %v1920
      %v2061 = vunpack.c.l.b16 %v1921
      %v2062 = vunpack.c.l.b16 %v1922
      %v2063 = vunpack.c.l.b16 %v1923
      %v2064 = vunpack.c.l.b16 %v1924
      %v2065 = vunpack.c.l.b16 %v1925
      %v2066 = vunpack.c.l.b16 %v1926
      %v2067 = vunpack.c.l.b16 %v1927
      %v2068 = vunpack.c.l.b16 %v1928
      %v2069 = vunpack.c.l.b16 %v1929
      %v2070 = vunpack.c.l.b16 %v1930
      %v2071 = vunpack.c.l.b16 %v1931
      %v2072 = vunpack.c.l.b16 %v1932
      %v2073 = vunpack.c.l.b16 %v1933
      %v2074 = vunpack.c.l.b16 %v1934
      %v2075 = vunpack.c.l.b16 %v1935
      %v2076 = vunpack.c.l.b16 %v1936
      %v2077 = vunpack.c.l.b16 %v1937
      %v2078 = vunpack.c.l.b16 %v1938
      %v2079 = vunpack.c.l.b16 %v1939
      %v2080 = vunpack.c.l.b16 %v1940
      %v2081 = vunpack.c.l.b16 %v1941
      %v2082 = vunpack.c.l.b16 %v1942
      %v2083 = vpack.c.b16 %v2020, %v2019
      %v2084 = vpack.c.b16 %v2022, %v2021
      %v2085 = vpack.c.b16 %v2024, %v2023
      %v2086 = vpack.c.b16 %v2026, %v2025
      %v2087 = vpack.c.b16 %v2028, %v2027
      %v2088 = vpack.c.b16 %v2030, %v2029
      %v2089 = vpack.c.b16 %v2032, %v2031
      %v2090 = vpack.c.b16 %v2034, %v2033
      %v2091 = vpack.c.b16 %v2036, %v2035
      %v2092 = vpack.c.b16 %v2038, %v2037
      %v2093 = vpack.c.b16 %v2040, %v2039
      %v2094 = vpack.c.b16 %v2042, %v2041
      %v2095 = vpack.c.b16 %v2044, %v2043
      %v2096 = vpack.c.b16 %v2046, %v2045
      %v2097 = vpack.c.b16 %v2048, %v2047
      %v2098 = vpack.c.b16 %v2050, %v2049
      %v2099 = vpack.c.b16 %v2052, %v2051
      %v2100 = vpack.c.b16 %v2054, %v2053
      %v2101 = vpack.c.b16 %v2056, %v2055
      %v2102 = vpack.c.b16 %v2058, %v2057
      %v2103 = vpack.c.b16 %v2060, %v2059
      %v2104 = vpack.c.b16 %v2062, %v2061
      %v2105 = vpack.c.b16 %v2064, %v2063
      %v2106 = vpack.c.b16 %v2066, %v2065
      %v2107 = vpack.c.b16 %v2068, %v2067
      %v2108 = vpack.c.b16 %v2070, %v2069
      %v2109 = vpack.c.b16 %v2072, %v2071
      %v2110 = vpack.c.b16 %v2074, %v2073
      %v2111 = vpack.c.b16 %v2076, %v2075
      %v2112 = vpack.c.b16 %v2078, %v2077
      %v2113 = vpack.c.b16 %v2080, %v2079
      %v2114 = vpack.c.b16 %v2082, %v2081
      %2147 = vmatprep.subr.bf16.mxu0 0
      %2148 = vmatpush1.bf16.msra.mxu0 %v2083
      %2149 = vmatprep.subr.bf16.mxu0 0
      %2150 = vmatpush1.bf16.msra.mxu0 %v2084
      %2151 = vmatprep.subr.bf16.mxu0 0
      %2152 = vmatpush1.bf16.msra.mxu0 %v2085
      %2153 = vmatprep.subr.bf16.mxu0 0
      %2154 = vmatpush1.bf16.msra.mxu0 %v2086
      %2155 = vmatprep.subr.bf16.mxu0 0
      %2156 = vmatpush1.bf16.msra.mxu0 %v2087
      %2157 = vmatprep.subr.bf16.mxu0 0
      %2158 = vmatpush1.bf16.msra.mxu0 %v2088
      %2159 = vmatprep.subr.bf16.mxu0 0
      %2160 = vmatpush1.bf16.msra.mxu0 %v2089
      %2161 = vmatprep.subr.bf16.mxu0 0
      %2162 = vmatpush1.bf16.msra.mxu0 %v2090
      %2163 = vmatprep.subr.bf16.mxu0 0
      %2164 = vmatpush1.bf16.msra.mxu0 %v2091
      %2165 = vmatprep.subr.bf16.mxu0 0
      %2166 = vmatpush1.bf16.msra.mxu0 %v2092
      %2167 = vmatprep.subr.bf16.mxu0 0
      %2168 = vmatpush1.bf16.msra.mxu0 %v2093
      %2169 = vmatprep.subr.bf16.mxu0 0
      %2170 = vmatpush1.bf16.msra.mxu0 %v2094
      %2171 = vmatprep.subr.bf16.mxu0 0
      %2172 = vmatpush1.bf16.msra.mxu0 %v2095
      %2173 = vmatprep.subr.bf16.mxu0 0
      %2174 = vmatpush1.bf16.msra.mxu0 %v2096
      %2175 = vmatprep.subr.bf16.mxu0 0
      %2176 = vmatpush1.bf16.msra.mxu0 %v2097
      %2177 = vmatprep.subr.bf16.mxu0 0
      %2178 = vmatpush1.bf16.msra.mxu0 %v2098
      %2179 = vmatprep.mubr.bf16.mxu0 %v1944
      %2180 = vmatmul.mubr.bf16.gmra.mrb[0].mxu0 %v1943
      %v2181 = vpop.f32.mrb[0].mxu0
      %v2182 = vadd.f32 %v1953, %v2181
      %v2183 = vpop.f32.mrb[0].mxu0
      %v2184 = vpop.f32.mrb[0].mxu0
      %v2185 = vpop.f32.mrb[0].mxu0
      %2186 = vdwg.mxu0
      %2187 = vmatprep.subr.bf16.mxu0 0
      %2188 = vmatpush1.bf16.msra.mxu0 %v2099
      %2189 = vmatprep.subr.bf16.mxu0 0
      %2190 = vmatpush1.bf16.msra.mxu0 %v2100
      %2191 = vmatprep.subr.bf16.mxu0 0
      %2192 = vmatpush1.bf16.msra.mxu0 %v2101
      %2193 = vmatprep.subr.bf16.mxu0 0
      %2194 = vmatpush1.bf16.msra.mxu0 %v2102
      %2195 = vmatprep.subr.bf16.mxu0 0
      %2196 = vmatpush1.bf16.msra.mxu0 %v2103
      %2197 = vmatprep.subr.bf16.mxu0 0
      %2198 = vmatpush1.bf16.msra.mxu0 %v2104
      %2199 = vmatprep.subr.bf16.mxu0 0
      %2200 = vmatpush1.bf16.msra.mxu0 %v2105
      %2201 = vmatprep.subr.bf16.mxu0 0
      %2202 = vmatpush1.bf16.msra.mxu0 %v2106
      %2203 = vmatprep.subr.bf16.mxu0 0
      %2204 = vmatpush1.bf16.msra.mxu0 %v2107
      %2205 = vmatprep.subr.bf16.mxu0 0
      %2206 = vmatpush1.bf16.msra.mxu0 %v2108
      %2207 = vmatprep.subr.bf16.mxu0 0
      %2208 = vmatpush1.bf16.msra.mxu0 %v2109
      %2209 = vmatprep.subr.bf16.mxu0 0
      %2210 = vmatpush1.bf16.msra.mxu0 %v2110
      %2211 = vmatprep.subr.bf16.mxu0 0
      %2212 = vmatpush1.bf16.msra.mxu0 %v2111
      %2213 = vmatprep.subr.bf16.mxu0 0
      %2214 = vmatpush1.bf16.msra.mxu0 %v2112
      %2215 = vmatprep.subr.bf16.mxu0 0
      %2216 = vmatpush1.bf16.msra.mxu0 %v2113
      %2217 = vmatprep.subr.bf16.mxu0 0
      %2218 = vmatpush1.bf16.msra.mxu0 %v2114
      %2219 = vmatprep.mubr.bf16.mxu0 %v1946
      %2220 = vmatmul.mubr.bf16.gmra.mrb[0].mxu0 %v1945
      %v2221 = vpop.f32.mrb[0].mxu0
      %v2222 = vadd.f32 %v2182, %v2221
      %v2223 = vpop.f32.mrb[0].mxu0
      %v2224 = vpop.f32.mrb[0].mxu0
      %v2225 = vpop.f32.mrb[0].mxu0
      %2226 = vdwg.mxu0
      %v2227 = vmul.f32 %v2222, %v2222
      %v2228 = vmul.f32 %v2222, %v2227
      %v2229 = vmul.f32 %v2228, 0.044715
      %v2230 = vadd.f32 %v2222, %v2229
      %v2231 = vmul.f32 %v2230, 0.7978846
      %v2232 = vtanh.pop %v2231
      %v2233 = vadd.f32 %v2232, 1.0
      %v2234 = vmul.f32 %v2233, 0.5
      %v2235 = vmul.f32 %v2222, %v2234
      %v2236 = vadd.f32 %v2235, %v1507
    $region150: #{gsgm_forward.5} parent=1 // loop_footer
      %s862 = sadd.s32 1, %s858
    $region151: #{gsgm_forward.5} parent=1 // loop_footer_branch
      %857 = sbr.rel target = $region147
    $region152: #{gsgm_forward.5} parent=1 // loop_exit
      _
    %v2237 = vld [vmem:[#allocation2] sm:$0x1]
    %v2238 = vld [vmem:[#allocation5] sm:$0x1]
    %vm2239 = vcmask 1043456
    %v2240 = vsel %vm2239, %v863, 0.0
    %2241 = vadd.xlane.f32.xlu0 %v2240
    %v2242 = vpop.xlane.xlu0 %2241
    %v2243 = vrcp.pop 128.0
    %v2244 = vmul.f32 %v2242, %v2243
    %v2245 = vsub.f32 %v863, %v2244
    %v2246 = vmul.f32 %v2245, %v2245
    %v2247 = vsel %vm2239, %v2246, 0.0
    %2248 = vadd.xlane.f32.xlu0 %v2247
    %v2249 = vpop.xlane.xlu0 %2248
    %v2250 = vmul.f32 %v2249, %v2243
    %v2251 = vadd.f32 %v2250, 1e-05
    %v2252 = vrsqrt.pop %v2251
    %v2253 = vmul.f32 %v2245, %v2252
    %v2255 = vlaneseq
    %v2256 = vshrl.u32 %v2255, 7
    %v2257 = vsub.s32 0, %v2256
    %v2258 = vrot.slane %v2237, %v2257
    %v2260 = vmul.f32 %v2253, %v2258
    %v2262 = vlaneseq
    %v2263 = vshrl.u32 %v2262, 7
    %v2264 = vsub.s32 0, %v2263
    %v2265 = vrot.slane %v2238, %v2264
    %v2267 = vadd.f32 %v2260, %v2265
    %v2268 = vld [vmem:[%s59] sm:$0xff]
    %v2269 = vld [vmem:[%s59 + $0x8] sm:$0xff]
    %v2270 = vld [vmem:[%s59 + $0x10] sm:$0xff]
    %v2271 = vld [vmem:[%s59 + $0x18] sm:$0xff]
    %v2272 = vld [vmem:[%s59 + $0x20] sm:$0xff]
    %v2273 = vld [vmem:[%s59 + $0x28] sm:$0xff]
    %v2274 = vld [vmem:[%s59 + $0x30] sm:$0xff]
    %v2275 = vld [vmem:[%s59 + $0x38] sm:$0xff]
    %v2276 = vld [vmem:[%s59 + $0x40] sm:$0xff]
    %v2277 = vld [vmem:[%s59 + $0x48] sm:$0xff]
    %v2278 = vld [vmem:[%s59 + $0x50] sm:$0xff]
    %v2279 = vld [vmem:[%s59 + $0x58] sm:$0xff]
    %v2280 = vld [vmem:[%s59 + $0x60] sm:$0xff]
    %v2281 = vld [vmem:[%s59 + $0x68] sm:$0xff]
    %v2282 = vld [vmem:[%s59 + $0x70] sm:$0xff]
    %v2283 = vld [vmem:[%s59 + $0x78] sm:$0xff]
    %v2284 = vpack.c.bf16 %v2267, %v2267
    %v2285 = vld [vmem:[%s61] sm:$0x3]
    %v2287 = vlaneseq
    %v2288 = vshrl.u32 %v2287, 7
    %v2289 = vsub.s32 0, %v2288
    %v2290 = vrot.slane %v2285, %v2289
    %v2291 = vlaneseq
    %v2292 = vshrl.u32 %v2291, 7
    %v2293 = vsub.s32 1, %v2292
    %v2294 = vrot.slane %v2285, %v2293
    %v2313 = vunpack.c.l.b16 %v2268
    %v2314 = vunpack.c.h.b16 %v2268
    %v2315 = vunpack.c.l.b16 %v2269
    %v2316 = vunpack.c.h.b16 %v2269
    %v2317 = vunpack.c.l.b16 %v2270
    %v2318 = vunpack.c.h.b16 %v2270
    %v2319 = vunpack.c.l.b16 %v2271
    %v2320 = vunpack.c.h.b16 %v2271
    %v2321 = vunpack.c.l.b16 %v2272
    %v2322 = vunpack.c.h.b16 %v2272
    %v2323 = vunpack.c.l.b16 %v2273
    %v2324 = vunpack.c.h.b16 %v2273
    %v2325 = vunpack.c.l.b16 %v2274
    %v2326 = vunpack.c.h.b16 %v2274
    %v2327 = vunpack.c.l.b16 %v2275
    %v2328 = vunpack.c.h.b16 %v2275
    %v2329 = vunpack.c.l.b16 %v2276
    %v2330 = vunpack.c.h.b16 %v2276
    %v2331 = vunpack.c.l.b16 %v2277
    %v2332 = vunpack.c.h.b16 %v2277
    %v2333 = vunpack.c.l.b16 %v2278
    %v2334 = vunpack.c.h.b16 %v2278
    %v2335 = vunpack.c.l.b16 %v2279
    %v2336 = vunpack.c.h.b16 %v2279
    %v2337 = vunpack.c.l.b16 %v2280
    %v2338 = vunpack.c.h.b16 %v2280
    %v2339 = vunpack.c.l.b16 %v2281
    %v2340 = vunpack.c.h.b16 %v2281
    %v2341 = vunpack.c.l.b16 %v2282
    %v2342 = vunpack.c.h.b16 %v2282
    %v2343 = vunpack.c.l.b16 %v2283
    %v2344 = vunpack.c.h.b16 %v2283
    %v2345 = vpack.c.b16 %v2315, %v2313
    %v2346 = vpack.c.b16 %v2316, %v2314
    %v2347 = vpack.c.b16 %v2319, %v2317
    %v2348 = vpack.c.b16 %v2320, %v2318
    %v2349 = vpack.c.b16 %v2323, %v2321
    %v2350 = vpack.c.b16 %v2324, %v2322
    %v2351 = vpack.c.b16 %v2327, %v2325
    %v2352 = vpack.c.b16 %v2328, %v2326
    %v2353 = vpack.c.b16 %v2331, %v2329
    %v2354 = vpack.c.b16 %v2332, %v2330
    %v2355 = vpack.c.b16 %v2335, %v2333
    %v2356 = vpack.c.b16 %v2336, %v2334
    %v2357 = vpack.c.b16 %v2339, %v2337
    %v2358 = vpack.c.b16 %v2340, %v2338
    %v2359 = vpack.c.b16 %v2343, %v2341
    %v2360 = vpack.c.b16 %v2344, %v2342
    %2377 = vmatprep.subr.bf16.mxu0 %v2346
    %2378 = vmatpush1.bf16.msra.mxu0 %v2345
    %2379 = vmatprep.subr.bf16.mxu0 %v2348
    %2380 = vmatpush1.bf16.msra.mxu0 %v2347
    %2381 = vmatprep.subr.bf16.mxu0 %v2350
    %2382 = vmatpush1.bf16.msra.mxu0 %v2349
    %2383 = vmatprep.subr.bf16.mxu0 %v2352
    %2384 = vmatpush1.bf16.msra.mxu0 %v2351
    %2385 = vmatprep.subr.bf16.mxu0 %v2354
    %2386 = vmatpush1.bf16.msra.mxu0 %v2353
    %2387 = vmatprep.subr.bf16.mxu0 %v2356
    %2388 = vmatpush1.bf16.msra.mxu0 %v2355
    %2389 = vmatprep.subr.bf16.mxu0 %v2358
    %2390 = vmatpush1.bf16.msra.mxu0 %v2357
    %2391 = vmatprep.subr.bf16.mxu0 %v2360
    %2392 = vmatpush1.bf16.msra.mxu0 %v2359
    %2393 = vmatprep.subr.bf16.mxu0 0
    %2394 = vmatpush1.bf16.msra.mxu0 0
    %2395 = vmatprep.subr.bf16.mxu0 0
    %2396 = vmatpush1.bf16.msra.mxu0 0
    %2397 = vmatprep.subr.bf16.mxu0 0
    %2398 = vmatpush1.bf16.msra.mxu0 0
    %2399 = vmatprep.subr.bf16.mxu0 0
    %2400 = vmatpush1.bf16.msra.mxu0 0
    %2401 = vmatprep.subr.bf16.mxu0 0
    %2402 = vmatpush1.bf16.msra.mxu0 0
    %2403 = vmatprep.subr.bf16.mxu0 0
    %2404 = vmatpush1.bf16.msra.mxu0 0
    %2405 = vmatprep.subr.bf16.mxu0 0
    %2406 = vmatpush1.bf16.msra.mxu0 0
    %2407 = vmatprep.subr.bf16.mxu0 0
    %2408 = vmatpush1.bf16.msra.mxu0 0
    %2409 = vmatprep.mubr.bf16.mxu0 0
    %2410 = vmatmul.mubr.bf16.gmra.mrb[0].mxu0 %v2284
    %v2411 = vpop.f32.mrb[0].mxu0
    %v2412 = vadd.f32 %v2290, %v2411
    %v2413 = vpop.f32.mrb[0].mxu0
    %v2414 = vadd.f32 %v2294, %v2413
    %v2415 = vpop.f32.mrb[0].mxu0
    %v2416 = vpop.f32.mrb[0].mxu0
    %2417 = vdwg.mxu0
    %vm2418 = vcmp.gt.f32.partialorder %v2412, 0.0
    %vm2419 = vcmp.gt.f32.partialorder %v2414, 0.0
    %v2420 = vmul.f32 %v2412, 0.01
    %v2421 = vmul.f32 %v2414, 0.01
    %v2422 = vsel %vm2418, %v2412, %v2420
    %v2423 = vsel %vm2419, %v2414, %v2421
    %v2424 = vld [vmem:[%s63] sm:$0xf]
    %v2425 = vld [vmem:[%s63 + $0x4] sm:$0xf]
    %v2426 = vld [vmem:[%s63 + $0x8] sm:$0xf]
    %v2427 = vld [vmem:[%s63 + $0xc] sm:$0xf]
    %v2428 = vld [vmem:[%s63 + $0x10] sm:$0xf]
    %v2429 = vld [vmem:[%s63 + $0x14] sm:$0xf]
    %v2430 = vld [vmem:[%s63 + $0x18] sm:$0xf]
    %v2431 = vld [vmem:[%s63 + $0x1c] sm:$0xf]
    %v2432 = vld [vmem:[%s63 + $0x20] sm:$0xf]
    %v2433 = vld [vmem:[%s63 + $0x24] sm:$0xf]
    %v2434 = vld [vmem:[%s63 + $0x28] sm:$0xf]
    %v2435 = vld [vmem:[%s63 + $0x2c] sm:$0xf]
    %v2436 = vld [vmem:[%s63 + $0x30] sm:$0xf]
    %v2437 = vld [vmem:[%s63 + $0x34] sm:$0xf]
    %v2438 = vld [vmem:[%s63 + $0x38] sm:$0xf]
    %v2439 = vld [vmem:[%s63 + $0x3c] sm:$0xf]
    %v2440 = vld [vmem:[%s63 + $0x40] sm:$0xf]
    %v2441 = vld [vmem:[%s63 + $0x44] sm:$0xf]
    %v2442 = vld [vmem:[%s63 + $0x48] sm:$0xf]
    %v2443 = vld [vmem:[%s63 + $0x4c] sm:$0xf]
    %v2444 = vld [vmem:[%s63 + $0x50] sm:$0xf]
    %v2445 = vld [vmem:[%s63 + $0x54] sm:$0xf]
    %v2446 = vld [vmem:[%s63 + $0x58] sm:$0xf]
    %v2447 = vld [vmem:[%s63 + $0x5c] sm:$0xf]
    %v2448 = vld [vmem:[%s63 + $0x60] sm:$0xf]
    %v2449 = vld [vmem:[%s63 + $0x64] sm:$0xf]
    %v2450 = vld [vmem:[%s63 + $0x68] sm:$0xf]
    %v2451 = vld [vmem:[%s63 + $0x6c] sm:$0xf]
    %v2452 = vld [vmem:[%s63 + $0x70] sm:$0xf]
    %v2453 = vld [vmem:[%s63 + $0x74] sm:$0xf]
    %v2454 = vld [vmem:[%s63 + $0x78] sm:$0xf]
    %v2455 = vld [vmem:[%s63 + $0x7c] sm:$0xf]
    %v2456 = vpack.c.bf16 %v2422, %v2422
    %v2457 = vpack.c.bf16 %v2423, %v2423
    %v2458 = vld [vmem:[#allocation7] sm:$0x1]
    %v2460 = vlaneseq
    %v2461 = vshrl.u32 %v2460, 7
    %v2462 = vsub.s32 0, %v2461
    %v2463 = vrot.slane %v2458, %v2462
    %v2497 = vunpack.c.l.b16 %v2424
    %v2498 = vunpack.c.l.b16 %v2425
    %v2499 = vunpack.c.l.b16 %v2426
    %v2500 = vunpack.c.l.b16 %v2427
    %v2501 = vunpack.c.l.b16 %v2428
    %v2502 = vunpack.c.l.b16 %v2429
    %v2503 = vunpack.c.l.b16 %v2430
    %v2504 = vunpack.c.l.b16 %v2431
    %v2505 = vunpack.c.l.b16 %v2432
    %v2506 = vunpack.c.l.b16 %v2433
    %v2507 = vunpack.c.l.b16 %v2434
    %v2508 = vunpack.c.l.b16 %v2435
    %v2509 = vunpack.c.l.b16 %v2436
    %v2510 = vunpack.c.l.b16 %v2437
    %v2511 = vunpack.c.l.b16 %v2438
    %v2512 = vunpack.c.l.b16 %v2439
    %v2513 = vunpack.c.l.b16 %v2440
    %v2514 = vunpack.c.l.b16 %v2441
    %v2515 = vunpack.c.l.b16 %v2442
    %v2516 = vunpack.c.l.b16 %v2443
    %v2517 = vunpack.c.l.b16 %v2444
    %v2518 = vunpack.c.l.b16 %v2445
    %v2519 = vunpack.c.l.b16 %v2446
    %v2520 = vunpack.c.l.b16 %v2447
    %v2521 = vunpack.c.l.b16 %v2448
    %v2522 = vunpack.c.l.b16 %v2449
    %v2523 = vunpack.c.l.b16 %v2450
    %v2524 = vunpack.c.l.b16 %v2451
    %v2525 = vunpack.c.l.b16 %v2452
    %v2526 = vunpack.c.l.b16 %v2453
    %v2527 = vunpack.c.l.b16 %v2454
    %v2528 = vunpack.c.l.b16 %v2455
    %v2529 = vpack.c.b16 %v2498, %v2497
    %v2530 = vpack.c.b16 %v2500, %v2499
    %v2531 = vpack.c.b16 %v2502, %v2501
    %v2532 = vpack.c.b16 %v2504, %v2503
    %v2533 = vpack.c.b16 %v2506, %v2505
    %v2534 = vpack.c.b16 %v2508, %v2507
    %v2535 = vpack.c.b16 %v2510, %v2509
    %v2536 = vpack.c.b16 %v2512, %v2511
    %v2537 = vpack.c.b16 %v2514, %v2513
    %v2538 = vpack.c.b16 %v2516, %v2515
    %v2539 = vpack.c.b16 %v2518, %v2517
    %v2540 = vpack.c.b16 %v2520, %v2519
    %v2541 = vpack.c.b16 %v2522, %v2521
    %v2542 = vpack.c.b16 %v2524, %v2523
    %v2543 = vpack.c.b16 %v2526, %v2525
    %v2544 = vpack.c.b16 %v2528, %v2527
    %2561 = vmatprep.subr.bf16.mxu0 0
    %2562 = vmatpush1.bf16.msra.mxu0 %v2529
    %2563 = vmatprep.subr.bf16.mxu0 0
    %2564 = vmatpush1.bf16.msra.mxu0 %v2530
    %2565 = vmatprep.subr.bf16.mxu0 0
    %2566 = vmatpush1.bf16.msra.mxu0 %v2531
    %2567 = vmatprep.subr.bf16.mxu0 0
    %2568 = vmatpush1.bf16.msra.mxu0 %v2532
    %2569 = vmatprep.subr.bf16.mxu0 0
    %2570 = vmatpush1.bf16.msra.mxu0 %v2533
    %2571 = vmatprep.subr.bf16.mxu0 0
    %2572 = vmatpush1.bf16.msra.mxu0 %v2534
    %2573 = vmatprep.subr.bf16.mxu0 0
    %2574 = vmatpush1.bf16.msra.mxu0 %v2535
    %2575 = vmatprep.subr.bf16.mxu0 0
    %2576 = vmatpush1.bf16.msra.mxu0 %v2536
    %2577 = vmatprep.subr.bf16.mxu0 0
    %2578 = vmatpush1.bf16.msra.mxu0 %v2537
    %2579 = vmatprep.subr.bf16.mxu0 0
    %2580 = vmatpush1.bf16.msra.mxu0 %v2538
    %2581 = vmatprep.subr.bf16.mxu0 0
    %2582 = vmatpush1.bf16.msra.mxu0 %v2539
    %2583 = vmatprep.subr.bf16.mxu0 0
    %2584 = vmatpush1.bf16.msra.mxu0 %v2540
    %2585 = vmatprep.subr.bf16.mxu0 0
    %2586 = vmatpush1.bf16.msra.mxu0 %v2541
    %2587 = vmatprep.subr.bf16.mxu0 0
    %2588 = vmatpush1.bf16.msra.mxu0 %v2542
    %2589 = vmatprep.subr.bf16.mxu0 0
    %2590 = vmatpush1.bf16.msra.mxu0 %v2543
    %2591 = vmatprep.subr.bf16.mxu0 0
    %2592 = vmatpush1.bf16.msra.mxu0 %v2544
    %2593 = vmatprep.mubr.bf16.mxu0 %v2457
    %2594 = vmatmul.mubr.bf16.gmra.mrb[0].mxu0 %v2456
    %v2595 = vpop.f32.mrb[0].mxu0
    %v2596 = vadd.f32 %v2463, %v2595
    %v2597 = vpop.f32.mrb[0].mxu0
    %v2598 = vpop.f32.mrb[0].mxu0
    %v2599 = vpop.f32.mrb[0].mxu0
    %2600 = vdwg.mxu0
    %v2601 = vld [vmem:[%s7] sm:$0xf]
    %2603 = vset.pattern.permute.xlu0 0
    %2604 = vperm.xlu0 %2603, %v2601
    %v2605 = vpop.permute.xlu0 %2604
    %v2607 = vmul.f32 %v2596, %v2605
    %vm2608 = vcmask 27648
    %2609 = vst.msk [vmem:[#allocation8] sm:$0xf] %vm2608, %v2607
    // Predicated region
    $region153: #{gsgm_forward.5} parent=1 // pred_check
      _
    $region154: #{gsgm_forward.5} parent=1 // pred_check_branch
      %2611 = sbr.rel (0) target = $region156
    $region155: #{gsgm_forward.5} parent=1 // pred_region
      %s2613 = ssub.s32 64, 64
      %2614 = vsyncadd [#allocation4], %s2613
      %s2616 = sshll.u32 [#allocation8], 4
      %s2617 = int_to_ptr.vmem [resolvable:$true] %s2616
      %2619 = dma.vmem_to_hbm [thread:$0]  %s2617, 64, %s67, [#allocation4]
    $region156: #{gsgm_forward.5} parent=1 // pred_fallthru
      _
    // Predicated region
    $region157: #{gsgm_forward.5} parent=1 // pred_check
      _
    $region158: #{gsgm_forward.5} parent=1 // pred_check_branch
      %2621 = sbr.rel (0) target = $region160
    $region159: #{gsgm_forward.5} parent=1 // pred_region
      %2622 = dma.done [#allocation4], 64
    $region160: #{gsgm_forward.5} parent=1 // pred_fallthru
      _
    %2623 = vsyncpa [#allocation3], 1
    %2624 = vsyncpa [#allocation6], 1
    %2625 = vsyncpa [#allocation4], 1

</llo_original>
